<compile_context>
chip_gen: v5e
topology: v5e:2x2
jax: 0.10.0
libtpu: 0.0.40
codegen_flags: <defaults>
</compile_context>

<pallas_src>
import math

import jax
import jax.numpy as jnp
from jax.experimental import pallas as pl
from jax.experimental.pallas import tpu as pltpu

LEAKY_SLOPE = 0.1
BN_EPS = 1e-5


# ----------------------------------------------------------------------------
# Generation-specific configuration & tiling helpers
# ----------------------------------------------------------------------------
_CFG = None


def _config():
    """Scoped-VMEM budget and row-tile target per TPU generation."""
    global _CFG
    if _CFG is None:
        cap = 64 * 1024 * 1024
        try:
            info = pltpu.get_tpu_info()
            cap = int(getattr(info, "vmem_capacity_bytes", cap))
        except Exception:
            pass
        if cap >= 100 * 1024 * 1024:      # v5e / v6e: 128 MiB physical VMEM
            _CFG = {"vmem_limit": 96 * 1024 * 1024, "rows_target": 2048}
        else:                             # v7x: 64 MiB physical VMEM
            _CFG = {"vmem_limit": 40 * 1024 * 1024, "rows_target": 1024}
    return _CFG


def _compiler_params(semantics, vmem_limit):
    return pltpu.CompilerParams(dimension_semantics=semantics,
                                vmem_limit_bytes=vmem_limit)


def _pick_row_tile(m, target):
    """Row tile (multiple of 8, <= target) and padded row count (no full-dim fallback)."""
    m8 = ((m + 7) // 8) * 8
    if m8 <= target:
        return m8, m8
    n_tiles = -(-m8 // target)                  # ceil
    tm = ((-(-m8 // n_tiles) + 7) // 8) * 8     # balance tiles, round to 8
    return tm, tm * n_tiles


def _pad_rows(x2d, m_pad):
    m = x2d.shape[0]
    if m_pad == m:
        return x2d
    return jnp.pad(x2d, ((0, m_pad - m), (0, 0)))


def _pick_conv_row_tile(h, w, cin, cmid, cout, rows_target, vmem_limit):
    """Largest row tile dividing h whose per-tile working set stays bounded."""
    best = 1
    for tr in range(1, h + 1):
        if h % tr:
            continue
        rows = tr * w
        tile_bytes = rows * (9 * cin * 2 + cmid * 4 + cout * 4) * 2
        if rows <= rows_target and tile_bytes <= vmem_limit // 3:
            best = tr
    return best


# ----------------------------------------------------------------------------
# Pallas kernels
# ----------------------------------------------------------------------------
def _c1_w3bot_kernel(x_ref, w1_ref, s1_ref, b1_ref, w3b_ref, o_ref):
    # p_low = leaky(bn1(x @ W1)) @ W3_bot   (all at low resolution)
    y = jnp.dot(x_ref[...], w1_ref[...], preferred_element_type=jnp.float32)
    y = y * s1_ref[...] + b1_ref[...]
    y = jnp.where(y > 0, y, LEAKY_SLOPE * y)
    p = jnp.dot(y.astype(jnp.bfloat16), w3b_ref[...],
                preferred_element_type=jnp.float32)
    o_ref[...] = p.astype(o_ref.dtype)


def _c2_add_c3_kernel(xup_ref, p_ref, w2_ref, s2_ref, b2_ref,
                      w3t_ref, s3_ref, b3_ref, o_ref):
    # x3 = leaky(bn3( leaky(bn2(x_up @ W2)) @ W3_top + up2(x1 @ W3_bot) ))
    t = jnp.dot(xup_ref[...], w2_ref[...], preferred_element_type=jnp.float32)
    t = t * s2_ref[...] + b2_ref[...]
    t = jnp.where(t > 0, t, LEAKY_SLOPE * t)
    y = jnp.dot(t.astype(jnp.bfloat16), w3t_ref[...],
                preferred_element_type=jnp.float32)
    y = y + p_ref[...].astype(jnp.float32)
    y = y * s3_ref[...] + b3_ref[...]
    o_ref[...] = jnp.where(y > 0, y, LEAKY_SLOPE * y).astype(o_ref.dtype)


def _im2col_conv3_conv1_kernel(xp_ref, w3_ref, s3_ref, b3_ref,
                               w1_ref, s1_ref, b1_ref, o_ref):
    # xp_ref: (1, H+2, W+2, Cin) padded image (resident across row tiles)
    # w3_ref: (9*Cin, Cmid)  w1_ref: (Cmid, Cout)  o_ref: (1, tr, W, Cout)
    _, tr, W, Cout = o_ref.shape
    Cin = xp_ref.shape[-1]
    r0 = pl.multiple_of(pl.program_id(1) * tr, tr)
    # im2col: gather the 9 shifted windows once, one big-K MXU matmul.
    taps = []
    for kh in range(3):
        for kw in range(3):
            taps.append(xp_ref[0, pl.ds(r0 + kh, tr), kw:kw + W, :])
    patch = jnp.concatenate(taps, axis=-1).reshape(tr * W, 9 * Cin)
    y = jnp.dot(patch, w3_ref[...], preferred_element_type=jnp.float32)
    y = y * s3_ref[...] + b3_ref[...]
    y = jnp.where(y > 0, y, LEAKY_SLOPE * y)
    z = jnp.dot(y.astype(jnp.bfloat16), w1_ref[...],
                preferred_element_type=jnp.float32)
    z = z * s1_ref[...] + b1_ref[...]
    z = jnp.where(z > 0, z, LEAKY_SLOPE * z)
    o_ref[...] = z.reshape(1, tr, W, Cout).astype(o_ref.dtype)


# ----------------------------------------------------------------------------
# Wrappers (pallas_call plumbing)
# ----------------------------------------------------------------------------
def fused_c1_w3bot(x_nhwc, c1_params, w3_bot, out_dtype=jnp.bfloat16):
    cfg = _config()
    w1, s1, b1 = c1_params                     # (in_c, half)
    N, H, W, Cin = x_nhwc.shape
    Ch = w1.shape[1]
    M = N * H * W
    tm, Mp = _pick_row_tile(M, cfg["rows_target"])
    xm = _pad_rows(x_nhwc.reshape(M, Cin), Mp)
    cost = pl.CostEstimate(
        flops=2 * M * (Cin * Ch + Ch * Ch), transcendentals=0,
        bytes_accessed=2 * Mp * (Cin + Ch) + 2 * (Cin * Ch + Ch * Ch) + 8 * Ch)
    out = pl.pallas_call(
        _c1_w3bot_kernel,
        out_shape=jax.ShapeDtypeStruct((Mp, Ch), out_dtype),
        grid=(Mp // tm,),
        in_specs=[pl.BlockSpec((tm, Cin), lambda i: (i, 0)),
                  pl.BlockSpec((Cin, Ch), lambda i: (0, 0)),
                  pl.BlockSpec((1, Ch), lambda i: (0, 0)),
                  pl.BlockSpec((1, Ch), lambda i: (0, 0)),
                  pl.BlockSpec((Ch, Ch), lambda i: (0, 0))],
        out_specs=pl.BlockSpec((tm, Ch), lambda i: (i, 0)),
        compiler_params=_compiler_params(("parallel",), cfg["vmem_limit"]),
        cost_estimate=cost,
    )(xm, w1, s1.reshape(1, Ch), b1.reshape(1, Ch), w3_bot)
    return out[:M].reshape(N, H, W, Ch)


def fused_c2_add_c3(x_up, p_up, c2_params, c3_top, out_dtype=jnp.bfloat16):
    cfg = _config()
    w2, s2, b2 = c2_params                     # (in_c, half)
    w3t, s3, b3 = c3_top                       # (half, half)
    N, H, W, Cin = x_up.shape
    Ch = w2.shape[1]
    M = N * H * W
    tm, Mp = _pick_row_tile(M, cfg["rows_target"])
    xu = _pad_rows(x_up.reshape(M, Cin), Mp)
    pm = _pad_rows(p_up.reshape(M, Ch), Mp)
    cost = pl.CostEstimate(
        flops=2 * M * (Cin * Ch + Ch * Ch), transcendentals=0,
        bytes_accessed=2 * Mp * (Cin + 2 * Ch)
                       + 2 * (Cin * Ch + Ch * Ch) + 16 * Ch)
    out = pl.pallas_call(
        _c2_add_c3_kernel,
        out_shape=jax.ShapeDtypeStruct((Mp, Ch), out_dtype),
        grid=(Mp // tm,),
        in_specs=[pl.BlockSpec((tm, Cin), lambda i: (i, 0)),
                  pl.BlockSpec((tm, Ch), lambda i: (i, 0)),
                  pl.BlockSpec((Cin, Ch), lambda i: (0, 0)),
                  pl.BlockSpec((1, Ch), lambda i: (0, 0)),
                  pl.BlockSpec((1, Ch), lambda i: (0, 0)),
                  pl.BlockSpec((Ch, Ch), lambda i: (0, 0)),
                  pl.BlockSpec((1, Ch), lambda i: (0, 0)),
                  pl.BlockSpec((1, Ch), lambda i: (0, 0))],
        out_specs=pl.BlockSpec((tm, Ch), lambda i: (i, 0)),
        compiler_params=_compiler_params(("parallel",), cfg["vmem_limit"]),
        cost_estimate=cost,
    )(xu, pm, w2, s2.reshape(1, Ch), b2.reshape(1, Ch),
      w3t, s3.reshape(1, Ch), b3.reshape(1, Ch))
    return out[:M].reshape(N, H, W, Ch)


def fused_conv3_conv1(x_nhwc, c3x3_params, c1x1_params, out_dtype=jnp.bfloat16):
    cfg = _config()
    w3, s3, b3 = c3x3_params                   # (3, 3, Cin, Cmid)
    w1, s1, b1 = c1x1_params                   # (Cmid, Cout)
    N, H, W, Cin = x_nhwc.shape
    Cmid = w3.shape[-1]
    Cout = w1.shape[1]
    tr = _pick_conv_row_tile(H, W, Cin, Cmid, Cout,
                             cfg["rows_target"], cfg["vmem_limit"])
    # Spatial zero-pad once in the wrapper -> no in-kernel zero-fill / strided store.
    x_pad = jnp.pad(x_nhwc, ((0, 0), (1, 1), (1, 1), (0, 0)))
    w3r = w3.reshape(9 * Cin, Cmid)            # im2col weight layout (kh,kw,cin)
    ob = 4 if out_dtype == jnp.float32 else 2
    cost = pl.CostEstimate(
        flops=2 * N * H * W * (9 * Cin * Cmid + Cmid * Cout),
        transcendentals=0,
        bytes_accessed=2 * N * (H + 2) * (W + 2) * Cin
                       + 2 * (9 * Cin * Cmid + Cmid * Cout)
                       + ob * N * H * W * Cout + 8 * (Cmid + Cout))
    out = pl.pallas_call(
        _im2col_conv3_conv1_kernel,
        out_shape=jax.ShapeDtypeStruct((N, H, W, Cout), out_dtype),
        grid=(N, H // tr),
        in_specs=[pl.BlockSpec((1, H + 2, W + 2, Cin), lambda b, r: (b, 0, 0, 0)),
                  pl.BlockSpec((9 * Cin, Cmid), lambda b, r: (0, 0)),
                  pl.BlockSpec((1, Cmid), lambda b, r: (0, 0)),
                  pl.BlockSpec((1, Cmid), lambda b, r: (0, 0)),
                  pl.BlockSpec((Cmid, Cout), lambda b, r: (0, 0)),
                  pl.BlockSpec((1, Cout), lambda b, r: (0, 0)),
                  pl.BlockSpec((1, Cout), lambda b, r: (0, 0))],
        out_specs=pl.BlockSpec((1, tr, W, Cout), lambda b, r: (b, r, 0, 0)),
        compiler_params=_compiler_params(("parallel", "arbitrary"),
                                         cfg["vmem_limit"]),
        cost_estimate=cost,
    )(x_pad, w3r, s3.reshape(1, Cmid), b3.reshape(1, Cmid),
      w1, s1.reshape(1, Cout), b1.reshape(1, Cout))
    return out


def upsample2x_nearest(x_nhwc):
    # nn.Upsample(scale_factor=2, mode='nearest') on NHWC; left to XLA.
    return jnp.repeat(jnp.repeat(x_nhwc, 2, axis=1), 2, axis=2)


# ----------------------------------------------------------------------------
# Parameter construction (deterministic synthetic init, eval-mode BN folded)
# ----------------------------------------------------------------------------
def make_convblock_params(key, in_c, out_c, k):
    kconv, kg, kb = jax.random.split(key, 3)
    fan_in = in_c * k * k
    bound = 1.0 / math.sqrt(fan_in)
    w_oihw = jax.random.uniform(kconv, (out_c, in_c, k, k), jnp.float32,
                                -bound, bound)
    gamma = 1.0 + 0.1 * jax.random.normal(kg, (out_c,), jnp.float32)
    beta = 0.1 * jax.random.normal(kb, (out_c,), jnp.float32)
    running_mean = jnp.zeros((out_c,), jnp.float32)
    running_var = jnp.ones((out_c,), jnp.float32)
    scale = gamma / jnp.sqrt(running_var + BN_EPS)
    bias = beta - running_mean * scale
    w_hwio = jnp.transpose(w_oihw, (2, 3, 1, 0)).astype(jnp.bfloat16)
    if k == 1:
        return w_hwio.reshape(in_c, out_c), scale, bias
    return w_hwio, scale, bias


def make_pan_params(key, in_c):
    out_c = in_c // 2
    keys = jax.random.split(key, 7)
    return {
        "c1": make_convblock_params(keys[0], in_c, out_c, 1),
        "c2": make_convblock_params(keys[1], in_c, out_c, 1),
        "c3": make_convblock_params(keys[2], in_c, out_c, 1),
        "c4": make_convblock_params(keys[3], out_c, in_c, 3),
        "c5": make_convblock_params(keys[4], in_c, out_c, 1),
        "c6": make_convblock_params(keys[5], out_c, in_c, 3),
        "c7": make_convblock_params(keys[6], in_c, out_c, 1),
    }


# ----------------------------------------------------------------------------
# PAN_Layer forward (Pallas) and pure-JAX reference
# ----------------------------------------------------------------------------
def pan_layer_forward(params, x_to_upsample, x_upsampled):
    x_to_upsample = x_to_upsample.astype(jnp.bfloat16)
    x_upsampled = x_upsampled.astype(jnp.bfloat16)
    w3, s3, b3 = params["c3"]                       # (2*half, half)
    half = w3.shape[1]
    w3_top, w3_bot = w3[:half], w3[half:]           # cat([x2_2, up2(x1)]) split
    # c1 + commuted W3_bot matmul at LOW resolution (x1 never hits HBM).
    p_low = fused_c1_w3bot(x_to_upsample, params["c1"], w3_bot)
    p_up = upsample2x_nearest(p_low)                # up2(x1 @ W3_bot)
    x3 = fused_c2_add_c3(x_upsampled, p_up, params["c2"], (w3_top, s3, b3))
    x5 = fused_conv3_conv1(x3, params["c4"], params["c5"])       # c4 + c5
    x7 = fused_conv3_conv1(x5, params["c6"], params["c7"],       # c6 + c7
                           out_dtype=jnp.float32)
    return x7


def pan_layer_reference(params, x_to_upsample, x_upsampled):
    """Pure-JAX f32 reference matching the PyTorch module (eval mode)."""
    def cb(x, p, k):
        w, s, b = p
        if k == 1:
            y = jnp.einsum("nhwc,cd->nhwd", x, w.astype(jnp.float32))
        else:
            y = jax.lax.conv_general_dilated(
                x.astype(jnp.float32), w.astype(jnp.float32),
                window_strides=(1, 1), padding="SAME",
                dimension_numbers=("NHWC", "HWIO", "NHWC"))
        y = y * s + b
        return jnp.where(y > 0, y, LEAKY_SLOPE * y)

    x1 = cb(x_to_upsample, params["c1"], 1)
    x2_1 = upsample2x_nearest(x1)
    x2_2 = cb(x_upsampled, params["c2"], 1)
    x2 = jnp.concatenate([x2_2, x2_1], axis=-1)
    x3 = cb(x2, params["c3"], 1)
    x4 = cb(x3, params["c4"], 3)
    x5 = cb(x4, params["c5"], 1)
    x6 = cb(x5, params["c6"], 3)
    x7 = cb(x6, params["c7"], 1)
    return x7


if __name__ == "__main__":
    key = jax.random.PRNGKey(0)
    k_in1, k_in2, k_params = jax.random.split(key, 3)

    in_c = 8                       # out_c = 4
    N, H, W = 2, 8, 8              # x_to_upsample spatial; x_upsampled is 2H x 2W

    # NHWC inputs (PyTorch NCHW equivalents: (2, 8, 8, 8) / (2, 8, 16, 16))
    x_to_upsample = jax.random.normal(k_in1, (N, H, W, in_c), jnp.float32)
    x_upsampled = jax.random.normal(k_in2, (N, 2 * H, 2 * W, in_c), jnp.float32)

    params = make_pan_params(k_params, in_c)

    out = jax.jit(pan_layer_forward)(params, x_to_upsample, x_upsampled)
    out = jax.block_until_ready(out)

    assert out.shape == (N, 2 * H, 2 * W, in_c // 2), out.shape
    assert bool(jnp.all(jnp.isfinite(out)))

    # Tolerance-checked reference comparison (bf16 activations vs f32 ref).
    ref = pan_layer_reference(params, x_to_upsample, x_upsampled)
    err = float(jnp.max(jnp.abs(out - ref)))
    tol = 0.05 * (1.0 + float(jnp.max(jnp.abs(ref))))
    assert err < tol, f"max abs error {err} exceeds tolerance {tol}"

    print("KERNEL_OK")
</pallas_src>

<mosaic_0001>
module attributes {stable_mosaic.version = 11 : i64} {
  func.func @_c1_w3bot_kernel(%arg0: i32, %arg1: memref<128x8xbf16, #tpu.memory_space<vmem>>, %arg2: memref<8x4xbf16, #tpu.memory_space<vmem>>, %arg3: memref<1x4xf32, #tpu.memory_space<vmem>>, %arg4: memref<1x4xf32, #tpu.memory_space<vmem>>, %arg5: memref<4x4xbf16, #tpu.memory_space<vmem>>, %arg6: memref<128x4xbf16, #tpu.memory_space<vmem>>) attributes {dimension_semantics = [#tpu.dimension_semantics<parallel>], iteration_bounds = array<i64: 1>, scalar_prefetch = 0 : i64, scratch_operands = 0 : i64, tpu.core_type = #tpu.core_type<tc>, window_params = [{transform_indices = @transform_0, window_bounds = array<i64: 128, 8>}, {pipeline_mode = #tpu.pipeline_mode<synchronous>, transform_indices = @transform_1, window_bounds = array<i64: 8, 4>}, {pipeline_mode = #tpu.pipeline_mode<synchronous>, transform_indices = @transform_2, window_bounds = array<i64: 1, 4>}, {pipeline_mode = #tpu.pipeline_mode<synchronous>, transform_indices = @transform_3, window_bounds = array<i64: 1, 4>}, {pipeline_mode = #tpu.pipeline_mode<synchronous>, transform_indices = @transform_4, window_bounds = array<i64: 4, 4>}, {transform_indices = @transform_5, window_bounds = array<i64: 128, 4>}]} {
    %c0 = arith.constant 0 : index
    %c0_0 = arith.constant 0 : index
    %0 = vector.load %arg1[%c0, %c0_0] : memref<128x8xbf16, #tpu.memory_space<vmem>>, vector<128x8xbf16>
    %c0_1 = arith.constant 0 : index
    %c0_2 = arith.constant 0 : index
    %1 = vector.load %arg2[%c0_1, %c0_2] : memref<8x4xbf16, #tpu.memory_space<vmem>>, vector<8x4xbf16>
    %cst = arith.constant dense<0.000000e+00> : vector<128x4xf32>
    %2 = tpu.matmul %0, %1, %cst {dimension_numbers = #tpu.dot_dimension_numbers<[1], [0], [0], [1], [0, 0, 1, 1], [], []>} : vector<128x8xbf16>, vector<8x4xbf16>, vector<128x4xf32> -> vector<128x4xf32>
    %c0_3 = arith.constant 0 : index
    %c0_4 = arith.constant 0 : index
    %3 = vector.load %arg3[%c0_3, %c0_4] : memref<1x4xf32, #tpu.memory_space<vmem>>, vector<1x4xf32>
    %4 = vector.broadcast %3 : vector<1x4xf32> to vector<128x4xf32>
    %5 = arith.mulf %2, %4 : vector<128x4xf32>
    %c0_5 = arith.constant 0 : index
    %c0_6 = arith.constant 0 : index
    %6 = vector.load %arg4[%c0_5, %c0_6] : memref<1x4xf32, #tpu.memory_space<vmem>>, vector<1x4xf32>
    %7 = vector.broadcast %6 : vector<1x4xf32> to vector<128x4xf32>
    %8 = arith.addf %5, %7 : vector<128x4xf32>
    %cst_7 = arith.constant 0.000000e+00 : f32
    %9 = vector.broadcast %cst_7 : f32 to vector<128x4xf32>
    %10 = arith.cmpf ogt, %8, %9 : vector<128x4xf32>
    %cst_8 = arith.constant 1.000000e-01 : f32
    %11 = vector.broadcast %cst_8 : f32 to vector<128x4xf32>
    %12 = arith.mulf %11, %8 : vector<128x4xf32>
    %13 = arith.select %10, %8, %12 : vector<128x4xi1>, vector<128x4xf32>
    %14 = arith.truncf %13 : vector<128x4xf32> to vector<128x4xbf16>
    %c0_9 = arith.constant 0 : index
    %c0_10 = arith.constant 0 : index
    %15 = vector.load %arg5[%c0_9, %c0_10] : memref<4x4xbf16, #tpu.memory_space<vmem>>, vector<4x4xbf16>
    %cst_11 = arith.constant dense<0.000000e+00> : vector<128x4xf32>
    %16 = tpu.matmul %14, %15, %cst_11 {dimension_numbers = #tpu.dot_dimension_numbers<[1], [0], [0], [1], [0, 0, 1, 1], [], []>} : vector<128x4xbf16>, vector<4x4xbf16>, vector<128x4xf32> -> vector<128x4xf32>
    %17 = arith.truncf %16 : vector<128x4xf32> to vector<128x4xbf16>
    %c0_12 = arith.constant 0 : index
    %c0_13 = arith.constant 0 : index
    %18 = vector.load %arg6[%c0_12, %c0_13] : memref<128x4xbf16, #tpu.memory_space<vmem>>, vector<128x4xbf16>
    tpu.vector_store %arg6[%c0_12, %c0_13], %17 {strides = array<i32>} : memref<128x4xbf16, #tpu.memory_space<vmem>>, vector<128x4xbf16>,
    return
  }
  func.func @transform_0(%arg0: i32) -> (i32, i32) {
    %c0_i32 = arith.constant 0 : i32
    %c0_i32_0 = arith.constant 0 : i32
    return %arg0, %c0_i32 : i32, i32
  }
  func.func @transform_1(%arg0: i32) -> (i32, i32) {
    %c0_i32 = arith.constant 0 : i32
    %c0_i32_0 = arith.constant 0 : i32
    %c0_i32_1 = arith.constant 0 : i32
    return %c0_i32, %c0_i32_0 : i32, i32
  }
  func.func @transform_2(%arg0: i32) -> (i32, i32) {
    %c0_i32 = arith.constant 0 : i32
    %c0_i32_0 = arith.constant 0 : i32
    %c0_i32_1 = arith.constant 0 : i32
    return %c0_i32, %c0_i32_0 : i32, i32
  }
  func.func @transform_3(%arg0: i32) -> (i32, i32) {
    %c0_i32 = arith.constant 0 : i32
    %c0_i32_0 = arith.constant 0 : i32
    %c0_i32_1 = arith.constant 0 : i32
    return %c0_i32, %c0_i32_0 : i32, i32
  }
  func.func @transform_4(%arg0: i32) -> (i32, i32) {
    %c0_i32 = arith.constant 0 : i32
    %c0_i32_0 = arith.constant 0 : i32
    %c0_i32_1 = arith.constant 0 : i32
    return %c0_i32, %c0_i32_0 : i32, i32
  }
  func.func @transform_5(%arg0: i32) -> (i32, i32) {
    %c0_i32 = arith.constant 0 : i32
    %c0_i32_0 = arith.constant 0 : i32
    return %arg0, %c0_i32 : i32, i32
  }
}

module attributes {stable_mosaic.version = 11 : i64} {
  func.func @_c2_add_c3_kernel(%arg0: i32, %arg1: memref<512x8xbf16, #tpu.memory_space<vmem>>, %arg2: memref<512x4xbf16, #tpu.memory_space<vmem>>, %arg3: memref<8x4xbf16, #tpu.memory_space<vmem>>, %arg4: memref<1x4xf32, #tpu.memory_space<vmem>>, %arg5: memref<1x4xf32, #tpu.memory_space<vmem>>, %arg6: memref<4x4xbf16, #tpu.memory_space<vmem>>, %arg7: memref<1x4xf32, #tpu.memory_space<vmem>>, %arg8: memref<1x4xf32, #tpu.memory_space<vmem>>, %arg9: memref<512x4xbf16, #tpu.memory_space<vmem>>) attributes {dimension_semantics = [#tpu.dimension_semantics<parallel>], iteration_bounds = array<i64: 1>, scalar_prefetch = 0 : i64, scratch_operands = 0 : i64, tpu.core_type = #tpu.core_type<tc>, window_params = [{transform_indices = @transform_0, window_bounds = array<i64: 512, 8>}, {transform_indices = @transform_1, window_bounds = array<i64: 512, 4>}, {pipeline_mode = #tpu.pipeline_mode<synchronous>, transform_indices = @transform_2, window_bounds = array<i64: 8, 4>}, {pipeline_mode = #tpu.pipeline_mode<synchronous>, transform_indices = @transform_3, window_bounds = array<i64: 1, 4>}, {pipeline_mode = #tpu.pipeline_mode<synchronous>, transform_indices = @transform_4, window_bounds = array<i64: 1, 4>}, {pipeline_mode = #tpu.pipeline_mode<synchronous>, transform_indices = @transform_5, window_bounds = array<i64: 4, 4>}, {pipeline_mode = #tpu.pipeline_mode<synchronous>, transform_indices = @transform_6, window_bounds = array<i64: 1, 4>}, {pipeline_mode = #tpu.pipeline_mode<synchronous>, transform_indices = @transform_7, window_bounds = array<i64: 1, 4>}, {transform_indices = @transform_8, window_bounds = array<i64: 512, 4>}]} {
    %c0 = arith.constant 0 : index
    %c0_0 = arith.constant 0 : index
    %0 = vector.load %arg1[%c0, %c0_0] : memref<512x8xbf16, #tpu.memory_space<vmem>>, vector<512x8xbf16>
    %c0_1 = arith.constant 0 : index
    %c0_2 = arith.constant 0 : index
    %1 = vector.load %arg3[%c0_1, %c0_2] : memref<8x4xbf16, #tpu.memory_space<vmem>>, vector<8x4xbf16>
    %cst = arith.constant dense<0.000000e+00> : vector<512x4xf32>
    %2 = tpu.matmul %0, %1, %cst {dimension_numbers = #tpu.dot_dimension_numbers<[1], [0], [0], [1], [0, 0, 1, 1], [], []>} : vector<512x8xbf16>, vector<8x4xbf16>, vector<512x4xf32> -> vector<512x4xf32>
    %c0_3 = arith.constant 0 : index
    %c0_4 = arith.constant 0 : index
    %3 = vector.load %arg4[%c0_3, %c0_4] : memref<1x4xf32, #tpu.memory_space<vmem>>, vector<1x4xf32>
    %4 = vector.broadcast %3 : vector<1x4xf32> to vector<512x4xf32>
    %5 = arith.mulf %2, %4 : vector<512x4xf32>
    %c0_5 = arith.constant 0 : index
    %c0_6 = arith.constant 0 : index
    %6 = vector.load %arg5[%c0_5, %c0_6] : memref<1x4xf32, #tpu.memory_space<vmem>>, vector<1x4xf32>
    %7 = vector.broadcast %6 : vector<1x4xf32> to vector<512x4xf32>
    %8 = arith.addf %5, %7 : vector<512x4xf32>
    %cst_7 = arith.constant 0.000000e+00 : f32
    %9 = vector.broadcast %cst_7 : f32 to vector<512x4xf32>
    %10 = arith.cmpf ogt, %8, %9 : vector<512x4xf32>
    %cst_8 = arith.constant 1.000000e-01 : f32
    %11 = vector.broadcast %cst_8 : f32 to vector<512x4xf32>
    %12 = arith.mulf %11, %8 : vector<512x4xf32>
    %13 = arith.select %10, %8, %12 : vector<512x4xi1>, vector<512x4xf32>
    %14 = arith.truncf %13 : vector<512x4xf32> to vector<512x4xbf16>
    %c0_9 = arith.constant 0 : index
    %c0_10 = arith.constant 0 : index
    %15 = vector.load %arg6[%c0_9, %c0_10] : memref<4x4xbf16, #tpu.memory_space<vmem>>, vector<4x4xbf16>
    %cst_11 = arith.constant dense<0.000000e+00> : vector<512x4xf32>
    %16 = tpu.matmul %14, %15, %cst_11 {dimension_numbers = #tpu.dot_dimension_numbers<[1], [0], [0], [1], [0, 0, 1, 1], [], []>} : vector<512x4xbf16>, vector<4x4xbf16>, vector<512x4xf32> -> vector<512x4xf32>
    %c0_12 = arith.constant 0 : index
    %c0_13 = arith.constant 0 : index
    %17 = vector.load %arg2[%c0_12, %c0_13] : memref<512x4xbf16, #tpu.memory_space<vmem>>, vector<512x4xbf16>
    %18 = arith.extf %17 : vector<512x4xbf16> to vector<512x4xf32>
    %19 = arith.addf %16, %18 : vector<512x4xf32>
    %c0_14 = arith.constant 0 : index
    %c0_15 = arith.constant 0 : index
    %20 = vector.load %arg7[%c0_14, %c0_15] : memref<1x4xf32, #tpu.memory_space<vmem>>, vector<1x4xf32>
    %21 = vector.broadcast %20 : vector<1x4xf32> to vector<512x4xf32>
    %22 = arith.mulf %19, %21 : vector<512x4xf32>
    %c0_16 = arith.constant 0 : index
    %c0_17 = arith.constant 0 : index
    %23 = vector.load %arg8[%c0_16, %c0_17] : memref<1x4xf32, #tpu.memory_space<vmem>>, vector<1x4xf32>
    %24 = vector.broadcast %23 : vector<1x4xf32> to vector<512x4xf32>
    %25 = arith.addf %22, %24 : vector<512x4xf32>
    %cst_18 = arith.constant 0.000000e+00 : f32
    %26 = vector.broadcast %cst_18 : f32 to vector<512x4xf32>
    %27 = arith.cmpf ogt, %25, %26 : vector<512x4xf32>
    %cst_19 = arith.constant 1.000000e-01 : f32
    %28 = vector.broadcast %cst_19 : f32 to vector<512x4xf32>
    %29 = arith.mulf %28, %25 : vector<512x4xf32>
    %30 = arith.select %27, %25, %29 : vector<512x4xi1>, vector<512x4xf32>
    %31 = arith.truncf %30 : vector<512x4xf32> to vector<512x4xbf16>
    %c0_20 = arith.constant 0 : index
    %c0_21 = arith.constant 0 : index
    %32 = vector.load %arg9[%c0_20, %c0_21] : memref<512x4xbf16, #tpu.memory_space<vmem>>, vector<512x4xbf16>
    tpu.vector_store %arg9[%c0_20, %c0_21], %31 {strides = array<i32>} : memref<512x4xbf16, #tpu.memory_space<vmem>>, vector<512x4xbf16>,
    return
  }
  func.func @transform_0(%arg0: i32) -> (i32, i32) {
    %c0_i32 = arith.constant 0 : i32
    %c0_i32_0 = arith.constant 0 : i32
    return %arg0, %c0_i32 : i32, i32
  }
  func.func @transform_1(%arg0: i32) -> (i32, i32) {
    %c0_i32 = arith.constant 0 : i32
    %c0_i32_0 = arith.constant 0 : i32
    return %arg0, %c0_i32 : i32, i32
  }
  func.func @transform_2(%arg0: i32) -> (i32, i32) {
    %c0_i32 = arith.constant 0 : i32
    %c0_i32_0 = arith.constant 0 : i32
    %c0_i32_1 = arith.constant 0 : i32
    return %c0_i32, %c0_i32_0 : i32, i32
  }
  func.func @transform_3(%arg0: i32) -> (i32, i32) {
    %c0_i32 = arith.constant 0 : i32
    %c0_i32_0 = arith.constant 0 : i32
    %c0_i32_1 = arith.constant 0 : i32
    return %c0_i32, %c0_i32_0 : i32, i32
  }
  func.func @transform_4(%arg0: i32) -> (i32, i32) {
    %c0_i32 = arith.constant 0 : i32
    %c0_i32_0 = arith.constant 0 : i32
    %c0_i32_1 = arith.constant 0 : i32
    return %c0_i32, %c0_i32_0 : i32, i32
  }
  func.func @transform_5(%arg0: i32) -> (i32, i32) {
    %c0_i32 = arith.constant 0 : i32
    %c0_i32_0 = arith.constant 0 : i32
    %c0_i32_1 = arith.constant 0 : i32
    return %c0_i32, %c0_i32_0 : i32, i32
  }
  func.func @transform_6(%arg0: i32) -> (i32, i32) {
    %c0_i32 = arith.constant 0 : i32
    %c0_i32_0 = arith.constant 0 : i32
    %c0_i32_1 = arith.constant 0 : i32
    return %c0_i32, %c0_i32_0 : i32, i32
  }
  func.func @transform_7(%arg0: i32) -> (i32, i32) {
    %c0_i32 = arith.constant 0 : i32
    %c0_i32_0 = arith.constant 0 : i32
    %c0_i32_1 = arith.constant 0 : i32
    return %c0_i32, %c0_i32_0 : i32, i32
  }
  func.func @transform_8(%arg0: i32) -> (i32, i32) {
    %c0_i32 = arith.constant 0 : i32
    %c0_i32_0 = arith.constant 0 : i32
    return %arg0, %c0_i32 : i32, i32
  }
}

module attributes {stable_mosaic.version = 11 : i64} {
  func.func @_im2col_conv3_conv1_kernel(%arg0: i32, %arg1: i32, %arg2: memref<1x18x18x4xbf16, #tpu.memory_space<vmem>>, %arg3: memref<36x8xbf16, #tpu.memory_space<vmem>>, %arg4: memref<1x8xf32, #tpu.memory_space<vmem>>, %arg5: memref<1x8xf32, #tpu.memory_space<vmem>>, %arg6: memref<8x4xbf16, #tpu.memory_space<vmem>>, %arg7: memref<1x4xf32, #tpu.memory_space<vmem>>, %arg8: memref<1x4xf32, #tpu.memory_space<vmem>>, %arg9: memref<1x16x16x4xbf16, #tpu.memory_space<vmem>>) attributes {dimension_semantics = [#tpu.dimension_semantics<parallel>, #tpu.dimension_semantics<arbitrary>], iteration_bounds = array<i64: 2, 1>, scalar_prefetch = 0 : i64, scratch_operands = 0 : i64, tpu.core_type = #tpu.core_type<tc>, window_params = [{transform_indices = @transform_0, window_bounds = array<i64: 1, 18, 18, 4>}, {pipeline_mode = #tpu.pipeline_mode<synchronous>, transform_indices = @transform_1, window_bounds = array<i64: 36, 8>}, {pipeline_mode = #tpu.pipeline_mode<synchronous>, transform_indices = @transform_2, window_bounds = array<i64: 1, 8>}, {pipeline_mode = #tpu.pipeline_mode<synchronous>, transform_indices = @transform_3, window_bounds = array<i64: 1, 8>}, {pipeline_mode = #tpu.pipeline_mode<synchronous>, transform_indices = @transform_4, window_bounds = array<i64: 8, 4>}, {pipeline_mode = #tpu.pipeline_mode<synchronous>, transform_indices = @transform_5, window_bounds = array<i64: 1, 4>}, {pipeline_mode = #tpu.pipeline_mode<synchronous>, transform_indices = @transform_6, window_bounds = array<i64: 1, 4>}, {transform_indices = @transform_7, window_bounds = array<i64: 1, 16, 16, 4>}]} {
    %c16_i32 = arith.constant 16 : i32
    %0 = arith.muli %arg1, %c16_i32 : i32
    %1 = tpu.assume_multiple %0, 16 : i32
    %c0_i32 = arith.constant 0 : i32
    %2 = arith.addi %1, %c0_i32 : i32
    %c0 = arith.constant 0 : index
    %3 = arith.index_cast %2 : i32 to index
    %c0_0 = arith.constant 0 : index
    %c0_1 = arith.constant 0 : index
    %4 = vector.load %arg2[%c0, %3, %c0_0, %c0_1] : memref<1x18x18x4xbf16, #tpu.memory_space<vmem>>, vector<1x16x16x4xbf16>
    %5 = vector.shape_cast %4 : vector<1x16x16x4xbf16> to vector<16x16x4xbf16>
    %c0_i32_2 = arith.constant 0 : i32
    %6 = arith.addi %1, %c0_i32_2 : i32
    %c0_3 = arith.constant 0 : index
    %7 = arith.index_cast %6 : i32 to index
    %c1 = arith.constant 1 : index
    %c0_4 = arith.constant 0 : index
    %8 = vector.load %arg2[%c0_3, %7, %c1, %c0_4] : memref<1x18x18x4xbf16, #tpu.memory_space<vmem>>, vector<1x16x16x4xbf16>
    %9 = vector.shape_cast %8 : vector<1x16x16x4xbf16> to vector<16x16x4xbf16>
    %c0_i32_5 = arith.constant 0 : i32
    %10 = arith.addi %1, %c0_i32_5 : i32
    %c0_6 = arith.constant 0 : index
    %11 = arith.index_cast %10 : i32 to index
    %c2 = arith.constant 2 : index
    %c0_7 = arith.constant 0 : index
    %12 = vector.load %arg2[%c0_6, %11, %c2, %c0_7] : memref<1x18x18x4xbf16, #tpu.memory_space<vmem>>, vector<1x16x16x4xbf16>
    %13 = vector.shape_cast %12 : vector<1x16x16x4xbf16> to vector<16x16x4xbf16>
    %c1_i32 = arith.constant 1 : i32
    %14 = arith.addi %1, %c1_i32 : i32
    %c0_8 = arith.constant 0 : index
    %15 = arith.index_cast %14 : i32 to index
    %c0_9 = arith.constant 0 : index
    %c0_10 = arith.constant 0 : index
    %16 = vector.load %arg2[%c0_8, %15, %c0_9, %c0_10] : memref<1x18x18x4xbf16, #tpu.memory_space<vmem>>, vector<1x16x16x4xbf16>
    %17 = vector.shape_cast %16 : vector<1x16x16x4xbf16> to vector<16x16x4xbf16>
    %c1_i32_11 = arith.constant 1 : i32
    %18 = arith.addi %1, %c1_i32_11 : i32
    %c0_12 = arith.constant 0 : index
    %19 = arith.index_cast %18 : i32 to index
    %c1_13 = arith.constant 1 : index
    %c0_14 = arith.constant 0 : index
    %20 = vector.load %arg2[%c0_12, %19, %c1_13, %c0_14] : memref<1x18x18x4xbf16, #tpu.memory_space<vmem>>, vector<1x16x16x4xbf16>
    %21 = vector.shape_cast %20 : vector<1x16x16x4xbf16> to vector<16x16x4xbf16>
    %c1_i32_15 = arith.constant 1 : i32
    %22 = arith.addi %1, %c1_i32_15 : i32
    %c0_16 = arith.constant 0 : index
    %23 = arith.index_cast %22 : i32 to index
    %c2_17 = arith.constant 2 : index
    %c0_18 = arith.constant 0 : index
    %24 = vector.load %arg2[%c0_16, %23, %c2_17, %c0_18] : memref<1x18x18x4xbf16, #tpu.memory_space<vmem>>, vector<1x16x16x4xbf16>
    %25 = vector.shape_cast %24 : vector<1x16x16x4xbf16> to vector<16x16x4xbf16>
    %c2_i32 = arith.constant 2 : i32
    %26 = arith.addi %1, %c2_i32 : i32
    %c0_19 = arith.constant 0 : index
    %27 = arith.index_cast %26 : i32 to index
    %c0_20 = arith.constant 0 : index
    %c0_21 = arith.constant 0 : index
    %28 = vector.load %arg2[%c0_19, %27, %c0_20, %c0_21] : memref<1x18x18x4xbf16, #tpu.memory_space<vmem>>, vector<1x16x16x4xbf16>
    %29 = vector.shape_cast %28 : vector<1x16x16x4xbf16> to vector<16x16x4xbf16>
    %c2_i32_22 = arith.constant 2 : i32
    %30 = arith.addi %1, %c2_i32_22 : i32
    %c0_23 = arith.constant 0 : index
    %31 = arith.index_cast %30 : i32 to index
    %c1_24 = arith.constant 1 : index
    %c0_25 = arith.constant 0 : index
    %32 = vector.load %arg2[%c0_23, %31, %c1_24, %c0_25] : memref<1x18x18x4xbf16, #tpu.memory_space<vmem>>, vector<1x16x16x4xbf16>
    %33 = vector.shape_cast %32 : vector<1x16x16x4xbf16> to vector<16x16x4xbf16>
    %c2_i32_26 = arith.constant 2 : i32
    %34 = arith.addi %1, %c2_i32_26 : i32
    %c0_27 = arith.constant 0 : index
    %35 = arith.index_cast %34 : i32 to index
    %c2_28 = arith.constant 2 : index
    %c0_29 = arith.constant 0 : index
    %36 = vector.load %arg2[%c0_27, %35, %c2_28, %c0_29] : memref<1x18x18x4xbf16, #tpu.memory_space<vmem>>, vector<1x16x16x4xbf16>
    %37 = vector.shape_cast %36 : vector<1x16x16x4xbf16> to vector<16x16x4xbf16>
    %38 = tpu.concatenate %5, %9, %13, %17, %21, %25, %29, %33, %37 in 2 : vector<16x16x4xbf16>, vector<16x16x4xbf16>, vector<16x16x4xbf16>, vector<16x16x4xbf16>, vector<16x16x4xbf16>, vector<16x16x4xbf16>, vector<16x16x4xbf16>, vector<16x16x4xbf16>, vector<16x16x4xbf16> -> vector<16x16x36xbf16>
    %39 = vector.shape_cast %38 : vector<16x16x36xbf16> to vector<256x36xbf16>
    %c0_30 = arith.constant 0 : index
    %c0_31 = arith.constant 0 : index
    %40 = vector.load %arg3[%c0_30, %c0_31] : memref<36x8xbf16, #tpu.memory_space<vmem>>, vector<36x8xbf16>
    %cst = arith.constant dense<0.000000e+00> : vector<256x8xf32>
    %41 = tpu.matmul %39, %40, %cst {dimension_numbers = #tpu.dot_dimension_numbers<[1], [0], [0], [1], [0, 0, 1, 1], [], []>} : vector<256x36xbf16>, vector<36x8xbf16>, vector<256x8xf32> -> vector<256x8xf32>
    %c0_32 = arith.constant 0 : index
    %c0_33 = arith.constant 0 : index
    %42 = vector.load %arg4[%c0_32, %c0_33] : memref<1x8xf32, #tpu.memory_space<vmem>>, vector<1x8xf32>
    %43 = vector.broadcast %42 : vector<1x8xf32> to vector<256x8xf32>
    %44 = arith.mulf %41, %43 : vector<256x8xf32>
    %c0_34 = arith.constant 0 : index
    %c0_35 = arith.constant 0 : index
    %45 = vector.load %arg5[%c0_34, %c0_35] : memref<1x8xf32, #tpu.memory_space<vmem>>, vector<1x8xf32>
    %46 = vector.broadcast %45 : vector<1x8xf32> to vector<256x8xf32>
    %47 = arith.addf %44, %46 : vector<256x8xf32>
    %cst_36 = arith.constant 0.000000e+00 : f32
    %48 = vector.broadcast %cst_36 : f32 to vector<256x8xf32>
    %49 = arith.cmpf ogt, %47, %48 : vector<256x8xf32>
    %cst_37 = arith.constant 1.000000e-01 : f32
    %50 = vector.broadcast %cst_37 : f32 to vector<256x8xf32>
    %51 = arith.mulf %50, %47 : vector<256x8xf32>
    %52 = arith.select %49, %47, %51 : vector<256x8xi1>, vector<256x8xf32>
    %53 = arith.truncf %52 : vector<256x8xf32> to vector<256x8xbf16>
    %c0_38 = arith.constant 0 : index
    %c0_39 = arith.constant 0 : index
    %54 = vector.load %arg6[%c0_38, %c0_39] : memref<8x4xbf16, #tpu.memory_space<vmem>>, vector<8x4xbf16>
    %cst_40 = arith.constant dense<0.000000e+00> : vector<256x4xf32>
    %55 = tpu.matmul %53, %54, %cst_40 {dimension_numbers = #tpu.dot_dimension_numbers<[1], [0], [0], [1], [0, 0, 1, 1], [], []>} : vector<256x8xbf16>, vector<8x4xbf16>, vector<256x4xf32> -> vector<256x4xf32>
    %c0_41 = arith.constant 0 : index
    %c0_42 = arith.constant 0 : index
    %56 = vector.load %arg7[%c0_41, %c0_42] : memref<1x4xf32, #tpu.memory_space<vmem>>, vector<1x4xf32>
    %57 = vector.broadcast %56 : vector<1x4xf32> to vector<256x4xf32>
    %58 = arith.mulf %55, %57 : vector<256x4xf32>
    %c0_43 = arith.constant 0 : index
    %c0_44 = arith.constant 0 : index
    %59 = vector.load %arg8[%c0_43, %c0_44] : memref<1x4xf32, #tpu.memory_space<vmem>>, vector<1x4xf32>
    %60 = vector.broadcast %59 : vector<1x4xf32> to vector<256x4xf32>
    %61 = arith.addf %58, %60 : vector<256x4xf32>
    %cst_45 = arith.constant 0.000000e+00 : f32
    %62 = vector.broadcast %cst_45 : f32 to vector<256x4xf32>
    %63 = arith.cmpf ogt, %61, %62 : vector<256x4xf32>
    %cst_46 = arith.constant 1.000000e-01 : f32
    %64 = vector.broadcast %cst_46 : f32 to vector<256x4xf32>
    %65 = arith.mulf %64, %61 : vector<256x4xf32>
    %66 = arith.select %63, %61, %65 : vector<256x4xi1>, vector<256x4xf32>
    %67 = vector.shape_cast %66 : vector<256x4xf32> to vector<1x16x16x4xf32>
    %68 = arith.truncf %67 : vector<1x16x16x4xf32> to vector<1x16x16x4xbf16>
    %c0_47 = arith.constant 0 : index
    %c0_48 = arith.constant 0 : index
    %c0_49 = arith.constant 0 : index
    %c0_50 = arith.constant 0 : index
    %69 = vector.load %arg9[%c0_47, %c0_48, %c0_49, %c0_50] : memref<1x16x16x4xbf16, #tpu.memory_space<vmem>>, vector<1x16x16x4xbf16>
    tpu.vector_store %arg9[%c0_47, %c0_48, %c0_49, %c0_50], %68 {strides = array<i32>} : memref<1x16x16x4xbf16, #tpu.memory_space<vmem>>, vector<1x16x16x4xbf16>,
    return
  }
  func.func @transform_0(%arg0: i32, %arg1: i32) -> (i32, i32, i32, i32) {
    %c0_i32 = arith.constant 0 : i32
    %c0_i32_0 = arith.constant 0 : i32
    %c0_i32_1 = arith.constant 0 : i32
    %c0_i32_2 = arith.constant 0 : i32
    return %arg0, %c0_i32, %c0_i32_0, %c0_i32_1 : i32, i32, i32, i32
  }
  func.func @transform_1(%arg0: i32, %arg1: i32) -> (i32, i32) {
    %c0_i32 = arith.constant 0 : i32
    %c0_i32_0 = arith.constant 0 : i32
    %c0_i32_1 = arith.constant 0 : i32
    return %c0_i32, %c0_i32_0 : i32, i32
  }
  func.func @transform_2(%arg0: i32, %arg1: i32) -> (i32, i32) {
    %c0_i32 = arith.constant 0 : i32
    %c0_i32_0 = arith.constant 0 : i32
    %c0_i32_1 = arith.constant 0 : i32
    return %c0_i32, %c0_i32_0 : i32, i32
  }
  func.func @transform_3(%arg0: i32, %arg1: i32) -> (i32, i32) {
    %c0_i32 = arith.constant 0 : i32
    %c0_i32_0 = arith.constant 0 : i32
    %c0_i32_1 = arith.constant 0 : i32
    return %c0_i32, %c0_i32_0 : i32, i32
  }
  func.func @transform_4(%arg0: i32, %arg1: i32) -> (i32, i32) {
    %c0_i32 = arith.constant 0 : i32
    %c0_i32_0 = arith.constant 0 : i32
    %c0_i32_1 = arith.constant 0 : i32
    return %c0_i32, %c0_i32_0 : i32, i32
  }
  func.func @transform_5(%arg0: i32, %arg1: i32) -> (i32, i32) {
    %c0_i32 = arith.constant 0 : i32
    %c0_i32_0 = arith.constant 0 : i32
    %c0_i32_1 = arith.constant 0 : i32
    return %c0_i32, %c0_i32_0 : i32, i32
  }
  func.func @transform_6(%arg0: i32, %arg1: i32) -> (i32, i32) {
    %c0_i32 = arith.constant 0 : i32
    %c0_i32_0 = arith.constant 0 : i32
    %c0_i32_1 = arith.constant 0 : i32
    return %c0_i32, %c0_i32_0 : i32, i32
  }
  func.func @transform_7(%arg0: i32, %arg1: i32) -> (i32, i32, i32, i32) {
    %c0_i32 = arith.constant 0 : i32
    %c0_i32_0 = arith.constant 0 : i32
    %c0_i32_1 = arith.constant 0 : i32
    return %arg0, %arg1, %c0_i32, %c0_i32_0 : i32, i32, i32, i32
  }
}

module attributes {stable_mosaic.version = 11 : i64} {
  func.func @_im2col_conv3_conv1_kernel(%arg0: i32, %arg1: i32, %arg2: memref<1x18x18x4xbf16, #tpu.memory_space<vmem>>, %arg3: memref<36x8xbf16, #tpu.memory_space<vmem>>, %arg4: memref<1x8xf32, #tpu.memory_space<vmem>>, %arg5: memref<1x8xf32, #tpu.memory_space<vmem>>, %arg6: memref<8x4xbf16, #tpu.memory_space<vmem>>, %arg7: memref<1x4xf32, #tpu.memory_space<vmem>>, %arg8: memref<1x4xf32, #tpu.memory_space<vmem>>, %arg9: memref<1x16x16x4xf32, #tpu.memory_space<vmem>>) attributes {dimension_semantics = [#tpu.dimension_semantics<parallel>, #tpu.dimension_semantics<arbitrary>], iteration_bounds = array<i64: 2, 1>, scalar_prefetch = 0 : i64, scratch_operands = 0 : i64, tpu.core_type = #tpu.core_type<tc>, window_params = [{transform_indices = @transform_0, window_bounds = array<i64: 1, 18, 18, 4>}, {pipeline_mode = #tpu.pipeline_mode<synchronous>, transform_indices = @transform_1, window_bounds = array<i64: 36, 8>}, {pipeline_mode = #tpu.pipeline_mode<synchronous>, transform_indices = @transform_2, window_bounds = array<i64: 1, 8>}, {pipeline_mode = #tpu.pipeline_mode<synchronous>, transform_indices = @transform_3, window_bounds = array<i64: 1, 8>}, {pipeline_mode = #tpu.pipeline_mode<synchronous>, transform_indices = @transform_4, window_bounds = array<i64: 8, 4>}, {pipeline_mode = #tpu.pipeline_mode<synchronous>, transform_indices = @transform_5, window_bounds = array<i64: 1, 4>}, {pipeline_mode = #tpu.pipeline_mode<synchronous>, transform_indices = @transform_6, window_bounds = array<i64: 1, 4>}, {transform_indices = @transform_7, window_bounds = array<i64: 1, 16, 16, 4>}]} {
    %c16_i32 = arith.constant 16 : i32
    %0 = arith.muli %arg1, %c16_i32 : i32
    %1 = tpu.assume_multiple %0, 16 : i32
    %c0_i32 = arith.constant 0 : i32
    %2 = arith.addi %1, %c0_i32 : i32
    %c0 = arith.constant 0 : index
    %3 = arith.index_cast %2 : i32 to index
    %c0_0 = arith.constant 0 : index
    %c0_1 = arith.constant 0 : index
    %4 = vector.load %arg2[%c0, %3, %c0_0, %c0_1] : memref<1x18x18x4xbf16, #tpu.memory_space<vmem>>, vector<1x16x16x4xbf16>
    %5 = vector.shape_cast %4 : vector<1x16x16x4xbf16> to vector<16x16x4xbf16>
    %c0_i32_2 = arith.constant 0 : i32
    %6 = arith.addi %1, %c0_i32_2 : i32
    %c0_3 = arith.constant 0 : index
    %7 = arith.index_cast %6 : i32 to index
    %c1 = arith.constant 1 : index
    %c0_4 = arith.constant 0 : index
    %8 = vector.load %arg2[%c0_3, %7, %c1, %c0_4] : memref<1x18x18x4xbf16, #tpu.memory_space<vmem>>, vector<1x16x16x4xbf16>
    %9 = vector.shape_cast %8 : vector<1x16x16x4xbf16> to vector<16x16x4xbf16>
    %c0_i32_5 = arith.constant 0 : i32
    %10 = arith.addi %1, %c0_i32_5 : i32
    %c0_6 = arith.constant 0 : index
    %11 = arith.index_cast %10 : i32 to index
    %c2 = arith.constant 2 : index
    %c0_7 = arith.constant 0 : index
    %12 = vector.load %arg2[%c0_6, %11, %c2, %c0_7] : memref<1x18x18x4xbf16, #tpu.memory_space<vmem>>, vector<1x16x16x4xbf16>
    %13 = vector.shape_cast %12 : vector<1x16x16x4xbf16> to vector<16x16x4xbf16>
    %c1_i32 = arith.constant 1 : i32
    %14 = arith.addi %1, %c1_i32 : i32
    %c0_8 = arith.constant 0 : index
    %15 = arith.index_cast %14 : i32 to index
    %c0_9 = arith.constant 0 : index
    %c0_10 = arith.constant 0 : index
    %16 = vector.load %arg2[%c0_8, %15, %c0_9, %c0_10] : memref<1x18x18x4xbf16, #tpu.memory_space<vmem>>, vector<1x16x16x4xbf16>
    %17 = vector.shape_cast %16 : vector<1x16x16x4xbf16> to vector<16x16x4xbf16>
    %c1_i32_11 = arith.constant 1 : i32
    %18 = arith.addi %1, %c1_i32_11 : i32
    %c0_12 = arith.constant 0 : index
    %19 = arith.index_cast %18 : i32 to index
    %c1_13 = arith.constant 1 : index
    %c0_14 = arith.constant 0 : index
    %20 = vector.load %arg2[%c0_12, %19, %c1_13, %c0_14] : memref<1x18x18x4xbf16, #tpu.memory_space<vmem>>, vector<1x16x16x4xbf16>
    %21 = vector.shape_cast %20 : vector<1x16x16x4xbf16> to vector<16x16x4xbf16>
    %c1_i32_15 = arith.constant 1 : i32
    %22 = arith.addi %1, %c1_i32_15 : i32
    %c0_16 = arith.constant 0 : index
    %23 = arith.index_cast %22 : i32 to index
    %c2_17 = arith.constant 2 : index
    %c0_18 = arith.constant 0 : index
    %24 = vector.load %arg2[%c0_16, %23, %c2_17, %c0_18] : memref<1x18x18x4xbf16, #tpu.memory_space<vmem>>, vector<1x16x16x4xbf16>
    %25 = vector.shape_cast %24 : vector<1x16x16x4xbf16> to vector<16x16x4xbf16>
    %c2_i32 = arith.constant 2 : i32
    %26 = arith.addi %1, %c2_i32 : i32
    %c0_19 = arith.constant 0 : index
    %27 = arith.index_cast %26 : i32 to index
    %c0_20 = arith.constant 0 : index
    %c0_21 = arith.constant 0 : index
    %28 = vector.load %arg2[%c0_19, %27, %c0_20, %c0_21] : memref<1x18x18x4xbf16, #tpu.memory_space<vmem>>, vector<1x16x16x4xbf16>
    %29 = vector.shape_cast %28 : vector<1x16x16x4xbf16> to vector<16x16x4xbf16>
    %c2_i32_22 = arith.constant 2 : i32
    %30 = arith.addi %1, %c2_i32_22 : i32
    %c0_23 = arith.constant 0 : index
    %31 = arith.index_cast %30 : i32 to index
    %c1_24 = arith.constant 1 : index
    %c0_25 = arith.constant 0 : index
    %32 = vector.load %arg2[%c0_23, %31, %c1_24, %c0_25] : memref<1x18x18x4xbf16, #tpu.memory_space<vmem>>, vector<1x16x16x4xbf16>
    %33 = vector.shape_cast %32 : vector<1x16x16x4xbf16> to vector<16x16x4xbf16>
    %c2_i32_26 = arith.constant 2 : i32
    %34 = arith.addi %1, %c2_i32_26 : i32
    %c0_27 = arith.constant 0 : index
    %35 = arith.index_cast %34 : i32 to index
    %c2_28 = arith.constant 2 : index
    %c0_29 = arith.constant 0 : index
    %36 = vector.load %arg2[%c0_27, %35, %c2_28, %c0_29] : memref<1x18x18x4xbf16, #tpu.memory_space<vmem>>, vector<1x16x16x4xbf16>
    %37 = vector.shape_cast %36 : vector<1x16x16x4xbf16> to vector<16x16x4xbf16>
    %38 = tpu.concatenate %5, %9, %13, %17, %21, %25, %29, %33, %37 in 2 : vector<16x16x4xbf16>, vector<16x16x4xbf16>, vector<16x16x4xbf16>, vector<16x16x4xbf16>, vector<16x16x4xbf16>, vector<16x16x4xbf16>, vector<16x16x4xbf16>, vector<16x16x4xbf16>, vector<16x16x4xbf16> -> vector<16x16x36xbf16>
    %39 = vector.shape_cast %38 : vector<16x16x36xbf16> to vector<256x36xbf16>
    %c0_30 = arith.constant 0 : index
    %c0_31 = arith.constant 0 : index
    %40 = vector.load %arg3[%c0_30, %c0_31] : memref<36x8xbf16, #tpu.memory_space<vmem>>, vector<36x8xbf16>
    %cst = arith.constant dense<0.000000e+00> : vector<256x8xf32>
    %41 = tpu.matmul %39, %40, %cst {dimension_numbers = #tpu.dot_dimension_numbers<[1], [0], [0], [1], [0, 0, 1, 1], [], []>} : vector<256x36xbf16>, vector<36x8xbf16>, vector<256x8xf32> -> vector<256x8xf32>
    %c0_32 = arith.constant 0 : index
    %c0_33 = arith.constant 0 : index
    %42 = vector.load %arg4[%c0_32, %c0_33] : memref<1x8xf32, #tpu.memory_space<vmem>>, vector<1x8xf32>
    %43 = vector.broadcast %42 : vector<1x8xf32> to vector<256x8xf32>
    %44 = arith.mulf %41, %43 : vector<256x8xf32>
    %c0_34 = arith.constant 0 : index
    %c0_35 = arith.constant 0 : index
    %45 = vector.load %arg5[%c0_34, %c0_35] : memref<1x8xf32, #tpu.memory_space<vmem>>, vector<1x8xf32>
    %46 = vector.broadcast %45 : vector<1x8xf32> to vector<256x8xf32>
    %47 = arith.addf %44, %46 : vector<256x8xf32>
    %cst_36 = arith.constant 0.000000e+00 : f32
    %48 = vector.broadcast %cst_36 : f32 to vector<256x8xf32>
    %49 = arith.cmpf ogt, %47, %48 : vector<256x8xf32>
    %cst_37 = arith.constant 1.000000e-01 : f32
    %50 = vector.broadcast %cst_37 : f32 to vector<256x8xf32>
    %51 = arith.mulf %50, %47 : vector<256x8xf32>
    %52 = arith.select %49, %47, %51 : vector<256x8xi1>, vector<256x8xf32>
    %53 = arith.truncf %52 : vector<256x8xf32> to vector<256x8xbf16>
    %c0_38 = arith.constant 0 : index
    %c0_39 = arith.constant 0 : index
    %54 = vector.load %arg6[%c0_38, %c0_39] : memref<8x4xbf16, #tpu.memory_space<vmem>>, vector<8x4xbf16>
    %cst_40 = arith.constant dense<0.000000e+00> : vector<256x4xf32>
    %55 = tpu.matmul %53, %54, %cst_40 {dimension_numbers = #tpu.dot_dimension_numbers<[1], [0], [0], [1], [0, 0, 1, 1], [], []>} : vector<256x8xbf16>, vector<8x4xbf16>, vector<256x4xf32> -> vector<256x4xf32>
    %c0_41 = arith.constant 0 : index
    %c0_42 = arith.constant 0 : index
    %56 = vector.load %arg7[%c0_41, %c0_42] : memref<1x4xf32, #tpu.memory_space<vmem>>, vector<1x4xf32>
    %57 = vector.broadcast %56 : vector<1x4xf32> to vector<256x4xf32>
    %58 = arith.mulf %55, %57 : vector<256x4xf32>
    %c0_43 = arith.constant 0 : index
    %c0_44 = arith.constant 0 : index
    %59 = vector.load %arg8[%c0_43, %c0_44] : memref<1x4xf32, #tpu.memory_space<vmem>>, vector<1x4xf32>
    %60 = vector.broadcast %59 : vector<1x4xf32> to vector<256x4xf32>
    %61 = arith.addf %58, %60 : vector<256x4xf32>
    %cst_45 = arith.constant 0.000000e+00 : f32
    %62 = vector.broadcast %cst_45 : f32 to vector<256x4xf32>
    %63 = arith.cmpf ogt, %61, %62 : vector<256x4xf32>
    %cst_46 = arith.constant 1.000000e-01 : f32
    %64 = vector.broadcast %cst_46 : f32 to vector<256x4xf32>
    %65 = arith.mulf %64, %61 : vector<256x4xf32>
    %66 = arith.select %63, %61, %65 : vector<256x4xi1>, vector<256x4xf32>
    %67 = vector.shape_cast %66 : vector<256x4xf32> to vector<1x16x16x4xf32>
    %c0_47 = arith.constant 0 : index
    %c0_48 = arith.constant 0 : index
    %c0_49 = arith.constant 0 : index
    %c0_50 = arith.constant 0 : index
    %68 = vector.load %arg9[%c0_47, %c0_48, %c0_49, %c0_50] : memref<1x16x16x4xf32, #tpu.memory_space<vmem>>, vector<1x16x16x4xf32>
    tpu.vector_store %arg9[%c0_47, %c0_48, %c0_49, %c0_50], %67 {strides = array<i32>} : memref<1x16x16x4xf32, #tpu.memory_space<vmem>>, vector<1x16x16x4xf32>,
    return
  }
  func.func @transform_0(%arg0: i32, %arg1: i32) -> (i32, i32, i32, i32) {
    %c0_i32 = arith.constant 0 : i32
    %c0_i32_0 = arith.constant 0 : i32
    %c0_i32_1 = arith.constant 0 : i32
    %c0_i32_2 = arith.constant 0 : i32
    return %arg0, %c0_i32, %c0_i32_0, %c0_i32_1 : i32, i32, i32, i32
  }
  func.func @transform_1(%arg0: i32, %arg1: i32) -> (i32, i32) {
    %c0_i32 = arith.constant 0 : i32
    %c0_i32_0 = arith.constant 0 : i32
    %c0_i32_1 = arith.constant 0 : i32
    return %c0_i32, %c0_i32_0 : i32, i32
  }
  func.func @transform_2(%arg0: i32, %arg1: i32) -> (i32, i32) {
    %c0_i32 = arith.constant 0 : i32
    %c0_i32_0 = arith.constant 0 : i32
    %c0_i32_1 = arith.constant 0 : i32
    return %c0_i32, %c0_i32_0 : i32, i32
  }
  func.func @transform_3(%arg0: i32, %arg1: i32) -> (i32, i32) {
    %c0_i32 = arith.constant 0 : i32
    %c0_i32_0 = arith.constant 0 : i32
    %c0_i32_1 = arith.constant 0 : i32
    return %c0_i32, %c0_i32_0 : i32, i32
  }
  func.func @transform_4(%arg0: i32, %arg1: i32) -> (i32, i32) {
    %c0_i32 = arith.constant 0 : i32
    %c0_i32_0 = arith.constant 0 : i32
    %c0_i32_1 = arith.constant 0 : i32
    return %c0_i32, %c0_i32_0 : i32, i32
  }
  func.func @transform_5(%arg0: i32, %arg1: i32) -> (i32, i32) {
    %c0_i32 = arith.constant 0 : i32
    %c0_i32_0 = arith.constant 0 : i32
    %c0_i32_1 = arith.constant 0 : i32
    return %c0_i32, %c0_i32_0 : i32, i32
  }
  func.func @transform_6(%arg0: i32, %arg1: i32) -> (i32, i32) {
    %c0_i32 = arith.constant 0 : i32
    %c0_i32_0 = arith.constant 0 : i32
    %c0_i32_1 = arith.constant 0 : i32
    return %c0_i32, %c0_i32_0 : i32, i32
  }
  func.func @transform_7(%arg0: i32, %arg1: i32) -> (i32, i32, i32, i32) {
    %c0_i32 = arith.constant 0 : i32
    %c0_i32_0 = arith.constant 0 : i32
    %c0_i32_1 = arith.constant 0 : i32
    return %arg0, %arg1, %c0_i32, %c0_i32_0 : i32, i32, i32, i32
  }
}

</mosaic_0001>

<llo_original>
// kernel: pan_layer_forward.4
$region0: #{pan_layer_forward.4}
  #allocation0 [shape = 'u32[]', space=smem, size = 0x4, offset = 0x4, fixed_abs, tag = 'smem constant byte address 0x4 - core index']
  #allocation1 [shape = 'u32[72,128]{1,0:T(1,128)}', space=vmem, size = 0x9000, scoped, tag = 'internal scratch']
  %s0 = inlined_call_operand.vmem [shape: bf16[128,8], index: 0, kind: input, shape index: {}]
  %s1 = inlined_call_operand.vmem [shape: bf16[8,4], index: 1, kind: input, shape index: {}]
  %s2 = inlined_call_operand.vmem [shape: f32[1,4], index: 2, kind: input, shape index: {}]
  %s3 = inlined_call_operand.vmem [shape: f32[1,4], index: 3, kind: input, shape index: {}]
  %s4 = inlined_call_operand.vmem [shape: bf16[4,4], index: 4, kind: input, shape index: {}]
  %s5 = inlined_call_operand.vmem [shape: bf16[128,4], index: 5, kind: output, shape index: {}]
  %s6 = sld [smem:[#allocation0]]
  $region30: #{pan_layer_forward.4} parent=0
    _
  %s8 = ssub.s32 1, %s6
  %s9 = scalar_select 0, %s8, %s6
  // Predicated region
  $region2: #{pan_layer_forward.4} parent=0 // pred_check
    _
  $region3: #{pan_layer_forward.4} parent=0 // pred_check_branch
    %11 = sbr.rel (0) target = $region5
  $region4: #{pan_layer_forward.4} parent=0 // pred_region
    _
  $region5: #{pan_layer_forward.4} parent=0 // pred_fallthru
    _
  // Predicated region
  $region6: #{pan_layer_forward.4} parent=0 // pred_check
    _
  $region7: #{pan_layer_forward.4} parent=0 // pred_check_branch
    %13 = sbr.rel (0) target = $region9
  $region8: #{pan_layer_forward.4} parent=0 // pred_region
    _
  $region9: #{pan_layer_forward.4} parent=0 // pred_fallthru
    _
  // Predicated region
  $region10: #{pan_layer_forward.4} parent=0 // pred_check
    _
  $region11: #{pan_layer_forward.4} parent=0 // pred_check_branch
    %15 = sbr.rel (0) target = $region13
  $region12: #{pan_layer_forward.4} parent=0 // pred_region
    _
  $region13: #{pan_layer_forward.4} parent=0 // pred_fallthru
    _
  // Predicated region
  $region14: #{pan_layer_forward.4} parent=0 // pred_check
    _
  $region15: #{pan_layer_forward.4} parent=0 // pred_check_branch
    %17 = sbr.rel (0) target = $region17
  $region16: #{pan_layer_forward.4} parent=0 // pred_region
    _
  $region17: #{pan_layer_forward.4} parent=0 // pred_fallthru
    _
  // Predicated region
  $region18: #{pan_layer_forward.4} parent=0 // pred_check
    _
  $region19: #{pan_layer_forward.4} parent=0 // pred_check_branch
    %19 = sbr.rel (0) target = $region21
  $region20: #{pan_layer_forward.4} parent=0 // pred_region
    _
  $region21: #{pan_layer_forward.4} parent=0 // pred_fallthru
    _
  %v21 = vld [vmem:[%s0] sm:$0xf]
  %v22 = vld [vmem:[%s0 + $0x4] sm:$0xf]
  %v23 = vld [vmem:[%s0 + $0x8] sm:$0xf]
  %v24 = vld [vmem:[%s0 + $0xc] sm:$0xf]
  %v25 = vld [vmem:[%s0 + $0x10] sm:$0xf]
  %v26 = vld [vmem:[%s0 + $0x14] sm:$0xf]
  %v27 = vld [vmem:[%s0 + $0x18] sm:$0xf]
  %v28 = vld [vmem:[%s0 + $0x1c] sm:$0xf]
  %v29 = vld [vmem:[%s0 + $0x20] sm:$0xf]
  %v30 = vld [vmem:[%s0 + $0x24] sm:$0xf]
  %v31 = vld [vmem:[%s0 + $0x28] sm:$0xf]
  %v32 = vld [vmem:[%s0 + $0x2c] sm:$0xf]
  %v33 = vld [vmem:[%s0 + $0x30] sm:$0xf]
  %v34 = vld [vmem:[%s0 + $0x34] sm:$0xf]
  %v35 = vld [vmem:[%s0 + $0x38] sm:$0xf]
  %v36 = vld [vmem:[%s0 + $0x3c] sm:$0xf]
  %v37 = vld [vmem:[%s1] sm:$0xf]
  %v54 = vunpack.c.l.b16 %v21
  %v55 = vunpack.c.l.b16 %v22
  %v56 = vunpack.c.l.b16 %v23
  %v57 = vunpack.c.l.b16 %v24
  %v58 = vunpack.c.l.b16 %v25
  %v59 = vunpack.c.l.b16 %v26
  %v60 = vunpack.c.l.b16 %v27
  %v61 = vunpack.c.l.b16 %v28
  %v62 = vunpack.c.l.b16 %v29
  %v63 = vunpack.c.l.b16 %v30
  %v64 = vunpack.c.l.b16 %v31
  %v65 = vunpack.c.l.b16 %v32
  %v66 = vunpack.c.l.b16 %v33
  %v67 = vunpack.c.l.b16 %v34
  %v68 = vunpack.c.l.b16 %v35
  %v69 = vunpack.c.l.b16 %v36
  %v70 = vpack.c.b16 %v55, %v54
  %v71 = vpack.c.b16 %v57, %v56
  %v72 = vpack.c.b16 %v59, %v58
  %v73 = vpack.c.b16 %v61, %v60
  %v74 = vpack.c.b16 %v63, %v62
  %v75 = vpack.c.b16 %v65, %v64
  %v76 = vpack.c.b16 %v67, %v66
  %v77 = vpack.c.b16 %v69, %v68
  %vm78 = vcmask 64512
  %v80 = vsel %vm78, %v70, 0
  %v83 = vsel %vm78, %v71, 0
  %v86 = vsel %vm78, %v72, 0
  %v89 = vsel %vm78, %v73, 0
  %v92 = vsel %vm78, %v74, 0
  %v95 = vsel %vm78, %v75, 0
  %v98 = vsel %vm78, %v76, 0
  %v101 = vsel %vm78, %v77, 0
  %vm103 = vcmask 1043456
  %v105 = vsel %vm103, %v37, 0
  %107 = vmatpush.bf16.msra.mxu0 0
  %108 = vmatpush.bf16.msra.mxu0 0
  %109 = vmatpush.bf16.msra.mxu0 0
  %110 = vmatpush.bf16.msra.mxu0 0
  %111 = vmatpush.bf16.msra.mxu0 0
  %112 = vmatpush.bf16.msra.mxu0 0
  %113 = vmatpush.bf16.msra.mxu0 0
  %114 = vmatpush.bf16.msra.mxu0 %v105
  %115 = vmatmul.bf16.gmra.mxu0 %v80
  %v116 = vpop.f32.mrf.mxu0
  %v117 = vadd.f32 0.0, %v116
  %v118 = vpop.f32.mrf.mxu0
  %v119 = vadd.f32 0.0, %v118
  %120 = vmatmul.bf16.gmra.mxu0 %v83
  %v121 = vpop.f32.mrf.mxu0
  %v122 = vadd.f32 0.0, %v121
  %v123 = vpop.f32.mrf.mxu0
  %v124 = vadd.f32 0.0, %v123
  %125 = vmatmul.bf16.gmra.mxu0 %v86
  %v126 = vpop.f32.mrf.mxu0
  %v127 = vadd.f32 0.0, %v126
  %v128 = vpop.f32.mrf.mxu0
  %v129 = vadd.f32 0.0, %v128
  %130 = vmatmul.bf16.gmra.mxu0 %v89
  %v131 = vpop.f32.mrf.mxu0
  %v132 = vadd.f32 0.0, %v131
  %v133 = vpop.f32.mrf.mxu0
  %v134 = vadd.f32 0.0, %v133
  %135 = vmatmul.bf16.gmra.mxu0 %v92
  %v136 = vpop.f32.mrf.mxu0
  %v137 = vadd.f32 0.0, %v136
  %v138 = vpop.f32.mrf.mxu0
  %v139 = vadd.f32 0.0, %v138
  %140 = vmatmul.bf16.gmra.mxu0 %v95
  %v141 = vpop.f32.mrf.mxu0
  %v142 = vadd.f32 0.0, %v141
  %v143 = vpop.f32.mrf.mxu0
  %v144 = vadd.f32 0.0, %v143
  %145 = vmatmul.bf16.gmra.mxu0 %v98
  %v146 = vpop.f32.mrf.mxu0
  %v147 = vadd.f32 0.0, %v146
  %v148 = vpop.f32.mrf.mxu0
  %v149 = vadd.f32 0.0, %v148
  %150 = vmatmul.bf16.gmra.mxu0 %v101
  %v151 = vpop.f32.mrf.mxu0
  %v152 = vadd.f32 0.0, %v151
  %v153 = vpop.f32.mrf.mxu0
  %v154 = vadd.f32 0.0, %v153
  %155 = vdwg.mxu0
  %v156 = vld [vmem:[%s2] sm:$0x1]
  %v158 = vperm.slane %v156, 0
  %v160 = vmul.f32 %v117, %v158
  %v161 = vmul.f32 %v119, %v158
  %v162 = vmul.f32 %v122, %v158
  %v163 = vmul.f32 %v124, %v158
  %v164 = vmul.f32 %v127, %v158
  %v165 = vmul.f32 %v129, %v158
  %v166 = vmul.f32 %v132, %v158
  %v167 = vmul.f32 %v134, %v158
  %v168 = vmul.f32 %v137, %v158
  %v169 = vmul.f32 %v139, %v158
  %v170 = vmul.f32 %v142, %v158
  %v171 = vmul.f32 %v144, %v158
  %v172 = vmul.f32 %v147, %v158
  %v173 = vmul.f32 %v149, %v158
  %v174 = vmul.f32 %v152, %v158
  %v175 = vmul.f32 %v154, %v158
  %v176 = vld [vmem:[%s3] sm:$0x1]
  %v178 = vperm.slane %v176, 0
  %v180 = vadd.f32 %v160, %v178
  %v181 = vadd.f32 %v161, %v178
  %v182 = vadd.f32 %v162, %v178
  %v183 = vadd.f32 %v163, %v178
  %v184 = vadd.f32 %v164, %v178
  %v185 = vadd.f32 %v165, %v178
  %v186 = vadd.f32 %v166, %v178
  %v187 = vadd.f32 %v167, %v178
  %v188 = vadd.f32 %v168, %v178
  %v189 = vadd.f32 %v169, %v178
  %v190 = vadd.f32 %v170, %v178
  %v191 = vadd.f32 %v171, %v178
  %v192 = vadd.f32 %v172, %v178
  %v193 = vadd.f32 %v173, %v178
  %v194 = vadd.f32 %v174, %v178
  %v195 = vadd.f32 %v175, %v178
  %vm196 = vcmp.gt.f32.partialorder %v180, 0.0
  %vm197 = vcmp.gt.f32.partialorder %v181, 0.0
  %vm198 = vcmp.gt.f32.partialorder %v182, 0.0
  %vm199 = vcmp.gt.f32.partialorder %v183, 0.0
  %vm200 = vcmp.gt.f32.partialorder %v184, 0.0
  %vm201 = vcmp.gt.f32.partialorder %v185, 0.0
  %vm202 = vcmp.gt.f32.partialorder %v186, 0.0
  %vm203 = vcmp.gt.f32.partialorder %v187, 0.0
  %vm204 = vcmp.gt.f32.partialorder %v188, 0.0
  %vm205 = vcmp.gt.f32.partialorder %v189, 0.0
  %vm206 = vcmp.gt.f32.partialorder %v190, 0.0
  %vm207 = vcmp.gt.f32.partialorder %v191, 0.0
  %vm208 = vcmp.gt.f32.partialorder %v192, 0.0
  %vm209 = vcmp.gt.f32.partialorder %v193, 0.0
  %vm210 = vcmp.gt.f32.partialorder %v194, 0.0
  %vm211 = vcmp.gt.f32.partialorder %v195, 0.0
  %v212 = vmul.f32 %v180, 0.1
  %v213 = vmul.f32 %v181, 0.1
  %v214 = vmul.f32 %v182, 0.1
  %v215 = vmul.f32 %v183, 0.1
  %v216 = vmul.f32 %v184, 0.1
  %v217 = vmul.f32 %v185, 0.1
  %v218 = vmul.f32 %v186, 0.1
  %v219 = vmul.f32 %v187, 0.1
  %v220 = vmul.f32 %v188, 0.1
  %v221 = vmul.f32 %v189, 0.1
  %v222 = vmul.f32 %v190, 0.1
  %v223 = vmul.f32 %v191, 0.1
  %v224 = vmul.f32 %v192, 0.1
  %v225 = vmul.f32 %v193, 0.1
  %v226 = vmul.f32 %v194, 0.1
  %v227 = vmul.f32 %v195, 0.1
  %v228 = vsel %vm196, %v180, %v212
  %v229 = vsel %vm197, %v181, %v213
  %v230 = vsel %vm198, %v182, %v214
  %v231 = vsel %vm199, %v183, %v215
  %v232 = vsel %vm200, %v184, %v216
  %v233 = vsel %vm201, %v185, %v217
  %v234 = vsel %vm202, %v186, %v218
  %v235 = vsel %vm203, %v187, %v219
  %v236 = vsel %vm204, %v188, %v220
  %v237 = vsel %vm205, %v189, %v221
  %v238 = vsel %vm206, %v190, %v222
  %v239 = vsel %vm207, %v191, %v223
  %v240 = vsel %vm208, %v192, %v224
  %v241 = vsel %vm209, %v193, %v225
  %v242 = vsel %vm210, %v194, %v226
  %v243 = vsel %vm211, %v195, %v227
  %v244 = vpack.c.bf16 %v229, %v228
  %v245 = vpack.c.bf16 %v231, %v230
  %v246 = vpack.c.bf16 %v233, %v232
  %v247 = vpack.c.bf16 %v235, %v234
  %v248 = vpack.c.bf16 %v237, %v236
  %v249 = vpack.c.bf16 %v239, %v238
  %v250 = vpack.c.bf16 %v241, %v240
  %v251 = vpack.c.bf16 %v243, %v242
  %v252 = vld [vmem:[%s4] sm:$0x3]
  %vm253 = vcmask 31744
  %v255 = vsel %vm253, %v244, 0
  %v258 = vsel %vm253, %v245, 0
  %v261 = vsel %vm253, %v246, 0
  %v264 = vsel %vm253, %v247, 0
  %v267 = vsel %vm253, %v248, 0
  %v270 = vsel %vm253, %v249, 0
  %v273 = vsel %vm253, %v250, 0
  %v276 = vsel %vm253, %v251, 0
  %vm278 = vcmask 1041408
  %v280 = vsel %vm278, %v252, 0
  %282 = vmatpush.bf16.msra.mxu0 0
  %283 = vmatpush.bf16.msra.mxu0 0
  %284 = vmatpush.bf16.msra.mxu0 0
  %285 = vmatpush.bf16.msra.mxu0 0
  %286 = vmatpush.bf16.msra.mxu0 0
  %287 = vmatpush.bf16.msra.mxu0 0
  %288 = vmatpush.bf16.msra.mxu0 0
  %289 = vmatpush.bf16.msra.mxu0 %v280
  %290 = vmatmul.bf16.gmra.mxu0 %v255
  %v291 = vpop.f32.mrf.mxu0
  %v292 = vadd.f32 0.0, %v291
  %v293 = vpop.f32.mrf.mxu0
  %v294 = vadd.f32 0.0, %v293
  %295 = vmatmul.bf16.gmra.mxu0 %v258
  %v296 = vpop.f32.mrf.mxu0
  %v297 = vadd.f32 0.0, %v296
  %v298 = vpop.f32.mrf.mxu0
  %v299 = vadd.f32 0.0, %v298
  %300 = vmatmul.bf16.gmra.mxu0 %v261
  %v301 = vpop.f32.mrf.mxu0
  %v302 = vadd.f32 0.0, %v301
  %v303 = vpop.f32.mrf.mxu0
  %v304 = vadd.f32 0.0, %v303
  %305 = vmatmul.bf16.gmra.mxu0 %v264
  %v306 = vpop.f32.mrf.mxu0
  %v307 = vadd.f32 0.0, %v306
  %v308 = vpop.f32.mrf.mxu0
  %v309 = vadd.f32 0.0, %v308
  %310 = vmatmul.bf16.gmra.mxu0 %v267
  %v311 = vpop.f32.mrf.mxu0
  %v312 = vadd.f32 0.0, %v311
  %v313 = vpop.f32.mrf.mxu0
  %v314 = vadd.f32 0.0, %v313
  %315 = vmatmul.bf16.gmra.mxu0 %v270
  %v316 = vpop.f32.mrf.mxu0
  %v317 = vadd.f32 0.0, %v316
  %v318 = vpop.f32.mrf.mxu0
  %v319 = vadd.f32 0.0, %v318
  %320 = vmatmul.bf16.gmra.mxu0 %v273
  %v321 = vpop.f32.mrf.mxu0
  %v322 = vadd.f32 0.0, %v321
  %v323 = vpop.f32.mrf.mxu0
  %v324 = vadd.f32 0.0, %v323
  %325 = vmatmul.bf16.gmra.mxu0 %v276
  %v326 = vpop.f32.mrf.mxu0
  %v327 = vadd.f32 0.0, %v326
  %v328 = vpop.f32.mrf.mxu0
  %v329 = vadd.f32 0.0, %v328
  %330 = vdwg.mxu0
  %v331 = vpack.c.bf16 %v292, %v292
  %v332 = vpack.c.bf16 %v294, %v294
  %v333 = vpack.c.bf16 %v297, %v297
  %v334 = vpack.c.bf16 %v299, %v299
  %v335 = vpack.c.bf16 %v302, %v302
  %v336 = vpack.c.bf16 %v304, %v304
  %v337 = vpack.c.bf16 %v307, %v307
  %v338 = vpack.c.bf16 %v309, %v309
  %v339 = vpack.c.bf16 %v312, %v312
  %v340 = vpack.c.bf16 %v314, %v314
  %v341 = vpack.c.bf16 %v317, %v317
  %v342 = vpack.c.bf16 %v319, %v319
  %v343 = vpack.c.bf16 %v322, %v322
  %v344 = vpack.c.bf16 %v324, %v324
  %v345 = vpack.c.bf16 %v327, %v327
  %v346 = vpack.c.bf16 %v329, %v329
  %vm347 = vcmask 27648
  %348 = vst.msk [vmem:[%s5] sm:$0xf] %vm347, %v331
  %349 = vst.msk [vmem:[%s5 + $0x4] sm:$0xf] %vm347, %v332
  %350 = vst.msk [vmem:[%s5 + $0x8] sm:$0xf] %vm347, %v333
  %351 = vst.msk [vmem:[%s5 + $0xc] sm:$0xf] %vm347, %v334
  %352 = vst.msk [vmem:[%s5 + $0x10] sm:$0xf] %vm347, %v335
  %353 = vst.msk [vmem:[%s5 + $0x14] sm:$0xf] %vm347, %v336
  %354 = vst.msk [vmem:[%s5 + $0x18] sm:$0xf] %vm347, %v337
  %355 = vst.msk [vmem:[%s5 + $0x1c] sm:$0xf] %vm347, %v338
  %356 = vst.msk [vmem:[%s5 + $0x20] sm:$0xf] %vm347, %v339
  %357 = vst.msk [vmem:[%s5 + $0x24] sm:$0xf] %vm347, %v340
  %358 = vst.msk [vmem:[%s5 + $0x28] sm:$0xf] %vm347, %v341
  %359 = vst.msk [vmem:[%s5 + $0x2c] sm:$0xf] %vm347, %v342
  %360 = vst.msk [vmem:[%s5 + $0x30] sm:$0xf] %vm347, %v343
  %361 = vst.msk [vmem:[%s5 + $0x34] sm:$0xf] %vm347, %v344
  %362 = vst.msk [vmem:[%s5 + $0x38] sm:$0xf] %vm347, %v345
  %363 = vst.msk [vmem:[%s5 + $0x3c] sm:$0xf] %vm347, %v346
  // Predicated region
  $region22: #{pan_layer_forward.4} parent=0 // pred_check
    _
  $region23: #{pan_layer_forward.4} parent=0 // pred_check_branch
    %365 = sbr.rel (0) target = $region25
  $region24: #{pan_layer_forward.4} parent=0 // pred_region
    _
  $region25: #{pan_layer_forward.4} parent=0 // pred_fallthru
    _
  // Predicated region
  $region26: #{pan_layer_forward.4} parent=0 // pred_check
    _
  $region27: #{pan_layer_forward.4} parent=0 // pred_check_branch
    %367 = sbr.rel (0) target = $region29
  $region28: #{pan_layer_forward.4} parent=0 // pred_region
    _
  $region29: #{pan_layer_forward.4} parent=0 // pred_fallthru
    _

// kernel: pan_layer_forward.5
$region0: #{pan_layer_forward.5}
  #allocation0 [shape = 'u32[]', space=smem, size = 0x4, offset = 0x4, fixed_abs, tag = 'smem constant byte address 0x4 - core index']
  #allocation1 [shape = 'u32[72,128]{1,0:T(1,128)}', space=vmem, size = 0x9000, scoped, tag = 'internal scratch']
  %s0 = inlined_call_operand.vmem [shape: bf16[512,8], index: 0, kind: input, shape index: {}]
  %s1 = inlined_call_operand.vmem [shape: bf16[512,4], index: 1, kind: input, shape index: {}]
  %s2 = inlined_call_operand.vmem [shape: bf16[8,4], index: 2, kind: input, shape index: {}]
  %s3 = inlined_call_operand.vmem [shape: f32[1,4], index: 3, kind: input, shape index: {}]
  %s4 = inlined_call_operand.vmem [shape: f32[1,4], index: 4, kind: input, shape index: {}]
  %s5 = inlined_call_operand.vmem [shape: bf16[4,4], index: 5, kind: input, shape index: {}]
  %s6 = inlined_call_operand.vmem [shape: f32[1,4], index: 6, kind: input, shape index: {}]
  %s7 = inlined_call_operand.vmem [shape: f32[1,4], index: 7, kind: input, shape index: {}]
  %s8 = inlined_call_operand.vmem [shape: bf16[512,4], index: 8, kind: output, shape index: {}]
  %s9 = sld [smem:[#allocation0]]
  $region42: #{pan_layer_forward.5} parent=0
    _
  %s11 = ssub.s32 1, %s9
  %s12 = scalar_select 0, %s11, %s9
  // Predicated region
  $region2: #{pan_layer_forward.5} parent=0 // pred_check
    _
  $region3: #{pan_layer_forward.5} parent=0 // pred_check_branch
    %14 = sbr.rel (0) target = $region5
  $region4: #{pan_layer_forward.5} parent=0 // pred_region
    _
  $region5: #{pan_layer_forward.5} parent=0 // pred_fallthru
    _
  // Predicated region
  $region6: #{pan_layer_forward.5} parent=0 // pred_check
    _
  $region7: #{pan_layer_forward.5} parent=0 // pred_check_branch
    %16 = sbr.rel (0) target = $region9
  $region8: #{pan_layer_forward.5} parent=0 // pred_region
    _
  $region9: #{pan_layer_forward.5} parent=0 // pred_fallthru
    _
  // Predicated region
  $region10: #{pan_layer_forward.5} parent=0 // pred_check
    _
  $region11: #{pan_layer_forward.5} parent=0 // pred_check_branch
    %18 = sbr.rel (0) target = $region13
  $region12: #{pan_layer_forward.5} parent=0 // pred_region
    _
  $region13: #{pan_layer_forward.5} parent=0 // pred_fallthru
    _
  // Predicated region
  $region14: #{pan_layer_forward.5} parent=0 // pred_check
    _
  $region15: #{pan_layer_forward.5} parent=0 // pred_check_branch
    %20 = sbr.rel (0) target = $region17
  $region16: #{pan_layer_forward.5} parent=0 // pred_region
    _
  $region17: #{pan_layer_forward.5} parent=0 // pred_fallthru
    _
  // Predicated region
  $region18: #{pan_layer_forward.5} parent=0 // pred_check
    _
  $region19: #{pan_layer_forward.5} parent=0 // pred_check_branch
    %22 = sbr.rel (0) target = $region21
  $region20: #{pan_layer_forward.5} parent=0 // pred_region
    _
  $region21: #{pan_layer_forward.5} parent=0 // pred_fallthru
    _
  // Predicated region
  $region22: #{pan_layer_forward.5} parent=0 // pred_check
    _
  $region23: #{pan_layer_forward.5} parent=0 // pred_check_branch
    %24 = sbr.rel (0) target = $region25
  $region24: #{pan_layer_forward.5} parent=0 // pred_region
    _
  $region25: #{pan_layer_forward.5} parent=0 // pred_fallthru
    _
  // Predicated region
  $region26: #{pan_layer_forward.5} parent=0 // pred_check
    _
  $region27: #{pan_layer_forward.5} parent=0 // pred_check_branch
    %26 = sbr.rel (0) target = $region29
  $region28: #{pan_layer_forward.5} parent=0 // pred_region
    _
  $region29: #{pan_layer_forward.5} parent=0 // pred_fallthru
    _
  // Predicated region
  $region30: #{pan_layer_forward.5} parent=0 // pred_check
    _
  $region31: #{pan_layer_forward.5} parent=0 // pred_check_branch
    %28 = sbr.rel (0) target = $region33
  $region32: #{pan_layer_forward.5} parent=0 // pred_region
    _
  $region33: #{pan_layer_forward.5} parent=0 // pred_fallthru
    _
  %v30 = vld [vmem:[%s0] sm:$0xf]
  %v31 = vld [vmem:[%s0 + $0x4] sm:$0xf]
  %v32 = vld [vmem:[%s0 + $0x8] sm:$0xf]
  %v33 = vld [vmem:[%s0 + $0xc] sm:$0xf]
  %v34 = vld [vmem:[%s0 + $0x10] sm:$0xf]
  %v35 = vld [vmem:[%s0 + $0x14] sm:$0xf]
  %v36 = vld [vmem:[%s0 + $0x18] sm:$0xf]
  %v37 = vld [vmem:[%s0 + $0x1c] sm:$0xf]
  %v38 = vld [vmem:[%s0 + $0x20] sm:$0xf]
  %v39 = vld [vmem:[%s0 + $0x24] sm:$0xf]
  %v40 = vld [vmem:[%s0 + $0x28] sm:$0xf]
  %v41 = vld [vmem:[%s0 + $0x2c] sm:$0xf]
  %v42 = vld [vmem:[%s0 + $0x30] sm:$0xf]
  %v43 = vld [vmem:[%s0 + $0x34] sm:$0xf]
  %v44 = vld [vmem:[%s0 + $0x38] sm:$0xf]
  %v45 = vld [vmem:[%s0 + $0x3c] sm:$0xf]
  %v46 = vld [vmem:[%s0 + $0x40] sm:$0xf]
  %v47 = vld [vmem:[%s0 + $0x44] sm:$0xf]
  %v48 = vld [vmem:[%s0 + $0x48] sm:$0xf]
  %v49 = vld [vmem:[%s0 + $0x4c] sm:$0xf]
  %v50 = vld [vmem:[%s0 + $0x50] sm:$0xf]
  %v51 = vld [vmem:[%s0 + $0x54] sm:$0xf]
  %v52 = vld [vmem:[%s0 + $0x58] sm:$0xf]
  %v53 = vld [vmem:[%s0 + $0x5c] sm:$0xf]
  %v54 = vld [vmem:[%s0 + $0x60] sm:$0xf]
  %v55 = vld [vmem:[%s0 + $0x64] sm:$0xf]
  %v56 = vld [vmem:[%s0 + $0x68] sm:$0xf]
  %v57 = vld [vmem:[%s0 + $0x6c] sm:$0xf]
  %v58 = vld [vmem:[%s0 + $0x70] sm:$0xf]
  %v59 = vld [vmem:[%s0 + $0x74] sm:$0xf]
  %v60 = vld [vmem:[%s0 + $0x78] sm:$0xf]
  %v61 = vld [vmem:[%s0 + $0x7c] sm:$0xf]
  %v62 = vld [vmem:[%s0 + $0x80] sm:$0xf]
  %v63 = vld [vmem:[%s0 + $0x84] sm:$0xf]
  %v64 = vld [vmem:[%s0 + $0x88] sm:$0xf]
  %v65 = vld [vmem:[%s0 + $0x8c] sm:$0xf]
  %v66 = vld [vmem:[%s0 + $0x90] sm:$0xf]
  %v67 = vld [vmem:[%s0 + $0x94] sm:$0xf]
  %v68 = vld [vmem:[%s0 + $0x98] sm:$0xf]
  %v69 = vld [vmem:[%s0 + $0x9c] sm:$0xf]
  %v70 = vld [vmem:[%s0 + $0xa0] sm:$0xf]
  %v71 = vld [vmem:[%s0 + $0xa4] sm:$0xf]
  %v72 = vld [vmem:[%s0 + $0xa8] sm:$0xf]
  %v73 = vld [vmem:[%s0 + $0xac] sm:$0xf]
  %v74 = vld [vmem:[%s0 + $0xb0] sm:$0xf]
  %v75 = vld [vmem:[%s0 + $0xb4] sm:$0xf]
  %v76 = vld [vmem:[%s0 + $0xb8] sm:$0xf]
  %v77 = vld [vmem:[%s0 + $0xbc] sm:$0xf]
  %v78 = vld [vmem:[%s0 + $0xc0] sm:$0xf]
  %v79 = vld [vmem:[%s0 + $0xc4] sm:$0xf]
  %v80 = vld [vmem:[%s0 + $0xc8] sm:$0xf]
  %v81 = vld [vmem:[%s0 + $0xcc] sm:$0xf]
  %v82 = vld [vmem:[%s0 + $0xd0] sm:$0xf]
  %v83 = vld [vmem:[%s0 + $0xd4] sm:$0xf]
  %v84 = vld [vmem:[%s0 + $0xd8] sm:$0xf]
  %v85 = vld [vmem:[%s0 + $0xdc] sm:$0xf]
  %v86 = vld [vmem:[%s0 + $0xe0] sm:$0xf]
  %v87 = vld [vmem:[%s0 + $0xe4] sm:$0xf]
  %v88 = vld [vmem:[%s0 + $0xe8] sm:$0xf]
  %v89 = vld [vmem:[%s0 + $0xec] sm:$0xf]
  %v90 = vld [vmem:[%s0 + $0xf0] sm:$0xf]
  %v91 = vld [vmem:[%s0 + $0xf4] sm:$0xf]
  %v92 = vld [vmem:[%s0 + $0xf8] sm:$0xf]
  %v93 = vld [vmem:[%s0 + $0xfc] sm:$0xf]
  %v94 = vld [vmem:[%s2] sm:$0xf]
  %v159 = vunpack.c.l.b16 %v30
  %v160 = vunpack.c.l.b16 %v31
  %v161 = vunpack.c.l.b16 %v32
  %v162 = vunpack.c.l.b16 %v33
  %v163 = vunpack.c.l.b16 %v34
  %v164 = vunpack.c.l.b16 %v35
  %v165 = vunpack.c.l.b16 %v36
  %v166 = vunpack.c.l.b16 %v37
  %v167 = vunpack.c.l.b16 %v38
  %v168 = vunpack.c.l.b16 %v39
  %v169 = vunpack.c.l.b16 %v40
  %v170 = vunpack.c.l.b16 %v41
  %v171 = vunpack.c.l.b16 %v42
  %v172 = vunpack.c.l.b16 %v43
  %v173 = vunpack.c.l.b16 %v44
  %v174 = vunpack.c.l.b16 %v45
  %v175 = vunpack.c.l.b16 %v46
  %v176 = vunpack.c.l.b16 %v47
  %v177 = vunpack.c.l.b16 %v48
  %v178 = vunpack.c.l.b16 %v49
  %v179 = vunpack.c.l.b16 %v50
  %v180 = vunpack.c.l.b16 %v51
  %v181 = vunpack.c.l.b16 %v52
  %v182 = vunpack.c.l.b16 %v53
  %v183 = vunpack.c.l.b16 %v54
  %v184 = vunpack.c.l.b16 %v55
  %v185 = vunpack.c.l.b16 %v56
  %v186 = vunpack.c.l.b16 %v57
  %v187 = vunpack.c.l.b16 %v58
  %v188 = vunpack.c.l.b16 %v59
  %v189 = vunpack.c.l.b16 %v60
  %v190 = vunpack.c.l.b16 %v61
  %v191 = vunpack.c.l.b16 %v62
  %v192 = vunpack.c.l.b16 %v63
  %v193 = vunpack.c.l.b16 %v64
  %v194 = vunpack.c.l.b16 %v65
  %v195 = vunpack.c.l.b16 %v66
  %v196 = vunpack.c.l.b16 %v67
  %v197 = vunpack.c.l.b16 %v68
  %v198 = vunpack.c.l.b16 %v69
  %v199 = vunpack.c.l.b16 %v70
  %v200 = vunpack.c.l.b16 %v71
  %v201 = vunpack.c.l.b16 %v72
  %v202 = vunpack.c.l.b16 %v73
  %v203 = vunpack.c.l.b16 %v74
  %v204 = vunpack.c.l.b16 %v75
  %v205 = vunpack.c.l.b16 %v76
  %v206 = vunpack.c.l.b16 %v77
  %v207 = vunpack.c.l.b16 %v78
  %v208 = vunpack.c.l.b16 %v79
  %v209 = vunpack.c.l.b16 %v80
  %v210 = vunpack.c.l.b16 %v81
  %v211 = vunpack.c.l.b16 %v82
  %v212 = vunpack.c.l.b16 %v83
  %v213 = vunpack.c.l.b16 %v84
  %v214 = vunpack.c.l.b16 %v85
  %v215 = vunpack.c.l.b16 %v86
  %v216 = vunpack.c.l.b16 %v87
  %v217 = vunpack.c.l.b16 %v88
  %v218 = vunpack.c.l.b16 %v89
  %v219 = vunpack.c.l.b16 %v90
  %v220 = vunpack.c.l.b16 %v91
  %v221 = vunpack.c.l.b16 %v92
  %v222 = vunpack.c.l.b16 %v93
  %v223 = vpack.c.b16 %v160, %v159
  %v224 = vpack.c.b16 %v162, %v161
  %v225 = vpack.c.b16 %v164, %v163
  %v226 = vpack.c.b16 %v166, %v165
  %v227 = vpack.c.b16 %v168, %v167
  %v228 = vpack.c.b16 %v170, %v169
  %v229 = vpack.c.b16 %v172, %v171
  %v230 = vpack.c.b16 %v174, %v173
  %v231 = vpack.c.b16 %v176, %v175
  %v232 = vpack.c.b16 %v178, %v177
  %v233 = vpack.c.b16 %v180, %v179
  %v234 = vpack.c.b16 %v182, %v181
  %v235 = vpack.c.b16 %v184, %v183
  %v236 = vpack.c.b16 %v186, %v185
  %v237 = vpack.c.b16 %v188, %v187
  %v238 = vpack.c.b16 %v190, %v189
  %v239 = vpack.c.b16 %v192, %v191
  %v240 = vpack.c.b16 %v194, %v193
  %v241 = vpack.c.b16 %v196, %v195
  %v242 = vpack.c.b16 %v198, %v197
  %v243 = vpack.c.b16 %v200, %v199
  %v244 = vpack.c.b16 %v202, %v201
  %v245 = vpack.c.b16 %v204, %v203
  %v246 = vpack.c.b16 %v206, %v205
  %v247 = vpack.c.b16 %v208, %v207
  %v248 = vpack.c.b16 %v210, %v209
  %v249 = vpack.c.b16 %v212, %v211
  %v250 = vpack.c.b16 %v214, %v213
  %v251 = vpack.c.b16 %v216, %v215
  %v252 = vpack.c.b16 %v218, %v217
  %v253 = vpack.c.b16 %v220, %v219
  %v254 = vpack.c.b16 %v222, %v221
  %vm255 = vcmask 64512
  %v257 = vsel %vm255, %v223, 0
  %v260 = vsel %vm255, %v224, 0
  %v263 = vsel %vm255, %v225, 0
  %v266 = vsel %vm255, %v226, 0
  %v269 = vsel %vm255, %v227, 0
  %v272 = vsel %vm255, %v228, 0
  %v275 = vsel %vm255, %v229, 0
  %v278 = vsel %vm255, %v230, 0
  %v281 = vsel %vm255, %v231, 0
  %v284 = vsel %vm255, %v232, 0
  %v287 = vsel %vm255, %v233, 0
  %v290 = vsel %vm255, %v234, 0
  %v293 = vsel %vm255, %v235, 0
  %v296 = vsel %vm255, %v236, 0
  %v299 = vsel %vm255, %v237, 0
  %v302 = vsel %vm255, %v238, 0
  %v305 = vsel %vm255, %v239, 0
  %v308 = vsel %vm255, %v240, 0
  %v311 = vsel %vm255, %v241, 0
  %v314 = vsel %vm255, %v242, 0
  %v317 = vsel %vm255, %v243, 0
  %v320 = vsel %vm255, %v244, 0
  %v323 = vsel %vm255, %v245, 0
  %v326 = vsel %vm255, %v246, 0
  %v329 = vsel %vm255, %v247, 0
  %v332 = vsel %vm255, %v248, 0
  %v335 = vsel %vm255, %v249, 0
  %v338 = vsel %vm255, %v250, 0
  %v341 = vsel %vm255, %v251, 0
  %v344 = vsel %vm255, %v252, 0
  %v347 = vsel %vm255, %v253, 0
  %v350 = vsel %vm255, %v254, 0
  %vm352 = vcmask 1043456
  %v354 = vsel %vm352, %v94, 0
  %356 = vmatpush.bf16.msra.mxu0 0
  %357 = vmatpush.bf16.msra.mxu0 0
  %358 = vmatpush.bf16.msra.mxu0 0
  %359 = vmatpush.bf16.msra.mxu0 0
  %360 = vmatpush.bf16.msra.mxu0 0
  %361 = vmatpush.bf16.msra.mxu0 0
  %362 = vmatpush.bf16.msra.mxu0 0
  %363 = vmatpush.bf16.msra.mxu0 %v354
  %364 = vmatmul.bf16.gmra.mxu0 %v257
  %v365 = vpop.f32.mrf.mxu0
  %v366 = vadd.f32 0.0, %v365
  %v367 = vpop.f32.mrf.mxu0
  %v368 = vadd.f32 0.0, %v367
  %369 = vmatmul.bf16.gmra.mxu0 %v260
  %v370 = vpop.f32.mrf.mxu0
  %v371 = vadd.f32 0.0, %v370
  %v372 = vpop.f32.mrf.mxu0
  %v373 = vadd.f32 0.0, %v372
  %374 = vmatmul.bf16.gmra.mxu0 %v263
  %v375 = vpop.f32.mrf.mxu0
  %v376 = vadd.f32 0.0, %v375
  %v377 = vpop.f32.mrf.mxu0
  %v378 = vadd.f32 0.0, %v377
  %379 = vmatmul.bf16.gmra.mxu0 %v266
  %v380 = vpop.f32.mrf.mxu0
  %v381 = vadd.f32 0.0, %v380
  %v382 = vpop.f32.mrf.mxu0
  %v383 = vadd.f32 0.0, %v382
  %384 = vmatmul.bf16.gmra.mxu0 %v269
  %v385 = vpop.f32.mrf.mxu0
  %v386 = vadd.f32 0.0, %v385
  %v387 = vpop.f32.mrf.mxu0
  %v388 = vadd.f32 0.0, %v387
  %389 = vmatmul.bf16.gmra.mxu0 %v272
  %v390 = vpop.f32.mrf.mxu0
  %v391 = vadd.f32 0.0, %v390
  %v392 = vpop.f32.mrf.mxu0
  %v393 = vadd.f32 0.0, %v392
  %394 = vmatmul.bf16.gmra.mxu0 %v275
  %v395 = vpop.f32.mrf.mxu0
  %v396 = vadd.f32 0.0, %v395
  %v397 = vpop.f32.mrf.mxu0
  %v398 = vadd.f32 0.0, %v397
  %399 = vmatmul.bf16.gmra.mxu0 %v278
  %v400 = vpop.f32.mrf.mxu0
  %v401 = vadd.f32 0.0, %v400
  %v402 = vpop.f32.mrf.mxu0
  %v403 = vadd.f32 0.0, %v402
  %404 = vmatmul.bf16.gmra.mxu0 %v281
  %v405 = vpop.f32.mrf.mxu0
  %v406 = vadd.f32 0.0, %v405
  %v407 = vpop.f32.mrf.mxu0
  %v408 = vadd.f32 0.0, %v407
  %409 = vmatmul.bf16.gmra.mxu0 %v284
  %v410 = vpop.f32.mrf.mxu0
  %v411 = vadd.f32 0.0, %v410
  %v412 = vpop.f32.mrf.mxu0
  %v413 = vadd.f32 0.0, %v412
  %414 = vmatmul.bf16.gmra.mxu0 %v287
  %v415 = vpop.f32.mrf.mxu0
  %v416 = vadd.f32 0.0, %v415
  %v417 = vpop.f32.mrf.mxu0
  %v418 = vadd.f32 0.0, %v417
  %419 = vmatmul.bf16.gmra.mxu0 %v290
  %v420 = vpop.f32.mrf.mxu0
  %v421 = vadd.f32 0.0, %v420
  %v422 = vpop.f32.mrf.mxu0
  %v423 = vadd.f32 0.0, %v422
  %424 = vmatmul.bf16.gmra.mxu0 %v293
  %v425 = vpop.f32.mrf.mxu0
  %v426 = vadd.f32 0.0, %v425
  %v427 = vpop.f32.mrf.mxu0
  %v428 = vadd.f32 0.0, %v427
  %429 = vmatmul.bf16.gmra.mxu0 %v296
  %v430 = vpop.f32.mrf.mxu0
  %v431 = vadd.f32 0.0, %v430
  %v432 = vpop.f32.mrf.mxu0
  %v433 = vadd.f32 0.0, %v432
  %434 = vmatmul.bf16.gmra.mxu0 %v299
  %v435 = vpop.f32.mrf.mxu0
  %v436 = vadd.f32 0.0, %v435
  %v437 = vpop.f32.mrf.mxu0
  %v438 = vadd.f32 0.0, %v437
  %439 = vmatmul.bf16.gmra.mxu0 %v302
  %v440 = vpop.f32.mrf.mxu0
  %v441 = vadd.f32 0.0, %v440
  %v442 = vpop.f32.mrf.mxu0
  %v443 = vadd.f32 0.0, %v442
  %444 = vmatmul.bf16.gmra.mxu0 %v305
  %v445 = vpop.f32.mrf.mxu0
  %v446 = vadd.f32 0.0, %v445
  %v447 = vpop.f32.mrf.mxu0
  %v448 = vadd.f32 0.0, %v447
  %449 = vmatmul.bf16.gmra.mxu0 %v308
  %v450 = vpop.f32.mrf.mxu0
  %v451 = vadd.f32 0.0, %v450
  %v452 = vpop.f32.mrf.mxu0
  %v453 = vadd.f32 0.0, %v452
  %454 = vmatmul.bf16.gmra.mxu0 %v311
  %v455 = vpop.f32.mrf.mxu0
  %v456 = vadd.f32 0.0, %v455
  %v457 = vpop.f32.mrf.mxu0
  %v458 = vadd.f32 0.0, %v457
  %459 = vmatmul.bf16.gmra.mxu0 %v314
  %v460 = vpop.f32.mrf.mxu0
  %v461 = vadd.f32 0.0, %v460
  %v462 = vpop.f32.mrf.mxu0
  %v463 = vadd.f32 0.0, %v462
  %464 = vmatmul.bf16.gmra.mxu0 %v317
  %v465 = vpop.f32.mrf.mxu0
  %v466 = vadd.f32 0.0, %v465
  %v467 = vpop.f32.mrf.mxu0
  %v468 = vadd.f32 0.0, %v467
  %469 = vmatmul.bf16.gmra.mxu0 %v320
  %v470 = vpop.f32.mrf.mxu0
  %v471 = vadd.f32 0.0, %v470
  %v472 = vpop.f32.mrf.mxu0
  %v473 = vadd.f32 0.0, %v472
  %474 = vmatmul.bf16.gmra.mxu0 %v323
  %v475 = vpop.f32.mrf.mxu0
  %v476 = vadd.f32 0.0, %v475
  %v477 = vpop.f32.mrf.mxu0
  %v478 = vadd.f32 0.0, %v477
  %479 = vmatmul.bf16.gmra.mxu0 %v326
  %v480 = vpop.f32.mrf.mxu0
  %v481 = vadd.f32 0.0, %v480
  %v482 = vpop.f32.mrf.mxu0
  %v483 = vadd.f32 0.0, %v482
  %484 = vmatmul.bf16.gmra.mxu0 %v329
  %v485 = vpop.f32.mrf.mxu0
  %v486 = vadd.f32 0.0, %v485
  %v487 = vpop.f32.mrf.mxu0
  %v488 = vadd.f32 0.0, %v487
  %489 = vmatmul.bf16.gmra.mxu0 %v332
  %v490 = vpop.f32.mrf.mxu0
  %v491 = vadd.f32 0.0, %v490
  %v492 = vpop.f32.mrf.mxu0
  %v493 = vadd.f32 0.0, %v492
  %494 = vmatmul.bf16.gmra.mxu0 %v335
  %v495 = vpop.f32.mrf.mxu0
  %v496 = vadd.f32 0.0, %v495
  %v497 = vpop.f32.mrf.mxu0
  %v498 = vadd.f32 0.0, %v497
  %499 = vmatmul.bf16.gmra.mxu0 %v338
  %v500 = vpop.f32.mrf.mxu0
  %v501 = vadd.f32 0.0, %v500
  %v502 = vpop.f32.mrf.mxu0
  %v503 = vadd.f32 0.0, %v502
  %504 = vmatmul.bf16.gmra.mxu0 %v341
  %v505 = vpop.f32.mrf.mxu0
  %v506 = vadd.f32 0.0, %v505
  %v507 = vpop.f32.mrf.mxu0
  %v508 = vadd.f32 0.0, %v507
  %509 = vmatmul.bf16.gmra.mxu0 %v344
  %v510 = vpop.f32.mrf.mxu0
  %v511 = vadd.f32 0.0, %v510
  %v512 = vpop.f32.mrf.mxu0
  %v513 = vadd.f32 0.0, %v512
  %514 = vmatmul.bf16.gmra.mxu0 %v347
  %v515 = vpop.f32.mrf.mxu0
  %v516 = vadd.f32 0.0, %v515
  %v517 = vpop.f32.mrf.mxu0
  %v518 = vadd.f32 0.0, %v517
  %519 = vmatmul.bf16.gmra.mxu0 %v350
  %v520 = vpop.f32.mrf.mxu0
  %v521 = vadd.f32 0.0, %v520
  %v522 = vpop.f32.mrf.mxu0
  %v523 = vadd.f32 0.0, %v522
  %524 = vdwg.mxu0
  %v525 = vld [vmem:[%s3] sm:$0x1]
  %v527 = vperm.slane %v525, 0
  %v529 = vmul.f32 %v366, %v527
  %v530 = vmul.f32 %v368, %v527
  %v531 = vmul.f32 %v371, %v527
  %v532 = vmul.f32 %v373, %v527
  %v533 = vmul.f32 %v376, %v527
  %v534 = vmul.f32 %v378, %v527
  %v535 = vmul.f32 %v381, %v527
  %v536 = vmul.f32 %v383, %v527
  %v537 = vmul.f32 %v386, %v527
  %v538 = vmul.f32 %v388, %v527
  %v539 = vmul.f32 %v391, %v527
  %v540 = vmul.f32 %v393, %v527
  %v541 = vmul.f32 %v396, %v527
  %v542 = vmul.f32 %v398, %v527
  %v543 = vmul.f32 %v401, %v527
  %v544 = vmul.f32 %v403, %v527
  %v545 = vmul.f32 %v406, %v527
  %v546 = vmul.f32 %v408, %v527
  %v547 = vmul.f32 %v411, %v527
  %v548 = vmul.f32 %v413, %v527
  %v549 = vmul.f32 %v416, %v527
  %v550 = vmul.f32 %v418, %v527
  %v551 = vmul.f32 %v421, %v527
  %v552 = vmul.f32 %v423, %v527
  %v553 = vmul.f32 %v426, %v527
  %v554 = vmul.f32 %v428, %v527
  %v555 = vmul.f32 %v431, %v527
  %v556 = vmul.f32 %v433, %v527
  %v557 = vmul.f32 %v436, %v527
  %v558 = vmul.f32 %v438, %v527
  %v559 = vmul.f32 %v441, %v527
  %v560 = vmul.f32 %v443, %v527
  %v561 = vmul.f32 %v446, %v527
  %v562 = vmul.f32 %v448, %v527
  %v563 = vmul.f32 %v451, %v527
  %v564 = vmul.f32 %v453, %v527
  %v565 = vmul.f32 %v456, %v527
  %v566 = vmul.f32 %v458, %v527
  %v567 = vmul.f32 %v461, %v527
  %v568 = vmul.f32 %v463, %v527
  %v569 = vmul.f32 %v466, %v527
  %v570 = vmul.f32 %v468, %v527
  %v571 = vmul.f32 %v471, %v527
  %v572 = vmul.f32 %v473, %v527
  %v573 = vmul.f32 %v476, %v527
  %v574 = vmul.f32 %v478, %v527
  %v575 = vmul.f32 %v481, %v527
  %v576 = vmul.f32 %v483, %v527
  %v577 = vmul.f32 %v486, %v527
  %v578 = vmul.f32 %v488, %v527
  %v579 = vmul.f32 %v491, %v527
  %v580 = vmul.f32 %v493, %v527
  %v581 = vmul.f32 %v496, %v527
  %v582 = vmul.f32 %v498, %v527
  %v583 = vmul.f32 %v501, %v527
  %v584 = vmul.f32 %v503, %v527
  %v585 = vmul.f32 %v506, %v527
  %v586 = vmul.f32 %v508, %v527
  %v587 = vmul.f32 %v511, %v527
  %v588 = vmul.f32 %v513, %v527
  %v589 = vmul.f32 %v516, %v527
  %v590 = vmul.f32 %v518, %v527
  %v591 = vmul.f32 %v521, %v527
  %v592 = vmul.f32 %v523, %v527
  %v593 = vld [vmem:[%s4] sm:$0x1]
  %v595 = vperm.slane %v593, 0
  %v597 = vadd.f32 %v529, %v595
  %v598 = vadd.f32 %v530, %v595
  %v599 = vadd.f32 %v531, %v595
  %v600 = vadd.f32 %v532, %v595
  %v601 = vadd.f32 %v533, %v595
  %v602 = vadd.f32 %v534, %v595
  %v603 = vadd.f32 %v535, %v595
  %v604 = vadd.f32 %v536, %v595
  %v605 = vadd.f32 %v537, %v595
  %v606 = vadd.f32 %v538, %v595
  %v607 = vadd.f32 %v539, %v595
  %v608 = vadd.f32 %v540, %v595
  %v609 = vadd.f32 %v541, %v595
  %v610 = vadd.f32 %v542, %v595
  %v611 = vadd.f32 %v543, %v595
  %v612 = vadd.f32 %v544, %v595
  %v613 = vadd.f32 %v545, %v595
  %v614 = vadd.f32 %v546, %v595
  %v615 = vadd.f32 %v547, %v595
  %v616 = vadd.f32 %v548, %v595
  %v617 = vadd.f32 %v549, %v595
  %v618 = vadd.f32 %v550, %v595
  %v619 = vadd.f32 %v551, %v595
  %v620 = vadd.f32 %v552, %v595
  %v621 = vadd.f32 %v553, %v595
  %v622 = vadd.f32 %v554, %v595
  %v623 = vadd.f32 %v555, %v595
  %v624 = vadd.f32 %v556, %v595
  %v625 = vadd.f32 %v557, %v595
  %v626 = vadd.f32 %v558, %v595
  %v627 = vadd.f32 %v559, %v595
  %v628 = vadd.f32 %v560, %v595
  %v629 = vadd.f32 %v561, %v595
  %v630 = vadd.f32 %v562, %v595
  %v631 = vadd.f32 %v563, %v595
  %v632 = vadd.f32 %v564, %v595
  %v633 = vadd.f32 %v565, %v595
  %v634 = vadd.f32 %v566, %v595
  %v635 = vadd.f32 %v567, %v595
  %v636 = vadd.f32 %v568, %v595
  %v637 = vadd.f32 %v569, %v595
  %v638 = vadd.f32 %v570, %v595
  %v639 = vadd.f32 %v571, %v595
  %v640 = vadd.f32 %v572, %v595
  %v641 = vadd.f32 %v573, %v595
  %v642 = vadd.f32 %v574, %v595
  %v643 = vadd.f32 %v575, %v595
  %v644 = vadd.f32 %v576, %v595
  %v645 = vadd.f32 %v577, %v595
  %v646 = vadd.f32 %v578, %v595
  %v647 = vadd.f32 %v579, %v595
  %v648 = vadd.f32 %v580, %v595
  %v649 = vadd.f32 %v581, %v595
  %v650 = vadd.f32 %v582, %v595
  %v651 = vadd.f32 %v583, %v595
  %v652 = vadd.f32 %v584, %v595
  %v653 = vadd.f32 %v585, %v595
  %v654 = vadd.f32 %v586, %v595
  %v655 = vadd.f32 %v587, %v595
  %v656 = vadd.f32 %v588, %v595
  %v657 = vadd.f32 %v589, %v595
  %v658 = vadd.f32 %v590, %v595
  %v659 = vadd.f32 %v591, %v595
  %v660 = vadd.f32 %v592, %v595
  %vm661 = vcmp.gt.f32.partialorder %v597, 0.0
  %vm662 = vcmp.gt.f32.partialorder %v598, 0.0
  %vm663 = vcmp.gt.f32.partialorder %v599, 0.0
  %vm664 = vcmp.gt.f32.partialorder %v600, 0.0
  %vm665 = vcmp.gt.f32.partialorder %v601, 0.0
  %vm666 = vcmp.gt.f32.partialorder %v602, 0.0
  %vm667 = vcmp.gt.f32.partialorder %v603, 0.0
  %vm668 = vcmp.gt.f32.partialorder %v604, 0.0
  %vm669 = vcmp.gt.f32.partialorder %v605, 0.0
  %vm670 = vcmp.gt.f32.partialorder %v606, 0.0
  %vm671 = vcmp.gt.f32.partialorder %v607, 0.0
  %vm672 = vcmp.gt.f32.partialorder %v608, 0.0
  %vm673 = vcmp.gt.f32.partialorder %v609, 0.0
  %vm674 = vcmp.gt.f32.partialorder %v610, 0.0
  %vm675 = vcmp.gt.f32.partialorder %v611, 0.0
  %vm676 = vcmp.gt.f32.partialorder %v612, 0.0
  %vm677 = vcmp.gt.f32.partialorder %v613, 0.0
  %vm678 = vcmp.gt.f32.partialorder %v614, 0.0
  %vm679 = vcmp.gt.f32.partialorder %v615, 0.0
  %vm680 = vcmp.gt.f32.partialorder %v616, 0.0
  %vm681 = vcmp.gt.f32.partialorder %v617, 0.0
  %vm682 = vcmp.gt.f32.partialorder %v618, 0.0
  %vm683 = vcmp.gt.f32.partialorder %v619, 0.0
  %vm684 = vcmp.gt.f32.partialorder %v620, 0.0
  %vm685 = vcmp.gt.f32.partialorder %v621, 0.0
  %vm686 = vcmp.gt.f32.partialorder %v622, 0.0
  %vm687 = vcmp.gt.f32.partialorder %v623, 0.0
  %vm688 = vcmp.gt.f32.partialorder %v624, 0.0
  %vm689 = vcmp.gt.f32.partialorder %v625, 0.0
  %vm690 = vcmp.gt.f32.partialorder %v626, 0.0
  %vm691 = vcmp.gt.f32.partialorder %v627, 0.0
  %vm692 = vcmp.gt.f32.partialorder %v628, 0.0
  %vm693 = vcmp.gt.f32.partialorder %v629, 0.0
  %vm694 = vcmp.gt.f32.partialorder %v630, 0.0
  %vm695 = vcmp.gt.f32.partialorder %v631, 0.0
  %vm696 = vcmp.gt.f32.partialorder %v632, 0.0
  %vm697 = vcmp.gt.f32.partialorder %v633, 0.0
  %vm698 = vcmp.gt.f32.partialorder %v634, 0.0
  %vm699 = vcmp.gt.f32.partialorder %v635, 0.0
  %vm700 = vcmp.gt.f32.partialorder %v636, 0.0
  %vm701 = vcmp.gt.f32.partialorder %v637, 0.0
  %vm702 = vcmp.gt.f32.partialorder %v638, 0.0
  %vm703 = vcmp.gt.f32.partialorder %v639, 0.0
  %vm704 = vcmp.gt.f32.partialorder %v640, 0.0
  %vm705 = vcmp.gt.f32.partialorder %v641, 0.0
  %vm706 = vcmp.gt.f32.partialorder %v642, 0.0
  %vm707 = vcmp.gt.f32.partialorder %v643, 0.0
  %vm708 = vcmp.gt.f32.partialorder %v644, 0.0
  %vm709 = vcmp.gt.f32.partialorder %v645, 0.0
  %vm710 = vcmp.gt.f32.partialorder %v646, 0.0
  %vm711 = vcmp.gt.f32.partialorder %v647, 0.0
  %vm712 = vcmp.gt.f32.partialorder %v648, 0.0
  %vm713 = vcmp.gt.f32.partialorder %v649, 0.0
  %vm714 = vcmp.gt.f32.partialorder %v650, 0.0
  %vm715 = vcmp.gt.f32.partialorder %v651, 0.0
  %vm716 = vcmp.gt.f32.partialorder %v652, 0.0
  %vm717 = vcmp.gt.f32.partialorder %v653, 0.0
  %vm718 = vcmp.gt.f32.partialorder %v654, 0.0
  %vm719 = vcmp.gt.f32.partialorder %v655, 0.0
  %vm720 = vcmp.gt.f32.partialorder %v656, 0.0
  %vm721 = vcmp.gt.f32.partialorder %v657, 0.0
  %vm722 = vcmp.gt.f32.partialorder %v658, 0.0
  %vm723 = vcmp.gt.f32.partialorder %v659, 0.0
  %vm724 = vcmp.gt.f32.partialorder %v660, 0.0
  %v725 = vmul.f32 %v597, 0.1
  %v726 = vmul.f32 %v598, 0.1
  %v727 = vmul.f32 %v599, 0.1
  %v728 = vmul.f32 %v600, 0.1
  %v729 = vmul.f32 %v601, 0.1
  %v730 = vmul.f32 %v602, 0.1
  %v731 = vmul.f32 %v603, 0.1
  %v732 = vmul.f32 %v604, 0.1
  %v733 = vmul.f32 %v605, 0.1
  %v734 = vmul.f32 %v606, 0.1
  %v735 = vmul.f32 %v607, 0.1
  %v736 = vmul.f32 %v608, 0.1
  %v737 = vmul.f32 %v609, 0.1
  %v738 = vmul.f32 %v610, 0.1
  %v739 = vmul.f32 %v611, 0.1
  %v740 = vmul.f32 %v612, 0.1
  %v741 = vmul.f32 %v613, 0.1
  %v742 = vmul.f32 %v614, 0.1
  %v743 = vmul.f32 %v615, 0.1
  %v744 = vmul.f32 %v616, 0.1
  %v745 = vmul.f32 %v617, 0.1
  %v746 = vmul.f32 %v618, 0.1
  %v747 = vmul.f32 %v619, 0.1
  %v748 = vmul.f32 %v620, 0.1
  %v749 = vmul.f32 %v621, 0.1
  %v750 = vmul.f32 %v622, 0.1
  %v751 = vmul.f32 %v623, 0.1
  %v752 = vmul.f32 %v624, 0.1
  %v753 = vmul.f32 %v625, 0.1
  %v754 = vmul.f32 %v626, 0.1
  %v755 = vmul.f32 %v627, 0.1
  %v756 = vmul.f32 %v628, 0.1
  %v757 = vmul.f32 %v629, 0.1
  %v758 = vmul.f32 %v630, 0.1
  %v759 = vmul.f32 %v631, 0.1
  %v760 = vmul.f32 %v632, 0.1
  %v761 = vmul.f32 %v633, 0.1
  %v762 = vmul.f32 %v634, 0.1
  %v763 = vmul.f32 %v635, 0.1
  %v764 = vmul.f32 %v636, 0.1
  %v765 = vmul.f32 %v637, 0.1
  %v766 = vmul.f32 %v638, 0.1
  %v767 = vmul.f32 %v639, 0.1
  %v768 = vmul.f32 %v640, 0.1
  %v769 = vmul.f32 %v641, 0.1
  %v770 = vmul.f32 %v642, 0.1
  %v771 = vmul.f32 %v643, 0.1
  %v772 = vmul.f32 %v644, 0.1
  %v773 = vmul.f32 %v645, 0.1
  %v774 = vmul.f32 %v646, 0.1
  %v775 = vmul.f32 %v647, 0.1
  %v776 = vmul.f32 %v648, 0.1
  %v777 = vmul.f32 %v649, 0.1
  %v778 = vmul.f32 %v650, 0.1
  %v779 = vmul.f32 %v651, 0.1
  %v780 = vmul.f32 %v652, 0.1
  %v781 = vmul.f32 %v653, 0.1
  %v782 = vmul.f32 %v654, 0.1
  %v783 = vmul.f32 %v655, 0.1
  %v784 = vmul.f32 %v656, 0.1
  %v785 = vmul.f32 %v657, 0.1
  %v786 = vmul.f32 %v658, 0.1
  %v787 = vmul.f32 %v659, 0.1
  %v788 = vmul.f32 %v660, 0.1
  %v789 = vsel %vm661, %v597, %v725
  %v790 = vsel %vm662, %v598, %v726
  %v791 = vsel %vm663, %v599, %v727
  %v792 = vsel %vm664, %v600, %v728
  %v793 = vsel %vm665, %v601, %v729
  %v794 = vsel %vm666, %v602, %v730
  %v795 = vsel %vm667, %v603, %v731
  %v796 = vsel %vm668, %v604, %v732
  %v797 = vsel %vm669, %v605, %v733
  %v798 = vsel %vm670, %v606, %v734
  %v799 = vsel %vm671, %v607, %v735
  %v800 = vsel %vm672, %v608, %v736
  %v801 = vsel %vm673, %v609, %v737
  %v802 = vsel %vm674, %v610, %v738
  %v803 = vsel %vm675, %v611, %v739
  %v804 = vsel %vm676, %v612, %v740
  %v805 = vsel %vm677, %v613, %v741
  %v806 = vsel %vm678, %v614, %v742
  %v807 = vsel %vm679, %v615, %v743
  %v808 = vsel %vm680, %v616, %v744
  %v809 = vsel %vm681, %v617, %v745
  %v810 = vsel %vm682, %v618, %v746
  %v811 = vsel %vm683, %v619, %v747
  %v812 = vsel %vm684, %v620, %v748
  %v813 = vsel %vm685, %v621, %v749
  %v814 = vsel %vm686, %v622, %v750
  %v815 = vsel %vm687, %v623, %v751
  %v816 = vsel %vm688, %v624, %v752
  %v817 = vsel %vm689, %v625, %v753
  %v818 = vsel %vm690, %v626, %v754
  %v819 = vsel %vm691, %v627, %v755
  %v820 = vsel %vm692, %v628, %v756
  %v821 = vsel %vm693, %v629, %v757
  %v822 = vsel %vm694, %v630, %v758
  %v823 = vsel %vm695, %v631, %v759
  %v824 = vsel %vm696, %v632, %v760
  %v825 = vsel %vm697, %v633, %v761
  %v826 = vsel %vm698, %v634, %v762
  %v827 = vsel %vm699, %v635, %v763
  %v828 = vsel %vm700, %v636, %v764
  %v829 = vsel %vm701, %v637, %v765
  %v830 = vsel %vm702, %v638, %v766
  %v831 = vsel %vm703, %v639, %v767
  %v832 = vsel %vm704, %v640, %v768
  %v833 = vsel %vm705, %v641, %v769
  %v834 = vsel %vm706, %v642, %v770
  %v835 = vsel %vm707, %v643, %v771
  %v836 = vsel %vm708, %v644, %v772
  %v837 = vsel %vm709, %v645, %v773
  %v838 = vsel %vm710, %v646, %v774
  %v839 = vsel %vm711, %v647, %v775
  %v840 = vsel %vm712, %v648, %v776
  %v841 = vsel %vm713, %v649, %v777
  %v842 = vsel %vm714, %v650, %v778
  %v843 = vsel %vm715, %v651, %v779
  %v844 = vsel %vm716, %v652, %v780
  %v845 = vsel %vm717, %v653, %v781
  %v846 = vsel %vm718, %v654, %v782
  %v847 = vsel %vm719, %v655, %v783
  %v848 = vsel %vm720, %v656, %v784
  %v849 = vsel %vm721, %v657, %v785
  %v850 = vsel %vm722, %v658, %v786
  %v851 = vsel %vm723, %v659, %v787
  %v852 = vsel %vm724, %v660, %v788
  %v853 = vpack.c.bf16 %v790, %v789
  %v854 = vpack.c.bf16 %v792, %v791
  %v855 = vpack.c.bf16 %v794, %v793
  %v856 = vpack.c.bf16 %v796, %v795
  %v857 = vpack.c.bf16 %v798, %v797
  %v858 = vpack.c.bf16 %v800, %v799
  %v859 = vpack.c.bf16 %v802, %v801
  %v860 = vpack.c.bf16 %v804, %v803
  %v861 = vpack.c.bf16 %v806, %v805
  %v862 = vpack.c.bf16 %v808, %v807
  %v863 = vpack.c.bf16 %v810, %v809
  %v864 = vpack.c.bf16 %v812, %v811
  %v865 = vpack.c.bf16 %v814, %v813
  %v866 = vpack.c.bf16 %v816, %v815
  %v867 = vpack.c.bf16 %v818, %v817
  %v868 = vpack.c.bf16 %v820, %v819
  %v869 = vpack.c.bf16 %v822, %v821
  %v870 = vpack.c.bf16 %v824, %v823
  %v871 = vpack.c.bf16 %v826, %v825
  %v872 = vpack.c.bf16 %v828, %v827
  %v873 = vpack.c.bf16 %v830, %v829
  %v874 = vpack.c.bf16 %v832, %v831
  %v875 = vpack.c.bf16 %v834, %v833
  %v876 = vpack.c.bf16 %v836, %v835
  %v877 = vpack.c.bf16 %v838, %v837
  %v878 = vpack.c.bf16 %v840, %v839
  %v879 = vpack.c.bf16 %v842, %v841
  %v880 = vpack.c.bf16 %v844, %v843
  %v881 = vpack.c.bf16 %v846, %v845
  %v882 = vpack.c.bf16 %v848, %v847
  %v883 = vpack.c.bf16 %v850, %v849
  %v884 = vpack.c.bf16 %v852, %v851
  %v885 = vld [vmem:[%s5] sm:$0x3]
  %v886 = vld [vmem:[%s1] sm:$0xf]
  %v887 = vld [vmem:[%s1 + $0x4] sm:$0xf]
  %v888 = vld [vmem:[%s1 + $0x8] sm:$0xf]
  %v889 = vld [vmem:[%s1 + $0xc] sm:$0xf]
  %v890 = vld [vmem:[%s1 + $0x10] sm:$0xf]
  %v891 = vld [vmem:[%s1 + $0x14] sm:$0xf]
  %v892 = vld [vmem:[%s1 + $0x18] sm:$0xf]
  %v893 = vld [vmem:[%s1 + $0x1c] sm:$0xf]
  %v894 = vld [vmem:[%s1 + $0x20] sm:$0xf]
  %v895 = vld [vmem:[%s1 + $0x24] sm:$0xf]
  %v896 = vld [vmem:[%s1 + $0x28] sm:$0xf]
  %v897 = vld [vmem:[%s1 + $0x2c] sm:$0xf]
  %v898 = vld [vmem:[%s1 + $0x30] sm:$0xf]
  %v899 = vld [vmem:[%s1 + $0x34] sm:$0xf]
  %v900 = vld [vmem:[%s1 + $0x38] sm:$0xf]
  %v901 = vld [vmem:[%s1 + $0x3c] sm:$0xf]
  %v902 = vld [vmem:[%s1 + $0x40] sm:$0xf]
  %v903 = vld [vmem:[%s1 + $0x44] sm:$0xf]
  %v904 = vld [vmem:[%s1 + $0x48] sm:$0xf]
  %v905 = vld [vmem:[%s1 + $0x4c] sm:$0xf]
  %v906 = vld [vmem:[%s1 + $0x50] sm:$0xf]
  %v907 = vld [vmem:[%s1 + $0x54] sm:$0xf]
  %v908 = vld [vmem:[%s1 + $0x58] sm:$0xf]
  %v909 = vld [vmem:[%s1 + $0x5c] sm:$0xf]
  %v910 = vld [vmem:[%s1 + $0x60] sm:$0xf]
  %v911 = vld [vmem:[%s1 + $0x64] sm:$0xf]
  %v912 = vld [vmem:[%s1 + $0x68] sm:$0xf]
  %v913 = vld [vmem:[%s1 + $0x6c] sm:$0xf]
  %v914 = vld [vmem:[%s1 + $0x70] sm:$0xf]
  %v915 = vld [vmem:[%s1 + $0x74] sm:$0xf]
  %v916 = vld [vmem:[%s1 + $0x78] sm:$0xf]
  %v917 = vld [vmem:[%s1 + $0x7c] sm:$0xf]
  %v918 = vld [vmem:[%s1 + $0x80] sm:$0xf]
  %v919 = vld [vmem:[%s1 + $0x84] sm:$0xf]
  %v920 = vld [vmem:[%s1 + $0x88] sm:$0xf]
  %v921 = vld [vmem:[%s1 + $0x8c] sm:$0xf]
  %v922 = vld [vmem:[%s1 + $0x90] sm:$0xf]
  %v923 = vld [vmem:[%s1 + $0x94] sm:$0xf]
  %v924 = vld [vmem:[%s1 + $0x98] sm:$0xf]
  %v925 = vld [vmem:[%s1 + $0x9c] sm:$0xf]
  %v926 = vld [vmem:[%s1 + $0xa0] sm:$0xf]
  %v927 = vld [vmem:[%s1 + $0xa4] sm:$0xf]
  %v928 = vld [vmem:[%s1 + $0xa8] sm:$0xf]
  %v929 = vld [vmem:[%s1 + $0xac] sm:$0xf]
  %v930 = vld [vmem:[%s1 + $0xb0] sm:$0xf]
  %v931 = vld [vmem:[%s1 + $0xb4] sm:$0xf]
  %v932 = vld [vmem:[%s1 + $0xb8] sm:$0xf]
  %v933 = vld [vmem:[%s1 + $0xbc] sm:$0xf]
  %v934 = vld [vmem:[%s1 + $0xc0] sm:$0xf]
  %v935 = vld [vmem:[%s1 + $0xc4] sm:$0xf]
  %v936 = vld [vmem:[%s1 + $0xc8] sm:$0xf]
  %v937 = vld [vmem:[%s1 + $0xcc] sm:$0xf]
  %v938 = vld [vmem:[%s1 + $0xd0] sm:$0xf]
  %v939 = vld [vmem:[%s1 + $0xd4] sm:$0xf]
  %v940 = vld [vmem:[%s1 + $0xd8] sm:$0xf]
  %v941 = vld [vmem:[%s1 + $0xdc] sm:$0xf]
  %v942 = vld [vmem:[%s1 + $0xe0] sm:$0xf]
  %v943 = vld [vmem:[%s1 + $0xe4] sm:$0xf]
  %v944 = vld [vmem:[%s1 + $0xe8] sm:$0xf]
  %v945 = vld [vmem:[%s1 + $0xec] sm:$0xf]
  %v946 = vld [vmem:[%s1 + $0xf0] sm:$0xf]
  %v947 = vld [vmem:[%s1 + $0xf4] sm:$0xf]
  %v948 = vld [vmem:[%s1 + $0xf8] sm:$0xf]
  %v949 = vld [vmem:[%s1 + $0xfc] sm:$0xf]
  %v950 = vunpack.c.l.bf16 %v886
  %v951 = vunpack.c.l.bf16 %v887
  %v952 = vunpack.c.l.bf16 %v888
  %v953 = vunpack.c.l.bf16 %v889
  %v954 = vunpack.c.l.bf16 %v890
  %v955 = vunpack.c.l.bf16 %v891
  %v956 = vunpack.c.l.bf16 %v892
  %v957 = vunpack.c.l.bf16 %v893
  %v958 = vunpack.c.l.bf16 %v894
  %v959 = vunpack.c.l.bf16 %v895
  %v960 = vunpack.c.l.bf16 %v896
  %v961 = vunpack.c.l.bf16 %v897
  %v962 = vunpack.c.l.bf16 %v898
  %v963 = vunpack.c.l.bf16 %v899
  %v964 = vunpack.c.l.bf16 %v900
  %v965 = vunpack.c.l.bf16 %v901
  %v966 = vunpack.c.l.bf16 %v902
  %v967 = vunpack.c.l.bf16 %v903
  %v968 = vunpack.c.l.bf16 %v904
  %v969 = vunpack.c.l.bf16 %v905
  %v970 = vunpack.c.l.bf16 %v906
  %v971 = vunpack.c.l.bf16 %v907
  %v972 = vunpack.c.l.bf16 %v908
  %v973 = vunpack.c.l.bf16 %v909
  %v974 = vunpack.c.l.bf16 %v910
  %v975 = vunpack.c.l.bf16 %v911
  %v976 = vunpack.c.l.bf16 %v912
  %v977 = vunpack.c.l.bf16 %v913
  %v978 = vunpack.c.l.bf16 %v914
  %v979 = vunpack.c.l.bf16 %v915
  %v980 = vunpack.c.l.bf16 %v916
  %v981 = vunpack.c.l.bf16 %v917
  %v982 = vunpack.c.l.bf16 %v918
  %v983 = vunpack.c.l.bf16 %v919
  %v984 = vunpack.c.l.bf16 %v920
  %v985 = vunpack.c.l.bf16 %v921
  %v986 = vunpack.c.l.bf16 %v922
  %v987 = vunpack.c.l.bf16 %v923
  %v988 = vunpack.c.l.bf16 %v924
  %v989 = vunpack.c.l.bf16 %v925
  %v990 = vunpack.c.l.bf16 %v926
  %v991 = vunpack.c.l.bf16 %v927
  %v992 = vunpack.c.l.bf16 %v928
  %v993 = vunpack.c.l.bf16 %v929
  %v994 = vunpack.c.l.bf16 %v930
  %v995 = vunpack.c.l.bf16 %v931
  %v996 = vunpack.c.l.bf16 %v932
  %v997 = vunpack.c.l.bf16 %v933
  %v998 = vunpack.c.l.bf16 %v934
  %v999 = vunpack.c.l.bf16 %v935
  %v1000 = vunpack.c.l.bf16 %v936
  %v1001 = vunpack.c.l.bf16 %v937
  %v1002 = vunpack.c.l.bf16 %v938
  %v1003 = vunpack.c.l.bf16 %v939
  %v1004 = vunpack.c.l.bf16 %v940
  %v1005 = vunpack.c.l.bf16 %v941
  %v1006 = vunpack.c.l.bf16 %v942
  %v1007 = vunpack.c.l.bf16 %v943
  %v1008 = vunpack.c.l.bf16 %v944
  %v1009 = vunpack.c.l.bf16 %v945
  %v1010 = vunpack.c.l.bf16 %v946
  %v1011 = vunpack.c.l.bf16 %v947
  %v1012 = vunpack.c.l.bf16 %v948
  %v1013 = vunpack.c.l.bf16 %v949
  %vm1014 = vcmask 31744
  %v1016 = vsel %vm1014, %v853, 0
  %v1019 = vsel %vm1014, %v854, 0
  %v1022 = vsel %vm1014, %v855, 0
  %v1025 = vsel %vm1014, %v856, 0
  %v1028 = vsel %vm1014, %v857, 0
  %v1031 = vsel %vm1014, %v858, 0
  %v1034 = vsel %vm1014, %v859, 0
  %v1037 = vsel %vm1014, %v860, 0
  %v1040 = vsel %vm1014, %v861, 0
  %v1043 = vsel %vm1014, %v862, 0
  %v1046 = vsel %vm1014, %v863, 0
  %v1049 = vsel %vm1014, %v864, 0
  %v1052 = vsel %vm1014, %v865, 0
  %v1055 = vsel %vm1014, %v866, 0
  %v1058 = vsel %vm1014, %v867, 0
  %v1061 = vsel %vm1014, %v868, 0
  %v1064 = vsel %vm1014, %v869, 0
  %v1067 = vsel %vm1014, %v870, 0
  %v1070 = vsel %vm1014, %v871, 0
  %v1073 = vsel %vm1014, %v872, 0
  %v1076 = vsel %vm1014, %v873, 0
  %v1079 = vsel %vm1014, %v874, 0
  %v1082 = vsel %vm1014, %v875, 0
  %v1085 = vsel %vm1014, %v876, 0
  %v1088 = vsel %vm1014, %v877, 0
  %v1091 = vsel %vm1014, %v878, 0
  %v1094 = vsel %vm1014, %v879, 0
  %v1097 = vsel %vm1014, %v880, 0
  %v1100 = vsel %vm1014, %v881, 0
  %v1103 = vsel %vm1014, %v882, 0
  %v1106 = vsel %vm1014, %v883, 0
  %v1109 = vsel %vm1014, %v884, 0
  %vm1111 = vcmask 1041408
  %v1113 = vsel %vm1111, %v885, 0
  %1115 = vmatpush.bf16.msra.mxu0 0
  %1116 = vmatpush.bf16.msra.mxu0 0
  %1117 = vmatpush.bf16.msra.mxu0 0
  %1118 = vmatpush.bf16.msra.mxu0 0
  %1119 = vmatpush.bf16.msra.mxu0 0
  %1120 = vmatpush.bf16.msra.mxu0 0
  %1121 = vmatpush.bf16.msra.mxu0 0
  %1122 = vmatpush.bf16.msra.mxu0 %v1113
  %1123 = vmatmul.bf16.gmra.mxu0 %v1016
  %v1124 = vpop.f32.mrf.mxu0
  %v1125 = vadd.f32 %v950, %v1124
  %v1126 = vpop.f32.mrf.mxu0
  %v1127 = vadd.f32 %v951, %v1126
  %1128 = vmatmul.bf16.gmra.mxu0 %v1019
  %v1129 = vpop.f32.mrf.mxu0
  %v1130 = vadd.f32 %v952, %v1129
  %v1131 = vpop.f32.mrf.mxu0
  %v1132 = vadd.f32 %v953, %v1131
  %1133 = vmatmul.bf16.gmra.mxu0 %v1022
  %v1134 = vpop.f32.mrf.mxu0
  %v1135 = vadd.f32 %v954, %v1134
  %v1136 = vpop.f32.mrf.mxu0
  %v1137 = vadd.f32 %v955, %v1136
  %1138 = vmatmul.bf16.gmra.mxu0 %v1025
  %v1139 = vpop.f32.mrf.mxu0
  %v1140 = vadd.f32 %v956, %v1139
  %v1141 = vpop.f32.mrf.mxu0
  %v1142 = vadd.f32 %v957, %v1141
  %1143 = vmatmul.bf16.gmra.mxu0 %v1028
  %v1144 = vpop.f32.mrf.mxu0
  %v1145 = vadd.f32 %v958, %v1144
  %v1146 = vpop.f32.mrf.mxu0
  %v1147 = vadd.f32 %v959, %v1146
  %1148 = vmatmul.bf16.gmra.mxu0 %v1031
  %v1149 = vpop.f32.mrf.mxu0
  %v1150 = vadd.f32 %v960, %v1149
  %v1151 = vpop.f32.mrf.mxu0
  %v1152 = vadd.f32 %v961, %v1151
  %1153 = vmatmul.bf16.gmra.mxu0 %v1034
  %v1154 = vpop.f32.mrf.mxu0
  %v1155 = vadd.f32 %v962, %v1154
  %v1156 = vpop.f32.mrf.mxu0
  %v1157 = vadd.f32 %v963, %v1156
  %1158 = vmatmul.bf16.gmra.mxu0 %v1037
  %v1159 = vpop.f32.mrf.mxu0
  %v1160 = vadd.f32 %v964, %v1159
  %v1161 = vpop.f32.mrf.mxu0
  %v1162 = vadd.f32 %v965, %v1161
  %1163 = vmatmul.bf16.gmra.mxu0 %v1040
  %v1164 = vpop.f32.mrf.mxu0
  %v1165 = vadd.f32 %v966, %v1164
  %v1166 = vpop.f32.mrf.mxu0
  %v1167 = vadd.f32 %v967, %v1166
  %1168 = vmatmul.bf16.gmra.mxu0 %v1043
  %v1169 = vpop.f32.mrf.mxu0
  %v1170 = vadd.f32 %v968, %v1169
  %v1171 = vpop.f32.mrf.mxu0
  %v1172 = vadd.f32 %v969, %v1171
  %1173 = vmatmul.bf16.gmra.mxu0 %v1046
  %v1174 = vpop.f32.mrf.mxu0
  %v1175 = vadd.f32 %v970, %v1174
  %v1176 = vpop.f32.mrf.mxu0
  %v1177 = vadd.f32 %v971, %v1176
  %1178 = vmatmul.bf16.gmra.mxu0 %v1049
  %v1179 = vpop.f32.mrf.mxu0
  %v1180 = vadd.f32 %v972, %v1179
  %v1181 = vpop.f32.mrf.mxu0
  %v1182 = vadd.f32 %v973, %v1181
  %1183 = vmatmul.bf16.gmra.mxu0 %v1052
  %v1184 = vpop.f32.mrf.mxu0
  %v1185 = vadd.f32 %v974, %v1184
  %v1186 = vpop.f32.mrf.mxu0
  %v1187 = vadd.f32 %v975, %v1186
  %1188 = vmatmul.bf16.gmra.mxu0 %v1055
  %v1189 = vpop.f32.mrf.mxu0
  %v1190 = vadd.f32 %v976, %v1189
  %v1191 = vpop.f32.mrf.mxu0
  %v1192 = vadd.f32 %v977, %v1191
  %1193 = vmatmul.bf16.gmra.mxu0 %v1058
  %v1194 = vpop.f32.mrf.mxu0
  %v1195 = vadd.f32 %v978, %v1194
  %v1196 = vpop.f32.mrf.mxu0
  %v1197 = vadd.f32 %v979, %v1196
  %1198 = vmatmul.bf16.gmra.mxu0 %v1061
  %v1199 = vpop.f32.mrf.mxu0
  %v1200 = vadd.f32 %v980, %v1199
  %v1201 = vpop.f32.mrf.mxu0
  %v1202 = vadd.f32 %v981, %v1201
  %1203 = vmatmul.bf16.gmra.mxu0 %v1064
  %v1204 = vpop.f32.mrf.mxu0
  %v1205 = vadd.f32 %v982, %v1204
  %v1206 = vpop.f32.mrf.mxu0
  %v1207 = vadd.f32 %v983, %v1206
  %1208 = vmatmul.bf16.gmra.mxu0 %v1067
  %v1209 = vpop.f32.mrf.mxu0
  %v1210 = vadd.f32 %v984, %v1209
  %v1211 = vpop.f32.mrf.mxu0
  %v1212 = vadd.f32 %v985, %v1211
  %1213 = vmatmul.bf16.gmra.mxu0 %v1070
  %v1214 = vpop.f32.mrf.mxu0
  %v1215 = vadd.f32 %v986, %v1214
  %v1216 = vpop.f32.mrf.mxu0
  %v1217 = vadd.f32 %v987, %v1216
  %1218 = vmatmul.bf16.gmra.mxu0 %v1073
  %v1219 = vpop.f32.mrf.mxu0
  %v1220 = vadd.f32 %v988, %v1219
  %v1221 = vpop.f32.mrf.mxu0
  %v1222 = vadd.f32 %v989, %v1221
  %1223 = vmatmul.bf16.gmra.mxu0 %v1076
  %v1224 = vpop.f32.mrf.mxu0
  %v1225 = vadd.f32 %v990, %v1224
  %v1226 = vpop.f32.mrf.mxu0
  %v1227 = vadd.f32 %v991, %v1226
  %1228 = vmatmul.bf16.gmra.mxu0 %v1079
  %v1229 = vpop.f32.mrf.mxu0
  %v1230 = vadd.f32 %v992, %v1229
  %v1231 = vpop.f32.mrf.mxu0
  %v1232 = vadd.f32 %v993, %v1231
  %1233 = vmatmul.bf16.gmra.mxu0 %v1082
  %v1234 = vpop.f32.mrf.mxu0
  %v1235 = vadd.f32 %v994, %v1234
  %v1236 = vpop.f32.mrf.mxu0
  %v1237 = vadd.f32 %v995, %v1236
  %1238 = vmatmul.bf16.gmra.mxu0 %v1085
  %v1239 = vpop.f32.mrf.mxu0
  %v1240 = vadd.f32 %v996, %v1239
  %v1241 = vpop.f32.mrf.mxu0
  %v1242 = vadd.f32 %v997, %v1241
  %1243 = vmatmul.bf16.gmra.mxu0 %v1088
  %v1244 = vpop.f32.mrf.mxu0
  %v1245 = vadd.f32 %v998, %v1244
  %v1246 = vpop.f32.mrf.mxu0
  %v1247 = vadd.f32 %v999, %v1246
  %1248 = vmatmul.bf16.gmra.mxu0 %v1091
  %v1249 = vpop.f32.mrf.mxu0
  %v1250 = vadd.f32 %v1000, %v1249
  %v1251 = vpop.f32.mrf.mxu0
  %v1252 = vadd.f32 %v1001, %v1251
  %1253 = vmatmul.bf16.gmra.mxu0 %v1094
  %v1254 = vpop.f32.mrf.mxu0
  %v1255 = vadd.f32 %v1002, %v1254
  %v1256 = vpop.f32.mrf.mxu0
  %v1257 = vadd.f32 %v1003, %v1256
  %1258 = vmatmul.bf16.gmra.mxu0 %v1097
  %v1259 = vpop.f32.mrf.mxu0
  %v1260 = vadd.f32 %v1004, %v1259
  %v1261 = vpop.f32.mrf.mxu0
  %v1262 = vadd.f32 %v1005, %v1261
  %1263 = vmatmul.bf16.gmra.mxu0 %v1100
  %v1264 = vpop.f32.mrf.mxu0
  %v1265 = vadd.f32 %v1006, %v1264
  %v1266 = vpop.f32.mrf.mxu0
  %v1267 = vadd.f32 %v1007, %v1266
  %1268 = vmatmul.bf16.gmra.mxu0 %v1103
  %v1269 = vpop.f32.mrf.mxu0
  %v1270 = vadd.f32 %v1008, %v1269
  %v1271 = vpop.f32.mrf.mxu0
  %v1272 = vadd.f32 %v1009, %v1271
  %1273 = vmatmul.bf16.gmra.mxu0 %v1106
  %v1274 = vpop.f32.mrf.mxu0
  %v1275 = vadd.f32 %v1010, %v1274
  %v1276 = vpop.f32.mrf.mxu0
  %v1277 = vadd.f32 %v1011, %v1276
  %1278 = vmatmul.bf16.gmra.mxu0 %v1109
  %v1279 = vpop.f32.mrf.mxu0
  %v1280 = vadd.f32 %v1012, %v1279
  %v1281 = vpop.f32.mrf.mxu0
  %v1282 = vadd.f32 %v1013, %v1281
  %1283 = vdwg.mxu0
  %v1284 = vld [vmem:[%s6] sm:$0x1]
  %v1286 = vperm.slane %v1284, 0
  %v1288 = vmul.f32 %v1125, %v1286
  %v1289 = vmul.f32 %v1127, %v1286
  %v1290 = vmul.f32 %v1130, %v1286
  %v1291 = vmul.f32 %v1132, %v1286
  %v1292 = vmul.f32 %v1135, %v1286
  %v1293 = vmul.f32 %v1137, %v1286
  %v1294 = vmul.f32 %v1140, %v1286
  %v1295 = vmul.f32 %v1142, %v1286
  %v1296 = vmul.f32 %v1145, %v1286
  %v1297 = vmul.f32 %v1147, %v1286
  %v1298 = vmul.f32 %v1150, %v1286
  %v1299 = vmul.f32 %v1152, %v1286
  %v1300 = vmul.f32 %v1155, %v1286
  %v1301 = vmul.f32 %v1157, %v1286
  %v1302 = vmul.f32 %v1160, %v1286
  %v1303 = vmul.f32 %v1162, %v1286
  %v1304 = vmul.f32 %v1165, %v1286
  %v1305 = vmul.f32 %v1167, %v1286
  %v1306 = vmul.f32 %v1170, %v1286
  %v1307 = vmul.f32 %v1172, %v1286
  %v1308 = vmul.f32 %v1175, %v1286
  %v1309 = vmul.f32 %v1177, %v1286
  %v1310 = vmul.f32 %v1180, %v1286
  %v1311 = vmul.f32 %v1182, %v1286
  %v1312 = vmul.f32 %v1185, %v1286
  %v1313 = vmul.f32 %v1187, %v1286
  %v1314 = vmul.f32 %v1190, %v1286
  %v1315 = vmul.f32 %v1192, %v1286
  %v1316 = vmul.f32 %v1195, %v1286
  %v1317 = vmul.f32 %v1197, %v1286
  %v1318 = vmul.f32 %v1200, %v1286
  %v1319 = vmul.f32 %v1202, %v1286
  %v1320 = vmul.f32 %v1205, %v1286
  %v1321 = vmul.f32 %v1207, %v1286
  %v1322 = vmul.f32 %v1210, %v1286
  %v1323 = vmul.f32 %v1212, %v1286
  %v1324 = vmul.f32 %v1215, %v1286
  %v1325 = vmul.f32 %v1217, %v1286
  %v1326 = vmul.f32 %v1220, %v1286
  %v1327 = vmul.f32 %v1222, %v1286
  %v1328 = vmul.f32 %v1225, %v1286
  %v1329 = vmul.f32 %v1227, %v1286
  %v1330 = vmul.f32 %v1230, %v1286
  %v1331 = vmul.f32 %v1232, %v1286
  %v1332 = vmul.f32 %v1235, %v1286
  %v1333 = vmul.f32 %v1237, %v1286
  %v1334 = vmul.f32 %v1240, %v1286
  %v1335 = vmul.f32 %v1242, %v1286
  %v1336 = vmul.f32 %v1245, %v1286
  %v1337 = vmul.f32 %v1247, %v1286
  %v1338 = vmul.f32 %v1250, %v1286
  %v1339 = vmul.f32 %v1252, %v1286
  %v1340 = vmul.f32 %v1255, %v1286
  %v1341 = vmul.f32 %v1257, %v1286
  %v1342 = vmul.f32 %v1260, %v1286
  %v1343 = vmul.f32 %v1262, %v1286
  %v1344 = vmul.f32 %v1265, %v1286
  %v1345 = vmul.f32 %v1267, %v1286
  %v1346 = vmul.f32 %v1270, %v1286
  %v1347 = vmul.f32 %v1272, %v1286
  %v1348 = vmul.f32 %v1275, %v1286
  %v1349 = vmul.f32 %v1277, %v1286
  %v1350 = vmul.f32 %v1280, %v1286
  %v1351 = vmul.f32 %v1282, %v1286
  %v1352 = vld [vmem:[%s7] sm:$0x1]
  %v1354 = vperm.slane %v1352, 0
  %v1356 = vadd.f32 %v1288, %v1354
  %v1357 = vadd.f32 %v1289, %v1354
  %v1358 = vadd.f32 %v1290, %v1354
  %v1359 = vadd.f32 %v1291, %v1354
  %v1360 = vadd.f32 %v1292, %v1354
  %v1361 = vadd.f32 %v1293, %v1354
  %v1362 = vadd.f32 %v1294, %v1354
  %v1363 = vadd.f32 %v1295, %v1354
  %v1364 = vadd.f32 %v1296, %v1354
  %v1365 = vadd.f32 %v1297, %v1354
  %v1366 = vadd.f32 %v1298, %v1354
  %v1367 = vadd.f32 %v1299, %v1354
  %v1368 = vadd.f32 %v1300, %v1354
  %v1369 = vadd.f32 %v1301, %v1354
  %v1370 = vadd.f32 %v1302, %v1354
  %v1371 = vadd.f32 %v1303, %v1354
  %v1372 = vadd.f32 %v1304, %v1354
  %v1373 = vadd.f32 %v1305, %v1354
  %v1374 = vadd.f32 %v1306, %v1354
  %v1375 = vadd.f32 %v1307, %v1354
  %v1376 = vadd.f32 %v1308, %v1354
  %v1377 = vadd.f32 %v1309, %v1354
  %v1378 = vadd.f32 %v1310, %v1354
  %v1379 = vadd.f32 %v1311, %v1354
  %v1380 = vadd.f32 %v1312, %v1354
  %v1381 = vadd.f32 %v1313, %v1354
  %v1382 = vadd.f32 %v1314, %v1354
  %v1383 = vadd.f32 %v1315, %v1354
  %v1384 = vadd.f32 %v1316, %v1354
  %v1385 = vadd.f32 %v1317, %v1354
  %v1386 = vadd.f32 %v1318, %v1354
  %v1387 = vadd.f32 %v1319, %v1354
  %v1388 = vadd.f32 %v1320, %v1354
  %v1389 = vadd.f32 %v1321, %v1354
  %v1390 = vadd.f32 %v1322, %v1354
  %v1391 = vadd.f32 %v1323, %v1354
  %v1392 = vadd.f32 %v1324, %v1354
  %v1393 = vadd.f32 %v1325, %v1354
  %v1394 = vadd.f32 %v1326, %v1354
  %v1395 = vadd.f32 %v1327, %v1354
  %v1396 = vadd.f32 %v1328, %v1354
  %v1397 = vadd.f32 %v1329, %v1354
  %v1398 = vadd.f32 %v1330, %v1354
  %v1399 = vadd.f32 %v1331, %v1354
  %v1400 = vadd.f32 %v1332, %v1354
  %v1401 = vadd.f32 %v1333, %v1354
  %v1402 = vadd.f32 %v1334, %v1354
  %v1403 = vadd.f32 %v1335, %v1354
  %v1404 = vadd.f32 %v1336, %v1354
  %v1405 = vadd.f32 %v1337, %v1354
  %v1406 = vadd.f32 %v1338, %v1354
  %v1407 = vadd.f32 %v1339, %v1354
  %v1408 = vadd.f32 %v1340, %v1354
  %v1409 = vadd.f32 %v1341, %v1354
  %v1410 = vadd.f32 %v1342, %v1354
  %v1411 = vadd.f32 %v1343, %v1354
  %v1412 = vadd.f32 %v1344, %v1354
  %v1413 = vadd.f32 %v1345, %v1354
  %v1414 = vadd.f32 %v1346, %v1354
  %v1415 = vadd.f32 %v1347, %v1354
  %v1416 = vadd.f32 %v1348, %v1354
  %v1417 = vadd.f32 %v1349, %v1354
  %v1418 = vadd.f32 %v1350, %v1354
  %v1419 = vadd.f32 %v1351, %v1354
  %vm1420 = vcmp.gt.f32.partialorder %v1356, 0.0
  %vm1421 = vcmp.gt.f32.partialorder %v1357, 0.0
  %vm1422 = vcmp.gt.f32.partialorder %v1358, 0.0
  %vm1423 = vcmp.gt.f32.partialorder %v1359, 0.0
  %vm1424 = vcmp.gt.f32.partialorder %v1360, 0.0
  %vm1425 = vcmp.gt.f32.partialorder %v1361, 0.0
  %vm1426 = vcmp.gt.f32.partialorder %v1362, 0.0
  %vm1427 = vcmp.gt.f32.partialorder %v1363, 0.0
  %vm1428 = vcmp.gt.f32.partialorder %v1364, 0.0
  %vm1429 = vcmp.gt.f32.partialorder %v1365, 0.0
  %vm1430 = vcmp.gt.f32.partialorder %v1366, 0.0
  %vm1431 = vcmp.gt.f32.partialorder %v1367, 0.0
  %vm1432 = vcmp.gt.f32.partialorder %v1368, 0.0
  %vm1433 = vcmp.gt.f32.partialorder %v1369, 0.0
  %vm1434 = vcmp.gt.f32.partialorder %v1370, 0.0
  %vm1435 = vcmp.gt.f32.partialorder %v1371, 0.0
  %vm1436 = vcmp.gt.f32.partialorder %v1372, 0.0
  %vm1437 = vcmp.gt.f32.partialorder %v1373, 0.0
  %vm1438 = vcmp.gt.f32.partialorder %v1374, 0.0
  %vm1439 = vcmp.gt.f32.partialorder %v1375, 0.0
  %vm1440 = vcmp.gt.f32.partialorder %v1376, 0.0
  %vm1441 = vcmp.gt.f32.partialorder %v1377, 0.0
  %vm1442 = vcmp.gt.f32.partialorder %v1378, 0.0
  %vm1443 = vcmp.gt.f32.partialorder %v1379, 0.0
  %vm1444 = vcmp.gt.f32.partialorder %v1380, 0.0
  %vm1445 = vcmp.gt.f32.partialorder %v1381, 0.0
  %vm1446 = vcmp.gt.f32.partialorder %v1382, 0.0
  %vm1447 = vcmp.gt.f32.partialorder %v1383, 0.0
  %vm1448 = vcmp.gt.f32.partialorder %v1384, 0.0
  %vm1449 = vcmp.gt.f32.partialorder %v1385, 0.0
  %vm1450 = vcmp.gt.f32.partialorder %v1386, 0.0
  %vm1451 = vcmp.gt.f32.partialorder %v1387, 0.0
  %vm1452 = vcmp.gt.f32.partialorder %v1388, 0.0
  %vm1453 = vcmp.gt.f32.partialorder %v1389, 0.0
  %vm1454 = vcmp.gt.f32.partialorder %v1390, 0.0
  %vm1455 = vcmp.gt.f32.partialorder %v1391, 0.0
  %vm1456 = vcmp.gt.f32.partialorder %v1392, 0.0
  %vm1457 = vcmp.gt.f32.partialorder %v1393, 0.0
  %vm1458 = vcmp.gt.f32.partialorder %v1394, 0.0
  %vm1459 = vcmp.gt.f32.partialorder %v1395, 0.0
  %vm1460 = vcmp.gt.f32.partialorder %v1396, 0.0
  %vm1461 = vcmp.gt.f32.partialorder %v1397, 0.0
  %vm1462 = vcmp.gt.f32.partialorder %v1398, 0.0
  %vm1463 = vcmp.gt.f32.partialorder %v1399, 0.0
  %vm1464 = vcmp.gt.f32.partialorder %v1400, 0.0
  %vm1465 = vcmp.gt.f32.partialorder %v1401, 0.0
  %vm1466 = vcmp.gt.f32.partialorder %v1402, 0.0
  %vm1467 = vcmp.gt.f32.partialorder %v1403, 0.0
  %vm1468 = vcmp.gt.f32.partialorder %v1404, 0.0
  %vm1469 = vcmp.gt.f32.partialorder %v1405, 0.0
  %vm1470 = vcmp.gt.f32.partialorder %v1406, 0.0
  %vm1471 = vcmp.gt.f32.partialorder %v1407, 0.0
  %vm1472 = vcmp.gt.f32.partialorder %v1408, 0.0
  %vm1473 = vcmp.gt.f32.partialorder %v1409, 0.0
  %vm1474 = vcmp.gt.f32.partialorder %v1410, 0.0
  %vm1475 = vcmp.gt.f32.partialorder %v1411, 0.0
  %vm1476 = vcmp.gt.f32.partialorder %v1412, 0.0
  %vm1477 = vcmp.gt.f32.partialorder %v1413, 0.0
  %vm1478 = vcmp.gt.f32.partialorder %v1414, 0.0
  %vm1479 = vcmp.gt.f32.partialorder %v1415, 0.0
  %vm1480 = vcmp.gt.f32.partialorder %v1416, 0.0
  %vm1481 = vcmp.gt.f32.partialorder %v1417, 0.0
  %vm1482 = vcmp.gt.f32.partialorder %v1418, 0.0
  %vm1483 = vcmp.gt.f32.partialorder %v1419, 0.0
  %v1484 = vmul.f32 %v1356, 0.1
  %v1485 = vmul.f32 %v1357, 0.1
  %v1486 = vmul.f32 %v1358, 0.1
  %v1487 = vmul.f32 %v1359, 0.1
  %v1488 = vmul.f32 %v1360, 0.1
  %v1489 = vmul.f32 %v1361, 0.1
  %v1490 = vmul.f32 %v1362, 0.1
  %v1491 = vmul.f32 %v1363, 0.1
  %v1492 = vmul.f32 %v1364, 0.1
  %v1493 = vmul.f32 %v1365, 0.1
  %v1494 = vmul.f32 %v1366, 0.1
  %v1495 = vmul.f32 %v1367, 0.1
  %v1496 = vmul.f32 %v1368, 0.1
  %v1497 = vmul.f32 %v1369, 0.1
  %v1498 = vmul.f32 %v1370, 0.1
  %v1499 = vmul.f32 %v1371, 0.1
  %v1500 = vmul.f32 %v1372, 0.1
  %v1501 = vmul.f32 %v1373, 0.1
  %v1502 = vmul.f32 %v1374, 0.1
  %v1503 = vmul.f32 %v1375, 0.1
  %v1504 = vmul.f32 %v1376, 0.1
  %v1505 = vmul.f32 %v1377, 0.1
  %v1506 = vmul.f32 %v1378, 0.1
  %v1507 = vmul.f32 %v1379, 0.1
  %v1508 = vmul.f32 %v1380, 0.1
  %v1509 = vmul.f32 %v1381, 0.1
  %v1510 = vmul.f32 %v1382, 0.1
  %v1511 = vmul.f32 %v1383, 0.1
  %v1512 = vmul.f32 %v1384, 0.1
  %v1513 = vmul.f32 %v1385, 0.1
  %v1514 = vmul.f32 %v1386, 0.1
  %v1515 = vmul.f32 %v1387, 0.1
  %v1516 = vmul.f32 %v1388, 0.1
  %v1517 = vmul.f32 %v1389, 0.1
  %v1518 = vmul.f32 %v1390, 0.1
  %v1519 = vmul.f32 %v1391, 0.1
  %v1520 = vmul.f32 %v1392, 0.1
  %v1521 = vmul.f32 %v1393, 0.1
  %v1522 = vmul.f32 %v1394, 0.1
  %v1523 = vmul.f32 %v1395, 0.1
  %v1524 = vmul.f32 %v1396, 0.1
  %v1525 = vmul.f32 %v1397, 0.1
  %v1526 = vmul.f32 %v1398, 0.1
  %v1527 = vmul.f32 %v1399, 0.1
  %v1528 = vmul.f32 %v1400, 0.1
  %v1529 = vmul.f32 %v1401, 0.1
  %v1530 = vmul.f32 %v1402, 0.1
  %v1531 = vmul.f32 %v1403, 0.1
  %v1532 = vmul.f32 %v1404, 0.1
  %v1533 = vmul.f32 %v1405, 0.1
  %v1534 = vmul.f32 %v1406, 0.1
  %v1535 = vmul.f32 %v1407, 0.1
  %v1536 = vmul.f32 %v1408, 0.1
  %v1537 = vmul.f32 %v1409, 0.1
  %v1538 = vmul.f32 %v1410, 0.1
  %v1539 = vmul.f32 %v1411, 0.1
  %v1540 = vmul.f32 %v1412, 0.1
  %v1541 = vmul.f32 %v1413, 0.1
  %v1542 = vmul.f32 %v1414, 0.1
  %v1543 = vmul.f32 %v1415, 0.1
  %v1544 = vmul.f32 %v1416, 0.1
  %v1545 = vmul.f32 %v1417, 0.1
  %v1546 = vmul.f32 %v1418, 0.1
  %v1547 = vmul.f32 %v1419, 0.1
  %v1548 = vsel %vm1420, %v1356, %v1484
  %v1549 = vsel %vm1421, %v1357, %v1485
  %v1550 = vsel %vm1422, %v1358, %v1486
  %v1551 = vsel %vm1423, %v1359, %v1487
  %v1552 = vsel %vm1424, %v1360, %v1488
  %v1553 = vsel %vm1425, %v1361, %v1489
  %v1554 = vsel %vm1426, %v1362, %v1490
  %v1555 = vsel %vm1427, %v1363, %v1491
  %v1556 = vsel %vm1428, %v1364, %v1492
  %v1557 = vsel %vm1429, %v1365, %v1493
  %v1558 = vsel %vm1430, %v1366, %v1494
  %v1559 = vsel %vm1431, %v1367, %v1495
  %v1560 = vsel %vm1432, %v1368, %v1496
  %v1561 = vsel %vm1433, %v1369, %v1497
  %v1562 = vsel %vm1434, %v1370, %v1498
  %v1563 = vsel %vm1435, %v1371, %v1499
  %v1564 = vsel %vm1436, %v1372, %v1500
  %v1565 = vsel %vm1437, %v1373, %v1501
  %v1566 = vsel %vm1438, %v1374, %v1502
  %v1567 = vsel %vm1439, %v1375, %v1503
  %v1568 = vsel %vm1440, %v1376, %v1504
  %v1569 = vsel %vm1441, %v1377, %v1505
  %v1570 = vsel %vm1442, %v1378, %v1506
  %v1571 = vsel %vm1443, %v1379, %v1507
  %v1572 = vsel %vm1444, %v1380, %v1508
  %v1573 = vsel %vm1445, %v1381, %v1509
  %v1574 = vsel %vm1446, %v1382, %v1510
  %v1575 = vsel %vm1447, %v1383, %v1511
  %v1576 = vsel %vm1448, %v1384, %v1512
  %v1577 = vsel %vm1449, %v1385, %v1513
  %v1578 = vsel %vm1450, %v1386, %v1514
  %v1579 = vsel %vm1451, %v1387, %v1515
  %v1580 = vsel %vm1452, %v1388, %v1516
  %v1581 = vsel %vm1453, %v1389, %v1517
  %v1582 = vsel %vm1454, %v1390, %v1518
  %v1583 = vsel %vm1455, %v1391, %v1519
  %v1584 = vsel %vm1456, %v1392, %v1520
  %v1585 = vsel %vm1457, %v1393, %v1521
  %v1586 = vsel %vm1458, %v1394, %v1522
  %v1587 = vsel %vm1459, %v1395, %v1523
  %v1588 = vsel %vm1460, %v1396, %v1524
  %v1589 = vsel %vm1461, %v1397, %v1525
  %v1590 = vsel %vm1462, %v1398, %v1526
  %v1591 = vsel %vm1463, %v1399, %v1527
  %v1592 = vsel %vm1464, %v1400, %v1528
  %v1593 = vsel %vm1465, %v1401, %v1529
  %v1594 = vsel %vm1466, %v1402, %v1530
  %v1595 = vsel %vm1467, %v1403, %v1531
  %v1596 = vsel %vm1468, %v1404, %v1532
  %v1597 = vsel %vm1469, %v1405, %v1533
  %v1598 = vsel %vm1470, %v1406, %v1534
  %v1599 = vsel %vm1471, %v1407, %v1535
  %v1600 = vsel %vm1472, %v1408, %v1536
  %v1601 = vsel %vm1473, %v1409, %v1537
  %v1602 = vsel %vm1474, %v1410, %v1538
  %v1603 = vsel %vm1475, %v1411, %v1539
  %v1604 = vsel %vm1476, %v1412, %v1540
  %v1605 = vsel %vm1477, %v1413, %v1541
  %v1606 = vsel %vm1478, %v1414, %v1542
  %v1607 = vsel %vm1479, %v1415, %v1543
  %v1608 = vsel %vm1480, %v1416, %v1544
  %v1609 = vsel %vm1481, %v1417, %v1545
  %v1610 = vsel %vm1482, %v1418, %v1546
  %v1611 = vsel %vm1483, %v1419, %v1547
  %v1612 = vpack.c.bf16 %v1548, %v1548
  %v1613 = vpack.c.bf16 %v1549, %v1549
  %v1614 = vpack.c.bf16 %v1550, %v1550
  %v1615 = vpack.c.bf16 %v1551, %v1551
  %v1616 = vpack.c.bf16 %v1552, %v1552
  %v1617 = vpack.c.bf16 %v1553, %v1553
  %v1618 = vpack.c.bf16 %v1554, %v1554
  %v1619 = vpack.c.bf16 %v1555, %v1555
  %v1620 = vpack.c.bf16 %v1556, %v1556
  %v1621 = vpack.c.bf16 %v1557, %v1557
  %v1622 = vpack.c.bf16 %v1558, %v1558
  %v1623 = vpack.c.bf16 %v1559, %v1559
  %v1624 = vpack.c.bf16 %v1560, %v1560
  %v1625 = vpack.c.bf16 %v1561, %v1561
  %v1626 = vpack.c.bf16 %v1562, %v1562
  %v1627 = vpack.c.bf16 %v1563, %v1563
  %v1628 = vpack.c.bf16 %v1564, %v1564
  %v1629 = vpack.c.bf16 %v1565, %v1565
  %v1630 = vpack.c.bf16 %v1566, %v1566
  %v1631 = vpack.c.bf16 %v1567, %v1567
  %v1632 = vpack.c.bf16 %v1568, %v1568
  %v1633 = vpack.c.bf16 %v1569, %v1569
  %v1634 = vpack.c.bf16 %v1570, %v1570
  %v1635 = vpack.c.bf16 %v1571, %v1571
  %v1636 = vpack.c.bf16 %v1572, %v1572
  %v1637 = vpack.c.bf16 %v1573, %v1573
  %v1638 = vpack.c.bf16 %v1574, %v1574
  %v1639 = vpack.c.bf16 %v1575, %v1575
  %v1640 = vpack.c.bf16 %v1576, %v1576
  %v1641 = vpack.c.bf16 %v1577, %v1577
  %v1642 = vpack.c.bf16 %v1578, %v1578
  %v1643 = vpack.c.bf16 %v1579, %v1579
  %v1644 = vpack.c.bf16 %v1580, %v1580
  %v1645 = vpack.c.bf16 %v1581, %v1581
  %v1646 = vpack.c.bf16 %v1582, %v1582
  %v1647 = vpack.c.bf16 %v1583, %v1583
  %v1648 = vpack.c.bf16 %v1584, %v1584
  %v1649 = vpack.c.bf16 %v1585, %v1585
  %v1650 = vpack.c.bf16 %v1586, %v1586
  %v1651 = vpack.c.bf16 %v1587, %v1587
  %v1652 = vpack.c.bf16 %v1588, %v1588
  %v1653 = vpack.c.bf16 %v1589, %v1589
  %v1654 = vpack.c.bf16 %v1590, %v1590
  %v1655 = vpack.c.bf16 %v1591, %v1591
  %v1656 = vpack.c.bf16 %v1592, %v1592
  %v1657 = vpack.c.bf16 %v1593, %v1593
  %v1658 = vpack.c.bf16 %v1594, %v1594
  %v1659 = vpack.c.bf16 %v1595, %v1595
  %v1660 = vpack.c.bf16 %v1596, %v1596
  %v1661 = vpack.c.bf16 %v1597, %v1597
  %v1662 = vpack.c.bf16 %v1598, %v1598
  %v1663 = vpack.c.bf16 %v1599, %v1599
  %v1664 = vpack.c.bf16 %v1600, %v1600
  %v1665 = vpack.c.bf16 %v1601, %v1601
  %v1666 = vpack.c.bf16 %v1602, %v1602
  %v1667 = vpack.c.bf16 %v1603, %v1603
  %v1668 = vpack.c.bf16 %v1604, %v1604
  %v1669 = vpack.c.bf16 %v1605, %v1605
  %v1670 = vpack.c.bf16 %v1606, %v1606
  %v1671 = vpack.c.bf16 %v1607, %v1607
  %v1672 = vpack.c.bf16 %v1608, %v1608
  %v1673 = vpack.c.bf16 %v1609, %v1609
  %v1674 = vpack.c.bf16 %v1610, %v1610
  %v1675 = vpack.c.bf16 %v1611, %v1611
  %vm1676 = vcmask 27648
  %1677 = vst.msk [vmem:[%s8] sm:$0xf] %vm1676, %v1612
  %1678 = vst.msk [vmem:[%s8 + $0x4] sm:$0xf] %vm1676, %v1613
  %1679 = vst.msk [vmem:[%s8 + $0x8] sm:$0xf] %vm1676, %v1614
  %1680 = vst.msk [vmem:[%s8 + $0xc] sm:$0xf] %vm1676, %v1615
  %1681 = vst.msk [vmem:[%s8 + $0x10] sm:$0xf] %vm1676, %v1616
  %1682 = vst.msk [vmem:[%s8 + $0x14] sm:$0xf] %vm1676, %v1617
  %1683 = vst.msk [vmem:[%s8 + $0x18] sm:$0xf] %vm1676, %v1618
  %1684 = vst.msk [vmem:[%s8 + $0x1c] sm:$0xf] %vm1676, %v1619
  %1685 = vst.msk [vmem:[%s8 + $0x20] sm:$0xf] %vm1676, %v1620
  %1686 = vst.msk [vmem:[%s8 + $0x24] sm:$0xf] %vm1676, %v1621
  %1687 = vst.msk [vmem:[%s8 + $0x28] sm:$0xf] %vm1676, %v1622
  %1688 = vst.msk [vmem:[%s8 + $0x2c] sm:$0xf] %vm1676, %v1623
  %1689 = vst.msk [vmem:[%s8 + $0x30] sm:$0xf] %vm1676, %v1624
  %1690 = vst.msk [vmem:[%s8 + $0x34] sm:$0xf] %vm1676, %v1625
  %1691 = vst.msk [vmem:[%s8 + $0x38] sm:$0xf] %vm1676, %v1626
  %1692 = vst.msk [vmem:[%s8 + $0x3c] sm:$0xf] %vm1676, %v1627
  %1693 = vst.msk [vmem:[%s8 + $0x40] sm:$0xf] %vm1676, %v1628
  %1694 = vst.msk [vmem:[%s8 + $0x44] sm:$0xf] %vm1676, %v1629
  %1695 = vst.msk [vmem:[%s8 + $0x48] sm:$0xf] %vm1676, %v1630
  %1696 = vst.msk [vmem:[%s8 + $0x4c] sm:$0xf] %vm1676, %v1631
  %1697 = vst.msk [vmem:[%s8 + $0x50] sm:$0xf] %vm1676, %v1632
  %1698 = vst.msk [vmem:[%s8 + $0x54] sm:$0xf] %vm1676, %v1633
  %1699 = vst.msk [vmem:[%s8 + $0x58] sm:$0xf] %vm1676, %v1634
  %1700 = vst.msk [vmem:[%s8 + $0x5c] sm:$0xf] %vm1676, %v1635
  %1701 = vst.msk [vmem:[%s8 + $0x60] sm:$0xf] %vm1676, %v1636
  %1702 = vst.msk [vmem:[%s8 + $0x64] sm:$0xf] %vm1676, %v1637
  %1703 = vst.msk [vmem:[%s8 + $0x68] sm:$0xf] %vm1676, %v1638
  %1704 = vst.msk [vmem:[%s8 + $0x6c] sm:$0xf] %vm1676, %v1639
  %1705 = vst.msk [vmem:[%s8 + $0x70] sm:$0xf] %vm1676, %v1640
  %1706 = vst.msk [vmem:[%s8 + $0x74] sm:$0xf] %vm1676, %v1641
  %1707 = vst.msk [vmem:[%s8 + $0x78] sm:$0xf] %vm1676, %v1642
  %1708 = vst.msk [vmem:[%s8 + $0x7c] sm:$0xf] %vm1676, %v1643
  %1709 = vst.msk [vmem:[%s8 + $0x80] sm:$0xf] %vm1676, %v1644
  %1710 = vst.msk [vmem:[%s8 + $0x84] sm:$0xf] %vm1676, %v1645
  %1711 = vst.msk [vmem:[%s8 + $0x88] sm:$0xf] %vm1676, %v1646
  %1712 = vst.msk [vmem:[%s8 + $0x8c] sm:$0xf] %vm1676, %v1647
  %1713 = vst.msk [vmem:[%s8 + $0x90] sm:$0xf] %vm1676, %v1648
  %1714 = vst.msk [vmem:[%s8 + $0x94] sm:$0xf] %vm1676, %v1649
  %1715 = vst.msk [vmem:[%s8 + $0x98] sm:$0xf] %vm1676, %v1650
  %1716 = vst.msk [vmem:[%s8 + $0x9c] sm:$0xf] %vm1676, %v1651
  %1717 = vst.msk [vmem:[%s8 + $0xa0] sm:$0xf] %vm1676, %v1652
  %1718 = vst.msk [vmem:[%s8 + $0xa4] sm:$0xf] %vm1676, %v1653
  %1719 = vst.msk [vmem:[%s8 + $0xa8] sm:$0xf] %vm1676, %v1654
  %1720 = vst.msk [vmem:[%s8 + $0xac] sm:$0xf] %vm1676, %v1655
  %1721 = vst.msk [vmem:[%s8 + $0xb0] sm:$0xf] %vm1676, %v1656
  %1722 = vst.msk [vmem:[%s8 + $0xb4] sm:$0xf] %vm1676, %v1657
  %1723 = vst.msk [vmem:[%s8 + $0xb8] sm:$0xf] %vm1676, %v1658
  %1724 = vst.msk [vmem:[%s8 + $0xbc] sm:$0xf] %vm1676, %v1659
  %1725 = vst.msk [vmem:[%s8 + $0xc0] sm:$0xf] %vm1676, %v1660
  %1726 = vst.msk [vmem:[%s8 + $0xc4] sm:$0xf] %vm1676, %v1661
  %1727 = vst.msk [vmem:[%s8 + $0xc8] sm:$0xf] %vm1676, %v1662
  %1728 = vst.msk [vmem:[%s8 + $0xcc] sm:$0xf] %vm1676, %v1663
  %1729 = vst.msk [vmem:[%s8 + $0xd0] sm:$0xf] %vm1676, %v1664
  %1730 = vst.msk [vmem:[%s8 + $0xd4] sm:$0xf] %vm1676, %v1665
  %1731 = vst.msk [vmem:[%s8 + $0xd8] sm:$0xf] %vm1676, %v1666
  %1732 = vst.msk [vmem:[%s8 + $0xdc] sm:$0xf] %vm1676, %v1667
  %1733 = vst.msk [vmem:[%s8 + $0xe0] sm:$0xf] %vm1676, %v1668
  %1734 = vst.msk [vmem:[%s8 + $0xe4] sm:$0xf] %vm1676, %v1669
  %1735 = vst.msk [vmem:[%s8 + $0xe8] sm:$0xf] %vm1676, %v1670
  %1736 = vst.msk [vmem:[%s8 + $0xec] sm:$0xf] %vm1676, %v1671
  %1737 = vst.msk [vmem:[%s8 + $0xf0] sm:$0xf] %vm1676, %v1672
  %1738 = vst.msk [vmem:[%s8 + $0xf4] sm:$0xf] %vm1676, %v1673
  %1739 = vst.msk [vmem:[%s8 + $0xf8] sm:$0xf] %vm1676, %v1674
  %1740 = vst.msk [vmem:[%s8 + $0xfc] sm:$0xf] %vm1676, %v1675
  // Predicated region
  $region34: #{pan_layer_forward.5} parent=0 // pred_check
    _
  $region35: #{pan_layer_forward.5} parent=0 // pred_check_branch
    %1742 = sbr.rel (0) target = $region37
  $region36: #{pan_layer_forward.5} parent=0 // pred_region
    _
  $region37: #{pan_layer_forward.5} parent=0 // pred_fallthru
    _
  // Predicated region
  $region38: #{pan_layer_forward.5} parent=0 // pred_check
    _
  $region39: #{pan_layer_forward.5} parent=0 // pred_check_branch
    %1744 = sbr.rel (0) target = $region41
  $region40: #{pan_layer_forward.5} parent=0 // pred_region
    _
  $region41: #{pan_layer_forward.5} parent=0 // pred_fallthru
    _

// kernel: pan_layer_forward.7
$region0: #{pan_layer_forward.7}
  #allocation0 [shape = 'u32[]', space=smem, size = 0x4, offset = 0x4, fixed_abs, tag = 'smem constant byte address 0x4 - core index']
  #allocation1 [shape = 'u32[72,128]{1,0:T(1,128)}', space=vmem, size = 0x9000, scoped, tag = 'internal scratch']
  %s0 = inlined_call_operand.vmem [shape: bf16[2,18,18,4], index: 0, kind: input, shape index: {}]
  %s1 = inlined_call_operand.vmem [shape: bf16[36,8], index: 1, kind: input, shape index: {}]
  %s2 = inlined_call_operand.vmem [shape: f32[1,8], index: 2, kind: input, shape index: {}]
  %s3 = inlined_call_operand.vmem [shape: f32[1,8], index: 3, kind: input, shape index: {}]
  %s4 = inlined_call_operand.vmem [shape: bf16[8,4], index: 4, kind: input, shape index: {}]
  %s5 = inlined_call_operand.vmem [shape: f32[1,4], index: 5, kind: input, shape index: {}]
  %s6 = inlined_call_operand.vmem [shape: f32[1,4], index: 6, kind: input, shape index: {}]
  %s7 = inlined_call_operand.vmem [shape: f32[2,16,16,4], index: 7, kind: output, shape index: {}]
  %s8 = sld [smem:[#allocation0]]
  $region61: #{pan_layer_forward.7} parent=0
    _
  %s10 = ssub.s32 1, %s8
  %s11 = scalar_select 0, %s10, %s8
  loop: start=0, step=1, limit=4
  $region2: #{pan_layer_forward.7} parent=0 // loop_pre_header
    _
  $region3: #{pan_layer_forward.7} parent=0 // loop_header
    %s13 = sphi 0, %s17
    %p14 = scmp.ge.s32.totalorder %s13, 4
    %s20 = sphi 0, %s32
    %s21 = sphi 0, %s28
    %s22 = sphi 0, %s20
    %s23 = sphi 0, %s21
    %s24 = sphi 0, %s22
    %s25 = sphi 0, %s23
    %s35 = sphi 0, %s37
    %s38 = sphi 0, %s35
    %s39 = sphi 0, %s38
    %s55 = sphi 0, %s39
    %s59 = sphi 0, %s59
    %s61 = sphi 0, %s59
    %s62 = sphi 0, %s61
    %s76 = sphi 0, %s62
    %s80 = sphi 0, %s80
    %s82 = sphi 0, %s80
    %s83 = sphi 0, %s82
    %s97 = sphi 0, %s83
    %s101 = sphi 0, %s101
    %s103 = sphi 0, %s101
    %s104 = sphi 0, %s103
    %s118 = sphi 0, %s104
    %s122 = sphi 0, %s122
    %s124 = sphi 0, %s122
    %s125 = sphi 0, %s124
    %s139 = sphi 0, %s125
    %s143 = sphi 0, %s143
    %s145 = sphi 0, %s143
    %s146 = sphi 0, %s145
    %s160 = sphi 0, %s146
    %s164 = sphi 0, %s164
    %s166 = sphi 0, %s164
    %s167 = sphi 0, %s166
    %s181 = sphi 0, %s167
    %s189 = sphi 0, %s191
    %s192 = sphi 0, %s189
    %s193 = sphi 0, %s192
    %s209 = sphi 0, %s193
  $region4: #{pan_layer_forward.7} parent=0 // loop_header_branch
    %16 = sbr.rel (%p14) target = $region8
  $region5: #{pan_layer_forward.7} parent=0 // loop_body
    %s18 = ssub.s32 %s13, 1
    %s19 = ssub.s32 %s13, 2
    %s26 = sadd.s32 1, %s21
    %p27 = scmp.ge.s32.totalorder %s26, 1
    %s28 = scalar_select %p27, 0, %s26
    %s29 = sadd.s32 1, %s20
    %s30 = scalar_select %p27, %s29, %s20
    %p31 = scmp.ge.s32.totalorder %s30, 2
    %s32 = scalar_select %p31, 0, %s30
    %s33 = ssub.s32 %s20, %s32
    %p34 = scmp.eq.s32.totalorder %s33, 0
    %s36 = sadd.s32 %s35, 1
    %s37 = scalar_select %p34, %s35, %s36
    %p40 = pneg %p34
    %p41 = scmp.eq.s32.totalorder %s13, 1
    %p42 = por %p40, %p41
    %p43 = scmp.ne.s32.totalorder %s35, %s38
    %p44 = scmp.eq.s32.totalorder %s13, 0
    %p45 = por %p43, %p44
    %p46 = scmp.ne.s32.totalorder %s35, %s38
    %p47 = scmp.eq.s32.totalorder %s18, 1
    %p48 = por %p46, %p47
    %p49 = scmp.ne.s32.totalorder %s38, %s39
    %p50 = scmp.eq.s32.totalorder %s18, 0
    %p51 = por %p49, %p50
    %p52 = scmp.ne.s32.totalorder %s38, %s39
    %p53 = scmp.eq.s32.totalorder %s19, 1
    %p54 = por %p52, %p53
    %p56 = scmp.ne.s32.totalorder %s39, %s55
    %p57 = scmp.eq.s32.totalorder %s19, 0
    %p58 = por %p56, %p57
    %s60 = sadd.s32 %s59, 1
    %p63 = scmp.eq.s32.totalorder %s13, 1
    %p64 = scmp.ne.s32.totalorder %s59, %s61
    %p65 = scmp.eq.s32.totalorder %s13, 0
    %p66 = por %p64, %p65
    %p67 = scmp.ne.s32.totalorder %s59, %s61
    %p68 = scmp.eq.s32.totalorder %s18, 1
    %p69 = por %p67, %p68
    %p70 = scmp.ne.s32.totalorder %s61, %s62
    %p71 = scmp.eq.s32.totalorder %s18, 0
    %p72 = por %p70, %p71
    %p73 = scmp.ne.s32.totalorder %s61, %s62
    %p74 = scmp.eq.s32.totalorder %s19, 1
    %p75 = por %p73, %p74
    %p77 = scmp.ne.s32.totalorder %s62, %s76
    %p78 = scmp.eq.s32.totalorder %s19, 0
    %p79 = por %p77, %p78
    %s81 = sadd.s32 %s80, 1
    %p84 = scmp.eq.s32.totalorder %s13, 1
    %p85 = scmp.ne.s32.totalorder %s80, %s82
    %p86 = scmp.eq.s32.totalorder %s13, 0
    %p87 = por %p85, %p86
    %p88 = scmp.ne.s32.totalorder %s80, %s82
    %p89 = scmp.eq.s32.totalorder %s18, 1
    %p90 = por %p88, %p89
    %p91 = scmp.ne.s32.totalorder %s82, %s83
    %p92 = scmp.eq.s32.totalorder %s18, 0
    %p93 = por %p91, %p92
    %p94 = scmp.ne.s32.totalorder %s82, %s83
    %p95 = scmp.eq.s32.totalorder %s19, 1
    %p96 = por %p94, %p95
    %p98 = scmp.ne.s32.totalorder %s83, %s97
    %p99 = scmp.eq.s32.totalorder %s19, 0
    %p100 = por %p98, %p99
    %s102 = sadd.s32 %s101, 1
    %p105 = scmp.eq.s32.totalorder %s13, 1
    %p106 = scmp.ne.s32.totalorder %s101, %s103
    %p107 = scmp.eq.s32.totalorder %s13, 0
    %p108 = por %p106, %p107
    %p109 = scmp.ne.s32.totalorder %s101, %s103
    %p110 = scmp.eq.s32.totalorder %s18, 1
    %p111 = por %p109, %p110
    %p112 = scmp.ne.s32.totalorder %s103, %s104
    %p113 = scmp.eq.s32.totalorder %s18, 0
    %p114 = por %p112, %p113
    %p115 = scmp.ne.s32.totalorder %s103, %s104
    %p116 = scmp.eq.s32.totalorder %s19, 1
    %p117 = por %p115, %p116
    %p119 = scmp.ne.s32.totalorder %s104, %s118
    %p120 = scmp.eq.s32.totalorder %s19, 0
    %p121 = por %p119, %p120
    %s123 = sadd.s32 %s122, 1
    %p126 = scmp.eq.s32.totalorder %s13, 1
    %p127 = scmp.ne.s32.totalorder %s122, %s124
    %p128 = scmp.eq.s32.totalorder %s13, 0
    %p129 = por %p127, %p128
    %p130 = scmp.ne.s32.totalorder %s122, %s124
    %p131 = scmp.eq.s32.totalorder %s18, 1
    %p132 = por %p130, %p131
    %p133 = scmp.ne.s32.totalorder %s124, %s125
    %p134 = scmp.eq.s32.totalorder %s18, 0
    %p135 = por %p133, %p134
    %p136 = scmp.ne.s32.totalorder %s124, %s125
    %p137 = scmp.eq.s32.totalorder %s19, 1
    %p138 = por %p136, %p137
    %p140 = scmp.ne.s32.totalorder %s125, %s139
    %p141 = scmp.eq.s32.totalorder %s19, 0
    %p142 = por %p140, %p141
    %s144 = sadd.s32 %s143, 1
    %p147 = scmp.eq.s32.totalorder %s13, 1
    %p148 = scmp.ne.s32.totalorder %s143, %s145
    %p149 = scmp.eq.s32.totalorder %s13, 0
    %p150 = por %p148, %p149
    %p151 = scmp.ne.s32.totalorder %s143, %s145
    %p152 = scmp.eq.s32.totalorder %s18, 1
    %p153 = por %p151, %p152
    %p154 = scmp.ne.s32.totalorder %s145, %s146
    %p155 = scmp.eq.s32.totalorder %s18, 0
    %p156 = por %p154, %p155
    %p157 = scmp.ne.s32.totalorder %s145, %s146
    %p158 = scmp.eq.s32.totalorder %s19, 1
    %p159 = por %p157, %p158
    %p161 = scmp.ne.s32.totalorder %s146, %s160
    %p162 = scmp.eq.s32.totalorder %s19, 0
    %p163 = por %p161, %p162
    %s165 = sadd.s32 %s164, 1
    %p168 = scmp.eq.s32.totalorder %s13, 1
    %p169 = scmp.ne.s32.totalorder %s164, %s166
    %p170 = scmp.eq.s32.totalorder %s13, 0
    %p171 = por %p169, %p170
    %p172 = scmp.ne.s32.totalorder %s164, %s166
    %p173 = scmp.eq.s32.totalorder %s18, 1
    %p174 = por %p172, %p173
    %p175 = scmp.ne.s32.totalorder %s166, %s167
    %p176 = scmp.eq.s32.totalorder %s18, 0
    %p177 = por %p175, %p176
    %p178 = scmp.ne.s32.totalorder %s166, %s167
    %p179 = scmp.eq.s32.totalorder %s19, 1
    %p180 = por %p178, %p179
    %p182 = scmp.ne.s32.totalorder %s167, %s181
    %p183 = scmp.eq.s32.totalorder %s19, 0
    %p184 = por %p182, %p183
    %s185 = ssub.s32 %s20, %s32
    %s186 = ssub.s32 %s21, %s28
    %s187 = sor.u32 %s185, %s186
    %p188 = scmp.eq.s32.totalorder %s187, 0
    %s190 = sadd.s32 %s189, 1
    %s191 = scalar_select %p188, %s189, %s190
    %p194 = pneg %p188
    %p195 = scmp.eq.s32.totalorder %s13, 1
    %p196 = por %p194, %p195
    %p197 = scmp.ne.s32.totalorder %s189, %s192
    %p198 = scmp.eq.s32.totalorder %s13, 0
    %p199 = por %p197, %p198
    %p200 = scmp.ne.s32.totalorder %s189, %s192
    %p201 = scmp.eq.s32.totalorder %s18, 1
    %p202 = por %p200, %p201
    %p203 = scmp.ne.s32.totalorder %s192, %s193
    %p204 = scmp.eq.s32.totalorder %s18, 0
    %p205 = por %p203, %p204
    %p206 = scmp.ne.s32.totalorder %s192, %s193
    %p207 = scmp.eq.s32.totalorder %s19, 1
    %p208 = por %p206, %p207
    %p210 = scmp.ne.s32.totalorder %s193, %s209
    %p211 = scmp.eq.s32.totalorder %s19, 0
    %p212 = por %p210, %p211
    %p213 = scmp.le.s32.totalorder 1, %s13
    %p214 = scmp.lt.s32.totalorder %s13, 3
    %p215 = pnand %p213, %p214
    %p216 = pneg %p215
    // Predicated region
    $region9: #{pan_layer_forward.7} parent=5 // pred_check
      _
    $region10: #{pan_layer_forward.7} parent=5 // pred_check_branch
      %218 = sbr.rel (%p215) target = $region12
    $region11: #{pan_layer_forward.7} parent=5 // pred_region
      %s219 = ssub.s32 %s13, 1
      // Predicated region
      $region13: #{pan_layer_forward.7} parent=11 // pred_check
        %p220 = pneg %p72
      $region14: #{pan_layer_forward.7} parent=11 // pred_check_branch
        %222 = sbr.rel (%p220) target = $region16
      $region15: #{pan_layer_forward.7} parent=11 // pred_region
        _
      $region16: #{pan_layer_forward.7} parent=11 // pred_fallthru
        _
      // Predicated region
      $region17: #{pan_layer_forward.7} parent=11 // pred_check
        %p223 = pneg %p93
      $region18: #{pan_layer_forward.7} parent=11 // pred_check_branch
        %225 = sbr.rel (%p223) target = $region20
      $region19: #{pan_layer_forward.7} parent=11 // pred_region
        _
      $region20: #{pan_layer_forward.7} parent=11 // pred_fallthru
        _
      // Predicated region
      $region21: #{pan_layer_forward.7} parent=11 // pred_check
        %p226 = pneg %p114
      $region22: #{pan_layer_forward.7} parent=11 // pred_check_branch
        %228 = sbr.rel (%p226) target = $region24
      $region23: #{pan_layer_forward.7} parent=11 // pred_region
        _
      $region24: #{pan_layer_forward.7} parent=11 // pred_fallthru
        _
      // Predicated region
      $region25: #{pan_layer_forward.7} parent=11 // pred_check
        %p229 = pneg %p135
      $region26: #{pan_layer_forward.7} parent=11 // pred_check_branch
        %231 = sbr.rel (%p229) target = $region28
      $region27: #{pan_layer_forward.7} parent=11 // pred_region
        _
      $region28: #{pan_layer_forward.7} parent=11 // pred_fallthru
        _
      // Predicated region
      $region29: #{pan_layer_forward.7} parent=11 // pred_check
        %p232 = pneg %p156
      $region30: #{pan_layer_forward.7} parent=11 // pred_check_branch
        %234 = sbr.rel (%p232) target = $region32
      $region31: #{pan_layer_forward.7} parent=11 // pred_region
        _
      $region32: #{pan_layer_forward.7} parent=11 // pred_fallthru
        _
      // Predicated region
      $region33: #{pan_layer_forward.7} parent=11 // pred_check
        %p235 = pneg %p177
      $region34: #{pan_layer_forward.7} parent=11 // pred_check_branch
        %237 = sbr.rel (%p235) target = $region36
      $region35: #{pan_layer_forward.7} parent=11 // pred_region
        _
      $region36: #{pan_layer_forward.7} parent=11 // pred_fallthru
        _
    $region12: #{pan_layer_forward.7} parent=5 // pred_fallthru
      _
    %p238 = scmp.lt.s32.totalorder %s13, 2
    // Predicated region
    $region37: #{pan_layer_forward.7} parent=5 // pred_check
      %p239 = pneg %p238
    $region38: #{pan_layer_forward.7} parent=5 // pred_check_branch
      %241 = sbr.rel (%p239) target = $region40
    $region39: #{pan_layer_forward.7} parent=5 // pred_region
      // Predicated region
      $region41: #{pan_layer_forward.7} parent=39 // pred_check
        %p242 = pneg %p45
      $region42: #{pan_layer_forward.7} parent=39 // pred_check_branch
        %244 = sbr.rel (%p242) target = $region44
      $region43: #{pan_layer_forward.7} parent=39 // pred_region
        %p245 = scmp.lt.s32.totalorder %s20, 1
        %s246 = scalar_select %p245, %s20, 1
        %s247 = smul.addr %s246, 54
        %s248 = smul.addr %s247, 4
        %s249 = scalar_lea.vmem %s0, %s248
      $region44: #{pan_layer_forward.7} parent=39 // pred_fallthru
        _
    $region40: #{pan_layer_forward.7} parent=5 // pred_fallthru
      _
    %p250 = scmp.le.s32.totalorder 1, %s13
    %p251 = scmp.lt.s32.totalorder %s13, 3
    %p252 = pnand %p250, %p251
    %p253 = pneg %p252
    // Predicated region
    $region45: #{pan_layer_forward.7} parent=5 // pred_check
      _
    $region46: #{pan_layer_forward.7} parent=5 // pred_check_branch
      %255 = sbr.rel (%p252) target = $region48
    $region47: #{pan_layer_forward.7} parent=5 // pred_region
      %s256 = ssub.s32 %s13, 1
      %p257 = scmp.lt.s32.totalorder %s22, 1
      %s258 = scalar_select %p257, %s22, 1
      %s259 = smul.addr %s258, 54
      %s260 = smul.addr %s259, 4
      %s261 = scalar_lea.vmem %s0, %s260
      %p262 = pneg %p51
      %p263 = pneg %p48
      %p264 = pneg %p72
      %p265 = pneg %p69
      %p266 = pneg %p93
      %p267 = pneg %p90
      %p268 = pneg %p114
      %p269 = pneg %p111
      %p270 = pneg %p135
      %p271 = pneg %p132
      %p272 = pneg %p156
      %p273 = pneg %p153
      %p274 = pneg %p177
      %p275 = pneg %p174
      %p276 = pneg %p205
      %p277 = pneg %p202
      %s278 = smul.u32 16, %s23
      %p279 = scmp.lt.s32.totalorder %s22, 1
      %s280 = scalar_select %p279, %s22, 1
      %p281 = scmp.lt.s32.totalorder %s278, 15
      %s282 = scalar_select %p281, %s278, 15
      %s283 = smul.addr %s282, 2
      %s284 = smul.addr %s280, 32
      %s285 = sadd.s32 %s283, %s284
      %s286 = smul.addr %s285, 8
      %s287 = scalar_lea.vmem %s7, %s286
      %p288 = scmp.lt.s32.totalorder %s22, 1
      %s289 = scalar_select %p288, %s22, 1
      %s290 = smul.addr %s289, 54
      %s291 = smul.addr %s290, 4
      %s292 = scalar_lea.vmem %s0, %s291
      %s293 = smul.u32 16, %s23
      %p294 = scmp.lt.s32.totalorder %s22, 1
      %s295 = scalar_select %p294, %s22, 1
      %p296 = scmp.lt.s32.totalorder %s293, 15
      %s297 = scalar_select %p296, %s293, 15
      %s298 = smul.addr %s297, 2
      %s299 = smul.addr %s295, 32
      %s300 = sadd.s32 %s298, %s299
      %s301 = smul.addr %s300, 8
      %s302 = scalar_lea.vmem %s7, %s301
      %s303 = smul.u32 16, %s23
      %s305 = smul.u32 %s23, 16
      %s306 = smul.u32 %s305, 3
      %s307 = smul.addr %s306, 4
      %s308 = scalar_lea.vmem %s292, %s307
      %v309 = vld [vmem:[%s308] sm:$0xf]
      %v310 = vld [vmem:[%s308 + $0x4] sm:$0xf]
      %v311 = vld [vmem:[%s308 + $0xc] sm:$0xf]
      %v312 = vld [vmem:[%s308 + $0x10] sm:$0xf]
      %v313 = vld [vmem:[%s308 + $0x18] sm:$0xf]
      %v314 = vld [vmem:[%s308 + $0x1c] sm:$0xf]
      %v315 = vld [vmem:[%s308 + $0x24] sm:$0xf]
      %v316 = vld [vmem:[%s308 + $0x28] sm:$0xf]
      %v317 = vld [vmem:[%s308 + $0x30] sm:$0xf]
      %v318 = vld [vmem:[%s308 + $0x34] sm:$0xf]
      %v319 = vld [vmem:[%s308 + $0x3c] sm:$0xf]
      %v320 = vld [vmem:[%s308 + $0x40] sm:$0xf]
      %v321 = vld [vmem:[%s308 + $0x48] sm:$0xf]
      %v322 = vld [vmem:[%s308 + $0x4c] sm:$0xf]
      %v323 = vld [vmem:[%s308 + $0x54] sm:$0xf]
      %v324 = vld [vmem:[%s308 + $0x58] sm:$0xf]
      %v325 = vld [vmem:[%s308 + $0x60] sm:$0xf]
      %v326 = vld [vmem:[%s308 + $0x64] sm:$0xf]
      %v327 = vld [vmem:[%s308 + $0x6c] sm:$0xf]
      %v328 = vld [vmem:[%s308 + $0x70] sm:$0xf]
      %v329 = vld [vmem:[%s308 + $0x78] sm:$0xf]
      %v330 = vld [vmem:[%s308 + $0x7c] sm:$0xf]
      %v331 = vld [vmem:[%s308 + $0x84] sm:$0xf]
      %v332 = vld [vmem:[%s308 + $0x88] sm:$0xf]
      %v333 = vld [vmem:[%s308 + $0x90] sm:$0xf]
      %v334 = vld [vmem:[%s308 + $0x94] sm:$0xf]
      %v335 = vld [vmem:[%s308 + $0x9c] sm:$0xf]
      %v336 = vld [vmem:[%s308 + $0xa0] sm:$0xf]
      %v337 = vld [vmem:[%s308 + $0xa8] sm:$0xf]
      %v338 = vld [vmem:[%s308 + $0xac] sm:$0xf]
      %v339 = vld [vmem:[%s308 + $0xb4] sm:$0xf]
      %v340 = vld [vmem:[%s308 + $0xb8] sm:$0xf]
      %v341 = vld [vmem:[%s308 + $0x8] sm:$0x1]
      %v342 = vld [vmem:[%s308 + $0x14] sm:$0x1]
      %v343 = vld [vmem:[%s308 + $0x20] sm:$0x1]
      %v344 = vld [vmem:[%s308 + $0x2c] sm:$0x1]
      %v345 = vld [vmem:[%s308 + $0x38] sm:$0x1]
      %v346 = vld [vmem:[%s308 + $0x44] sm:$0x1]
      %v347 = vld [vmem:[%s308 + $0x50] sm:$0x1]
      %v348 = vld [vmem:[%s308 + $0x5c] sm:$0x1]
      %v349 = vld [vmem:[%s308 + $0x68] sm:$0x1]
      %v350 = vld [vmem:[%s308 + $0x74] sm:$0x1]
      %v351 = vld [vmem:[%s308 + $0x80] sm:$0x1]
      %v352 = vld [vmem:[%s308 + $0x8c] sm:$0x1]
      %v353 = vld [vmem:[%s308 + $0x98] sm:$0x1]
      %v354 = vld [vmem:[%s308 + $0xa4] sm:$0x1]
      %v355 = vld [vmem:[%s308 + $0xb0] sm:$0x1]
      %v356 = vld [vmem:[%s308 + $0xbc] sm:$0x1]
      %v357 = vld [vmem:[%s308] sm:$0xe]
      %v358 = vld [vmem:[%s308 + $0xc] sm:$0xe]
      %v359 = vld [vmem:[%s308 + $0x18] sm:$0xe]
      %v360 = vld [vmem:[%s308 + $0x24] sm:$0xe]
      %v361 = vld [vmem:[%s308 + $0x30] sm:$0xe]
      %v362 = vld [vmem:[%s308 + $0x3c] sm:$0xe]
      %v363 = vld [vmem:[%s308 + $0x48] sm:$0xe]
      %v364 = vld [vmem:[%s308 + $0x54] sm:$0xe]
      %v365 = vld [vmem:[%s308 + $0x60] sm:$0xe]
      %v366 = vld [vmem:[%s308 + $0x6c] sm:$0xe]
      %v367 = vld [vmem:[%s308 + $0x78] sm:$0xe]
      %v368 = vld [vmem:[%s308 + $0x84] sm:$0xe]
      %v369 = vld [vmem:[%s308 + $0x90] sm:$0xe]
      %v370 = vld [vmem:[%s308 + $0x9c] sm:$0xe]
      %v371 = vld [vmem:[%s308 + $0xa8] sm:$0xe]
      %v372 = vld [vmem:[%s308 + $0xb4] sm:$0xe]
      %s373 = sadd.s32 %s305, 1
      %s374 = smul.u32 %s373, 3
      %s375 = smul.addr %s374, 4
      %s376 = scalar_lea.vmem %s292, %s375
      %v377 = vld [vmem:[%s376] sm:$0xf]
      %v378 = vld [vmem:[%s376 + $0x4] sm:$0xf]
      %v379 = vld [vmem:[%s376 + $0xc] sm:$0xf]
      %v380 = vld [vmem:[%s376 + $0x10] sm:$0xf]
      %v381 = vld [vmem:[%s376 + $0x18] sm:$0xf]
      %v382 = vld [vmem:[%s376 + $0x1c] sm:$0xf]
      %v383 = vld [vmem:[%s376 + $0x24] sm:$0xf]
      %v384 = vld [vmem:[%s376 + $0x28] sm:$0xf]
      %v385 = vld [vmem:[%s376 + $0x30] sm:$0xf]
      %v386 = vld [vmem:[%s376 + $0x34] sm:$0xf]
      %v387 = vld [vmem:[%s376 + $0x3c] sm:$0xf]
      %v388 = vld [vmem:[%s376 + $0x40] sm:$0xf]
      %v389 = vld [vmem:[%s376 + $0x48] sm:$0xf]
      %v390 = vld [vmem:[%s376 + $0x4c] sm:$0xf]
      %v391 = vld [vmem:[%s376 + $0x54] sm:$0xf]
      %v392 = vld [vmem:[%s376 + $0x58] sm:$0xf]
      %v393 = vld [vmem:[%s376 + $0x60] sm:$0xf]
      %v394 = vld [vmem:[%s376 + $0x64] sm:$0xf]
      %v395 = vld [vmem:[%s376 + $0x6c] sm:$0xf]
      %v396 = vld [vmem:[%s376 + $0x70] sm:$0xf]
      %v397 = vld [vmem:[%s376 + $0x78] sm:$0xf]
      %v398 = vld [vmem:[%s376 + $0x7c] sm:$0xf]
      %v399 = vld [vmem:[%s376 + $0x84] sm:$0xf]
      %v400 = vld [vmem:[%s376 + $0x88] sm:$0xf]
      %v401 = vld [vmem:[%s376 + $0x90] sm:$0xf]
      %v402 = vld [vmem:[%s376 + $0x94] sm:$0xf]
      %v403 = vld [vmem:[%s376 + $0x9c] sm:$0xf]
      %v404 = vld [vmem:[%s376 + $0xa0] sm:$0xf]
      %v405 = vld [vmem:[%s376 + $0xa8] sm:$0xf]
      %v406 = vld [vmem:[%s376 + $0xac] sm:$0xf]
      %v407 = vld [vmem:[%s376 + $0xb4] sm:$0xf]
      %v408 = vld [vmem:[%s376 + $0xb8] sm:$0xf]
      %v409 = vld [vmem:[%s376 + $0x8] sm:$0x1]
      %v410 = vld [vmem:[%s376 + $0x14] sm:$0x1]
      %v411 = vld [vmem:[%s376 + $0x20] sm:$0x1]
      %v412 = vld [vmem:[%s376 + $0x2c] sm:$0x1]
      %v413 = vld [vmem:[%s376 + $0x38] sm:$0x1]
      %v414 = vld [vmem:[%s376 + $0x44] sm:$0x1]
      %v415 = vld [vmem:[%s376 + $0x50] sm:$0x1]
      %v416 = vld [vmem:[%s376 + $0x5c] sm:$0x1]
      %v417 = vld [vmem:[%s376 + $0x68] sm:$0x1]
      %v418 = vld [vmem:[%s376 + $0x74] sm:$0x1]
      %v419 = vld [vmem:[%s376 + $0x80] sm:$0x1]
      %v420 = vld [vmem:[%s376 + $0x8c] sm:$0x1]
      %v421 = vld [vmem:[%s376 + $0x98] sm:$0x1]
      %v422 = vld [vmem:[%s376 + $0xa4] sm:$0x1]
      %v423 = vld [vmem:[%s376 + $0xb0] sm:$0x1]
      %v424 = vld [vmem:[%s376 + $0xbc] sm:$0x1]
      %v425 = vld [vmem:[%s376] sm:$0xe]
      %v426 = vld [vmem:[%s376 + $0xc] sm:$0xe]
      %v427 = vld [vmem:[%s376 + $0x18] sm:$0xe]
      %v428 = vld [vmem:[%s376 + $0x24] sm:$0xe]
      %v429 = vld [vmem:[%s376 + $0x30] sm:$0xe]
      %v430 = vld [vmem:[%s376 + $0x3c] sm:$0xe]
      %v431 = vld [vmem:[%s376 + $0x48] sm:$0xe]
      %v432 = vld [vmem:[%s376 + $0x54] sm:$0xe]
      %v433 = vld [vmem:[%s376 + $0x60] sm:$0xe]
      %v434 = vld [vmem:[%s376 + $0x6c] sm:$0xe]
      %v435 = vld [vmem:[%s376 + $0x78] sm:$0xe]
      %v436 = vld [vmem:[%s376 + $0x84] sm:$0xe]
      %v437 = vld [vmem:[%s376 + $0x90] sm:$0xe]
      %v438 = vld [vmem:[%s376 + $0x9c] sm:$0xe]
      %v439 = vld [vmem:[%s376 + $0xa8] sm:$0xe]
      %v440 = vld [vmem:[%s376 + $0xb4] sm:$0xe]
      %s441 = sadd.s32 %s305, 2
      %s442 = smul.u32 %s441, 3
      %s443 = smul.addr %s442, 4
      %s444 = scalar_lea.vmem %s292, %s443
      %v445 = vld [vmem:[%s444] sm:$0xf]
      %v446 = vld [vmem:[%s444 + $0x4] sm:$0xf]
      %v447 = vld [vmem:[%s444 + $0xc] sm:$0xf]
      %v448 = vld [vmem:[%s444 + $0x10] sm:$0xf]
      %v449 = vld [vmem:[%s444 + $0x18] sm:$0xf]
      %v450 = vld [vmem:[%s444 + $0x1c] sm:$0xf]
      %v451 = vld [vmem:[%s444 + $0x24] sm:$0xf]
      %v452 = vld [vmem:[%s444 + $0x28] sm:$0xf]
      %v453 = vld [vmem:[%s444 + $0x30] sm:$0xf]
      %v454 = vld [vmem:[%s444 + $0x34] sm:$0xf]
      %v455 = vld [vmem:[%s444 + $0x3c] sm:$0xf]
      %v456 = vld [vmem:[%s444 + $0x40] sm:$0xf]
      %v457 = vld [vmem:[%s444 + $0x48] sm:$0xf]
      %v458 = vld [vmem:[%s444 + $0x4c] sm:$0xf]
      %v459 = vld [vmem:[%s444 + $0x54] sm:$0xf]
      %v460 = vld [vmem:[%s444 + $0x58] sm:$0xf]
      %v461 = vld [vmem:[%s444 + $0x60] sm:$0xf]
      %v462 = vld [vmem:[%s444 + $0x64] sm:$0xf]
      %v463 = vld [vmem:[%s444 + $0x6c] sm:$0xf]
      %v464 = vld [vmem:[%s444 + $0x70] sm:$0xf]
      %v465 = vld [vmem:[%s444 + $0x78] sm:$0xf]
      %v466 = vld [vmem:[%s444 + $0x7c] sm:$0xf]
      %v467 = vld [vmem:[%s444 + $0x84] sm:$0xf]
      %v468 = vld [vmem:[%s444 + $0x88] sm:$0xf]
      %v469 = vld [vmem:[%s444 + $0x90] sm:$0xf]
      %v470 = vld [vmem:[%s444 + $0x94] sm:$0xf]
      %v471 = vld [vmem:[%s444 + $0x9c] sm:$0xf]
      %v472 = vld [vmem:[%s444 + $0xa0] sm:$0xf]
      %v473 = vld [vmem:[%s444 + $0xa8] sm:$0xf]
      %v474 = vld [vmem:[%s444 + $0xac] sm:$0xf]
      %v475 = vld [vmem:[%s444 + $0xb4] sm:$0xf]
      %v476 = vld [vmem:[%s444 + $0xb8] sm:$0xf]
      %v477 = vld [vmem:[%s444 + $0x8] sm:$0x1]
      %v478 = vld [vmem:[%s444 + $0x14] sm:$0x1]
      %v479 = vld [vmem:[%s444 + $0x20] sm:$0x1]
      %v480 = vld [vmem:[%s444 + $0x2c] sm:$0x1]
      %v481 = vld [vmem:[%s444 + $0x38] sm:$0x1]
      %v482 = vld [vmem:[%s444 + $0x44] sm:$0x1]
      %v483 = vld [vmem:[%s444 + $0x50] sm:$0x1]
      %v484 = vld [vmem:[%s444 + $0x5c] sm:$0x1]
      %v485 = vld [vmem:[%s444 + $0x68] sm:$0x1]
      %v486 = vld [vmem:[%s444 + $0x74] sm:$0x1]
      %v487 = vld [vmem:[%s444 + $0x80] sm:$0x1]
      %v488 = vld [vmem:[%s444 + $0x8c] sm:$0x1]
      %v489 = vld [vmem:[%s444 + $0x98] sm:$0x1]
      %v490 = vld [vmem:[%s444 + $0xa4] sm:$0x1]
      %v491 = vld [vmem:[%s444 + $0xb0] sm:$0x1]
      %v492 = vld [vmem:[%s444 + $0xbc] sm:$0x1]
      %v493 = vld [vmem:[%s444] sm:$0xe]
      %v494 = vld [vmem:[%s444 + $0xc] sm:$0xe]
      %v495 = vld [vmem:[%s444 + $0x18] sm:$0xe]
      %v496 = vld [vmem:[%s444 + $0x24] sm:$0xe]
      %v497 = vld [vmem:[%s444 + $0x30] sm:$0xe]
      %v498 = vld [vmem:[%s444 + $0x3c] sm:$0xe]
      %v499 = vld [vmem:[%s444 + $0x48] sm:$0xe]
      %v500 = vld [vmem:[%s444 + $0x54] sm:$0xe]
      %v501 = vld [vmem:[%s444 + $0x60] sm:$0xe]
      %v502 = vld [vmem:[%s444 + $0x6c] sm:$0xe]
      %v503 = vld [vmem:[%s444 + $0x78] sm:$0xe]
      %v504 = vld [vmem:[%s444 + $0x84] sm:$0xe]
      %v505 = vld [vmem:[%s444 + $0x90] sm:$0xe]
      %v506 = vld [vmem:[%s444 + $0x9c] sm:$0xe]
      %v507 = vld [vmem:[%s444 + $0xa8] sm:$0xe]
      %v508 = vld [vmem:[%s444 + $0xb4] sm:$0xe]
      %v541 = vunpack.c.l.b16 %v309
      %v542 = vunpack.c.l.b16 %v310
      %v543 = vunpack.c.l.b16 %v311
      %v544 = vunpack.c.l.b16 %v312
      %v545 = vunpack.c.l.b16 %v313
      %v546 = vunpack.c.l.b16 %v314
      %v547 = vunpack.c.l.b16 %v315
      %v548 = vunpack.c.l.b16 %v316
      %v549 = vunpack.c.l.b16 %v317
      %v550 = vunpack.c.l.b16 %v318
      %v551 = vunpack.c.l.b16 %v319
      %v552 = vunpack.c.l.b16 %v320
      %v553 = vunpack.c.l.b16 %v321
      %v554 = vunpack.c.l.b16 %v322
      %v555 = vunpack.c.l.b16 %v323
      %v556 = vunpack.c.l.b16 %v324
      %v557 = vunpack.c.l.b16 %v325
      %v558 = vunpack.c.l.b16 %v326
      %v559 = vunpack.c.l.b16 %v327
      %v560 = vunpack.c.l.b16 %v328
      %v561 = vunpack.c.l.b16 %v329
      %v562 = vunpack.c.l.b16 %v330
      %v563 = vunpack.c.l.b16 %v331
      %v564 = vunpack.c.l.b16 %v332
      %v565 = vunpack.c.l.b16 %v333
      %v566 = vunpack.c.l.b16 %v334
      %v567 = vunpack.c.l.b16 %v335
      %v568 = vunpack.c.l.b16 %v336
      %v569 = vunpack.c.l.b16 %v337
      %v570 = vunpack.c.l.b16 %v338
      %v571 = vunpack.c.l.b16 %v339
      %v572 = vunpack.c.l.b16 %v340
      %v573 = vpack.c.b16 %v542, %v541
      %v574 = vpack.c.b16 %v544, %v543
      %v575 = vpack.c.b16 %v546, %v545
      %v576 = vpack.c.b16 %v548, %v547
      %v577 = vpack.c.b16 %v550, %v549
      %v578 = vpack.c.b16 %v552, %v551
      %v579 = vpack.c.b16 %v554, %v553
      %v580 = vpack.c.b16 %v556, %v555
      %v581 = vpack.c.b16 %v558, %v557
      %v582 = vpack.c.b16 %v560, %v559
      %v583 = vpack.c.b16 %v562, %v561
      %v584 = vpack.c.b16 %v564, %v563
      %v585 = vpack.c.b16 %v566, %v565
      %v586 = vpack.c.b16 %v568, %v567
      %v587 = vpack.c.b16 %v570, %v569
      %v588 = vpack.c.b16 %v572, %v571
      %v605 = vunpack.c.l.b16 %v341
      %v606 = vunpack.c.l.b16 %v342
      %v607 = vunpack.c.l.b16 %v343
      %v608 = vunpack.c.l.b16 %v344
      %v609 = vunpack.c.l.b16 %v345
      %v610 = vunpack.c.l.b16 %v346
      %v611 = vunpack.c.l.b16 %v347
      %v612 = vunpack.c.l.b16 %v348
      %v613 = vunpack.c.l.b16 %v349
      %v614 = vunpack.c.l.b16 %v350
      %v615 = vunpack.c.l.b16 %v351
      %v616 = vunpack.c.l.b16 %v352
      %v617 = vunpack.c.l.b16 %v353
      %v618 = vunpack.c.l.b16 %v354
      %v619 = vunpack.c.l.b16 %v355
      %v620 = vunpack.c.l.b16 %v356
      %v621 = vpack.c.b16 %v605, %v605
      %v622 = vpack.c.b16 %v606, %v606
      %v623 = vpack.c.b16 %v607, %v607
      %v624 = vpack.c.b16 %v608, %v608
      %v625 = vpack.c.b16 %v609, %v609
      %v626 = vpack.c.b16 %v610, %v610
      %v627 = vpack.c.b16 %v611, %v611
      %v628 = vpack.c.b16 %v612, %v612
      %v629 = vpack.c.b16 %v613, %v613
      %v630 = vpack.c.b16 %v614, %v614
      %v631 = vpack.c.b16 %v615, %v615
      %v632 = vpack.c.b16 %v616, %v616
      %v633 = vpack.c.b16 %v617, %v617
      %v634 = vpack.c.b16 %v618, %v618
      %v635 = vpack.c.b16 %v619, %v619
      %v636 = vpack.c.b16 %v620, %v620
      %vm637 = vsmask.f32 7424
      %v639 = vshrl.u32 %v573, 16
      %v641 = vshll.u32 %v573, 16
      %v643 = vrot.slane %v641, 1
      %v644 = vor.u32 %v639, %v643
      %v646 = vshll.u32 %v621, 16
      %v648 = vrot.slane %v646, 1
      %v649 = vsel %vm637, %v644, %v648
      %v651 = vshrl.u32 %v574, 16
      %v653 = vshll.u32 %v574, 16
      %v655 = vrot.slane %v653, 1
      %v656 = vor.u32 %v651, %v655
      %v658 = vshll.u32 %v622, 16
      %v660 = vrot.slane %v658, 1
      %v661 = vsel %vm637, %v656, %v660
      %v663 = vshrl.u32 %v575, 16
      %v665 = vshll.u32 %v575, 16
      %v667 = vrot.slane %v665, 1
      %v668 = vor.u32 %v663, %v667
      %v670 = vshll.u32 %v623, 16
      %v672 = vrot.slane %v670, 1
      %v673 = vsel %vm637, %v668, %v672
      %v675 = vshrl.u32 %v576, 16
      %v677 = vshll.u32 %v576, 16
      %v679 = vrot.slane %v677, 1
      %v680 = vor.u32 %v675, %v679
      %v682 = vshll.u32 %v624, 16
      %v684 = vrot.slane %v682, 1
      %v685 = vsel %vm637, %v680, %v684
      %v687 = vshrl.u32 %v577, 16
      %v689 = vshll.u32 %v577, 16
      %v691 = vrot.slane %v689, 1
      %v692 = vor.u32 %v687, %v691
      %v694 = vshll.u32 %v625, 16
      %v696 = vrot.slane %v694, 1
      %v697 = vsel %vm637, %v692, %v696
      %v699 = vshrl.u32 %v578, 16
      %v701 = vshll.u32 %v578, 16
      %v703 = vrot.slane %v701, 1
      %v704 = vor.u32 %v699, %v703
      %v706 = vshll.u32 %v626, 16
      %v708 = vrot.slane %v706, 1
      %v709 = vsel %vm637, %v704, %v708
      %v711 = vshrl.u32 %v579, 16
      %v713 = vshll.u32 %v579, 16
      %v715 = vrot.slane %v713, 1
      %v716 = vor.u32 %v711, %v715
      %v718 = vshll.u32 %v627, 16
      %v720 = vrot.slane %v718, 1
      %v721 = vsel %vm637, %v716, %v720
      %v723 = vshrl.u32 %v580, 16
      %v725 = vshll.u32 %v580, 16
      %v727 = vrot.slane %v725, 1
      %v728 = vor.u32 %v723, %v727
      %v730 = vshll.u32 %v628, 16
      %v732 = vrot.slane %v730, 1
      %v733 = vsel %vm637, %v728, %v732
      %v735 = vshrl.u32 %v581, 16
      %v737 = vshll.u32 %v581, 16
      %v739 = vrot.slane %v737, 1
      %v740 = vor.u32 %v735, %v739
      %v742 = vshll.u32 %v629, 16
      %v744 = vrot.slane %v742, 1
      %v745 = vsel %vm637, %v740, %v744
      %v747 = vshrl.u32 %v582, 16
      %v749 = vshll.u32 %v582, 16
      %v751 = vrot.slane %v749, 1
      %v752 = vor.u32 %v747, %v751
      %v754 = vshll.u32 %v630, 16
      %v756 = vrot.slane %v754, 1
      %v757 = vsel %vm637, %v752, %v756
      %v759 = vshrl.u32 %v583, 16
      %v761 = vshll.u32 %v583, 16
      %v763 = vrot.slane %v761, 1
      %v764 = vor.u32 %v759, %v763
      %v766 = vshll.u32 %v631, 16
      %v768 = vrot.slane %v766, 1
      %v769 = vsel %vm637, %v764, %v768
      %v771 = vshrl.u32 %v584, 16
      %v773 = vshll.u32 %v584, 16
      %v775 = vrot.slane %v773, 1
      %v776 = vor.u32 %v771, %v775
      %v778 = vshll.u32 %v632, 16
      %v780 = vrot.slane %v778, 1
      %v781 = vsel %vm637, %v776, %v780
      %v783 = vshrl.u32 %v585, 16
      %v785 = vshll.u32 %v585, 16
      %v787 = vrot.slane %v785, 1
      %v788 = vor.u32 %v783, %v787
      %v790 = vshll.u32 %v633, 16
      %v792 = vrot.slane %v790, 1
      %v793 = vsel %vm637, %v788, %v792
      %v795 = vshrl.u32 %v586, 16
      %v797 = vshll.u32 %v586, 16
      %v799 = vrot.slane %v797, 1
      %v800 = vor.u32 %v795, %v799
      %v802 = vshll.u32 %v634, 16
      %v804 = vrot.slane %v802, 1
      %v805 = vsel %vm637, %v800, %v804
      %v807 = vshrl.u32 %v587, 16
      %v809 = vshll.u32 %v587, 16
      %v811 = vrot.slane %v809, 1
      %v812 = vor.u32 %v807, %v811
      %v814 = vshll.u32 %v635, 16
      %v816 = vrot.slane %v814, 1
      %v817 = vsel %vm637, %v812, %v816
      %v819 = vshrl.u32 %v588, 16
      %v821 = vshll.u32 %v588, 16
      %v823 = vrot.slane %v821, 1
      %v824 = vor.u32 %v819, %v823
      %v826 = vshll.u32 %v636, 16
      %v828 = vrot.slane %v826, 1
      %v829 = vsel %vm637, %v824, %v828
      %830 = vrot.lane.b32.xlu0 %v649, 4
      %v831 = vpop.permute.xlu0 %830
      %832 = vrot.lane.b32.xlu0 %v661, 4
      %v833 = vpop.permute.xlu0 %832
      %834 = vrot.lane.b32.xlu0 %v673, 4
      %v835 = vpop.permute.xlu0 %834
      %836 = vrot.lane.b32.xlu0 %v685, 4
      %v837 = vpop.permute.xlu0 %836
      %838 = vrot.lane.b32.xlu0 %v697, 4
      %v839 = vpop.permute.xlu0 %838
      %840 = vrot.lane.b32.xlu0 %v709, 4
      %v841 = vpop.permute.xlu0 %840
      %842 = vrot.lane.b32.xlu0 %v721, 4
      %v843 = vpop.permute.xlu0 %842
      %844 = vrot.lane.b32.xlu0 %v733, 4
      %v845 = vpop.permute.xlu0 %844
      %846 = vrot.lane.b32.xlu0 %v745, 4
      %v847 = vpop.permute.xlu0 %846
      %848 = vrot.lane.b32.xlu0 %v757, 4
      %v849 = vpop.permute.xlu0 %848
      %850 = vrot.lane.b32.xlu0 %v769, 4
      %v851 = vpop.permute.xlu0 %850
      %852 = vrot.lane.b32.xlu0 %v781, 4
      %v853 = vpop.permute.xlu0 %852
      %854 = vrot.lane.b32.xlu0 %v793, 4
      %v855 = vpop.permute.xlu0 %854
      %856 = vrot.lane.b32.xlu0 %v805, 4
      %v857 = vpop.permute.xlu0 %856
      %858 = vrot.lane.b32.xlu0 %v817, 4
      %v859 = vpop.permute.xlu0 %858
      %860 = vrot.lane.b32.xlu0 %v829, 4
      %v861 = vpop.permute.xlu0 %860
      %v878 = vunpack.c.l.b16 %v357
      %v879 = vunpack.c.l.b16 %v358
      %v880 = vunpack.c.l.b16 %v359
      %v881 = vunpack.c.l.b16 %v360
      %v882 = vunpack.c.l.b16 %v361
      %v883 = vunpack.c.l.b16 %v362
      %v884 = vunpack.c.l.b16 %v363
      %v885 = vunpack.c.l.b16 %v364
      %v886 = vunpack.c.l.b16 %v365
      %v887 = vunpack.c.l.b16 %v366
      %v888 = vunpack.c.l.b16 %v367
      %v889 = vunpack.c.l.b16 %v368
      %v890 = vunpack.c.l.b16 %v369
      %v891 = vunpack.c.l.b16 %v370
      %v892 = vunpack.c.l.b16 %v371
      %v893 = vunpack.c.l.b16 %v372
      %v894 = vpack.c.b16 %v542, %v878
      %v895 = vpack.c.b16 %v544, %v879
      %v896 = vpack.c.b16 %v546, %v880
      %v897 = vpack.c.b16 %v548, %v881
      %v898 = vpack.c.b16 %v550, %v882
      %v899 = vpack.c.b16 %v552, %v883
      %v900 = vpack.c.b16 %v554, %v884
      %v901 = vpack.c.b16 %v556, %v885
      %v902 = vpack.c.b16 %v558, %v886
      %v903 = vpack.c.b16 %v560, %v887
      %v904 = vpack.c.b16 %v562, %v888
      %v905 = vpack.c.b16 %v564, %v889
      %v906 = vpack.c.b16 %v566, %v890
      %v907 = vpack.c.b16 %v568, %v891
      %v908 = vpack.c.b16 %v570, %v892
      %v909 = vpack.c.b16 %v572, %v893
      %vm910 = vcmask 1046528
      %v911 = vrot.slane %v894, 1
      %v912 = vrot.slane %v621, 1
      %v913 = vsel %vm910, %v911, %v912
      %v914 = vrot.slane %v895, 1
      %v915 = vrot.slane %v622, 1
      %v916 = vsel %vm910, %v914, %v915
      %v917 = vrot.slane %v896, 1
      %v918 = vrot.slane %v623, 1
      %v919 = vsel %vm910, %v917, %v918
      %v920 = vrot.slane %v897, 1
      %v921 = vrot.slane %v624, 1
      %v922 = vsel %vm910, %v920, %v921
      %v923 = vrot.slane %v898, 1
      %v924 = vrot.slane %v625, 1
      %v925 = vsel %vm910, %v923, %v924
      %v926 = vrot.slane %v899, 1
      %v927 = vrot.slane %v626, 1
      %v928 = vsel %vm910, %v926, %v927
      %v929 = vrot.slane %v900, 1
      %v930 = vrot.slane %v627, 1
      %v931 = vsel %vm910, %v929, %v930
      %v932 = vrot.slane %v901, 1
      %v933 = vrot.slane %v628, 1
      %v934 = vsel %vm910, %v932, %v933
      %v935 = vrot.slane %v902, 1
      %v936 = vrot.slane %v629, 1
      %v937 = vsel %vm910, %v935, %v936
      %v938 = vrot.slane %v903, 1
      %v939 = vrot.slane %v630, 1
      %v940 = vsel %vm910, %v938, %v939
      %v941 = vrot.slane %v904, 1
      %v942 = vrot.slane %v631, 1
      %v943 = vsel %vm910, %v941, %v942
      %v944 = vrot.slane %v905, 1
      %v945 = vrot.slane %v632, 1
      %v946 = vsel %vm910, %v944, %v945
      %v947 = vrot.slane %v906, 1
      %v948 = vrot.slane %v633, 1
      %v949 = vsel %vm910, %v947, %v948
      %v950 = vrot.slane %v907, 1
      %v951 = vrot.slane %v634, 1
      %v952 = vsel %vm910, %v950, %v951
      %v953 = vrot.slane %v908, 1
      %v954 = vrot.slane %v635, 1
      %v955 = vsel %vm910, %v953, %v954
      %v956 = vrot.slane %v909, 1
      %v957 = vrot.slane %v636, 1
      %v958 = vsel %vm910, %v956, %v957
      %959 = vrot.lane.b32.xlu0 %v913, 8
      %v960 = vpop.permute.xlu0 %959
      %961 = vrot.lane.b32.xlu0 %v916, 8
      %v962 = vpop.permute.xlu0 %961
      %963 = vrot.lane.b32.xlu0 %v919, 8
      %v964 = vpop.permute.xlu0 %963
      %965 = vrot.lane.b32.xlu0 %v922, 8
      %v966 = vpop.permute.xlu0 %965
      %967 = vrot.lane.b32.xlu0 %v925, 8
      %v968 = vpop.permute.xlu0 %967
      %969 = vrot.lane.b32.xlu0 %v928, 8
      %v970 = vpop.permute.xlu0 %969
      %971 = vrot.lane.b32.xlu0 %v931, 8
      %v972 = vpop.permute.xlu0 %971
      %973 = vrot.lane.b32.xlu0 %v934, 8
      %v974 = vpop.permute.xlu0 %973
      %975 = vrot.lane.b32.xlu0 %v937, 8
      %v976 = vpop.permute.xlu0 %975
      %977 = vrot.lane.b32.xlu0 %v940, 8
      %v978 = vpop.permute.xlu0 %977
      %979 = vrot.lane.b32.xlu0 %v943, 8
      %v980 = vpop.permute.xlu0 %979
      %981 = vrot.lane.b32.xlu0 %v946, 8
      %v982 = vpop.permute.xlu0 %981
      %983 = vrot.lane.b32.xlu0 %v949, 8
      %v984 = vpop.permute.xlu0 %983
      %985 = vrot.lane.b32.xlu0 %v952, 8
      %v986 = vpop.permute.xlu0 %985
      %987 = vrot.lane.b32.xlu0 %v955, 8
      %v988 = vpop.permute.xlu0 %987
      %989 = vrot.lane.b32.xlu0 %v958, 8
      %v990 = vpop.permute.xlu0 %989
      %v1023 = vunpack.c.l.b16 %v377
      %v1024 = vunpack.c.l.b16 %v378
      %v1025 = vunpack.c.l.b16 %v379
      %v1026 = vunpack.c.l.b16 %v380
      %v1027 = vunpack.c.l.b16 %v381
      %v1028 = vunpack.c.l.b16 %v382
      %v1029 = vunpack.c.l.b16 %v383
      %v1030 = vunpack.c.l.b16 %v384
      %v1031 = vunpack.c.l.b16 %v385
      %v1032 = vunpack.c.l.b16 %v386
      %v1033 = vunpack.c.l.b16 %v387
      %v1034 = vunpack.c.l.b16 %v388
      %v1035 = vunpack.c.l.b16 %v389
      %v1036 = vunpack.c.l.b16 %v390
      %v1037 = vunpack.c.l.b16 %v391
      %v1038 = vunpack.c.l.b16 %v392
      %v1039 = vunpack.c.l.b16 %v393
      %v1040 = vunpack.c.l.b16 %v394
      %v1041 = vunpack.c.l.b16 %v395
      %v1042 = vunpack.c.l.b16 %v396
      %v1043 = vunpack.c.l.b16 %v397
      %v1044 = vunpack.c.l.b16 %v398
      %v1045 = vunpack.c.l.b16 %v399
      %v1046 = vunpack.c.l.b16 %v400
      %v1047 = vunpack.c.l.b16 %v401
      %v1048 = vunpack.c.l.b16 %v402
      %v1049 = vunpack.c.l.b16 %v403
      %v1050 = vunpack.c.l.b16 %v404
      %v1051 = vunpack.c.l.b16 %v405
      %v1052 = vunpack.c.l.b16 %v406
      %v1053 = vunpack.c.l.b16 %v407
      %v1054 = vunpack.c.l.b16 %v408
      %v1055 = vpack.c.b16 %v1024, %v1023
      %v1056 = vpack.c.b16 %v1026, %v1025
      %v1057 = vpack.c.b16 %v1028, %v1027
      %v1058 = vpack.c.b16 %v1030, %v1029
      %v1059 = vpack.c.b16 %v1032, %v1031
      %v1060 = vpack.c.b16 %v1034, %v1033
      %v1061 = vpack.c.b16 %v1036, %v1035
      %v1062 = vpack.c.b16 %v1038, %v1037
      %v1063 = vpack.c.b16 %v1040, %v1039
      %v1064 = vpack.c.b16 %v1042, %v1041
      %v1065 = vpack.c.b16 %v1044, %v1043
      %v1066 = vpack.c.b16 %v1046, %v1045
      %v1067 = vpack.c.b16 %v1048, %v1047
      %v1068 = vpack.c.b16 %v1050, %v1049
      %v1069 = vpack.c.b16 %v1052, %v1051
      %v1070 = vpack.c.b16 %v1054, %v1053
      %1071 = vrot.lane.b32.xlu0 %v1055, 12
      %v1072 = vpop.permute.xlu0 %1071
      %1073 = vrot.lane.b32.xlu0 %v1056, 12
      %v1074 = vpop.permute.xlu0 %1073
      %1075 = vrot.lane.b32.xlu0 %v1057, 12
      %v1076 = vpop.permute.xlu0 %1075
      %1077 = vrot.lane.b32.xlu0 %v1058, 12
      %v1078 = vpop.permute.xlu0 %1077
      %1079 = vrot.lane.b32.xlu0 %v1059, 12
      %v1080 = vpop.permute.xlu0 %1079
      %1081 = vrot.lane.b32.xlu0 %v1060, 12
      %v1082 = vpop.permute.xlu0 %1081
      %1083 = vrot.lane.b32.xlu0 %v1061, 12
      %v1084 = vpop.permute.xlu0 %1083
      %1085 = vrot.lane.b32.xlu0 %v1062, 12
      %v1086 = vpop.permute.xlu0 %1085
      %1087 = vrot.lane.b32.xlu0 %v1063, 12
      %v1088 = vpop.permute.xlu0 %1087
      %1089 = vrot.lane.b32.xlu0 %v1064, 12
      %v1090 = vpop.permute.xlu0 %1089
      %1091 = vrot.lane.b32.xlu0 %v1065, 12
      %v1092 = vpop.permute.xlu0 %1091
      %1093 = vrot.lane.b32.xlu0 %v1066, 12
      %v1094 = vpop.permute.xlu0 %1093
      %1095 = vrot.lane.b32.xlu0 %v1067, 12
      %v1096 = vpop.permute.xlu0 %1095
      %1097 = vrot.lane.b32.xlu0 %v1068, 12
      %v1098 = vpop.permute.xlu0 %1097
      %1099 = vrot.lane.b32.xlu0 %v1069, 12
      %v1100 = vpop.permute.xlu0 %1099
      %1101 = vrot.lane.b32.xlu0 %v1070, 12
      %v1102 = vpop.permute.xlu0 %1101
      %v1119 = vunpack.c.l.b16 %v409
      %v1120 = vunpack.c.l.b16 %v410
      %v1121 = vunpack.c.l.b16 %v411
      %v1122 = vunpack.c.l.b16 %v412
      %v1123 = vunpack.c.l.b16 %v413
      %v1124 = vunpack.c.l.b16 %v414
      %v1125 = vunpack.c.l.b16 %v415
      %v1126 = vunpack.c.l.b16 %v416
      %v1127 = vunpack.c.l.b16 %v417
      %v1128 = vunpack.c.l.b16 %v418
      %v1129 = vunpack.c.l.b16 %v419
      %v1130 = vunpack.c.l.b16 %v420
      %v1131 = vunpack.c.l.b16 %v421
      %v1132 = vunpack.c.l.b16 %v422
      %v1133 = vunpack.c.l.b16 %v423
      %v1134 = vunpack.c.l.b16 %v424
      %v1135 = vpack.c.b16 %v1119, %v1119
      %v1136 = vpack.c.b16 %v1120, %v1120
      %v1137 = vpack.c.b16 %v1121, %v1121
      %v1138 = vpack.c.b16 %v1122, %v1122
      %v1139 = vpack.c.b16 %v1123, %v1123
      %v1140 = vpack.c.b16 %v1124, %v1124
      %v1141 = vpack.c.b16 %v1125, %v1125
      %v1142 = vpack.c.b16 %v1126, %v1126
      %v1143 = vpack.c.b16 %v1127, %v1127
      %v1144 = vpack.c.b16 %v1128, %v1128
      %v1145 = vpack.c.b16 %v1129, %v1129
      %v1146 = vpack.c.b16 %v1130, %v1130
      %v1147 = vpack.c.b16 %v1131, %v1131
      %v1148 = vpack.c.b16 %v1132, %v1132
      %v1149 = vpack.c.b16 %v1133, %v1133
      %v1150 = vpack.c.b16 %v1134, %v1134
      %v1152 = vshrl.u32 %v1055, 16
      %v1154 = vshll.u32 %v1055, 16
      %v1156 = vrot.slane %v1154, 1
      %v1157 = vor.u32 %v1152, %v1156
      %v1159 = vshll.u32 %v1135, 16
      %v1161 = vrot.slane %v1159, 1
      %v1162 = vsel %vm637, %v1157, %v1161
      %v1164 = vshrl.u32 %v1056, 16
      %v1166 = vshll.u32 %v1056, 16
      %v1168 = vrot.slane %v1166, 1
      %v1169 = vor.u32 %v1164, %v1168
      %v1171 = vshll.u32 %v1136, 16
      %v1173 = vrot.slane %v1171, 1
      %v1174 = vsel %vm637, %v1169, %v1173
      %v1176 = vshrl.u32 %v1057, 16
      %v1178 = vshll.u32 %v1057, 16
      %v1180 = vrot.slane %v1178, 1
      %v1181 = vor.u32 %v1176, %v1180
      %v1183 = vshll.u32 %v1137, 16
      %v1185 = vrot.slane %v1183, 1
      %v1186 = vsel %vm637, %v1181, %v1185
      %v1188 = vshrl.u32 %v1058, 16
      %v1190 = vshll.u32 %v1058, 16
      %v1192 = vrot.slane %v1190, 1
      %v1193 = vor.u32 %v1188, %v1192
      %v1195 = vshll.u32 %v1138, 16
      %v1197 = vrot.slane %v1195, 1
      %v1198 = vsel %vm637, %v1193, %v1197
      %v1200 = vshrl.u32 %v1059, 16
      %v1202 = vshll.u32 %v1059, 16
      %v1204 = vrot.slane %v1202, 1
      %v1205 = vor.u32 %v1200, %v1204
      %v1207 = vshll.u32 %v1139, 16
      %v1209 = vrot.slane %v1207, 1
      %v1210 = vsel %vm637, %v1205, %v1209
      %v1212 = vshrl.u32 %v1060, 16
      %v1214 = vshll.u32 %v1060, 16
      %v1216 = vrot.slane %v1214, 1
      %v1217 = vor.u32 %v1212, %v1216
      %v1219 = vshll.u32 %v1140, 16
      %v1221 = vrot.slane %v1219, 1
      %v1222 = vsel %vm637, %v1217, %v1221
      %v1224 = vshrl.u32 %v1061, 16
      %v1226 = vshll.u32 %v1061, 16
      %v1228 = vrot.slane %v1226, 1
      %v1229 = vor.u32 %v1224, %v1228
      %v1231 = vshll.u32 %v1141, 16
      %v1233 = vrot.slane %v1231, 1
      %v1234 = vsel %vm637, %v1229, %v1233
      %v1236 = vshrl.u32 %v1062, 16
      %v1238 = vshll.u32 %v1062, 16
      %v1240 = vrot.slane %v1238, 1
      %v1241 = vor.u32 %v1236, %v1240
      %v1243 = vshll.u32 %v1142, 16
      %v1245 = vrot.slane %v1243, 1
      %v1246 = vsel %vm637, %v1241, %v1245
      %v1248 = vshrl.u32 %v1063, 16
      %v1250 = vshll.u32 %v1063, 16
      %v1252 = vrot.slane %v1250, 1
      %v1253 = vor.u32 %v1248, %v1252
      %v1255 = vshll.u32 %v1143, 16
      %v1257 = vrot.slane %v1255, 1
      %v1258 = vsel %vm637, %v1253, %v1257
      %v1260 = vshrl.u32 %v1064, 16
      %v1262 = vshll.u32 %v1064, 16
      %v1264 = vrot.slane %v1262, 1
      %v1265 = vor.u32 %v1260, %v1264
      %v1267 = vshll.u32 %v1144, 16
      %v1269 = vrot.slane %v1267, 1
      %v1270 = vsel %vm637, %v1265, %v1269
      %v1272 = vshrl.u32 %v1065, 16
      %v1274 = vshll.u32 %v1065, 16
      %v1276 = vrot.slane %v1274, 1
      %v1277 = vor.u32 %v1272, %v1276
      %v1279 = vshll.u32 %v1145, 16
      %v1281 = vrot.slane %v1279, 1
      %v1282 = vsel %vm637, %v1277, %v1281
      %v1284 = vshrl.u32 %v1066, 16
      %v1286 = vshll.u32 %v1066, 16
      %v1288 = vrot.slane %v1286, 1
      %v1289 = vor.u32 %v1284, %v1288
      %v1291 = vshll.u32 %v1146, 16
      %v1293 = vrot.slane %v1291, 1
      %v1294 = vsel %vm637, %v1289, %v1293
      %v1296 = vshrl.u32 %v1067, 16
      %v1298 = vshll.u32 %v1067, 16
      %v1300 = vrot.slane %v1298, 1
      %v1301 = vor.u32 %v1296, %v1300
      %v1303 = vshll.u32 %v1147, 16
      %v1305 = vrot.slane %v1303, 1
      %v1306 = vsel %vm637, %v1301, %v1305
      %v1308 = vshrl.u32 %v1068, 16
      %v1310 = vshll.u32 %v1068, 16
      %v1312 = vrot.slane %v1310, 1
      %v1313 = vor.u32 %v1308, %v1312
      %v1315 = vshll.u32 %v1148, 16
      %v1317 = vrot.slane %v1315, 1
      %v1318 = vsel %vm637, %v1313, %v1317
      %v1320 = vshrl.u32 %v1069, 16
      %v1322 = vshll.u32 %v1069, 16
      %v1324 = vrot.slane %v1322, 1
      %v1325 = vor.u32 %v1320, %v1324
      %v1327 = vshll.u32 %v1149, 16
      %v1329 = vrot.slane %v1327, 1
      %v1330 = vsel %vm637, %v1325, %v1329
      %v1332 = vshrl.u32 %v1070, 16
      %v1334 = vshll.u32 %v1070, 16
      %v1336 = vrot.slane %v1334, 1
      %v1337 = vor.u32 %v1332, %v1336
      %v1339 = vshll.u32 %v1150, 16
      %v1341 = vrot.slane %v1339, 1
      %v1342 = vsel %vm637, %v1337, %v1341
      %1343 = vrot.lane.b32.xlu0 %v1162, 16
      %v1344 = vpop.permute.xlu0 %1343
      %1345 = vrot.lane.b32.xlu0 %v1174, 16
      %v1346 = vpop.permute.xlu0 %1345
      %1347 = vrot.lane.b32.xlu0 %v1186, 16
      %v1348 = vpop.permute.xlu0 %1347
      %1349 = vrot.lane.b32.xlu0 %v1198, 16
      %v1350 = vpop.permute.xlu0 %1349
      %1351 = vrot.lane.b32.xlu0 %v1210, 16
      %v1352 = vpop.permute.xlu0 %1351
      %1353 = vrot.lane.b32.xlu0 %v1222, 16
      %v1354 = vpop.permute.xlu0 %1353
      %1355 = vrot.lane.b32.xlu0 %v1234, 16
      %v1356 = vpop.permute.xlu0 %1355
      %1357 = vrot.lane.b32.xlu0 %v1246, 16
      %v1358 = vpop.permute.xlu0 %1357
      %1359 = vrot.lane.b32.xlu0 %v1258, 16
      %v1360 = vpop.permute.xlu0 %1359
      %1361 = vrot.lane.b32.xlu0 %v1270, 16
      %v1362 = vpop.permute.xlu0 %1361
      %1363 = vrot.lane.b32.xlu0 %v1282, 16
      %v1364 = vpop.permute.xlu0 %1363
      %1365 = vrot.lane.b32.xlu0 %v1294, 16
      %v1366 = vpop.permute.xlu0 %1365
      %1367 = vrot.lane.b32.xlu0 %v1306, 16
      %v1368 = vpop.permute.xlu0 %1367
      %1369 = vrot.lane.b32.xlu0 %v1318, 16
      %v1370 = vpop.permute.xlu0 %1369
      %1371 = vrot.lane.b32.xlu0 %v1330, 16
      %v1372 = vpop.permute.xlu0 %1371
      %1373 = vrot.lane.b32.xlu0 %v1342, 16
      %v1374 = vpop.permute.xlu0 %1373
      %v1391 = vunpack.c.l.b16 %v425
      %v1392 = vunpack.c.l.b16 %v426
      %v1393 = vunpack.c.l.b16 %v427
      %v1394 = vunpack.c.l.b16 %v428
      %v1395 = vunpack.c.l.b16 %v429
      %v1396 = vunpack.c.l.b16 %v430
      %v1397 = vunpack.c.l.b16 %v431
      %v1398 = vunpack.c.l.b16 %v432
      %v1399 = vunpack.c.l.b16 %v433
      %v1400 = vunpack.c.l.b16 %v434
      %v1401 = vunpack.c.l.b16 %v435
      %v1402 = vunpack.c.l.b16 %v436
      %v1403 = vunpack.c.l.b16 %v437
      %v1404 = vunpack.c.l.b16 %v438
      %v1405 = vunpack.c.l.b16 %v439
      %v1406 = vunpack.c.l.b16 %v440
      %v1407 = vpack.c.b16 %v1024, %v1391
      %v1408 = vpack.c.b16 %v1026, %v1392
      %v1409 = vpack.c.b16 %v1028, %v1393
      %v1410 = vpack.c.b16 %v1030, %v1394
      %v1411 = vpack.c.b16 %v1032, %v1395
      %v1412 = vpack.c.b16 %v1034, %v1396
      %v1413 = vpack.c.b16 %v1036, %v1397
      %v1414 = vpack.c.b16 %v1038, %v1398
      %v1415 = vpack.c.b16 %v1040, %v1399
      %v1416 = vpack.c.b16 %v1042, %v1400
      %v1417 = vpack.c.b16 %v1044, %v1401
      %v1418 = vpack.c.b16 %v1046, %v1402
      %v1419 = vpack.c.b16 %v1048, %v1403
      %v1420 = vpack.c.b16 %v1050, %v1404
      %v1421 = vpack.c.b16 %v1052, %v1405
      %v1422 = vpack.c.b16 %v1054, %v1406
      %v1423 = vrot.slane %v1407, 1
      %v1424 = vrot.slane %v1135, 1
      %v1425 = vsel %vm910, %v1423, %v1424
      %v1426 = vrot.slane %v1408, 1
      %v1427 = vrot.slane %v1136, 1
      %v1428 = vsel %vm910, %v1426, %v1427
      %v1429 = vrot.slane %v1409, 1
      %v1430 = vrot.slane %v1137, 1
      %v1431 = vsel %vm910, %v1429, %v1430
      %v1432 = vrot.slane %v1410, 1
      %v1433 = vrot.slane %v1138, 1
      %v1434 = vsel %vm910, %v1432, %v1433
      %v1435 = vrot.slane %v1411, 1
      %v1436 = vrot.slane %v1139, 1
      %v1437 = vsel %vm910, %v1435, %v1436
      %v1438 = vrot.slane %v1412, 1
      %v1439 = vrot.slane %v1140, 1
      %v1440 = vsel %vm910, %v1438, %v1439
      %v1441 = vrot.slane %v1413, 1
      %v1442 = vrot.slane %v1141, 1
      %v1443 = vsel %vm910, %v1441, %v1442
      %v1444 = vrot.slane %v1414, 1
      %v1445 = vrot.slane %v1142, 1
      %v1446 = vsel %vm910, %v1444, %v1445
      %v1447 = vrot.slane %v1415, 1
      %v1448 = vrot.slane %v1143, 1
      %v1449 = vsel %vm910, %v1447, %v1448
      %v1450 = vrot.slane %v1416, 1
      %v1451 = vrot.slane %v1144, 1
      %v1452 = vsel %vm910, %v1450, %v1451
      %v1453 = vrot.slane %v1417, 1
      %v1454 = vrot.slane %v1145, 1
      %v1455 = vsel %vm910, %v1453, %v1454
      %v1456 = vrot.slane %v1418, 1
      %v1457 = vrot.slane %v1146, 1
      %v1458 = vsel %vm910, %v1456, %v1457
      %v1459 = vrot.slane %v1419, 1
      %v1460 = vrot.slane %v1147, 1
      %v1461 = vsel %vm910, %v1459, %v1460
      %v1462 = vrot.slane %v1420, 1
      %v1463 = vrot.slane %v1148, 1
      %v1464 = vsel %vm910, %v1462, %v1463
      %v1465 = vrot.slane %v1421, 1
      %v1466 = vrot.slane %v1149, 1
      %v1467 = vsel %vm910, %v1465, %v1466
      %v1468 = vrot.slane %v1422, 1
      %v1469 = vrot.slane %v1150, 1
      %v1470 = vsel %vm910, %v1468, %v1469
      %1471 = vrot.lane.b32.xlu0 %v1425, 20
      %v1472 = vpop.permute.xlu0 %1471
      %1473 = vrot.lane.b32.xlu0 %v1428, 20
      %v1474 = vpop.permute.xlu0 %1473
      %1475 = vrot.lane.b32.xlu0 %v1431, 20
      %v1476 = vpop.permute.xlu0 %1475
      %1477 = vrot.lane.b32.xlu0 %v1434, 20
      %v1478 = vpop.permute.xlu0 %1477
      %1479 = vrot.lane.b32.xlu0 %v1437, 20
      %v1480 = vpop.permute.xlu0 %1479
      %1481 = vrot.lane.b32.xlu0 %v1440, 20
      %v1482 = vpop.permute.xlu0 %1481
      %1483 = vrot.lane.b32.xlu0 %v1443, 20
      %v1484 = vpop.permute.xlu0 %1483
      %1485 = vrot.lane.b32.xlu0 %v1446, 20
      %v1486 = vpop.permute.xlu0 %1485
      %1487 = vrot.lane.b32.xlu0 %v1449, 20
      %v1488 = vpop.permute.xlu0 %1487
      %1489 = vrot.lane.b32.xlu0 %v1452, 20
      %v1490 = vpop.permute.xlu0 %1489
      %1491 = vrot.lane.b32.xlu0 %v1455, 20
      %v1492 = vpop.permute.xlu0 %1491
      %1493 = vrot.lane.b32.xlu0 %v1458, 20
      %v1494 = vpop.permute.xlu0 %1493
      %1495 = vrot.lane.b32.xlu0 %v1461, 20
      %v1496 = vpop.permute.xlu0 %1495
      %1497 = vrot.lane.b32.xlu0 %v1464, 20
      %v1498 = vpop.permute.xlu0 %1497
      %1499 = vrot.lane.b32.xlu0 %v1467, 20
      %v1500 = vpop.permute.xlu0 %1499
      %1501 = vrot.lane.b32.xlu0 %v1470, 20
      %v1502 = vpop.permute.xlu0 %1501
      %v1535 = vunpack.c.l.b16 %v445
      %v1536 = vunpack.c.l.b16 %v446
      %v1537 = vunpack.c.l.b16 %v447
      %v1538 = vunpack.c.l.b16 %v448
      %v1539 = vunpack.c.l.b16 %v449
      %v1540 = vunpack.c.l.b16 %v450
      %v1541 = vunpack.c.l.b16 %v451
      %v1542 = vunpack.c.l.b16 %v452
      %v1543 = vunpack.c.l.b16 %v453
      %v1544 = vunpack.c.l.b16 %v454
      %v1545 = vunpack.c.l.b16 %v455
      %v1546 = vunpack.c.l.b16 %v456
      %v1547 = vunpack.c.l.b16 %v457
      %v1548 = vunpack.c.l.b16 %v458
      %v1549 = vunpack.c.l.b16 %v459
      %v1550 = vunpack.c.l.b16 %v460
      %v1551 = vunpack.c.l.b16 %v461
      %v1552 = vunpack.c.l.b16 %v462
      %v1553 = vunpack.c.l.b16 %v463
      %v1554 = vunpack.c.l.b16 %v464
      %v1555 = vunpack.c.l.b16 %v465
      %v1556 = vunpack.c.l.b16 %v466
      %v1557 = vunpack.c.l.b16 %v467
      %v1558 = vunpack.c.l.b16 %v468
      %v1559 = vunpack.c.l.b16 %v469
      %v1560 = vunpack.c.l.b16 %v470
      %v1561 = vunpack.c.l.b16 %v471
      %v1562 = vunpack.c.l.b16 %v472
      %v1563 = vunpack.c.l.b16 %v473
      %v1564 = vunpack.c.l.b16 %v474
      %v1565 = vunpack.c.l.b16 %v475
      %v1566 = vunpack.c.l.b16 %v476
      %v1567 = vpack.c.b16 %v1536, %v1535
      %v1568 = vpack.c.b16 %v1538, %v1537
      %v1569 = vpack.c.b16 %v1540, %v1539
      %v1570 = vpack.c.b16 %v1542, %v1541
      %v1571 = vpack.c.b16 %v1544, %v1543
      %v1572 = vpack.c.b16 %v1546, %v1545
      %v1573 = vpack.c.b16 %v1548, %v1547
      %v1574 = vpack.c.b16 %v1550, %v1549
      %v1575 = vpack.c.b16 %v1552, %v1551
      %v1576 = vpack.c.b16 %v1554, %v1553
      %v1577 = vpack.c.b16 %v1556, %v1555
      %v1578 = vpack.c.b16 %v1558, %v1557
      %v1579 = vpack.c.b16 %v1560, %v1559
      %v1580 = vpack.c.b16 %v1562, %v1561
      %v1581 = vpack.c.b16 %v1564, %v1563
      %v1582 = vpack.c.b16 %v1566, %v1565
      %1583 = vrot.lane.b32.xlu0 %v1567, 24
      %v1584 = vpop.permute.xlu0 %1583
      %1585 = vrot.lane.b32.xlu0 %v1568, 24
      %v1586 = vpop.permute.xlu0 %1585
      %1587 = vrot.lane.b32.xlu0 %v1569, 24
      %v1588 = vpop.permute.xlu0 %1587
      %1589 = vrot.lane.b32.xlu0 %v1570, 24
      %v1590 = vpop.permute.xlu0 %1589
      %1591 = vrot.lane.b32.xlu0 %v1571, 24
      %v1592 = vpop.permute.xlu0 %1591
      %1593 = vrot.lane.b32.xlu0 %v1572, 24
      %v1594 = vpop.permute.xlu0 %1593
      %1595 = vrot.lane.b32.xlu0 %v1573, 24
      %v1596 = vpop.permute.xlu0 %1595
      %1597 = vrot.lane.b32.xlu0 %v1574, 24
      %v1598 = vpop.permute.xlu0 %1597
      %1599 = vrot.lane.b32.xlu0 %v1575, 24
      %v1600 = vpop.permute.xlu0 %1599
      %1601 = vrot.lane.b32.xlu0 %v1576, 24
      %v1602 = vpop.permute.xlu0 %1601
      %1603 = vrot.lane.b32.xlu0 %v1577, 24
      %v1604 = vpop.permute.xlu0 %1603
      %1605 = vrot.lane.b32.xlu0 %v1578, 24
      %v1606 = vpop.permute.xlu0 %1605
      %1607 = vrot.lane.b32.xlu0 %v1579, 24
      %v1608 = vpop.permute.xlu0 %1607
      %1609 = vrot.lane.b32.xlu0 %v1580, 24
      %v1610 = vpop.permute.xlu0 %1609
      %1611 = vrot.lane.b32.xlu0 %v1581, 24
      %v1612 = vpop.permute.xlu0 %1611
      %1613 = vrot.lane.b32.xlu0 %v1582, 24
      %v1614 = vpop.permute.xlu0 %1613
      %v1631 = vunpack.c.l.b16 %v477
      %v1632 = vunpack.c.l.b16 %v478
      %v1633 = vunpack.c.l.b16 %v479
      %v1634 = vunpack.c.l.b16 %v480
      %v1635 = vunpack.c.l.b16 %v481
      %v1636 = vunpack.c.l.b16 %v482
      %v1637 = vunpack.c.l.b16 %v483
      %v1638 = vunpack.c.l.b16 %v484
      %v1639 = vunpack.c.l.b16 %v485
      %v1640 = vunpack.c.l.b16 %v486
      %v1641 = vunpack.c.l.b16 %v487
      %v1642 = vunpack.c.l.b16 %v488
      %v1643 = vunpack.c.l.b16 %v489
      %v1644 = vunpack.c.l.b16 %v490
      %v1645 = vunpack.c.l.b16 %v491
      %v1646 = vunpack.c.l.b16 %v492
      %v1647 = vpack.c.b16 %v1631, %v1631
      %v1648 = vpack.c.b16 %v1632, %v1632
      %v1649 = vpack.c.b16 %v1633, %v1633
      %v1650 = vpack.c.b16 %v1634, %v1634
      %v1651 = vpack.c.b16 %v1635, %v1635
      %v1652 = vpack.c.b16 %v1636, %v1636
      %v1653 = vpack.c.b16 %v1637, %v1637
      %v1654 = vpack.c.b16 %v1638, %v1638
      %v1655 = vpack.c.b16 %v1639, %v1639
      %v1656 = vpack.c.b16 %v1640, %v1640
      %v1657 = vpack.c.b16 %v1641, %v1641
      %v1658 = vpack.c.b16 %v1642, %v1642
      %v1659 = vpack.c.b16 %v1643, %v1643
      %v1660 = vpack.c.b16 %v1644, %v1644
      %v1661 = vpack.c.b16 %v1645, %v1645
      %v1662 = vpack.c.b16 %v1646, %v1646
      %v1664 = vshrl.u32 %v1567, 16
      %v1666 = vshll.u32 %v1567, 16
      %v1668 = vrot.slane %v1666, 1
      %v1669 = vor.u32 %v1664, %v1668
      %v1671 = vshll.u32 %v1647, 16
      %v1673 = vrot.slane %v1671, 1
      %v1674 = vsel %vm637, %v1669, %v1673
      %v1676 = vshrl.u32 %v1568, 16
      %v1678 = vshll.u32 %v1568, 16
      %v1680 = vrot.slane %v1678, 1
      %v1681 = vor.u32 %v1676, %v1680
      %v1683 = vshll.u32 %v1648, 16
      %v1685 = vrot.slane %v1683, 1
      %v1686 = vsel %vm637, %v1681, %v1685
      %v1688 = vshrl.u32 %v1569, 16
      %v1690 = vshll.u32 %v1569, 16
      %v1692 = vrot.slane %v1690, 1
      %v1693 = vor.u32 %v1688, %v1692
      %v1695 = vshll.u32 %v1649, 16
      %v1697 = vrot.slane %v1695, 1
      %v1698 = vsel %vm637, %v1693, %v1697
      %v1700 = vshrl.u32 %v1570, 16
      %v1702 = vshll.u32 %v1570, 16
      %v1704 = vrot.slane %v1702, 1
      %v1705 = vor.u32 %v1700, %v1704
      %v1707 = vshll.u32 %v1650, 16
      %v1709 = vrot.slane %v1707, 1
      %v1710 = vsel %vm637, %v1705, %v1709
      %v1712 = vshrl.u32 %v1571, 16
      %v1714 = vshll.u32 %v1571, 16
      %v1716 = vrot.slane %v1714, 1
      %v1717 = vor.u32 %v1712, %v1716
      %v1719 = vshll.u32 %v1651, 16
      %v1721 = vrot.slane %v1719, 1
      %v1722 = vsel %vm637, %v1717, %v1721
      %v1724 = vshrl.u32 %v1572, 16
      %v1726 = vshll.u32 %v1572, 16
      %v1728 = vrot.slane %v1726, 1
      %v1729 = vor.u32 %v1724, %v1728
      %v1731 = vshll.u32 %v1652, 16
      %v1733 = vrot.slane %v1731, 1
      %v1734 = vsel %vm637, %v1729, %v1733
      %v1736 = vshrl.u32 %v1573, 16
      %v1738 = vshll.u32 %v1573, 16
      %v1740 = vrot.slane %v1738, 1
      %v1741 = vor.u32 %v1736, %v1740
      %v1743 = vshll.u32 %v1653, 16
      %v1745 = vrot.slane %v1743, 1
      %v1746 = vsel %vm637, %v1741, %v1745
      %v1748 = vshrl.u32 %v1574, 16
      %v1750 = vshll.u32 %v1574, 16
      %v1752 = vrot.slane %v1750, 1
      %v1753 = vor.u32 %v1748, %v1752
      %v1755 = vshll.u32 %v1654, 16
      %v1757 = vrot.slane %v1755, 1
      %v1758 = vsel %vm637, %v1753, %v1757
      %v1760 = vshrl.u32 %v1575, 16
      %v1762 = vshll.u32 %v1575, 16
      %v1764 = vrot.slane %v1762, 1
      %v1765 = vor.u32 %v1760, %v1764
      %v1767 = vshll.u32 %v1655, 16
      %v1769 = vrot.slane %v1767, 1
      %v1770 = vsel %vm637, %v1765, %v1769
      %v1772 = vshrl.u32 %v1576, 16
      %v1774 = vshll.u32 %v1576, 16
      %v1776 = vrot.slane %v1774, 1
      %v1777 = vor.u32 %v1772, %v1776
      %v1779 = vshll.u32 %v1656, 16
      %v1781 = vrot.slane %v1779, 1
      %v1782 = vsel %vm637, %v1777, %v1781
      %v1784 = vshrl.u32 %v1577, 16
      %v1786 = vshll.u32 %v1577, 16
      %v1788 = vrot.slane %v1786, 1
      %v1789 = vor.u32 %v1784, %v1788
      %v1791 = vshll.u32 %v1657, 16
      %v1793 = vrot.slane %v1791, 1
      %v1794 = vsel %vm637, %v1789, %v1793
      %v1796 = vshrl.u32 %v1578, 16
      %v1798 = vshll.u32 %v1578, 16
      %v1800 = vrot.slane %v1798, 1
      %v1801 = vor.u32 %v1796, %v1800
      %v1803 = vshll.u32 %v1658, 16
      %v1805 = vrot.slane %v1803, 1
      %v1806 = vsel %vm637, %v1801, %v1805
      %v1808 = vshrl.u32 %v1579, 16
      %v1810 = vshll.u32 %v1579, 16
      %v1812 = vrot.slane %v1810, 1
      %v1813 = vor.u32 %v1808, %v1812
      %v1815 = vshll.u32 %v1659, 16
      %v1817 = vrot.slane %v1815, 1
      %v1818 = vsel %vm637, %v1813, %v1817
      %v1820 = vshrl.u32 %v1580, 16
      %v1822 = vshll.u32 %v1580, 16
      %v1824 = vrot.slane %v1822, 1
      %v1825 = vor.u32 %v1820, %v1824
      %v1827 = vshll.u32 %v1660, 16
      %v1829 = vrot.slane %v1827, 1
      %v1830 = vsel %vm637, %v1825, %v1829
      %v1832 = vshrl.u32 %v1581, 16
      %v1834 = vshll.u32 %v1581, 16
      %v1836 = vrot.slane %v1834, 1
      %v1837 = vor.u32 %v1832, %v1836
      %v1839 = vshll.u32 %v1661, 16
      %v1841 = vrot.slane %v1839, 1
      %v1842 = vsel %vm637, %v1837, %v1841
      %v1844 = vshrl.u32 %v1582, 16
      %v1846 = vshll.u32 %v1582, 16
      %v1848 = vrot.slane %v1846, 1
      %v1849 = vor.u32 %v1844, %v1848
      %v1851 = vshll.u32 %v1662, 16
      %v1853 = vrot.slane %v1851, 1
      %v1854 = vsel %vm637, %v1849, %v1853
      %1855 = vrot.lane.b32.xlu0 %v1674, 28
      %v1856 = vpop.permute.xlu0 %1855
      %1857 = vrot.lane.b32.xlu0 %v1686, 28
      %v1858 = vpop.permute.xlu0 %1857
      %1859 = vrot.lane.b32.xlu0 %v1698, 28
      %v1860 = vpop.permute.xlu0 %1859
      %1861 = vrot.lane.b32.xlu0 %v1710, 28
      %v1862 = vpop.permute.xlu0 %1861
      %1863 = vrot.lane.b32.xlu0 %v1722, 28
      %v1864 = vpop.permute.xlu0 %1863
      %1865 = vrot.lane.b32.xlu0 %v1734, 28
      %v1866 = vpop.permute.xlu0 %1865
      %1867 = vrot.lane.b32.xlu0 %v1746, 28
      %v1868 = vpop.permute.xlu0 %1867
      %1869 = vrot.lane.b32.xlu0 %v1758, 28
      %v1870 = vpop.permute.xlu0 %1869
      %1871 = vrot.lane.b32.xlu0 %v1770, 28
      %v1872 = vpop.permute.xlu0 %1871
      %1873 = vrot.lane.b32.xlu0 %v1782, 28
      %v1874 = vpop.permute.xlu0 %1873
      %1875 = vrot.lane.b32.xlu0 %v1794, 28
      %v1876 = vpop.permute.xlu0 %1875
      %1877 = vrot.lane.b32.xlu0 %v1806, 28
      %v1878 = vpop.permute.xlu0 %1877
      %1879 = vrot.lane.b32.xlu0 %v1818, 28
      %v1880 = vpop.permute.xlu0 %1879
      %1881 = vrot.lane.b32.xlu0 %v1830, 28
      %v1882 = vpop.permute.xlu0 %1881
      %1883 = vrot.lane.b32.xlu0 %v1842, 28
      %v1884 = vpop.permute.xlu0 %1883
      %1885 = vrot.lane.b32.xlu0 %v1854, 28
      %v1886 = vpop.permute.xlu0 %1885
      %v1903 = vunpack.c.l.b16 %v493
      %v1904 = vunpack.c.l.b16 %v494
      %v1905 = vunpack.c.l.b16 %v495
      %v1906 = vunpack.c.l.b16 %v496
      %v1907 = vunpack.c.l.b16 %v497
      %v1908 = vunpack.c.l.b16 %v498
      %v1909 = vunpack.c.l.b16 %v499
      %v1910 = vunpack.c.l.b16 %v500
      %v1911 = vunpack.c.l.b16 %v501
      %v1912 = vunpack.c.l.b16 %v502
      %v1913 = vunpack.c.l.b16 %v503
      %v1914 = vunpack.c.l.b16 %v504
      %v1915 = vunpack.c.l.b16 %v505
      %v1916 = vunpack.c.l.b16 %v506
      %v1917 = vunpack.c.l.b16 %v507
      %v1918 = vunpack.c.l.b16 %v508
      %v1919 = vpack.c.b16 %v1536, %v1903
      %v1920 = vpack.c.b16 %v1538, %v1904
      %v1921 = vpack.c.b16 %v1540, %v1905
      %v1922 = vpack.c.b16 %v1542, %v1906
      %v1923 = vpack.c.b16 %v1544, %v1907
      %v1924 = vpack.c.b16 %v1546, %v1908
      %v1925 = vpack.c.b16 %v1548, %v1909
      %v1926 = vpack.c.b16 %v1550, %v1910
      %v1927 = vpack.c.b16 %v1552, %v1911
      %v1928 = vpack.c.b16 %v1554, %v1912
      %v1929 = vpack.c.b16 %v1556, %v1913
      %v1930 = vpack.c.b16 %v1558, %v1914
      %v1931 = vpack.c.b16 %v1560, %v1915
      %v1932 = vpack.c.b16 %v1562, %v1916
      %v1933 = vpack.c.b16 %v1564, %v1917
      %v1934 = vpack.c.b16 %v1566, %v1918
      %v1935 = vrot.slane %v1919, 1
      %v1936 = vrot.slane %v1647, 1
      %v1937 = vsel %vm910, %v1935, %v1936
      %v1938 = vrot.slane %v1920, 1
      %v1939 = vrot.slane %v1648, 1
      %v1940 = vsel %vm910, %v1938, %v1939
      %v1941 = vrot.slane %v1921, 1
      %v1942 = vrot.slane %v1649, 1
      %v1943 = vsel %vm910, %v1941, %v1942
      %v1944 = vrot.slane %v1922, 1
      %v1945 = vrot.slane %v1650, 1
      %v1946 = vsel %vm910, %v1944, %v1945
      %v1947 = vrot.slane %v1923, 1
      %v1948 = vrot.slane %v1651, 1
      %v1949 = vsel %vm910, %v1947, %v1948
      %v1950 = vrot.slane %v1924, 1
      %v1951 = vrot.slane %v1652, 1
      %v1952 = vsel %vm910, %v1950, %v1951
      %v1953 = vrot.slane %v1925, 1
      %v1954 = vrot.slane %v1653, 1
      %v1955 = vsel %vm910, %v1953, %v1954
      %v1956 = vrot.slane %v1926, 1
      %v1957 = vrot.slane %v1654, 1
      %v1958 = vsel %vm910, %v1956, %v1957
      %v1959 = vrot.slane %v1927, 1
      %v1960 = vrot.slane %v1655, 1
      %v1961 = vsel %vm910, %v1959, %v1960
      %v1962 = vrot.slane %v1928, 1
      %v1963 = vrot.slane %v1656, 1
      %v1964 = vsel %vm910, %v1962, %v1963
      %v1965 = vrot.slane %v1929, 1
      %v1966 = vrot.slane %v1657, 1
      %v1967 = vsel %vm910, %v1965, %v1966
      %v1968 = vrot.slane %v1930, 1
      %v1969 = vrot.slane %v1658, 1
      %v1970 = vsel %vm910, %v1968, %v1969
      %v1971 = vrot.slane %v1931, 1
      %v1972 = vrot.slane %v1659, 1
      %v1973 = vsel %vm910, %v1971, %v1972
      %v1974 = vrot.slane %v1932, 1
      %v1975 = vrot.slane %v1660, 1
      %v1976 = vsel %vm910, %v1974, %v1975
      %v1977 = vrot.slane %v1933, 1
      %v1978 = vrot.slane %v1661, 1
      %v1979 = vsel %vm910, %v1977, %v1978
      %v1980 = vrot.slane %v1934, 1
      %v1981 = vrot.slane %v1662, 1
      %v1982 = vsel %vm910, %v1980, %v1981
      %1983 = vrot.lane.b32.xlu0 %v1937, 32
      %v1984 = vpop.permute.xlu0 %1983
      %1985 = vrot.lane.b32.xlu0 %v1940, 32
      %v1986 = vpop.permute.xlu0 %1985
      %1987 = vrot.lane.b32.xlu0 %v1943, 32
      %v1988 = vpop.permute.xlu0 %1987
      %1989 = vrot.lane.b32.xlu0 %v1946, 32
      %v1990 = vpop.permute.xlu0 %1989
      %1991 = vrot.lane.b32.xlu0 %v1949, 32
      %v1992 = vpop.permute.xlu0 %1991
      %1993 = vrot.lane.b32.xlu0 %v1952, 32
      %v1994 = vpop.permute.xlu0 %1993
      %1995 = vrot.lane.b32.xlu0 %v1955, 32
      %v1996 = vpop.permute.xlu0 %1995
      %1997 = vrot.lane.b32.xlu0 %v1958, 32
      %v1998 = vpop.permute.xlu0 %1997
      %1999 = vrot.lane.b32.xlu0 %v1961, 32
      %v2000 = vpop.permute.xlu0 %1999
      %2001 = vrot.lane.b32.xlu0 %v1964, 32
      %v2002 = vpop.permute.xlu0 %2001
      %2003 = vrot.lane.b32.xlu0 %v1967, 32
      %v2004 = vpop.permute.xlu0 %2003
      %2005 = vrot.lane.b32.xlu0 %v1970, 32
      %v2006 = vpop.permute.xlu0 %2005
      %2007 = vrot.lane.b32.xlu0 %v1973, 32
      %v2008 = vpop.permute.xlu0 %2007
      %2009 = vrot.lane.b32.xlu0 %v1976, 32
      %v2010 = vpop.permute.xlu0 %2009
      %2011 = vrot.lane.b32.xlu0 %v1979, 32
      %v2012 = vpop.permute.xlu0 %2011
      %2013 = vrot.lane.b32.xlu0 %v1982, 32
      %v2014 = vpop.permute.xlu0 %2013
      %vm2015 = vcmask 31744
      %v2017 = vsel %vm2015, %v573, %v831
      %v2019 = vsel %vm2015, %v574, %v833
      %v2021 = vsel %vm2015, %v575, %v835
      %v2023 = vsel %vm2015, %v576, %v837
      %v2025 = vsel %vm2015, %v577, %v839
      %v2027 = vsel %vm2015, %v578, %v841
      %v2029 = vsel %vm2015, %v579, %v843
      %v2031 = vsel %vm2015, %v580, %v845
      %v2033 = vsel %vm2015, %v581, %v847
      %v2035 = vsel %vm2015, %v582, %v849
      %v2037 = vsel %vm2015, %v583, %v851
      %v2039 = vsel %vm2015, %v584, %v853
      %v2041 = vsel %vm2015, %v585, %v855
      %v2043 = vsel %vm2015, %v586, %v857
      %v2045 = vsel %vm2015, %v587, %v859
      %v2047 = vsel %vm2015, %v588, %v861
      %vm2048 = vcmask 64512
      %v2050 = vsel %vm2048, %v2017, %v960
      %v2052 = vsel %vm2048, %v2019, %v962
      %v2054 = vsel %vm2048, %v2021, %v964
      %v2056 = vsel %vm2048, %v2023, %v966
      %v2058 = vsel %vm2048, %v2025, %v968
      %v2060 = vsel %vm2048, %v2027, %v970
      %v2062 = vsel %vm2048, %v2029, %v972
      %v2064 = vsel %vm2048, %v2031, %v974
      %v2066 = vsel %vm2048, %v2033, %v976
      %v2068 = vsel %vm2048, %v2035, %v978
      %v2070 = vsel %vm2048, %v2037, %v980
      %v2072 = vsel %vm2048, %v2039, %v982
      %v2074 = vsel %vm2048, %v2041, %v984
      %v2076 = vsel %vm2048, %v2043, %v986
      %v2078 = vsel %vm2048, %v2045, %v988
      %v2080 = vsel %vm2048, %v2047, %v990
      %vm2081 = vcmask 97280
      %v2083 = vsel %vm2081, %v2050, %v1072
      %v2085 = vsel %vm2081, %v2052, %v1074
      %v2087 = vsel %vm2081, %v2054, %v1076
      %v2089 = vsel %vm2081, %v2056, %v1078
      %v2091 = vsel %vm2081, %v2058, %v1080
      %v2093 = vsel %vm2081, %v2060, %v1082
      %v2095 = vsel %vm2081, %v2062, %v1084
      %v2097 = vsel %vm2081, %v2064, %v1086
      %v2099 = vsel %vm2081, %v2066, %v1088
      %v2101 = vsel %vm2081, %v2068, %v1090
      %v2103 = vsel %vm2081, %v2070, %v1092
      %v2105 = vsel %vm2081, %v2072, %v1094
      %v2107 = vsel %vm2081, %v2074, %v1096
      %v2109 = vsel %vm2081, %v2076, %v1098
      %v2111 = vsel %vm2081, %v2078, %v1100
      %v2113 = vsel %vm2081, %v2080, %v1102
      %vm2114 = vcmask 130048
      %v2116 = vsel %vm2114, %v2083, %v1344
      %v2118 = vsel %vm2114, %v2085, %v1346
      %v2120 = vsel %vm2114, %v2087, %v1348
      %v2122 = vsel %vm2114, %v2089, %v1350
      %v2124 = vsel %vm2114, %v2091, %v1352
      %v2126 = vsel %vm2114, %v2093, %v1354
      %v2128 = vsel %vm2114, %v2095, %v1356
      %v2130 = vsel %vm2114, %v2097, %v1358
      %v2132 = vsel %vm2114, %v2099, %v1360
      %v2134 = vsel %vm2114, %v2101, %v1362
      %v2136 = vsel %vm2114, %v2103, %v1364
      %v2138 = vsel %vm2114, %v2105, %v1366
      %v2140 = vsel %vm2114, %v2107, %v1368
      %v2142 = vsel %vm2114, %v2109, %v1370
      %v2144 = vsel %vm2114, %v2111, %v1372
      %v2146 = vsel %vm2114, %v2113, %v1374
      %vm2147 = vcmask 162816
      %v2149 = vsel %vm2147, %v2116, %v1472
      %v2151 = vsel %vm2147, %v2118, %v1474
      %v2153 = vsel %vm2147, %v2120, %v1476
      %v2155 = vsel %vm2147, %v2122, %v1478
      %v2157 = vsel %vm2147, %v2124, %v1480
      %v2159 = vsel %vm2147, %v2126, %v1482
      %v2161 = vsel %vm2147, %v2128, %v1484
      %v2163 = vsel %vm2147, %v2130, %v1486
      %v2165 = vsel %vm2147, %v2132, %v1488
      %v2167 = vsel %vm2147, %v2134, %v1490
      %v2169 = vsel %vm2147, %v2136, %v1492
      %v2171 = vsel %vm2147, %v2138, %v1494
      %v2173 = vsel %vm2147, %v2140, %v1496
      %v2175 = vsel %vm2147, %v2142, %v1498
      %v2177 = vsel %vm2147, %v2144, %v1500
      %v2179 = vsel %vm2147, %v2146, %v1502
      %vm2180 = vcmask 195584
      %v2182 = vsel %vm2180, %v2149, %v1584
      %v2184 = vsel %vm2180, %v2151, %v1586
      %v2186 = vsel %vm2180, %v2153, %v1588
      %v2188 = vsel %vm2180, %v2155, %v1590
      %v2190 = vsel %vm2180, %v2157, %v1592
      %v2192 = vsel %vm2180, %v2159, %v1594
      %v2194 = vsel %vm2180, %v2161, %v1596
      %v2196 = vsel %vm2180, %v2163, %v1598
      %v2198 = vsel %vm2180, %v2165, %v1600
      %v2200 = vsel %vm2180, %v2167, %v1602
      %v2202 = vsel %vm2180, %v2169, %v1604
      %v2204 = vsel %vm2180, %v2171, %v1606
      %v2206 = vsel %vm2180, %v2173, %v1608
      %v2208 = vsel %vm2180, %v2175, %v1610
      %v2210 = vsel %vm2180, %v2177, %v1612
      %v2212 = vsel %vm2180, %v2179, %v1614
      %vm2213 = vcmask 228352
      %v2215 = vsel %vm2213, %v2182, %v1856
      %v2217 = vsel %vm2213, %v2184, %v1858
      %v2219 = vsel %vm2213, %v2186, %v1860
      %v2221 = vsel %vm2213, %v2188, %v1862
      %v2223 = vsel %vm2213, %v2190, %v1864
      %v2225 = vsel %vm2213, %v2192, %v1866
      %v2227 = vsel %vm2213, %v2194, %v1868
      %v2229 = vsel %vm2213, %v2196, %v1870
      %v2231 = vsel %vm2213, %v2198, %v1872
      %v2233 = vsel %vm2213, %v2200, %v1874
      %v2235 = vsel %vm2213, %v2202, %v1876
      %v2237 = vsel %vm2213, %v2204, %v1878
      %v2239 = vsel %vm2213, %v2206, %v1880
      %v2241 = vsel %vm2213, %v2208, %v1882
      %v2243 = vsel %vm2213, %v2210, %v1884
      %v2245 = vsel %vm2213, %v2212, %v1886
      %vm2246 = vcmask 261120
      %v2248 = vsel %vm2246, %v2215, %v1984
      %v2250 = vsel %vm2246, %v2217, %v1986
      %v2252 = vsel %vm2246, %v2219, %v1988
      %v2254 = vsel %vm2246, %v2221, %v1990
      %v2256 = vsel %vm2246, %v2223, %v1992
      %v2258 = vsel %vm2246, %v2225, %v1994
      %v2260 = vsel %vm2246, %v2227, %v1996
      %v2262 = vsel %vm2246, %v2229, %v1998
      %v2264 = vsel %vm2246, %v2231, %v2000
      %v2266 = vsel %vm2246, %v2233, %v2002
      %v2268 = vsel %vm2246, %v2235, %v2004
      %v2270 = vsel %vm2246, %v2237, %v2006
      %v2272 = vsel %vm2246, %v2239, %v2008
      %v2274 = vsel %vm2246, %v2241, %v2010
      %v2276 = vsel %vm2246, %v2243, %v2012
      %v2278 = vsel %vm2246, %v2245, %v2014
      %v2279 = vld [vmem:[%s1] sm:$0xf]
      %v2280 = vld [vmem:[%s1 + $0x4] sm:$0xf]
      %v2281 = vld [vmem:[%s1 + $0x8] sm:$0xf]
      %v2282 = vld [vmem:[%s1 + $0xc] sm:$0xf]
      %v2283 = vld [vmem:[%s1 + $0x10] sm:$0x3]
      %v2289 = vunpack.c.l.b16 %v2279
      %v2290 = vunpack.c.l.b16 %v2280
      %v2291 = vunpack.c.l.b16 %v2281
      %v2292 = vunpack.c.l.b16 %v2282
      %v2293 = vunpack.c.l.b16 %v2283
      %v2294 = vpack.c.b16 %v2290, %v2289
      %v2295 = vpack.c.b16 %v2292, %v2291
      %v2296 = vpack.c.b16 %v2293, %v2293
      %vm2299 = vcmask 293888
      %v2300 = vsel %vm2299, %v2248, 0
      %v2302 = vsel %vm2299, %v2250, 0
      %v2304 = vsel %vm2299, %v2252, 0
      %v2306 = vsel %vm2299, %v2254, 0
      %v2308 = vsel %vm2299, %v2256, 0
      %v2310 = vsel %vm2299, %v2258, 0
      %v2312 = vsel %vm2299, %v2260, 0
      %v2314 = vsel %vm2299, %v2262, 0
      %v2316 = vsel %vm2299, %v2264, 0
      %v2318 = vsel %vm2299, %v2266, 0
      %v2320 = vsel %vm2299, %v2268, 0
      %v2322 = vsel %vm2299, %v2270, 0
      %v2324 = vsel %vm2299, %v2272, 0
      %v2326 = vsel %vm2299, %v2274, 0
      %v2328 = vsel %vm2299, %v2276, 0
      %v2330 = vsel %vm2299, %v2278, 0
      %vm2332 = vcmask 1041408
      %v2334 = vsel %vm2332, %v2296, 0
      %2336 = vmatpush.bf16.msra.mxu0 0
      %2337 = vmatpush.bf16.msra.mxu0 0
      %2338 = vmatpush.bf16.msra.mxu0 0
      %2339 = vmatpush.bf16.msra.mxu0 0
      %2340 = vmatpush.bf16.msra.mxu0 0
      %2341 = vmatpush.bf16.msra.mxu0 %v2334
      %2342 = vmatpush.bf16.msra.mxu0 %v2295
      %2343 = vmatpush.bf16.msra.mxu0 %v2294
      %2344 = vmatmul.bf16.gmra.mxu0 %v2300
      %v2345 = vpop.f32.mrf.mxu0
      %v2346 = vadd.f32 0.0, %v2345
      %v2347 = vpop.f32.mrf.mxu0
      %v2348 = vadd.f32 0.0, %v2347
      %2349 = vmatmul.bf16.gmra.mxu0 %v2302
      %v2350 = vpop.f32.mrf.mxu0
      %v2351 = vadd.f32 0.0, %v2350
      %v2352 = vpop.f32.mrf.mxu0
      %v2353 = vadd.f32 0.0, %v2352
      %2354 = vmatmul.bf16.gmra.mxu0 %v2304
      %v2355 = vpop.f32.mrf.mxu0
      %v2356 = vadd.f32 0.0, %v2355
      %v2357 = vpop.f32.mrf.mxu0
      %v2358 = vadd.f32 0.0, %v2357
      %2359 = vmatmul.bf16.gmra.mxu0 %v2306
      %v2360 = vpop.f32.mrf.mxu0
      %v2361 = vadd.f32 0.0, %v2360
      %v2362 = vpop.f32.mrf.mxu0
      %v2363 = vadd.f32 0.0, %v2362
      %2364 = vmatmul.bf16.gmra.mxu0 %v2308
      %v2365 = vpop.f32.mrf.mxu0
      %v2366 = vadd.f32 0.0, %v2365
      %v2367 = vpop.f32.mrf.mxu0
      %v2368 = vadd.f32 0.0, %v2367
      %2369 = vmatmul.bf16.gmra.mxu0 %v2310
      %v2370 = vpop.f32.mrf.mxu0
      %v2371 = vadd.f32 0.0, %v2370
      %v2372 = vpop.f32.mrf.mxu0
      %v2373 = vadd.f32 0.0, %v2372
      %2374 = vmatmul.bf16.gmra.mxu0 %v2312
      %v2375 = vpop.f32.mrf.mxu0
      %v2376 = vadd.f32 0.0, %v2375
      %v2377 = vpop.f32.mrf.mxu0
      %v2378 = vadd.f32 0.0, %v2377
      %2379 = vmatmul.bf16.gmra.mxu0 %v2314
      %v2380 = vpop.f32.mrf.mxu0
      %v2381 = vadd.f32 0.0, %v2380
      %v2382 = vpop.f32.mrf.mxu0
      %v2383 = vadd.f32 0.0, %v2382
      %2384 = vmatmul.bf16.gmra.mxu0 %v2316
      %v2385 = vpop.f32.mrf.mxu0
      %v2386 = vadd.f32 0.0, %v2385
      %v2387 = vpop.f32.mrf.mxu0
      %v2388 = vadd.f32 0.0, %v2387
      %2389 = vmatmul.bf16.gmra.mxu0 %v2318
      %v2390 = vpop.f32.mrf.mxu0
      %v2391 = vadd.f32 0.0, %v2390
      %v2392 = vpop.f32.mrf.mxu0
      %v2393 = vadd.f32 0.0, %v2392
      %2394 = vmatmul.bf16.gmra.mxu0 %v2320
      %v2395 = vpop.f32.mrf.mxu0
      %v2396 = vadd.f32 0.0, %v2395
      %v2397 = vpop.f32.mrf.mxu0
      %v2398 = vadd.f32 0.0, %v2397
      %2399 = vmatmul.bf16.gmra.mxu0 %v2322
      %v2400 = vpop.f32.mrf.mxu0
      %v2401 = vadd.f32 0.0, %v2400
      %v2402 = vpop.f32.mrf.mxu0
      %v2403 = vadd.f32 0.0, %v2402
      %2404 = vmatmul.bf16.gmra.mxu0 %v2324
      %v2405 = vpop.f32.mrf.mxu0
      %v2406 = vadd.f32 0.0, %v2405
      %v2407 = vpop.f32.mrf.mxu0
      %v2408 = vadd.f32 0.0, %v2407
      %2409 = vmatmul.bf16.gmra.mxu0 %v2326
      %v2410 = vpop.f32.mrf.mxu0
      %v2411 = vadd.f32 0.0, %v2410
      %v2412 = vpop.f32.mrf.mxu0
      %v2413 = vadd.f32 0.0, %v2412
      %2414 = vmatmul.bf16.gmra.mxu0 %v2328
      %v2415 = vpop.f32.mrf.mxu0
      %v2416 = vadd.f32 0.0, %v2415
      %v2417 = vpop.f32.mrf.mxu0
      %v2418 = vadd.f32 0.0, %v2417
      %2419 = vmatmul.bf16.gmra.mxu0 %v2330
      %v2420 = vpop.f32.mrf.mxu0
      %v2421 = vadd.f32 0.0, %v2420
      %v2422 = vpop.f32.mrf.mxu0
      %v2423 = vadd.f32 0.0, %v2422
      %2424 = vdwg.mxu0
      %v2425 = vld [vmem:[%s2] sm:$0x1]
      %v2427 = vperm.slane %v2425, 0
      %v2429 = vmul.f32 %v2346, %v2427
      %v2430 = vmul.f32 %v2348, %v2427
      %v2431 = vmul.f32 %v2351, %v2427
      %v2432 = vmul.f32 %v2353, %v2427
      %v2433 = vmul.f32 %v2356, %v2427
      %v2434 = vmul.f32 %v2358, %v2427
      %v2435 = vmul.f32 %v2361, %v2427
      %v2436 = vmul.f32 %v2363, %v2427
      %v2437 = vmul.f32 %v2366, %v2427
      %v2438 = vmul.f32 %v2368, %v2427
      %v2439 = vmul.f32 %v2371, %v2427
      %v2440 = vmul.f32 %v2373, %v2427
      %v2441 = vmul.f32 %v2376, %v2427
      %v2442 = vmul.f32 %v2378, %v2427
      %v2443 = vmul.f32 %v2381, %v2427
      %v2444 = vmul.f32 %v2383, %v2427
      %v2445 = vmul.f32 %v2386, %v2427
      %v2446 = vmul.f32 %v2388, %v2427
      %v2447 = vmul.f32 %v2391, %v2427
      %v2448 = vmul.f32 %v2393, %v2427
      %v2449 = vmul.f32 %v2396, %v2427
      %v2450 = vmul.f32 %v2398, %v2427
      %v2451 = vmul.f32 %v2401, %v2427
      %v2452 = vmul.f32 %v2403, %v2427
      %v2453 = vmul.f32 %v2406, %v2427
      %v2454 = vmul.f32 %v2408, %v2427
      %v2455 = vmul.f32 %v2411, %v2427
      %v2456 = vmul.f32 %v2413, %v2427
      %v2457 = vmul.f32 %v2416, %v2427
      %v2458 = vmul.f32 %v2418, %v2427
      %v2459 = vmul.f32 %v2421, %v2427
      %v2460 = vmul.f32 %v2423, %v2427
      %v2461 = vld [vmem:[%s3] sm:$0x1]
      %v2463 = vperm.slane %v2461, 0
      %v2465 = vadd.f32 %v2429, %v2463
      %v2466 = vadd.f32 %v2430, %v2463
      %v2467 = vadd.f32 %v2431, %v2463
      %v2468 = vadd.f32 %v2432, %v2463
      %v2469 = vadd.f32 %v2433, %v2463
      %v2470 = vadd.f32 %v2434, %v2463
      %v2471 = vadd.f32 %v2435, %v2463
      %v2472 = vadd.f32 %v2436, %v2463
      %v2473 = vadd.f32 %v2437, %v2463
      %v2474 = vadd.f32 %v2438, %v2463
      %v2475 = vadd.f32 %v2439, %v2463
      %v2476 = vadd.f32 %v2440, %v2463
      %v2477 = vadd.f32 %v2441, %v2463
      %v2478 = vadd.f32 %v2442, %v2463
      %v2479 = vadd.f32 %v2443, %v2463
      %v2480 = vadd.f32 %v2444, %v2463
      %v2481 = vadd.f32 %v2445, %v2463
      %v2482 = vadd.f32 %v2446, %v2463
      %v2483 = vadd.f32 %v2447, %v2463
      %v2484 = vadd.f32 %v2448, %v2463
      %v2485 = vadd.f32 %v2449, %v2463
      %v2486 = vadd.f32 %v2450, %v2463
      %v2487 = vadd.f32 %v2451, %v2463
      %v2488 = vadd.f32 %v2452, %v2463
      %v2489 = vadd.f32 %v2453, %v2463
      %v2490 = vadd.f32 %v2454, %v2463
      %v2491 = vadd.f32 %v2455, %v2463
      %v2492 = vadd.f32 %v2456, %v2463
      %v2493 = vadd.f32 %v2457, %v2463
      %v2494 = vadd.f32 %v2458, %v2463
      %v2495 = vadd.f32 %v2459, %v2463
      %v2496 = vadd.f32 %v2460, %v2463
      %vm2497 = vcmp.gt.f32.partialorder %v2465, 0.0
      %vm2498 = vcmp.gt.f32.partialorder %v2466, 0.0
      %vm2499 = vcmp.gt.f32.partialorder %v2467, 0.0
      %vm2500 = vcmp.gt.f32.partialorder %v2468, 0.0
      %vm2501 = vcmp.gt.f32.partialorder %v2469, 0.0
      %vm2502 = vcmp.gt.f32.partialorder %v2470, 0.0
      %vm2503 = vcmp.gt.f32.partialorder %v2471, 0.0
      %vm2504 = vcmp.gt.f32.partialorder %v2472, 0.0
      %vm2505 = vcmp.gt.f32.partialorder %v2473, 0.0
      %vm2506 = vcmp.gt.f32.partialorder %v2474, 0.0
      %vm2507 = vcmp.gt.f32.partialorder %v2475, 0.0
      %vm2508 = vcmp.gt.f32.partialorder %v2476, 0.0
      %vm2509 = vcmp.gt.f32.partialorder %v2477, 0.0
      %vm2510 = vcmp.gt.f32.partialorder %v2478, 0.0
      %vm2511 = vcmp.gt.f32.partialorder %v2479, 0.0
      %vm2512 = vcmp.gt.f32.partialorder %v2480, 0.0
      %vm2513 = vcmp.gt.f32.partialorder %v2481, 0.0
      %vm2514 = vcmp.gt.f32.partialorder %v2482, 0.0
      %vm2515 = vcmp.gt.f32.partialorder %v2483, 0.0
      %vm2516 = vcmp.gt.f32.partialorder %v2484, 0.0
      %vm2517 = vcmp.gt.f32.partialorder %v2485, 0.0
      %vm2518 = vcmp.gt.f32.partialorder %v2486, 0.0
      %vm2519 = vcmp.gt.f32.partialorder %v2487, 0.0
      %vm2520 = vcmp.gt.f32.partialorder %v2488, 0.0
      %vm2521 = vcmp.gt.f32.partialorder %v2489, 0.0
      %vm2522 = vcmp.gt.f32.partialorder %v2490, 0.0
      %vm2523 = vcmp.gt.f32.partialorder %v2491, 0.0
      %vm2524 = vcmp.gt.f32.partialorder %v2492, 0.0
      %vm2525 = vcmp.gt.f32.partialorder %v2493, 0.0
      %vm2526 = vcmp.gt.f32.partialorder %v2494, 0.0
      %vm2527 = vcmp.gt.f32.partialorder %v2495, 0.0
      %vm2528 = vcmp.gt.f32.partialorder %v2496, 0.0
      %v2529 = vmul.f32 %v2465, 0.1
      %v2530 = vmul.f32 %v2466, 0.1
      %v2531 = vmul.f32 %v2467, 0.1
      %v2532 = vmul.f32 %v2468, 0.1
      %v2533 = vmul.f32 %v2469, 0.1
      %v2534 = vmul.f32 %v2470, 0.1
      %v2535 = vmul.f32 %v2471, 0.1
      %v2536 = vmul.f32 %v2472, 0.1
      %v2537 = vmul.f32 %v2473, 0.1
      %v2538 = vmul.f32 %v2474, 0.1
      %v2539 = vmul.f32 %v2475, 0.1
      %v2540 = vmul.f32 %v2476, 0.1
      %v2541 = vmul.f32 %v2477, 0.1
      %v2542 = vmul.f32 %v2478, 0.1
      %v2543 = vmul.f32 %v2479, 0.1
      %v2544 = vmul.f32 %v2480, 0.1
      %v2545 = vmul.f32 %v2481, 0.1
      %v2546 = vmul.f32 %v2482, 0.1
      %v2547 = vmul.f32 %v2483, 0.1
      %v2548 = vmul.f32 %v2484, 0.1
      %v2549 = vmul.f32 %v2485, 0.1
      %v2550 = vmul.f32 %v2486, 0.1
      %v2551 = vmul.f32 %v2487, 0.1
      %v2552 = vmul.f32 %v2488, 0.1
      %v2553 = vmul.f32 %v2489, 0.1
      %v2554 = vmul.f32 %v2490, 0.1
      %v2555 = vmul.f32 %v2491, 0.1
      %v2556 = vmul.f32 %v2492, 0.1
      %v2557 = vmul.f32 %v2493, 0.1
      %v2558 = vmul.f32 %v2494, 0.1
      %v2559 = vmul.f32 %v2495, 0.1
      %v2560 = vmul.f32 %v2496, 0.1
      %v2561 = vsel %vm2497, %v2465, %v2529
      %v2562 = vsel %vm2498, %v2466, %v2530
      %v2563 = vsel %vm2499, %v2467, %v2531
      %v2564 = vsel %vm2500, %v2468, %v2532
      %v2565 = vsel %vm2501, %v2469, %v2533
      %v2566 = vsel %vm2502, %v2470, %v2534
      %v2567 = vsel %vm2503, %v2471, %v2535
      %v2568 = vsel %vm2504, %v2472, %v2536
      %v2569 = vsel %vm2505, %v2473, %v2537
      %v2570 = vsel %vm2506, %v2474, %v2538
      %v2571 = vsel %vm2507, %v2475, %v2539
      %v2572 = vsel %vm2508, %v2476, %v2540
      %v2573 = vsel %vm2509, %v2477, %v2541
      %v2574 = vsel %vm2510, %v2478, %v2542
      %v2575 = vsel %vm2511, %v2479, %v2543
      %v2576 = vsel %vm2512, %v2480, %v2544
      %v2577 = vsel %vm2513, %v2481, %v2545
      %v2578 = vsel %vm2514, %v2482, %v2546
      %v2579 = vsel %vm2515, %v2483, %v2547
      %v2580 = vsel %vm2516, %v2484, %v2548
      %v2581 = vsel %vm2517, %v2485, %v2549
      %v2582 = vsel %vm2518, %v2486, %v2550
      %v2583 = vsel %vm2519, %v2487, %v2551
      %v2584 = vsel %vm2520, %v2488, %v2552
      %v2585 = vsel %vm2521, %v2489, %v2553
      %v2586 = vsel %vm2522, %v2490, %v2554
      %v2587 = vsel %vm2523, %v2491, %v2555
      %v2588 = vsel %vm2524, %v2492, %v2556
      %v2589 = vsel %vm2525, %v2493, %v2557
      %v2590 = vsel %vm2526, %v2494, %v2558
      %v2591 = vsel %vm2527, %v2495, %v2559
      %v2592 = vsel %vm2528, %v2496, %v2560
      %v2593 = vpack.c.bf16 %v2562, %v2561
      %v2594 = vpack.c.bf16 %v2564, %v2563
      %v2595 = vpack.c.bf16 %v2566, %v2565
      %v2596 = vpack.c.bf16 %v2568, %v2567
      %v2597 = vpack.c.bf16 %v2570, %v2569
      %v2598 = vpack.c.bf16 %v2572, %v2571
      %v2599 = vpack.c.bf16 %v2574, %v2573
      %v2600 = vpack.c.bf16 %v2576, %v2575
      %v2601 = vpack.c.bf16 %v2578, %v2577
      %v2602 = vpack.c.bf16 %v2580, %v2579
      %v2603 = vpack.c.bf16 %v2582, %v2581
      %v2604 = vpack.c.bf16 %v2584, %v2583
      %v2605 = vpack.c.bf16 %v2586, %v2585
      %v2606 = vpack.c.bf16 %v2588, %v2587
      %v2607 = vpack.c.bf16 %v2590, %v2589
      %v2608 = vpack.c.bf16 %v2592, %v2591
      %v2609 = vld [vmem:[%s4] sm:$0xf]
      %v2611 = vsel %vm2048, %v2593, 0
      %v2614 = vsel %vm2048, %v2594, 0
      %v2617 = vsel %vm2048, %v2595, 0
      %v2620 = vsel %vm2048, %v2596, 0
      %v2623 = vsel %vm2048, %v2597, 0
      %v2626 = vsel %vm2048, %v2598, 0
      %v2629 = vsel %vm2048, %v2599, 0
      %v2632 = vsel %vm2048, %v2600, 0
      %v2635 = vsel %vm2048, %v2601, 0
      %v2638 = vsel %vm2048, %v2602, 0
      %v2641 = vsel %vm2048, %v2603, 0
      %v2644 = vsel %vm2048, %v2604, 0
      %v2647 = vsel %vm2048, %v2605, 0
      %v2650 = vsel %vm2048, %v2606, 0
      %v2653 = vsel %vm2048, %v2607, 0
      %v2656 = vsel %vm2048, %v2608, 0
      %vm2658 = vcmask 1043456
      %v2660 = vsel %vm2658, %v2609, 0
      %2662 = vmatpush.bf16.msra.mxu0 0
      %2663 = vmatpush.bf16.msra.mxu0 0
      %2664 = vmatpush.bf16.msra.mxu0 0
      %2665 = vmatpush.bf16.msra.mxu0 0
      %2666 = vmatpush.bf16.msra.mxu0 0
      %2667 = vmatpush.bf16.msra.mxu0 0
      %2668 = vmatpush.bf16.msra.mxu0 0
      %2669 = vmatpush.bf16.msra.mxu0 %v2660
      %2670 = vmatmul.bf16.gmra.mxu0 %v2611
      %v2671 = vpop.f32.mrf.mxu0
      %v2672 = vadd.f32 0.0, %v2671
      %v2673 = vpop.f32.mrf.mxu0
      %v2674 = vadd.f32 0.0, %v2673
      %2675 = vmatmul.bf16.gmra.mxu0 %v2614
      %v2676 = vpop.f32.mrf.mxu0
      %v2677 = vadd.f32 0.0, %v2676
      %v2678 = vpop.f32.mrf.mxu0
      %v2679 = vadd.f32 0.0, %v2678
      %2680 = vmatmul.bf16.gmra.mxu0 %v2617
      %v2681 = vpop.f32.mrf.mxu0
      %v2682 = vadd.f32 0.0, %v2681
      %v2683 = vpop.f32.mrf.mxu0
      %v2684 = vadd.f32 0.0, %v2683
      %2685 = vmatmul.bf16.gmra.mxu0 %v2620
      %v2686 = vpop.f32.mrf.mxu0
      %v2687 = vadd.f32 0.0, %v2686
      %v2688 = vpop.f32.mrf.mxu0
      %v2689 = vadd.f32 0.0, %v2688
      %2690 = vmatmul.bf16.gmra.mxu0 %v2623
      %v2691 = vpop.f32.mrf.mxu0
      %v2692 = vadd.f32 0.0, %v2691
      %v2693 = vpop.f32.mrf.mxu0
      %v2694 = vadd.f32 0.0, %v2693
      %2695 = vmatmul.bf16.gmra.mxu0 %v2626
      %v2696 = vpop.f32.mrf.mxu0
      %v2697 = vadd.f32 0.0, %v2696
      %v2698 = vpop.f32.mrf.mxu0
      %v2699 = vadd.f32 0.0, %v2698
      %2700 = vmatmul.bf16.gmra.mxu0 %v2629
      %v2701 = vpop.f32.mrf.mxu0
      %v2702 = vadd.f32 0.0, %v2701
      %v2703 = vpop.f32.mrf.mxu0
      %v2704 = vadd.f32 0.0, %v2703
      %2705 = vmatmul.bf16.gmra.mxu0 %v2632
      %v2706 = vpop.f32.mrf.mxu0
      %v2707 = vadd.f32 0.0, %v2706
      %v2708 = vpop.f32.mrf.mxu0
      %v2709 = vadd.f32 0.0, %v2708
      %2710 = vmatmul.bf16.gmra.mxu0 %v2635
      %v2711 = vpop.f32.mrf.mxu0
      %v2712 = vadd.f32 0.0, %v2711
      %v2713 = vpop.f32.mrf.mxu0
      %v2714 = vadd.f32 0.0, %v2713
      %2715 = vmatmul.bf16.gmra.mxu0 %v2638
      %v2716 = vpop.f32.mrf.mxu0
      %v2717 = vadd.f32 0.0, %v2716
      %v2718 = vpop.f32.mrf.mxu0
      %v2719 = vadd.f32 0.0, %v2718
      %2720 = vmatmul.bf16.gmra.mxu0 %v2641
      %v2721 = vpop.f32.mrf.mxu0
      %v2722 = vadd.f32 0.0, %v2721
      %v2723 = vpop.f32.mrf.mxu0
      %v2724 = vadd.f32 0.0, %v2723
      %2725 = vmatmul.bf16.gmra.mxu0 %v2644
      %v2726 = vpop.f32.mrf.mxu0
      %v2727 = vadd.f32 0.0, %v2726
      %v2728 = vpop.f32.mrf.mxu0
      %v2729 = vadd.f32 0.0, %v2728
      %2730 = vmatmul.bf16.gmra.mxu0 %v2647
      %v2731 = vpop.f32.mrf.mxu0
      %v2732 = vadd.f32 0.0, %v2731
      %v2733 = vpop.f32.mrf.mxu0
      %v2734 = vadd.f32 0.0, %v2733
      %2735 = vmatmul.bf16.gmra.mxu0 %v2650
      %v2736 = vpop.f32.mrf.mxu0
      %v2737 = vadd.f32 0.0, %v2736
      %v2738 = vpop.f32.mrf.mxu0
      %v2739 = vadd.f32 0.0, %v2738
      %2740 = vmatmul.bf16.gmra.mxu0 %v2653
      %v2741 = vpop.f32.mrf.mxu0
      %v2742 = vadd.f32 0.0, %v2741
      %v2743 = vpop.f32.mrf.mxu0
      %v2744 = vadd.f32 0.0, %v2743
      %2745 = vmatmul.bf16.gmra.mxu0 %v2656
      %v2746 = vpop.f32.mrf.mxu0
      %v2747 = vadd.f32 0.0, %v2746
      %v2748 = vpop.f32.mrf.mxu0
      %v2749 = vadd.f32 0.0, %v2748
      %2750 = vdwg.mxu0
      %v2751 = vld [vmem:[%s5] sm:$0x1]
      %v2753 = vperm.slane %v2751, 0
      %v2755 = vmul.f32 %v2672, %v2753
      %v2756 = vmul.f32 %v2674, %v2753
      %v2757 = vmul.f32 %v2677, %v2753
      %v2758 = vmul.f32 %v2679, %v2753
      %v2759 = vmul.f32 %v2682, %v2753
      %v2760 = vmul.f32 %v2684, %v2753
      %v2761 = vmul.f32 %v2687, %v2753
      %v2762 = vmul.f32 %v2689, %v2753
      %v2763 = vmul.f32 %v2692, %v2753
      %v2764 = vmul.f32 %v2694, %v2753
      %v2765 = vmul.f32 %v2697, %v2753
      %v2766 = vmul.f32 %v2699, %v2753
      %v2767 = vmul.f32 %v2702, %v2753
      %v2768 = vmul.f32 %v2704, %v2753
      %v2769 = vmul.f32 %v2707, %v2753
      %v2770 = vmul.f32 %v2709, %v2753
      %v2771 = vmul.f32 %v2712, %v2753
      %v2772 = vmul.f32 %v2714, %v2753
      %v2773 = vmul.f32 %v2717, %v2753
      %v2774 = vmul.f32 %v2719, %v2753
      %v2775 = vmul.f32 %v2722, %v2753
      %v2776 = vmul.f32 %v2724, %v2753
      %v2777 = vmul.f32 %v2727, %v2753
      %v2778 = vmul.f32 %v2729, %v2753
      %v2779 = vmul.f32 %v2732, %v2753
      %v2780 = vmul.f32 %v2734, %v2753
      %v2781 = vmul.f32 %v2737, %v2753
      %v2782 = vmul.f32 %v2739, %v2753
      %v2783 = vmul.f32 %v2742, %v2753
      %v2784 = vmul.f32 %v2744, %v2753
      %v2785 = vmul.f32 %v2747, %v2753
      %v2786 = vmul.f32 %v2749, %v2753
      %v2787 = vld [vmem:[%s6] sm:$0x1]
      %v2789 = vperm.slane %v2787, 0
      %v2791 = vadd.f32 %v2755, %v2789
      %v2792 = vadd.f32 %v2756, %v2789
      %v2793 = vadd.f32 %v2757, %v2789
      %v2794 = vadd.f32 %v2758, %v2789
      %v2795 = vadd.f32 %v2759, %v2789
      %v2796 = vadd.f32 %v2760, %v2789
      %v2797 = vadd.f32 %v2761, %v2789
      %v2798 = vadd.f32 %v2762, %v2789
      %v2799 = vadd.f32 %v2763, %v2789
      %v2800 = vadd.f32 %v2764, %v2789
      %v2801 = vadd.f32 %v2765, %v2789
      %v2802 = vadd.f32 %v2766, %v2789
      %v2803 = vadd.f32 %v2767, %v2789
      %v2804 = vadd.f32 %v2768, %v2789
      %v2805 = vadd.f32 %v2769, %v2789
      %v2806 = vadd.f32 %v2770, %v2789
      %v2807 = vadd.f32 %v2771, %v2789
      %v2808 = vadd.f32 %v2772, %v2789
      %v2809 = vadd.f32 %v2773, %v2789
      %v2810 = vadd.f32 %v2774, %v2789
      %v2811 = vadd.f32 %v2775, %v2789
      %v2812 = vadd.f32 %v2776, %v2789
      %v2813 = vadd.f32 %v2777, %v2789
      %v2814 = vadd.f32 %v2778, %v2789
      %v2815 = vadd.f32 %v2779, %v2789
      %v2816 = vadd.f32 %v2780, %v2789
      %v2817 = vadd.f32 %v2781, %v2789
      %v2818 = vadd.f32 %v2782, %v2789
      %v2819 = vadd.f32 %v2783, %v2789
      %v2820 = vadd.f32 %v2784, %v2789
      %v2821 = vadd.f32 %v2785, %v2789
      %v2822 = vadd.f32 %v2786, %v2789
      %vm2823 = vcmp.gt.f32.partialorder %v2791, 0.0
      %vm2824 = vcmp.gt.f32.partialorder %v2792, 0.0
      %vm2825 = vcmp.gt.f32.partialorder %v2793, 0.0
      %vm2826 = vcmp.gt.f32.partialorder %v2794, 0.0
      %vm2827 = vcmp.gt.f32.partialorder %v2795, 0.0
      %vm2828 = vcmp.gt.f32.partialorder %v2796, 0.0
      %vm2829 = vcmp.gt.f32.partialorder %v2797, 0.0
      %vm2830 = vcmp.gt.f32.partialorder %v2798, 0.0
      %vm2831 = vcmp.gt.f32.partialorder %v2799, 0.0
      %vm2832 = vcmp.gt.f32.partialorder %v2800, 0.0
      %vm2833 = vcmp.gt.f32.partialorder %v2801, 0.0
      %vm2834 = vcmp.gt.f32.partialorder %v2802, 0.0
      %vm2835 = vcmp.gt.f32.partialorder %v2803, 0.0
      %vm2836 = vcmp.gt.f32.partialorder %v2804, 0.0
      %vm2837 = vcmp.gt.f32.partialorder %v2805, 0.0
      %vm2838 = vcmp.gt.f32.partialorder %v2806, 0.0
      %vm2839 = vcmp.gt.f32.partialorder %v2807, 0.0
      %vm2840 = vcmp.gt.f32.partialorder %v2808, 0.0
      %vm2841 = vcmp.gt.f32.partialorder %v2809, 0.0
      %vm2842 = vcmp.gt.f32.partialorder %v2810, 0.0
      %vm2843 = vcmp.gt.f32.partialorder %v2811, 0.0
      %vm2844 = vcmp.gt.f32.partialorder %v2812, 0.0
      %vm2845 = vcmp.gt.f32.partialorder %v2813, 0.0
      %vm2846 = vcmp.gt.f32.partialorder %v2814, 0.0
      %vm2847 = vcmp.gt.f32.partialorder %v2815, 0.0
      %vm2848 = vcmp.gt.f32.partialorder %v2816, 0.0
      %vm2849 = vcmp.gt.f32.partialorder %v2817, 0.0
      %vm2850 = vcmp.gt.f32.partialorder %v2818, 0.0
      %vm2851 = vcmp.gt.f32.partialorder %v2819, 0.0
      %vm2852 = vcmp.gt.f32.partialorder %v2820, 0.0
      %vm2853 = vcmp.gt.f32.partialorder %v2821, 0.0
      %vm2854 = vcmp.gt.f32.partialorder %v2822, 0.0
      %v2855 = vmul.f32 %v2791, 0.1
      %v2856 = vmul.f32 %v2792, 0.1
      %v2857 = vmul.f32 %v2793, 0.1
      %v2858 = vmul.f32 %v2794, 0.1
      %v2859 = vmul.f32 %v2795, 0.1
      %v2860 = vmul.f32 %v2796, 0.1
      %v2861 = vmul.f32 %v2797, 0.1
      %v2862 = vmul.f32 %v2798, 0.1
      %v2863 = vmul.f32 %v2799, 0.1
      %v2864 = vmul.f32 %v2800, 0.1
      %v2865 = vmul.f32 %v2801, 0.1
      %v2866 = vmul.f32 %v2802, 0.1
      %v2867 = vmul.f32 %v2803, 0.1
      %v2868 = vmul.f32 %v2804, 0.1
      %v2869 = vmul.f32 %v2805, 0.1
      %v2870 = vmul.f32 %v2806, 0.1
      %v2871 = vmul.f32 %v2807, 0.1
      %v2872 = vmul.f32 %v2808, 0.1
      %v2873 = vmul.f32 %v2809, 0.1
      %v2874 = vmul.f32 %v2810, 0.1
      %v2875 = vmul.f32 %v2811, 0.1
      %v2876 = vmul.f32 %v2812, 0.1
      %v2877 = vmul.f32 %v2813, 0.1
      %v2878 = vmul.f32 %v2814, 0.1
      %v2879 = vmul.f32 %v2815, 0.1
      %v2880 = vmul.f32 %v2816, 0.1
      %v2881 = vmul.f32 %v2817, 0.1
      %v2882 = vmul.f32 %v2818, 0.1
      %v2883 = vmul.f32 %v2819, 0.1
      %v2884 = vmul.f32 %v2820, 0.1
      %v2885 = vmul.f32 %v2821, 0.1
      %v2886 = vmul.f32 %v2822, 0.1
      %v2887 = vsel %vm2823, %v2791, %v2855
      %v2888 = vsel %vm2824, %v2792, %v2856
      %v2889 = vsel %vm2825, %v2793, %v2857
      %v2890 = vsel %vm2826, %v2794, %v2858
      %v2891 = vsel %vm2827, %v2795, %v2859
      %v2892 = vsel %vm2828, %v2796, %v2860
      %v2893 = vsel %vm2829, %v2797, %v2861
      %v2894 = vsel %vm2830, %v2798, %v2862
      %v2895 = vsel %vm2831, %v2799, %v2863
      %v2896 = vsel %vm2832, %v2800, %v2864
      %v2897 = vsel %vm2833, %v2801, %v2865
      %v2898 = vsel %vm2834, %v2802, %v2866
      %v2899 = vsel %vm2835, %v2803, %v2867
      %v2900 = vsel %vm2836, %v2804, %v2868
      %v2901 = vsel %vm2837, %v2805, %v2869
      %v2902 = vsel %vm2838, %v2806, %v2870
      %v2903 = vsel %vm2839, %v2807, %v2871
      %v2904 = vsel %vm2840, %v2808, %v2872
      %v2905 = vsel %vm2841, %v2809, %v2873
      %v2906 = vsel %vm2842, %v2810, %v2874
      %v2907 = vsel %vm2843, %v2811, %v2875
      %v2908 = vsel %vm2844, %v2812, %v2876
      %v2909 = vsel %vm2845, %v2813, %v2877
      %v2910 = vsel %vm2846, %v2814, %v2878
      %v2911 = vsel %vm2847, %v2815, %v2879
      %v2912 = vsel %vm2848, %v2816, %v2880
      %v2913 = vsel %vm2849, %v2817, %v2881
      %v2914 = vsel %vm2850, %v2818, %v2882
      %v2915 = vsel %vm2851, %v2819, %v2883
      %v2916 = vsel %vm2852, %v2820, %v2884
      %v2917 = vsel %vm2853, %v2821, %v2885
      %v2918 = vsel %vm2854, %v2822, %v2886
      %2919 = vst.msk [vmem:[%s302] sm:$0xff] %vm2015, %v2887
      %2920 = vst.msk [vmem:[%s302 + $0x8] sm:$0xff] %vm2015, %v2888
      %2921 = vst.msk [vmem:[%s302 + $0x10] sm:$0xff] %vm2015, %v2889
      %2922 = vst.msk [vmem:[%s302 + $0x18] sm:$0xff] %vm2015, %v2890
      %2923 = vst.msk [vmem:[%s302 + $0x20] sm:$0xff] %vm2015, %v2891
      %2924 = vst.msk [vmem:[%s302 + $0x28] sm:$0xff] %vm2015, %v2892
      %2925 = vst.msk [vmem:[%s302 + $0x30] sm:$0xff] %vm2015, %v2893
      %2926 = vst.msk [vmem:[%s302 + $0x38] sm:$0xff] %vm2015, %v2894
      %2927 = vst.msk [vmem:[%s302 + $0x40] sm:$0xff] %vm2015, %v2895
      %2928 = vst.msk [vmem:[%s302 + $0x48] sm:$0xff] %vm2015, %v2896
      %2929 = vst.msk [vmem:[%s302 + $0x50] sm:$0xff] %vm2015, %v2897
      %2930 = vst.msk [vmem:[%s302 + $0x58] sm:$0xff] %vm2015, %v2898
      %2931 = vst.msk [vmem:[%s302 + $0x60] sm:$0xff] %vm2015, %v2899
      %2932 = vst.msk [vmem:[%s302 + $0x68] sm:$0xff] %vm2015, %v2900
      %2933 = vst.msk [vmem:[%s302 + $0x70] sm:$0xff] %vm2015, %v2901
      %2934 = vst.msk [vmem:[%s302 + $0x78] sm:$0xff] %vm2015, %v2902
      %2935 = vst.msk [vmem:[%s302 + $0x80] sm:$0xff] %vm2015, %v2903
      %2936 = vst.msk [vmem:[%s302 + $0x88] sm:$0xff] %vm2015, %v2904
      %2937 = vst.msk [vmem:[%s302 + $0x90] sm:$0xff] %vm2015, %v2905
      %2938 = vst.msk [vmem:[%s302 + $0x98] sm:$0xff] %vm2015, %v2906
      %2939 = vst.msk [vmem:[%s302 + $0xa0] sm:$0xff] %vm2015, %v2907
      %2940 = vst.msk [vmem:[%s302 + $0xa8] sm:$0xff] %vm2015, %v2908
      %2941 = vst.msk [vmem:[%s302 + $0xb0] sm:$0xff] %vm2015, %v2909
      %2942 = vst.msk [vmem:[%s302 + $0xb8] sm:$0xff] %vm2015, %v2910
      %2943 = vst.msk [vmem:[%s302 + $0xc0] sm:$0xff] %vm2015, %v2911
      %2944 = vst.msk [vmem:[%s302 + $0xc8] sm:$0xff] %vm2015, %v2912
      %2945 = vst.msk [vmem:[%s302 + $0xd0] sm:$0xff] %vm2015, %v2913
      %2946 = vst.msk [vmem:[%s302 + $0xd8] sm:$0xff] %vm2015, %v2914
      %2947 = vst.msk [vmem:[%s302 + $0xe0] sm:$0xff] %vm2015, %v2915
      %2948 = vst.msk [vmem:[%s302 + $0xe8] sm:$0xff] %vm2015, %v2916
      %2949 = vst.msk [vmem:[%s302 + $0xf0] sm:$0xff] %vm2015, %v2917
      %2950 = vst.msk [vmem:[%s302 + $0xf8] sm:$0xff] %vm2015, %v2918
      %s2951 = smul.u32 16, %s23
      %p2952 = scmp.lt.s32.totalorder %s22, 1
      %s2953 = scalar_select %p2952, %s22, 1
      %p2954 = scmp.lt.s32.totalorder %s2951, 15
      %s2955 = scalar_select %p2954, %s2951, 15
      %s2956 = smul.addr %s2955, 2
      %s2957 = smul.addr %s2953, 32
      %s2958 = sadd.s32 %s2956, %s2957
      %s2959 = smul.addr %s2958, 8
      %s2960 = scalar_lea.vmem %s7, %s2959
      // Predicated region
      $region49: #{pan_layer_forward.7} parent=47 // pred_check
        %p2961 = pneg %p202
      $region50: #{pan_layer_forward.7} parent=47 // pred_check_branch
        %2963 = sbr.rel (%p2961) target = $region52
      $region51: #{pan_layer_forward.7} parent=47 // pred_region
        %s2964 = smul.u32 16, %s23
      $region52: #{pan_layer_forward.7} parent=47 // pred_fallthru
        _
    $region48: #{pan_layer_forward.7} parent=5 // pred_fallthru
      _
    %p2965 = scmp.le.s32.totalorder 2, %s13
    // Predicated region
    $region53: #{pan_layer_forward.7} parent=5 // pred_check
      %p2966 = pneg %p2965
    $region54: #{pan_layer_forward.7} parent=5 // pred_check_branch
      %2968 = sbr.rel (%p2966) target = $region56
    $region55: #{pan_layer_forward.7} parent=5 // pred_region
      %s2969 = ssub.s32 %s13, 2
      // Predicated region
      $region57: #{pan_layer_forward.7} parent=55 // pred_check
        %p2970 = pneg %p208
      $region58: #{pan_layer_forward.7} parent=55 // pred_check_branch
        %2972 = sbr.rel (%p2970) target = $region60
      $region59: #{pan_layer_forward.7} parent=55 // pred_region
        %s2973 = smul.u32 16, %s25
        %p2974 = scmp.lt.s32.totalorder %s24, 1
        %s2975 = scalar_select %p2974, %s24, 1
        %p2976 = scmp.lt.s32.totalorder %s2973, 15
        %s2977 = scalar_select %p2976, %s2973, 15
        %s2978 = smul.addr %s2977, 2
        %s2979 = smul.addr %s2975, 32
        %s2980 = sadd.s32 %s2978, %s2979
        %s2981 = smul.addr %s2980, 8
        %s2982 = scalar_lea.vmem %s7, %s2981
      $region60: #{pan_layer_forward.7} parent=55 // pred_fallthru
        _
    $region56: #{pan_layer_forward.7} parent=5 // pred_fallthru
      _
  $region6: #{pan_layer_forward.7} parent=0 // loop_footer
    %s17 = sadd.s32 1, %s13
  $region7: #{pan_layer_forward.7} parent=0 // loop_footer_branch
    %12 = sbr.rel target = $region3
  $region8: #{pan_layer_forward.7} parent=0 // loop_exit
    _

// kernel: pan_layer_forward.6
$region0: #{pan_layer_forward.6}
  #allocation0 [shape = 'u32[]', space=smem, size = 0x4, offset = 0x4, fixed_abs, tag = 'smem constant byte address 0x4 - core index']
  #allocation1 [shape = 'u32[72,128]{1,0:T(1,128)}', space=vmem, size = 0x9000, scoped, tag = 'internal scratch']
  %s0 = inlined_call_operand.vmem [shape: bf16[2,18,18,4], index: 0, kind: input, shape index: {}]
  %s1 = inlined_call_operand.vmem [shape: bf16[36,8], index: 1, kind: input, shape index: {}]
  %s2 = inlined_call_operand.vmem [shape: f32[1,8], index: 2, kind: input, shape index: {}]
  %s3 = inlined_call_operand.vmem [shape: f32[1,8], index: 3, kind: input, shape index: {}]
  %s4 = inlined_call_operand.vmem [shape: bf16[8,4], index: 4, kind: input, shape index: {}]
  %s5 = inlined_call_operand.vmem [shape: f32[1,4], index: 5, kind: input, shape index: {}]
  %s6 = inlined_call_operand.vmem [shape: f32[1,4], index: 6, kind: input, shape index: {}]
  %s7 = inlined_call_operand.vmem [shape: bf16[2,16,16,4], index: 7, kind: output, shape index: {}]
  %s8 = sld [smem:[#allocation0]]
  $region61: #{pan_layer_forward.6} parent=0
    _
  %s10 = ssub.s32 1, %s8
  %s11 = scalar_select 0, %s10, %s8
  loop: start=0, step=1, limit=4
  $region2: #{pan_layer_forward.6} parent=0 // loop_pre_header
    _
  $region3: #{pan_layer_forward.6} parent=0 // loop_header
    %s13 = sphi 0, %s17
    %p14 = scmp.ge.s32.totalorder %s13, 4
    %s20 = sphi 0, %s32
    %s21 = sphi 0, %s28
    %s22 = sphi 0, %s20
    %s23 = sphi 0, %s21
    %s24 = sphi 0, %s22
    %s25 = sphi 0, %s23
    %s35 = sphi 0, %s37
    %s38 = sphi 0, %s35
    %s39 = sphi 0, %s38
    %s55 = sphi 0, %s39
    %s59 = sphi 0, %s59
    %s61 = sphi 0, %s59
    %s62 = sphi 0, %s61
    %s76 = sphi 0, %s62
    %s80 = sphi 0, %s80
    %s82 = sphi 0, %s80
    %s83 = sphi 0, %s82
    %s97 = sphi 0, %s83
    %s101 = sphi 0, %s101
    %s103 = sphi 0, %s101
    %s104 = sphi 0, %s103
    %s118 = sphi 0, %s104
    %s122 = sphi 0, %s122
    %s124 = sphi 0, %s122
    %s125 = sphi 0, %s124
    %s139 = sphi 0, %s125
    %s143 = sphi 0, %s143
    %s145 = sphi 0, %s143
    %s146 = sphi 0, %s145
    %s160 = sphi 0, %s146
    %s164 = sphi 0, %s164
    %s166 = sphi 0, %s164
    %s167 = sphi 0, %s166
    %s181 = sphi 0, %s167
    %s189 = sphi 0, %s191
    %s192 = sphi 0, %s189
    %s193 = sphi 0, %s192
    %s209 = sphi 0, %s193
  $region4: #{pan_layer_forward.6} parent=0 // loop_header_branch
    %16 = sbr.rel (%p14) target = $region8
  $region5: #{pan_layer_forward.6} parent=0 // loop_body
    %s18 = ssub.s32 %s13, 1
    %s19 = ssub.s32 %s13, 2
    %s26 = sadd.s32 1, %s21
    %p27 = scmp.ge.s32.totalorder %s26, 1
    %s28 = scalar_select %p27, 0, %s26
    %s29 = sadd.s32 1, %s20
    %s30 = scalar_select %p27, %s29, %s20
    %p31 = scmp.ge.s32.totalorder %s30, 2
    %s32 = scalar_select %p31, 0, %s30
    %s33 = ssub.s32 %s20, %s32
    %p34 = scmp.eq.s32.totalorder %s33, 0
    %s36 = sadd.s32 %s35, 1
    %s37 = scalar_select %p34, %s35, %s36
    %p40 = pneg %p34
    %p41 = scmp.eq.s32.totalorder %s13, 1
    %p42 = por %p40, %p41
    %p43 = scmp.ne.s32.totalorder %s35, %s38
    %p44 = scmp.eq.s32.totalorder %s13, 0
    %p45 = por %p43, %p44
    %p46 = scmp.ne.s32.totalorder %s35, %s38
    %p47 = scmp.eq.s32.totalorder %s18, 1
    %p48 = por %p46, %p47
    %p49 = scmp.ne.s32.totalorder %s38, %s39
    %p50 = scmp.eq.s32.totalorder %s18, 0
    %p51 = por %p49, %p50
    %p52 = scmp.ne.s32.totalorder %s38, %s39
    %p53 = scmp.eq.s32.totalorder %s19, 1
    %p54 = por %p52, %p53
    %p56 = scmp.ne.s32.totalorder %s39, %s55
    %p57 = scmp.eq.s32.totalorder %s19, 0
    %p58 = por %p56, %p57
    %s60 = sadd.s32 %s59, 1
    %p63 = scmp.eq.s32.totalorder %s13, 1
    %p64 = scmp.ne.s32.totalorder %s59, %s61
    %p65 = scmp.eq.s32.totalorder %s13, 0
    %p66 = por %p64, %p65
    %p67 = scmp.ne.s32.totalorder %s59, %s61
    %p68 = scmp.eq.s32.totalorder %s18, 1
    %p69 = por %p67, %p68
    %p70 = scmp.ne.s32.totalorder %s61, %s62
    %p71 = scmp.eq.s32.totalorder %s18, 0
    %p72 = por %p70, %p71
    %p73 = scmp.ne.s32.totalorder %s61, %s62
    %p74 = scmp.eq.s32.totalorder %s19, 1
    %p75 = por %p73, %p74
    %p77 = scmp.ne.s32.totalorder %s62, %s76
    %p78 = scmp.eq.s32.totalorder %s19, 0
    %p79 = por %p77, %p78
    %s81 = sadd.s32 %s80, 1
    %p84 = scmp.eq.s32.totalorder %s13, 1
    %p85 = scmp.ne.s32.totalorder %s80, %s82
    %p86 = scmp.eq.s32.totalorder %s13, 0
    %p87 = por %p85, %p86
    %p88 = scmp.ne.s32.totalorder %s80, %s82
    %p89 = scmp.eq.s32.totalorder %s18, 1
    %p90 = por %p88, %p89
    %p91 = scmp.ne.s32.totalorder %s82, %s83
    %p92 = scmp.eq.s32.totalorder %s18, 0
    %p93 = por %p91, %p92
    %p94 = scmp.ne.s32.totalorder %s82, %s83
    %p95 = scmp.eq.s32.totalorder %s19, 1
    %p96 = por %p94, %p95
    %p98 = scmp.ne.s32.totalorder %s83, %s97
    %p99 = scmp.eq.s32.totalorder %s19, 0
    %p100 = por %p98, %p99
    %s102 = sadd.s32 %s101, 1
    %p105 = scmp.eq.s32.totalorder %s13, 1
    %p106 = scmp.ne.s32.totalorder %s101, %s103
    %p107 = scmp.eq.s32.totalorder %s13, 0
    %p108 = por %p106, %p107
    %p109 = scmp.ne.s32.totalorder %s101, %s103
    %p110 = scmp.eq.s32.totalorder %s18, 1
    %p111 = por %p109, %p110
    %p112 = scmp.ne.s32.totalorder %s103, %s104
    %p113 = scmp.eq.s32.totalorder %s18, 0
    %p114 = por %p112, %p113
    %p115 = scmp.ne.s32.totalorder %s103, %s104
    %p116 = scmp.eq.s32.totalorder %s19, 1
    %p117 = por %p115, %p116
    %p119 = scmp.ne.s32.totalorder %s104, %s118
    %p120 = scmp.eq.s32.totalorder %s19, 0
    %p121 = por %p119, %p120
    %s123 = sadd.s32 %s122, 1
    %p126 = scmp.eq.s32.totalorder %s13, 1
    %p127 = scmp.ne.s32.totalorder %s122, %s124
    %p128 = scmp.eq.s32.totalorder %s13, 0
    %p129 = por %p127, %p128
    %p130 = scmp.ne.s32.totalorder %s122, %s124
    %p131 = scmp.eq.s32.totalorder %s18, 1
    %p132 = por %p130, %p131
    %p133 = scmp.ne.s32.totalorder %s124, %s125
    %p134 = scmp.eq.s32.totalorder %s18, 0
    %p135 = por %p133, %p134
    %p136 = scmp.ne.s32.totalorder %s124, %s125
    %p137 = scmp.eq.s32.totalorder %s19, 1
    %p138 = por %p136, %p137
    %p140 = scmp.ne.s32.totalorder %s125, %s139
    %p141 = scmp.eq.s32.totalorder %s19, 0
    %p142 = por %p140, %p141
    %s144 = sadd.s32 %s143, 1
    %p147 = scmp.eq.s32.totalorder %s13, 1
    %p148 = scmp.ne.s32.totalorder %s143, %s145
    %p149 = scmp.eq.s32.totalorder %s13, 0
    %p150 = por %p148, %p149
    %p151 = scmp.ne.s32.totalorder %s143, %s145
    %p152 = scmp.eq.s32.totalorder %s18, 1
    %p153 = por %p151, %p152
    %p154 = scmp.ne.s32.totalorder %s145, %s146
    %p155 = scmp.eq.s32.totalorder %s18, 0
    %p156 = por %p154, %p155
    %p157 = scmp.ne.s32.totalorder %s145, %s146
    %p158 = scmp.eq.s32.totalorder %s19, 1
    %p159 = por %p157, %p158
    %p161 = scmp.ne.s32.totalorder %s146, %s160
    %p162 = scmp.eq.s32.totalorder %s19, 0
    %p163 = por %p161, %p162
    %s165 = sadd.s32 %s164, 1
    %p168 = scmp.eq.s32.totalorder %s13, 1
    %p169 = scmp.ne.s32.totalorder %s164, %s166
    %p170 = scmp.eq.s32.totalorder %s13, 0
    %p171 = por %p169, %p170
    %p172 = scmp.ne.s32.totalorder %s164, %s166
    %p173 = scmp.eq.s32.totalorder %s18, 1
    %p174 = por %p172, %p173
    %p175 = scmp.ne.s32.totalorder %s166, %s167
    %p176 = scmp.eq.s32.totalorder %s18, 0
    %p177 = por %p175, %p176
    %p178 = scmp.ne.s32.totalorder %s166, %s167
    %p179 = scmp.eq.s32.totalorder %s19, 1
    %p180 = por %p178, %p179
    %p182 = scmp.ne.s32.totalorder %s167, %s181
    %p183 = scmp.eq.s32.totalorder %s19, 0
    %p184 = por %p182, %p183
    %s185 = ssub.s32 %s20, %s32
    %s186 = ssub.s32 %s21, %s28
    %s187 = sor.u32 %s185, %s186
    %p188 = scmp.eq.s32.totalorder %s187, 0
    %s190 = sadd.s32 %s189, 1
    %s191 = scalar_select %p188, %s189, %s190
    %p194 = pneg %p188
    %p195 = scmp.eq.s32.totalorder %s13, 1
    %p196 = por %p194, %p195
    %p197 = scmp.ne.s32.totalorder %s189, %s192
    %p198 = scmp.eq.s32.totalorder %s13, 0
    %p199 = por %p197, %p198
    %p200 = scmp.ne.s32.totalorder %s189, %s192
    %p201 = scmp.eq.s32.totalorder %s18, 1
    %p202 = por %p200, %p201
    %p203 = scmp.ne.s32.totalorder %s192, %s193
    %p204 = scmp.eq.s32.totalorder %s18, 0
    %p205 = por %p203, %p204
    %p206 = scmp.ne.s32.totalorder %s192, %s193
    %p207 = scmp.eq.s32.totalorder %s19, 1
    %p208 = por %p206, %p207
    %p210 = scmp.ne.s32.totalorder %s193, %s209
    %p211 = scmp.eq.s32.totalorder %s19, 0
    %p212 = por %p210, %p211
    %p213 = scmp.le.s32.totalorder 1, %s13
    %p214 = scmp.lt.s32.totalorder %s13, 3
    %p215 = pnand %p213, %p214
    %p216 = pneg %p215
    // Predicated region
    $region9: #{pan_layer_forward.6} parent=5 // pred_check
      _
    $region10: #{pan_layer_forward.6} parent=5 // pred_check_branch
      %218 = sbr.rel (%p215) target = $region12
    $region11: #{pan_layer_forward.6} parent=5 // pred_region
      %s219 = ssub.s32 %s13, 1
      // Predicated region
      $region13: #{pan_layer_forward.6} parent=11 // pred_check
        %p220 = pneg %p72
      $region14: #{pan_layer_forward.6} parent=11 // pred_check_branch
        %222 = sbr.rel (%p220) target = $region16
      $region15: #{pan_layer_forward.6} parent=11 // pred_region
        _
      $region16: #{pan_layer_forward.6} parent=11 // pred_fallthru
        _
      // Predicated region
      $region17: #{pan_layer_forward.6} parent=11 // pred_check
        %p223 = pneg %p93
      $region18: #{pan_layer_forward.6} parent=11 // pred_check_branch
        %225 = sbr.rel (%p223) target = $region20
      $region19: #{pan_layer_forward.6} parent=11 // pred_region
        _
      $region20: #{pan_layer_forward.6} parent=11 // pred_fallthru
        _
      // Predicated region
      $region21: #{pan_layer_forward.6} parent=11 // pred_check
        %p226 = pneg %p114
      $region22: #{pan_layer_forward.6} parent=11 // pred_check_branch
        %228 = sbr.rel (%p226) target = $region24
      $region23: #{pan_layer_forward.6} parent=11 // pred_region
        _
      $region24: #{pan_layer_forward.6} parent=11 // pred_fallthru
        _
      // Predicated region
      $region25: #{pan_layer_forward.6} parent=11 // pred_check
        %p229 = pneg %p135
      $region26: #{pan_layer_forward.6} parent=11 // pred_check_branch
        %231 = sbr.rel (%p229) target = $region28
      $region27: #{pan_layer_forward.6} parent=11 // pred_region
        _
      $region28: #{pan_layer_forward.6} parent=11 // pred_fallthru
        _
      // Predicated region
      $region29: #{pan_layer_forward.6} parent=11 // pred_check
        %p232 = pneg %p156
      $region30: #{pan_layer_forward.6} parent=11 // pred_check_branch
        %234 = sbr.rel (%p232) target = $region32
      $region31: #{pan_layer_forward.6} parent=11 // pred_region
        _
      $region32: #{pan_layer_forward.6} parent=11 // pred_fallthru
        _
      // Predicated region
      $region33: #{pan_layer_forward.6} parent=11 // pred_check
        %p235 = pneg %p177
      $region34: #{pan_layer_forward.6} parent=11 // pred_check_branch
        %237 = sbr.rel (%p235) target = $region36
      $region35: #{pan_layer_forward.6} parent=11 // pred_region
        _
      $region36: #{pan_layer_forward.6} parent=11 // pred_fallthru
        _
    $region12: #{pan_layer_forward.6} parent=5 // pred_fallthru
      _
    %p238 = scmp.lt.s32.totalorder %s13, 2
    // Predicated region
    $region37: #{pan_layer_forward.6} parent=5 // pred_check
      %p239 = pneg %p238
    $region38: #{pan_layer_forward.6} parent=5 // pred_check_branch
      %241 = sbr.rel (%p239) target = $region40
    $region39: #{pan_layer_forward.6} parent=5 // pred_region
      // Predicated region
      $region41: #{pan_layer_forward.6} parent=39 // pred_check
        %p242 = pneg %p45
      $region42: #{pan_layer_forward.6} parent=39 // pred_check_branch
        %244 = sbr.rel (%p242) target = $region44
      $region43: #{pan_layer_forward.6} parent=39 // pred_region
        %p245 = scmp.lt.s32.totalorder %s20, 1
        %s246 = scalar_select %p245, %s20, 1
        %s247 = smul.addr %s246, 54
        %s248 = smul.addr %s247, 4
        %s249 = scalar_lea.vmem %s0, %s248
      $region44: #{pan_layer_forward.6} parent=39 // pred_fallthru
        _
    $region40: #{pan_layer_forward.6} parent=5 // pred_fallthru
      _
    %p250 = scmp.le.s32.totalorder 1, %s13
    %p251 = scmp.lt.s32.totalorder %s13, 3
    %p252 = pnand %p250, %p251
    %p253 = pneg %p252
    // Predicated region
    $region45: #{pan_layer_forward.6} parent=5 // pred_check
      _
    $region46: #{pan_layer_forward.6} parent=5 // pred_check_branch
      %255 = sbr.rel (%p252) target = $region48
    $region47: #{pan_layer_forward.6} parent=5 // pred_region
      %s256 = ssub.s32 %s13, 1
      %p257 = scmp.lt.s32.totalorder %s22, 1
      %s258 = scalar_select %p257, %s22, 1
      %s259 = smul.addr %s258, 54
      %s260 = smul.addr %s259, 4
      %s261 = scalar_lea.vmem %s0, %s260
      %p262 = pneg %p51
      %p263 = pneg %p48
      %p264 = pneg %p72
      %p265 = pneg %p69
      %p266 = pneg %p93
      %p267 = pneg %p90
      %p268 = pneg %p114
      %p269 = pneg %p111
      %p270 = pneg %p135
      %p271 = pneg %p132
      %p272 = pneg %p156
      %p273 = pneg %p153
      %p274 = pneg %p177
      %p275 = pneg %p174
      %p276 = pneg %p205
      %p277 = pneg %p202
      %s278 = smul.u32 16, %s23
      %p279 = scmp.lt.s32.totalorder %s22, 1
      %s280 = scalar_select %p279, %s22, 1
      %p281 = scmp.lt.s32.totalorder %s278, 15
      %s282 = scalar_select %p281, %s278, 15
      %s283 = smul.addr %s282, 2
      %s284 = smul.addr %s280, 32
      %s285 = sadd.s32 %s283, %s284
      %s286 = smul.addr %s285, 4
      %s287 = scalar_lea.vmem %s7, %s286
      %p288 = scmp.lt.s32.totalorder %s22, 1
      %s289 = scalar_select %p288, %s22, 1
      %s290 = smul.addr %s289, 54
      %s291 = smul.addr %s290, 4
      %s292 = scalar_lea.vmem %s0, %s291
      %s293 = smul.u32 16, %s23
      %p294 = scmp.lt.s32.totalorder %s22, 1
      %s295 = scalar_select %p294, %s22, 1
      %p296 = scmp.lt.s32.totalorder %s293, 15
      %s297 = scalar_select %p296, %s293, 15
      %s298 = smul.addr %s297, 2
      %s299 = smul.addr %s295, 32
      %s300 = sadd.s32 %s298, %s299
      %s301 = smul.addr %s300, 4
      %s302 = scalar_lea.vmem %s7, %s301
      %s303 = smul.u32 16, %s23
      %s305 = smul.u32 %s23, 16
      %s306 = smul.u32 %s305, 3
      %s307 = smul.addr %s306, 4
      %s308 = scalar_lea.vmem %s292, %s307
      %v309 = vld [vmem:[%s308] sm:$0xf]
      %v310 = vld [vmem:[%s308 + $0x4] sm:$0xf]
      %v311 = vld [vmem:[%s308 + $0xc] sm:$0xf]
      %v312 = vld [vmem:[%s308 + $0x10] sm:$0xf]
      %v313 = vld [vmem:[%s308 + $0x18] sm:$0xf]
      %v314 = vld [vmem:[%s308 + $0x1c] sm:$0xf]
      %v315 = vld [vmem:[%s308 + $0x24] sm:$0xf]
      %v316 = vld [vmem:[%s308 + $0x28] sm:$0xf]
      %v317 = vld [vmem:[%s308 + $0x30] sm:$0xf]
      %v318 = vld [vmem:[%s308 + $0x34] sm:$0xf]
      %v319 = vld [vmem:[%s308 + $0x3c] sm:$0xf]
      %v320 = vld [vmem:[%s308 + $0x40] sm:$0xf]
      %v321 = vld [vmem:[%s308 + $0x48] sm:$0xf]
      %v322 = vld [vmem:[%s308 + $0x4c] sm:$0xf]
      %v323 = vld [vmem:[%s308 + $0x54] sm:$0xf]
      %v324 = vld [vmem:[%s308 + $0x58] sm:$0xf]
      %v325 = vld [vmem:[%s308 + $0x60] sm:$0xf]
      %v326 = vld [vmem:[%s308 + $0x64] sm:$0xf]
      %v327 = vld [vmem:[%s308 + $0x6c] sm:$0xf]
      %v328 = vld [vmem:[%s308 + $0x70] sm:$0xf]
      %v329 = vld [vmem:[%s308 + $0x78] sm:$0xf]
      %v330 = vld [vmem:[%s308 + $0x7c] sm:$0xf]
      %v331 = vld [vmem:[%s308 + $0x84] sm:$0xf]
      %v332 = vld [vmem:[%s308 + $0x88] sm:$0xf]
      %v333 = vld [vmem:[%s308 + $0x90] sm:$0xf]
      %v334 = vld [vmem:[%s308 + $0x94] sm:$0xf]
      %v335 = vld [vmem:[%s308 + $0x9c] sm:$0xf]
      %v336 = vld [vmem:[%s308 + $0xa0] sm:$0xf]
      %v337 = vld [vmem:[%s308 + $0xa8] sm:$0xf]
      %v338 = vld [vmem:[%s308 + $0xac] sm:$0xf]
      %v339 = vld [vmem:[%s308 + $0xb4] sm:$0xf]
      %v340 = vld [vmem:[%s308 + $0xb8] sm:$0xf]
      %v341 = vld [vmem:[%s308 + $0x8] sm:$0x1]
      %v342 = vld [vmem:[%s308 + $0x14] sm:$0x1]
      %v343 = vld [vmem:[%s308 + $0x20] sm:$0x1]
      %v344 = vld [vmem:[%s308 + $0x2c] sm:$0x1]
      %v345 = vld [vmem:[%s308 + $0x38] sm:$0x1]
      %v346 = vld [vmem:[%s308 + $0x44] sm:$0x1]
      %v347 = vld [vmem:[%s308 + $0x50] sm:$0x1]
      %v348 = vld [vmem:[%s308 + $0x5c] sm:$0x1]
      %v349 = vld [vmem:[%s308 + $0x68] sm:$0x1]
      %v350 = vld [vmem:[%s308 + $0x74] sm:$0x1]
      %v351 = vld [vmem:[%s308 + $0x80] sm:$0x1]
      %v352 = vld [vmem:[%s308 + $0x8c] sm:$0x1]
      %v353 = vld [vmem:[%s308 + $0x98] sm:$0x1]
      %v354 = vld [vmem:[%s308 + $0xa4] sm:$0x1]
      %v355 = vld [vmem:[%s308 + $0xb0] sm:$0x1]
      %v356 = vld [vmem:[%s308 + $0xbc] sm:$0x1]
      %v357 = vld [vmem:[%s308] sm:$0xe]
      %v358 = vld [vmem:[%s308 + $0xc] sm:$0xe]
      %v359 = vld [vmem:[%s308 + $0x18] sm:$0xe]
      %v360 = vld [vmem:[%s308 + $0x24] sm:$0xe]
      %v361 = vld [vmem:[%s308 + $0x30] sm:$0xe]
      %v362 = vld [vmem:[%s308 + $0x3c] sm:$0xe]
      %v363 = vld [vmem:[%s308 + $0x48] sm:$0xe]
      %v364 = vld [vmem:[%s308 + $0x54] sm:$0xe]
      %v365 = vld [vmem:[%s308 + $0x60] sm:$0xe]
      %v366 = vld [vmem:[%s308 + $0x6c] sm:$0xe]
      %v367 = vld [vmem:[%s308 + $0x78] sm:$0xe]
      %v368 = vld [vmem:[%s308 + $0x84] sm:$0xe]
      %v369 = vld [vmem:[%s308 + $0x90] sm:$0xe]
      %v370 = vld [vmem:[%s308 + $0x9c] sm:$0xe]
      %v371 = vld [vmem:[%s308 + $0xa8] sm:$0xe]
      %v372 = vld [vmem:[%s308 + $0xb4] sm:$0xe]
      %s373 = sadd.s32 %s305, 1
      %s374 = smul.u32 %s373, 3
      %s375 = smul.addr %s374, 4
      %s376 = scalar_lea.vmem %s292, %s375
      %v377 = vld [vmem:[%s376] sm:$0xf]
      %v378 = vld [vmem:[%s376 + $0x4] sm:$0xf]
      %v379 = vld [vmem:[%s376 + $0xc] sm:$0xf]
      %v380 = vld [vmem:[%s376 + $0x10] sm:$0xf]
      %v381 = vld [vmem:[%s376 + $0x18] sm:$0xf]
      %v382 = vld [vmem:[%s376 + $0x1c] sm:$0xf]
      %v383 = vld [vmem:[%s376 + $0x24] sm:$0xf]
      %v384 = vld [vmem:[%s376 + $0x28] sm:$0xf]
      %v385 = vld [vmem:[%s376 + $0x30] sm:$0xf]
      %v386 = vld [vmem:[%s376 + $0x34] sm:$0xf]
      %v387 = vld [vmem:[%s376 + $0x3c] sm:$0xf]
      %v388 = vld [vmem:[%s376 + $0x40] sm:$0xf]
      %v389 = vld [vmem:[%s376 + $0x48] sm:$0xf]
      %v390 = vld [vmem:[%s376 + $0x4c] sm:$0xf]
      %v391 = vld [vmem:[%s376 + $0x54] sm:$0xf]
      %v392 = vld [vmem:[%s376 + $0x58] sm:$0xf]
      %v393 = vld [vmem:[%s376 + $0x60] sm:$0xf]
      %v394 = vld [vmem:[%s376 + $0x64] sm:$0xf]
      %v395 = vld [vmem:[%s376 + $0x6c] sm:$0xf]
      %v396 = vld [vmem:[%s376 + $0x70] sm:$0xf]
      %v397 = vld [vmem:[%s376 + $0x78] sm:$0xf]
      %v398 = vld [vmem:[%s376 + $0x7c] sm:$0xf]
      %v399 = vld [vmem:[%s376 + $0x84] sm:$0xf]
      %v400 = vld [vmem:[%s376 + $0x88] sm:$0xf]
      %v401 = vld [vmem:[%s376 + $0x90] sm:$0xf]
      %v402 = vld [vmem:[%s376 + $0x94] sm:$0xf]
      %v403 = vld [vmem:[%s376 + $0x9c] sm:$0xf]
      %v404 = vld [vmem:[%s376 + $0xa0] sm:$0xf]
      %v405 = vld [vmem:[%s376 + $0xa8] sm:$0xf]
      %v406 = vld [vmem:[%s376 + $0xac] sm:$0xf]
      %v407 = vld [vmem:[%s376 + $0xb4] sm:$0xf]
      %v408 = vld [vmem:[%s376 + $0xb8] sm:$0xf]
      %v409 = vld [vmem:[%s376 + $0x8] sm:$0x1]
      %v410 = vld [vmem:[%s376 + $0x14] sm:$0x1]
      %v411 = vld [vmem:[%s376 + $0x20] sm:$0x1]
      %v412 = vld [vmem:[%s376 + $0x2c] sm:$0x1]
      %v413 = vld [vmem:[%s376 + $0x38] sm:$0x1]
      %v414 = vld [vmem:[%s376 + $0x44] sm:$0x1]
      %v415 = vld [vmem:[%s376 + $0x50] sm:$0x1]
      %v416 = vld [vmem:[%s376 + $0x5c] sm:$0x1]
      %v417 = vld [vmem:[%s376 + $0x68] sm:$0x1]
      %v418 = vld [vmem:[%s376 + $0x74] sm:$0x1]
      %v419 = vld [vmem:[%s376 + $0x80] sm:$0x1]
      %v420 = vld [vmem:[%s376 + $0x8c] sm:$0x1]
      %v421 = vld [vmem:[%s376 + $0x98] sm:$0x1]
      %v422 = vld [vmem:[%s376 + $0xa4] sm:$0x1]
      %v423 = vld [vmem:[%s376 + $0xb0] sm:$0x1]
      %v424 = vld [vmem:[%s376 + $0xbc] sm:$0x1]
      %v425 = vld [vmem:[%s376] sm:$0xe]
      %v426 = vld [vmem:[%s376 + $0xc] sm:$0xe]
      %v427 = vld [vmem:[%s376 + $0x18] sm:$0xe]
      %v428 = vld [vmem:[%s376 + $0x24] sm:$0xe]
      %v429 = vld [vmem:[%s376 + $0x30] sm:$0xe]
      %v430 = vld [vmem:[%s376 + $0x3c] sm:$0xe]
      %v431 = vld [vmem:[%s376 + $0x48] sm:$0xe]
      %v432 = vld [vmem:[%s376 + $0x54] sm:$0xe]
      %v433 = vld [vmem:[%s376 + $0x60] sm:$0xe]
      %v434 = vld [vmem:[%s376 + $0x6c] sm:$0xe]
      %v435 = vld [vmem:[%s376 + $0x78] sm:$0xe]
      %v436 = vld [vmem:[%s376 + $0x84] sm:$0xe]
      %v437 = vld [vmem:[%s376 + $0x90] sm:$0xe]
      %v438 = vld [vmem:[%s376 + $0x9c] sm:$0xe]
      %v439 = vld [vmem:[%s376 + $0xa8] sm:$0xe]
      %v440 = vld [vmem:[%s376 + $0xb4] sm:$0xe]
      %s441 = sadd.s32 %s305, 2
      %s442 = smul.u32 %s441, 3
      %s443 = smul.addr %s442, 4
      %s444 = scalar_lea.vmem %s292, %s443
      %v445 = vld [vmem:[%s444] sm:$0xf]
      %v446 = vld [vmem:[%s444 + $0x4] sm:$0xf]
      %v447 = vld [vmem:[%s444 + $0xc] sm:$0xf]
      %v448 = vld [vmem:[%s444 + $0x10] sm:$0xf]
      %v449 = vld [vmem:[%s444 + $0x18] sm:$0xf]
      %v450 = vld [vmem:[%s444 + $0x1c] sm:$0xf]
      %v451 = vld [vmem:[%s444 + $0x24] sm:$0xf]
      %v452 = vld [vmem:[%s444 + $0x28] sm:$0xf]
      %v453 = vld [vmem:[%s444 + $0x30] sm:$0xf]
      %v454 = vld [vmem:[%s444 + $0x34] sm:$0xf]
      %v455 = vld [vmem:[%s444 + $0x3c] sm:$0xf]
      %v456 = vld [vmem:[%s444 + $0x40] sm:$0xf]
      %v457 = vld [vmem:[%s444 + $0x48] sm:$0xf]
      %v458 = vld [vmem:[%s444 + $0x4c] sm:$0xf]
      %v459 = vld [vmem:[%s444 + $0x54] sm:$0xf]
      %v460 = vld [vmem:[%s444 + $0x58] sm:$0xf]
      %v461 = vld [vmem:[%s444 + $0x60] sm:$0xf]
      %v462 = vld [vmem:[%s444 + $0x64] sm:$0xf]
      %v463 = vld [vmem:[%s444 + $0x6c] sm:$0xf]
      %v464 = vld [vmem:[%s444 + $0x70] sm:$0xf]
      %v465 = vld [vmem:[%s444 + $0x78] sm:$0xf]
      %v466 = vld [vmem:[%s444 + $0x7c] sm:$0xf]
      %v467 = vld [vmem:[%s444 + $0x84] sm:$0xf]
      %v468 = vld [vmem:[%s444 + $0x88] sm:$0xf]
      %v469 = vld [vmem:[%s444 + $0x90] sm:$0xf]
      %v470 = vld [vmem:[%s444 + $0x94] sm:$0xf]
      %v471 = vld [vmem:[%s444 + $0x9c] sm:$0xf]
      %v472 = vld [vmem:[%s444 + $0xa0] sm:$0xf]
      %v473 = vld [vmem:[%s444 + $0xa8] sm:$0xf]
      %v474 = vld [vmem:[%s444 + $0xac] sm:$0xf]
      %v475 = vld [vmem:[%s444 + $0xb4] sm:$0xf]
      %v476 = vld [vmem:[%s444 + $0xb8] sm:$0xf]
      %v477 = vld [vmem:[%s444 + $0x8] sm:$0x1]
      %v478 = vld [vmem:[%s444 + $0x14] sm:$0x1]
      %v479 = vld [vmem:[%s444 + $0x20] sm:$0x1]
      %v480 = vld [vmem:[%s444 + $0x2c] sm:$0x1]
      %v481 = vld [vmem:[%s444 + $0x38] sm:$0x1]
      %v482 = vld [vmem:[%s444 + $0x44] sm:$0x1]
      %v483 = vld [vmem:[%s444 + $0x50] sm:$0x1]
      %v484 = vld [vmem:[%s444 + $0x5c] sm:$0x1]
      %v485 = vld [vmem:[%s444 + $0x68] sm:$0x1]
      %v486 = vld [vmem:[%s444 + $0x74] sm:$0x1]
      %v487 = vld [vmem:[%s444 + $0x80] sm:$0x1]
      %v488 = vld [vmem:[%s444 + $0x8c] sm:$0x1]
      %v489 = vld [vmem:[%s444 + $0x98] sm:$0x1]
      %v490 = vld [vmem:[%s444 + $0xa4] sm:$0x1]
      %v491 = vld [vmem:[%s444 + $0xb0] sm:$0x1]
      %v492 = vld [vmem:[%s444 + $0xbc] sm:$0x1]
      %v493 = vld [vmem:[%s444] sm:$0xe]
      %v494 = vld [vmem:[%s444 + $0xc] sm:$0xe]
      %v495 = vld [vmem:[%s444 + $0x18] sm:$0xe]
      %v496 = vld [vmem:[%s444 + $0x24] sm:$0xe]
      %v497 = vld [vmem:[%s444 + $0x30] sm:$0xe]
      %v498 = vld [vmem:[%s444 + $0x3c] sm:$0xe]
      %v499 = vld [vmem:[%s444 + $0x48] sm:$0xe]
      %v500 = vld [vmem:[%s444 + $0x54] sm:$0xe]
      %v501 = vld [vmem:[%s444 + $0x60] sm:$0xe]
      %v502 = vld [vmem:[%s444 + $0x6c] sm:$0xe]
      %v503 = vld [vmem:[%s444 + $0x78] sm:$0xe]
      %v504 = vld [vmem:[%s444 + $0x84] sm:$0xe]
      %v505 = vld [vmem:[%s444 + $0x90] sm:$0xe]
      %v506 = vld [vmem:[%s444 + $0x9c] sm:$0xe]
      %v507 = vld [vmem:[%s444 + $0xa8] sm:$0xe]
      %v508 = vld [vmem:[%s444 + $0xb4] sm:$0xe]
      %v541 = vunpack.c.l.b16 %v309
      %v542 = vunpack.c.l.b16 %v310
      %v543 = vunpack.c.l.b16 %v311
      %v544 = vunpack.c.l.b16 %v312
      %v545 = vunpack.c.l.b16 %v313
      %v546 = vunpack.c.l.b16 %v314
      %v547 = vunpack.c.l.b16 %v315
      %v548 = vunpack.c.l.b16 %v316
      %v549 = vunpack.c.l.b16 %v317
      %v550 = vunpack.c.l.b16 %v318
      %v551 = vunpack.c.l.b16 %v319
      %v552 = vunpack.c.l.b16 %v320
      %v553 = vunpack.c.l.b16 %v321
      %v554 = vunpack.c.l.b16 %v322
      %v555 = vunpack.c.l.b16 %v323
      %v556 = vunpack.c.l.b16 %v324
      %v557 = vunpack.c.l.b16 %v325
      %v558 = vunpack.c.l.b16 %v326
      %v559 = vunpack.c.l.b16 %v327
      %v560 = vunpack.c.l.b16 %v328
      %v561 = vunpack.c.l.b16 %v329
      %v562 = vunpack.c.l.b16 %v330
      %v563 = vunpack.c.l.b16 %v331
      %v564 = vunpack.c.l.b16 %v332
      %v565 = vunpack.c.l.b16 %v333
      %v566 = vunpack.c.l.b16 %v334
      %v567 = vunpack.c.l.b16 %v335
      %v568 = vunpack.c.l.b16 %v336
      %v569 = vunpack.c.l.b16 %v337
      %v570 = vunpack.c.l.b16 %v338
      %v571 = vunpack.c.l.b16 %v339
      %v572 = vunpack.c.l.b16 %v340
      %v573 = vpack.c.b16 %v542, %v541
      %v574 = vpack.c.b16 %v544, %v543
      %v575 = vpack.c.b16 %v546, %v545
      %v576 = vpack.c.b16 %v548, %v547
      %v577 = vpack.c.b16 %v550, %v549
      %v578 = vpack.c.b16 %v552, %v551
      %v579 = vpack.c.b16 %v554, %v553
      %v580 = vpack.c.b16 %v556, %v555
      %v581 = vpack.c.b16 %v558, %v557
      %v582 = vpack.c.b16 %v560, %v559
      %v583 = vpack.c.b16 %v562, %v561
      %v584 = vpack.c.b16 %v564, %v563
      %v585 = vpack.c.b16 %v566, %v565
      %v586 = vpack.c.b16 %v568, %v567
      %v587 = vpack.c.b16 %v570, %v569
      %v588 = vpack.c.b16 %v572, %v571
      %v605 = vunpack.c.l.b16 %v341
      %v606 = vunpack.c.l.b16 %v342
      %v607 = vunpack.c.l.b16 %v343
      %v608 = vunpack.c.l.b16 %v344
      %v609 = vunpack.c.l.b16 %v345
      %v610 = vunpack.c.l.b16 %v346
      %v611 = vunpack.c.l.b16 %v347
      %v612 = vunpack.c.l.b16 %v348
      %v613 = vunpack.c.l.b16 %v349
      %v614 = vunpack.c.l.b16 %v350
      %v615 = vunpack.c.l.b16 %v351
      %v616 = vunpack.c.l.b16 %v352
      %v617 = vunpack.c.l.b16 %v353
      %v618 = vunpack.c.l.b16 %v354
      %v619 = vunpack.c.l.b16 %v355
      %v620 = vunpack.c.l.b16 %v356
      %v621 = vpack.c.b16 %v605, %v605
      %v622 = vpack.c.b16 %v606, %v606
      %v623 = vpack.c.b16 %v607, %v607
      %v624 = vpack.c.b16 %v608, %v608
      %v625 = vpack.c.b16 %v609, %v609
      %v626 = vpack.c.b16 %v610, %v610
      %v627 = vpack.c.b16 %v611, %v611
      %v628 = vpack.c.b16 %v612, %v612
      %v629 = vpack.c.b16 %v613, %v613
      %v630 = vpack.c.b16 %v614, %v614
      %v631 = vpack.c.b16 %v615, %v615
      %v632 = vpack.c.b16 %v616, %v616
      %v633 = vpack.c.b16 %v617, %v617
      %v634 = vpack.c.b16 %v618, %v618
      %v635 = vpack.c.b16 %v619, %v619
      %v636 = vpack.c.b16 %v620, %v620
      %vm637 = vsmask.f32 7424
      %v639 = vshrl.u32 %v573, 16
      %v641 = vshll.u32 %v573, 16
      %v643 = vrot.slane %v641, 1
      %v644 = vor.u32 %v639, %v643
      %v646 = vshll.u32 %v621, 16
      %v648 = vrot.slane %v646, 1
      %v649 = vsel %vm637, %v644, %v648
      %v651 = vshrl.u32 %v574, 16
      %v653 = vshll.u32 %v574, 16
      %v655 = vrot.slane %v653, 1
      %v656 = vor.u32 %v651, %v655
      %v658 = vshll.u32 %v622, 16
      %v660 = vrot.slane %v658, 1
      %v661 = vsel %vm637, %v656, %v660
      %v663 = vshrl.u32 %v575, 16
      %v665 = vshll.u32 %v575, 16
      %v667 = vrot.slane %v665, 1
      %v668 = vor.u32 %v663, %v667
      %v670 = vshll.u32 %v623, 16
      %v672 = vrot.slane %v670, 1
      %v673 = vsel %vm637, %v668, %v672
      %v675 = vshrl.u32 %v576, 16
      %v677 = vshll.u32 %v576, 16
      %v679 = vrot.slane %v677, 1
      %v680 = vor.u32 %v675, %v679
      %v682 = vshll.u32 %v624, 16
      %v684 = vrot.slane %v682, 1
      %v685 = vsel %vm637, %v680, %v684
      %v687 = vshrl.u32 %v577, 16
      %v689 = vshll.u32 %v577, 16
      %v691 = vrot.slane %v689, 1
      %v692 = vor.u32 %v687, %v691
      %v694 = vshll.u32 %v625, 16
      %v696 = vrot.slane %v694, 1
      %v697 = vsel %vm637, %v692, %v696
      %v699 = vshrl.u32 %v578, 16
      %v701 = vshll.u32 %v578, 16
      %v703 = vrot.slane %v701, 1
      %v704 = vor.u32 %v699, %v703
      %v706 = vshll.u32 %v626, 16
      %v708 = vrot.slane %v706, 1
      %v709 = vsel %vm637, %v704, %v708
      %v711 = vshrl.u32 %v579, 16
      %v713 = vshll.u32 %v579, 16
      %v715 = vrot.slane %v713, 1
      %v716 = vor.u32 %v711, %v715
      %v718 = vshll.u32 %v627, 16
      %v720 = vrot.slane %v718, 1
      %v721 = vsel %vm637, %v716, %v720
      %v723 = vshrl.u32 %v580, 16
      %v725 = vshll.u32 %v580, 16
      %v727 = vrot.slane %v725, 1
      %v728 = vor.u32 %v723, %v727
      %v730 = vshll.u32 %v628, 16
      %v732 = vrot.slane %v730, 1
      %v733 = vsel %vm637, %v728, %v732
      %v735 = vshrl.u32 %v581, 16
      %v737 = vshll.u32 %v581, 16
      %v739 = vrot.slane %v737, 1
      %v740 = vor.u32 %v735, %v739
      %v742 = vshll.u32 %v629, 16
      %v744 = vrot.slane %v742, 1
      %v745 = vsel %vm637, %v740, %v744
      %v747 = vshrl.u32 %v582, 16
      %v749 = vshll.u32 %v582, 16
      %v751 = vrot.slane %v749, 1
      %v752 = vor.u32 %v747, %v751
      %v754 = vshll.u32 %v630, 16
      %v756 = vrot.slane %v754, 1
      %v757 = vsel %vm637, %v752, %v756
      %v759 = vshrl.u32 %v583, 16
      %v761 = vshll.u32 %v583, 16
      %v763 = vrot.slane %v761, 1
      %v764 = vor.u32 %v759, %v763
      %v766 = vshll.u32 %v631, 16
      %v768 = vrot.slane %v766, 1
      %v769 = vsel %vm637, %v764, %v768
      %v771 = vshrl.u32 %v584, 16
      %v773 = vshll.u32 %v584, 16
      %v775 = vrot.slane %v773, 1
      %v776 = vor.u32 %v771, %v775
      %v778 = vshll.u32 %v632, 16
      %v780 = vrot.slane %v778, 1
      %v781 = vsel %vm637, %v776, %v780
      %v783 = vshrl.u32 %v585, 16
      %v785 = vshll.u32 %v585, 16
      %v787 = vrot.slane %v785, 1
      %v788 = vor.u32 %v783, %v787
      %v790 = vshll.u32 %v633, 16
      %v792 = vrot.slane %v790, 1
      %v793 = vsel %vm637, %v788, %v792
      %v795 = vshrl.u32 %v586, 16
      %v797 = vshll.u32 %v586, 16
      %v799 = vrot.slane %v797, 1
      %v800 = vor.u32 %v795, %v799
      %v802 = vshll.u32 %v634, 16
      %v804 = vrot.slane %v802, 1
      %v805 = vsel %vm637, %v800, %v804
      %v807 = vshrl.u32 %v587, 16
      %v809 = vshll.u32 %v587, 16
      %v811 = vrot.slane %v809, 1
      %v812 = vor.u32 %v807, %v811
      %v814 = vshll.u32 %v635, 16
      %v816 = vrot.slane %v814, 1
      %v817 = vsel %vm637, %v812, %v816
      %v819 = vshrl.u32 %v588, 16
      %v821 = vshll.u32 %v588, 16
      %v823 = vrot.slane %v821, 1
      %v824 = vor.u32 %v819, %v823
      %v826 = vshll.u32 %v636, 16
      %v828 = vrot.slane %v826, 1
      %v829 = vsel %vm637, %v824, %v828
      %830 = vrot.lane.b32.xlu0 %v649, 4
      %v831 = vpop.permute.xlu0 %830
      %832 = vrot.lane.b32.xlu0 %v661, 4
      %v833 = vpop.permute.xlu0 %832
      %834 = vrot.lane.b32.xlu0 %v673, 4
      %v835 = vpop.permute.xlu0 %834
      %836 = vrot.lane.b32.xlu0 %v685, 4
      %v837 = vpop.permute.xlu0 %836
      %838 = vrot.lane.b32.xlu0 %v697, 4
      %v839 = vpop.permute.xlu0 %838
      %840 = vrot.lane.b32.xlu0 %v709, 4
      %v841 = vpop.permute.xlu0 %840
      %842 = vrot.lane.b32.xlu0 %v721, 4
      %v843 = vpop.permute.xlu0 %842
      %844 = vrot.lane.b32.xlu0 %v733, 4
      %v845 = vpop.permute.xlu0 %844
      %846 = vrot.lane.b32.xlu0 %v745, 4
      %v847 = vpop.permute.xlu0 %846
      %848 = vrot.lane.b32.xlu0 %v757, 4
      %v849 = vpop.permute.xlu0 %848
      %850 = vrot.lane.b32.xlu0 %v769, 4
      %v851 = vpop.permute.xlu0 %850
      %852 = vrot.lane.b32.xlu0 %v781, 4
      %v853 = vpop.permute.xlu0 %852
      %854 = vrot.lane.b32.xlu0 %v793, 4
      %v855 = vpop.permute.xlu0 %854
      %856 = vrot.lane.b32.xlu0 %v805, 4
      %v857 = vpop.permute.xlu0 %856
      %858 = vrot.lane.b32.xlu0 %v817, 4
      %v859 = vpop.permute.xlu0 %858
      %860 = vrot.lane.b32.xlu0 %v829, 4
      %v861 = vpop.permute.xlu0 %860
      %v878 = vunpack.c.l.b16 %v357
      %v879 = vunpack.c.l.b16 %v358
      %v880 = vunpack.c.l.b16 %v359
      %v881 = vunpack.c.l.b16 %v360
      %v882 = vunpack.c.l.b16 %v361
      %v883 = vunpack.c.l.b16 %v362
      %v884 = vunpack.c.l.b16 %v363
      %v885 = vunpack.c.l.b16 %v364
      %v886 = vunpack.c.l.b16 %v365
      %v887 = vunpack.c.l.b16 %v366
      %v888 = vunpack.c.l.b16 %v367
      %v889 = vunpack.c.l.b16 %v368
      %v890 = vunpack.c.l.b16 %v369
      %v891 = vunpack.c.l.b16 %v370
      %v892 = vunpack.c.l.b16 %v371
      %v893 = vunpack.c.l.b16 %v372
      %v894 = vpack.c.b16 %v542, %v878
      %v895 = vpack.c.b16 %v544, %v879
      %v896 = vpack.c.b16 %v546, %v880
      %v897 = vpack.c.b16 %v548, %v881
      %v898 = vpack.c.b16 %v550, %v882
      %v899 = vpack.c.b16 %v552, %v883
      %v900 = vpack.c.b16 %v554, %v884
      %v901 = vpack.c.b16 %v556, %v885
      %v902 = vpack.c.b16 %v558, %v886
      %v903 = vpack.c.b16 %v560, %v887
      %v904 = vpack.c.b16 %v562, %v888
      %v905 = vpack.c.b16 %v564, %v889
      %v906 = vpack.c.b16 %v566, %v890
      %v907 = vpack.c.b16 %v568, %v891
      %v908 = vpack.c.b16 %v570, %v892
      %v909 = vpack.c.b16 %v572, %v893
      %vm910 = vcmask 1046528
      %v911 = vrot.slane %v894, 1
      %v912 = vrot.slane %v621, 1
      %v913 = vsel %vm910, %v911, %v912
      %v914 = vrot.slane %v895, 1
      %v915 = vrot.slane %v622, 1
      %v916 = vsel %vm910, %v914, %v915
      %v917 = vrot.slane %v896, 1
      %v918 = vrot.slane %v623, 1
      %v919 = vsel %vm910, %v917, %v918
      %v920 = vrot.slane %v897, 1
      %v921 = vrot.slane %v624, 1
      %v922 = vsel %vm910, %v920, %v921
      %v923 = vrot.slane %v898, 1
      %v924 = vrot.slane %v625, 1
      %v925 = vsel %vm910, %v923, %v924
      %v926 = vrot.slane %v899, 1
      %v927 = vrot.slane %v626, 1
      %v928 = vsel %vm910, %v926, %v927
      %v929 = vrot.slane %v900, 1
      %v930 = vrot.slane %v627, 1
      %v931 = vsel %vm910, %v929, %v930
      %v932 = vrot.slane %v901, 1
      %v933 = vrot.slane %v628, 1
      %v934 = vsel %vm910, %v932, %v933
      %v935 = vrot.slane %v902, 1
      %v936 = vrot.slane %v629, 1
      %v937 = vsel %vm910, %v935, %v936
      %v938 = vrot.slane %v903, 1
      %v939 = vrot.slane %v630, 1
      %v940 = vsel %vm910, %v938, %v939
      %v941 = vrot.slane %v904, 1
      %v942 = vrot.slane %v631, 1
      %v943 = vsel %vm910, %v941, %v942
      %v944 = vrot.slane %v905, 1
      %v945 = vrot.slane %v632, 1
      %v946 = vsel %vm910, %v944, %v945
      %v947 = vrot.slane %v906, 1
      %v948 = vrot.slane %v633, 1
      %v949 = vsel %vm910, %v947, %v948
      %v950 = vrot.slane %v907, 1
      %v951 = vrot.slane %v634, 1
      %v952 = vsel %vm910, %v950, %v951
      %v953 = vrot.slane %v908, 1
      %v954 = vrot.slane %v635, 1
      %v955 = vsel %vm910, %v953, %v954
      %v956 = vrot.slane %v909, 1
      %v957 = vrot.slane %v636, 1
      %v958 = vsel %vm910, %v956, %v957
      %959 = vrot.lane.b32.xlu0 %v913, 8
      %v960 = vpop.permute.xlu0 %959
      %961 = vrot.lane.b32.xlu0 %v916, 8
      %v962 = vpop.permute.xlu0 %961
      %963 = vrot.lane.b32.xlu0 %v919, 8
      %v964 = vpop.permute.xlu0 %963
      %965 = vrot.lane.b32.xlu0 %v922, 8
      %v966 = vpop.permute.xlu0 %965
      %967 = vrot.lane.b32.xlu0 %v925, 8
      %v968 = vpop.permute.xlu0 %967
      %969 = vrot.lane.b32.xlu0 %v928, 8
      %v970 = vpop.permute.xlu0 %969
      %971 = vrot.lane.b32.xlu0 %v931, 8
      %v972 = vpop.permute.xlu0 %971
      %973 = vrot.lane.b32.xlu0 %v934, 8
      %v974 = vpop.permute.xlu0 %973
      %975 = vrot.lane.b32.xlu0 %v937, 8
      %v976 = vpop.permute.xlu0 %975
      %977 = vrot.lane.b32.xlu0 %v940, 8
      %v978 = vpop.permute.xlu0 %977
      %979 = vrot.lane.b32.xlu0 %v943, 8
      %v980 = vpop.permute.xlu0 %979
      %981 = vrot.lane.b32.xlu0 %v946, 8
      %v982 = vpop.permute.xlu0 %981
      %983 = vrot.lane.b32.xlu0 %v949, 8
      %v984 = vpop.permute.xlu0 %983
      %985 = vrot.lane.b32.xlu0 %v952, 8
      %v986 = vpop.permute.xlu0 %985
      %987 = vrot.lane.b32.xlu0 %v955, 8
      %v988 = vpop.permute.xlu0 %987
      %989 = vrot.lane.b32.xlu0 %v958, 8
      %v990 = vpop.permute.xlu0 %989
      %v1023 = vunpack.c.l.b16 %v377
      %v1024 = vunpack.c.l.b16 %v378
      %v1025 = vunpack.c.l.b16 %v379
      %v1026 = vunpack.c.l.b16 %v380
      %v1027 = vunpack.c.l.b16 %v381
      %v1028 = vunpack.c.l.b16 %v382
      %v1029 = vunpack.c.l.b16 %v383
      %v1030 = vunpack.c.l.b16 %v384
      %v1031 = vunpack.c.l.b16 %v385
      %v1032 = vunpack.c.l.b16 %v386
      %v1033 = vunpack.c.l.b16 %v387
      %v1034 = vunpack.c.l.b16 %v388
      %v1035 = vunpack.c.l.b16 %v389
      %v1036 = vunpack.c.l.b16 %v390
      %v1037 = vunpack.c.l.b16 %v391
      %v1038 = vunpack.c.l.b16 %v392
      %v1039 = vunpack.c.l.b16 %v393
      %v1040 = vunpack.c.l.b16 %v394
      %v1041 = vunpack.c.l.b16 %v395
      %v1042 = vunpack.c.l.b16 %v396
      %v1043 = vunpack.c.l.b16 %v397
      %v1044 = vunpack.c.l.b16 %v398
      %v1045 = vunpack.c.l.b16 %v399
      %v1046 = vunpack.c.l.b16 %v400
      %v1047 = vunpack.c.l.b16 %v401
      %v1048 = vunpack.c.l.b16 %v402
      %v1049 = vunpack.c.l.b16 %v403
      %v1050 = vunpack.c.l.b16 %v404
      %v1051 = vunpack.c.l.b16 %v405
      %v1052 = vunpack.c.l.b16 %v406
      %v1053 = vunpack.c.l.b16 %v407
      %v1054 = vunpack.c.l.b16 %v408
      %v1055 = vpack.c.b16 %v1024, %v1023
      %v1056 = vpack.c.b16 %v1026, %v1025
      %v1057 = vpack.c.b16 %v1028, %v1027
      %v1058 = vpack.c.b16 %v1030, %v1029
      %v1059 = vpack.c.b16 %v1032, %v1031
      %v1060 = vpack.c.b16 %v1034, %v1033
      %v1061 = vpack.c.b16 %v1036, %v1035
      %v1062 = vpack.c.b16 %v1038, %v1037
      %v1063 = vpack.c.b16 %v1040, %v1039
      %v1064 = vpack.c.b16 %v1042, %v1041
      %v1065 = vpack.c.b16 %v1044, %v1043
      %v1066 = vpack.c.b16 %v1046, %v1045
      %v1067 = vpack.c.b16 %v1048, %v1047
      %v1068 = vpack.c.b16 %v1050, %v1049
      %v1069 = vpack.c.b16 %v1052, %v1051
      %v1070 = vpack.c.b16 %v1054, %v1053
      %1071 = vrot.lane.b32.xlu0 %v1055, 12
      %v1072 = vpop.permute.xlu0 %1071
      %1073 = vrot.lane.b32.xlu0 %v1056, 12
      %v1074 = vpop.permute.xlu0 %1073
      %1075 = vrot.lane.b32.xlu0 %v1057, 12
      %v1076 = vpop.permute.xlu0 %1075
      %1077 = vrot.lane.b32.xlu0 %v1058, 12
      %v1078 = vpop.permute.xlu0 %1077
      %1079 = vrot.lane.b32.xlu0 %v1059, 12
      %v1080 = vpop.permute.xlu0 %1079
      %1081 = vrot.lane.b32.xlu0 %v1060, 12
      %v1082 = vpop.permute.xlu0 %1081
      %1083 = vrot.lane.b32.xlu0 %v1061, 12
      %v1084 = vpop.permute.xlu0 %1083
      %1085 = vrot.lane.b32.xlu0 %v1062, 12
      %v1086 = vpop.permute.xlu0 %1085
      %1087 = vrot.lane.b32.xlu0 %v1063, 12
      %v1088 = vpop.permute.xlu0 %1087
      %1089 = vrot.lane.b32.xlu0 %v1064, 12
      %v1090 = vpop.permute.xlu0 %1089
      %1091 = vrot.lane.b32.xlu0 %v1065, 12
      %v1092 = vpop.permute.xlu0 %1091
      %1093 = vrot.lane.b32.xlu0 %v1066, 12
      %v1094 = vpop.permute.xlu0 %1093
      %1095 = vrot.lane.b32.xlu0 %v1067, 12
      %v1096 = vpop.permute.xlu0 %1095
      %1097 = vrot.lane.b32.xlu0 %v1068, 12
      %v1098 = vpop.permute.xlu0 %1097
      %1099 = vrot.lane.b32.xlu0 %v1069, 12
      %v1100 = vpop.permute.xlu0 %1099
      %1101 = vrot.lane.b32.xlu0 %v1070, 12
      %v1102 = vpop.permute.xlu0 %1101
      %v1119 = vunpack.c.l.b16 %v409
      %v1120 = vunpack.c.l.b16 %v410
      %v1121 = vunpack.c.l.b16 %v411
      %v1122 = vunpack.c.l.b16 %v412
      %v1123 = vunpack.c.l.b16 %v413
      %v1124 = vunpack.c.l.b16 %v414
      %v1125 = vunpack.c.l.b16 %v415
      %v1126 = vunpack.c.l.b16 %v416
      %v1127 = vunpack.c.l.b16 %v417
      %v1128 = vunpack.c.l.b16 %v418
      %v1129 = vunpack.c.l.b16 %v419
      %v1130 = vunpack.c.l.b16 %v420
      %v1131 = vunpack.c.l.b16 %v421
      %v1132 = vunpack.c.l.b16 %v422
      %v1133 = vunpack.c.l.b16 %v423
      %v1134 = vunpack.c.l.b16 %v424
      %v1135 = vpack.c.b16 %v1119, %v1119
      %v1136 = vpack.c.b16 %v1120, %v1120
      %v1137 = vpack.c.b16 %v1121, %v1121
      %v1138 = vpack.c.b16 %v1122, %v1122
      %v1139 = vpack.c.b16 %v1123, %v1123
      %v1140 = vpack.c.b16 %v1124, %v1124
      %v1141 = vpack.c.b16 %v1125, %v1125
      %v1142 = vpack.c.b16 %v1126, %v1126
      %v1143 = vpack.c.b16 %v1127, %v1127
      %v1144 = vpack.c.b16 %v1128, %v1128
      %v1145 = vpack.c.b16 %v1129, %v1129
      %v1146 = vpack.c.b16 %v1130, %v1130
      %v1147 = vpack.c.b16 %v1131, %v1131
      %v1148 = vpack.c.b16 %v1132, %v1132
      %v1149 = vpack.c.b16 %v1133, %v1133
      %v1150 = vpack.c.b16 %v1134, %v1134
      %v1152 = vshrl.u32 %v1055, 16
      %v1154 = vshll.u32 %v1055, 16
      %v1156 = vrot.slane %v1154, 1
      %v1157 = vor.u32 %v1152, %v1156
      %v1159 = vshll.u32 %v1135, 16
      %v1161 = vrot.slane %v1159, 1
      %v1162 = vsel %vm637, %v1157, %v1161
      %v1164 = vshrl.u32 %v1056, 16
      %v1166 = vshll.u32 %v1056, 16
      %v1168 = vrot.slane %v1166, 1
      %v1169 = vor.u32 %v1164, %v1168
      %v1171 = vshll.u32 %v1136, 16
      %v1173 = vrot.slane %v1171, 1
      %v1174 = vsel %vm637, %v1169, %v1173
      %v1176 = vshrl.u32 %v1057, 16
      %v1178 = vshll.u32 %v1057, 16
      %v1180 = vrot.slane %v1178, 1
      %v1181 = vor.u32 %v1176, %v1180
      %v1183 = vshll.u32 %v1137, 16
      %v1185 = vrot.slane %v1183, 1
      %v1186 = vsel %vm637, %v1181, %v1185
      %v1188 = vshrl.u32 %v1058, 16
      %v1190 = vshll.u32 %v1058, 16
      %v1192 = vrot.slane %v1190, 1
      %v1193 = vor.u32 %v1188, %v1192
      %v1195 = vshll.u32 %v1138, 16
      %v1197 = vrot.slane %v1195, 1
      %v1198 = vsel %vm637, %v1193, %v1197
      %v1200 = vshrl.u32 %v1059, 16
      %v1202 = vshll.u32 %v1059, 16
      %v1204 = vrot.slane %v1202, 1
      %v1205 = vor.u32 %v1200, %v1204
      %v1207 = vshll.u32 %v1139, 16
      %v1209 = vrot.slane %v1207, 1
      %v1210 = vsel %vm637, %v1205, %v1209
      %v1212 = vshrl.u32 %v1060, 16
      %v1214 = vshll.u32 %v1060, 16
      %v1216 = vrot.slane %v1214, 1
      %v1217 = vor.u32 %v1212, %v1216
      %v1219 = vshll.u32 %v1140, 16
      %v1221 = vrot.slane %v1219, 1
      %v1222 = vsel %vm637, %v1217, %v1221
      %v1224 = vshrl.u32 %v1061, 16
      %v1226 = vshll.u32 %v1061, 16
      %v1228 = vrot.slane %v1226, 1
      %v1229 = vor.u32 %v1224, %v1228
      %v1231 = vshll.u32 %v1141, 16
      %v1233 = vrot.slane %v1231, 1
      %v1234 = vsel %vm637, %v1229, %v1233
      %v1236 = vshrl.u32 %v1062, 16
      %v1238 = vshll.u32 %v1062, 16
      %v1240 = vrot.slane %v1238, 1
      %v1241 = vor.u32 %v1236, %v1240
      %v1243 = vshll.u32 %v1142, 16
      %v1245 = vrot.slane %v1243, 1
      %v1246 = vsel %vm637, %v1241, %v1245
      %v1248 = vshrl.u32 %v1063, 16
      %v1250 = vshll.u32 %v1063, 16
      %v1252 = vrot.slane %v1250, 1
      %v1253 = vor.u32 %v1248, %v1252
      %v1255 = vshll.u32 %v1143, 16
      %v1257 = vrot.slane %v1255, 1
      %v1258 = vsel %vm637, %v1253, %v1257
      %v1260 = vshrl.u32 %v1064, 16
      %v1262 = vshll.u32 %v1064, 16
      %v1264 = vrot.slane %v1262, 1
      %v1265 = vor.u32 %v1260, %v1264
      %v1267 = vshll.u32 %v1144, 16
      %v1269 = vrot.slane %v1267, 1
      %v1270 = vsel %vm637, %v1265, %v1269
      %v1272 = vshrl.u32 %v1065, 16
      %v1274 = vshll.u32 %v1065, 16
      %v1276 = vrot.slane %v1274, 1
      %v1277 = vor.u32 %v1272, %v1276
      %v1279 = vshll.u32 %v1145, 16
      %v1281 = vrot.slane %v1279, 1
      %v1282 = vsel %vm637, %v1277, %v1281
      %v1284 = vshrl.u32 %v1066, 16
      %v1286 = vshll.u32 %v1066, 16
      %v1288 = vrot.slane %v1286, 1
      %v1289 = vor.u32 %v1284, %v1288
      %v1291 = vshll.u32 %v1146, 16
      %v1293 = vrot.slane %v1291, 1
      %v1294 = vsel %vm637, %v1289, %v1293
      %v1296 = vshrl.u32 %v1067, 16
      %v1298 = vshll.u32 %v1067, 16
      %v1300 = vrot.slane %v1298, 1
      %v1301 = vor.u32 %v1296, %v1300
      %v1303 = vshll.u32 %v1147, 16
      %v1305 = vrot.slane %v1303, 1
      %v1306 = vsel %vm637, %v1301, %v1305
      %v1308 = vshrl.u32 %v1068, 16
      %v1310 = vshll.u32 %v1068, 16
      %v1312 = vrot.slane %v1310, 1
      %v1313 = vor.u32 %v1308, %v1312
      %v1315 = vshll.u32 %v1148, 16
      %v1317 = vrot.slane %v1315, 1
      %v1318 = vsel %vm637, %v1313, %v1317
      %v1320 = vshrl.u32 %v1069, 16
      %v1322 = vshll.u32 %v1069, 16
      %v1324 = vrot.slane %v1322, 1
      %v1325 = vor.u32 %v1320, %v1324
      %v1327 = vshll.u32 %v1149, 16
      %v1329 = vrot.slane %v1327, 1
      %v1330 = vsel %vm637, %v1325, %v1329
      %v1332 = vshrl.u32 %v1070, 16
      %v1334 = vshll.u32 %v1070, 16
      %v1336 = vrot.slane %v1334, 1
      %v1337 = vor.u32 %v1332, %v1336
      %v1339 = vshll.u32 %v1150, 16
      %v1341 = vrot.slane %v1339, 1
      %v1342 = vsel %vm637, %v1337, %v1341
      %1343 = vrot.lane.b32.xlu0 %v1162, 16
      %v1344 = vpop.permute.xlu0 %1343
      %1345 = vrot.lane.b32.xlu0 %v1174, 16
      %v1346 = vpop.permute.xlu0 %1345
      %1347 = vrot.lane.b32.xlu0 %v1186, 16
      %v1348 = vpop.permute.xlu0 %1347
      %1349 = vrot.lane.b32.xlu0 %v1198, 16
      %v1350 = vpop.permute.xlu0 %1349
      %1351 = vrot.lane.b32.xlu0 %v1210, 16
      %v1352 = vpop.permute.xlu0 %1351
      %1353 = vrot.lane.b32.xlu0 %v1222, 16
      %v1354 = vpop.permute.xlu0 %1353
      %1355 = vrot.lane.b32.xlu0 %v1234, 16
      %v1356 = vpop.permute.xlu0 %1355
      %1357 = vrot.lane.b32.xlu0 %v1246, 16
      %v1358 = vpop.permute.xlu0 %1357
      %1359 = vrot.lane.b32.xlu0 %v1258, 16
      %v1360 = vpop.permute.xlu0 %1359
      %1361 = vrot.lane.b32.xlu0 %v1270, 16
      %v1362 = vpop.permute.xlu0 %1361
      %1363 = vrot.lane.b32.xlu0 %v1282, 16
      %v1364 = vpop.permute.xlu0 %1363
      %1365 = vrot.lane.b32.xlu0 %v1294, 16
      %v1366 = vpop.permute.xlu0 %1365
      %1367 = vrot.lane.b32.xlu0 %v1306, 16
      %v1368 = vpop.permute.xlu0 %1367
      %1369 = vrot.lane.b32.xlu0 %v1318, 16
      %v1370 = vpop.permute.xlu0 %1369
      %1371 = vrot.lane.b32.xlu0 %v1330, 16
      %v1372 = vpop.permute.xlu0 %1371
      %1373 = vrot.lane.b32.xlu0 %v1342, 16
      %v1374 = vpop.permute.xlu0 %1373
      %v1391 = vunpack.c.l.b16 %v425
      %v1392 = vunpack.c.l.b16 %v426
      %v1393 = vunpack.c.l.b16 %v427
      %v1394 = vunpack.c.l.b16 %v428
      %v1395 = vunpack.c.l.b16 %v429
      %v1396 = vunpack.c.l.b16 %v430
      %v1397 = vunpack.c.l.b16 %v431
      %v1398 = vunpack.c.l.b16 %v432
      %v1399 = vunpack.c.l.b16 %v433
      %v1400 = vunpack.c.l.b16 %v434
      %v1401 = vunpack.c.l.b16 %v435
      %v1402 = vunpack.c.l.b16 %v436
      %v1403 = vunpack.c.l.b16 %v437
      %v1404 = vunpack.c.l.b16 %v438
      %v1405 = vunpack.c.l.b16 %v439
      %v1406 = vunpack.c.l.b16 %v440
      %v1407 = vpack.c.b16 %v1024, %v1391
      %v1408 = vpack.c.b16 %v1026, %v1392
      %v1409 = vpack.c.b16 %v1028, %v1393
      %v1410 = vpack.c.b16 %v1030, %v1394
      %v1411 = vpack.c.b16 %v1032, %v1395
      %v1412 = vpack.c.b16 %v1034, %v1396
      %v1413 = vpack.c.b16 %v1036, %v1397
      %v1414 = vpack.c.b16 %v1038, %v1398
      %v1415 = vpack.c.b16 %v1040, %v1399
      %v1416 = vpack.c.b16 %v1042, %v1400
      %v1417 = vpack.c.b16 %v1044, %v1401
      %v1418 = vpack.c.b16 %v1046, %v1402
      %v1419 = vpack.c.b16 %v1048, %v1403
      %v1420 = vpack.c.b16 %v1050, %v1404
      %v1421 = vpack.c.b16 %v1052, %v1405
      %v1422 = vpack.c.b16 %v1054, %v1406
      %v1423 = vrot.slane %v1407, 1
      %v1424 = vrot.slane %v1135, 1
      %v1425 = vsel %vm910, %v1423, %v1424
      %v1426 = vrot.slane %v1408, 1
      %v1427 = vrot.slane %v1136, 1
      %v1428 = vsel %vm910, %v1426, %v1427
      %v1429 = vrot.slane %v1409, 1
      %v1430 = vrot.slane %v1137, 1
      %v1431 = vsel %vm910, %v1429, %v1430
      %v1432 = vrot.slane %v1410, 1
      %v1433 = vrot.slane %v1138, 1
      %v1434 = vsel %vm910, %v1432, %v1433
      %v1435 = vrot.slane %v1411, 1
      %v1436 = vrot.slane %v1139, 1
      %v1437 = vsel %vm910, %v1435, %v1436
      %v1438 = vrot.slane %v1412, 1
      %v1439 = vrot.slane %v1140, 1
      %v1440 = vsel %vm910, %v1438, %v1439
      %v1441 = vrot.slane %v1413, 1
      %v1442 = vrot.slane %v1141, 1
      %v1443 = vsel %vm910, %v1441, %v1442
      %v1444 = vrot.slane %v1414, 1
      %v1445 = vrot.slane %v1142, 1
      %v1446 = vsel %vm910, %v1444, %v1445
      %v1447 = vrot.slane %v1415, 1
      %v1448 = vrot.slane %v1143, 1
      %v1449 = vsel %vm910, %v1447, %v1448
      %v1450 = vrot.slane %v1416, 1
      %v1451 = vrot.slane %v1144, 1
      %v1452 = vsel %vm910, %v1450, %v1451
      %v1453 = vrot.slane %v1417, 1
      %v1454 = vrot.slane %v1145, 1
      %v1455 = vsel %vm910, %v1453, %v1454
      %v1456 = vrot.slane %v1418, 1
      %v1457 = vrot.slane %v1146, 1
      %v1458 = vsel %vm910, %v1456, %v1457
      %v1459 = vrot.slane %v1419, 1
      %v1460 = vrot.slane %v1147, 1
      %v1461 = vsel %vm910, %v1459, %v1460
      %v1462 = vrot.slane %v1420, 1
      %v1463 = vrot.slane %v1148, 1
      %v1464 = vsel %vm910, %v1462, %v1463
      %v1465 = vrot.slane %v1421, 1
      %v1466 = vrot.slane %v1149, 1
      %v1467 = vsel %vm910, %v1465, %v1466
      %v1468 = vrot.slane %v1422, 1
      %v1469 = vrot.slane %v1150, 1
      %v1470 = vsel %vm910, %v1468, %v1469
      %1471 = vrot.lane.b32.xlu0 %v1425, 20
      %v1472 = vpop.permute.xlu0 %1471
      %1473 = vrot.lane.b32.xlu0 %v1428, 20
      %v1474 = vpop.permute.xlu0 %1473
      %1475 = vrot.lane.b32.xlu0 %v1431, 20
      %v1476 = vpop.permute.xlu0 %1475
      %1477 = vrot.lane.b32.xlu0 %v1434, 20
      %v1478 = vpop.permute.xlu0 %1477
      %1479 = vrot.lane.b32.xlu0 %v1437, 20
      %v1480 = vpop.permute.xlu0 %1479
      %1481 = vrot.lane.b32.xlu0 %v1440, 20
      %v1482 = vpop.permute.xlu0 %1481
      %1483 = vrot.lane.b32.xlu0 %v1443, 20
      %v1484 = vpop.permute.xlu0 %1483
      %1485 = vrot.lane.b32.xlu0 %v1446, 20
      %v1486 = vpop.permute.xlu0 %1485
      %1487 = vrot.lane.b32.xlu0 %v1449, 20
      %v1488 = vpop.permute.xlu0 %1487
      %1489 = vrot.lane.b32.xlu0 %v1452, 20
      %v1490 = vpop.permute.xlu0 %1489
      %1491 = vrot.lane.b32.xlu0 %v1455, 20
      %v1492 = vpop.permute.xlu0 %1491
      %1493 = vrot.lane.b32.xlu0 %v1458, 20
      %v1494 = vpop.permute.xlu0 %1493
      %1495 = vrot.lane.b32.xlu0 %v1461, 20
      %v1496 = vpop.permute.xlu0 %1495
      %1497 = vrot.lane.b32.xlu0 %v1464, 20
      %v1498 = vpop.permute.xlu0 %1497
      %1499 = vrot.lane.b32.xlu0 %v1467, 20
      %v1500 = vpop.permute.xlu0 %1499
      %1501 = vrot.lane.b32.xlu0 %v1470, 20
      %v1502 = vpop.permute.xlu0 %1501
      %v1535 = vunpack.c.l.b16 %v445
      %v1536 = vunpack.c.l.b16 %v446
      %v1537 = vunpack.c.l.b16 %v447
      %v1538 = vunpack.c.l.b16 %v448
      %v1539 = vunpack.c.l.b16 %v449
      %v1540 = vunpack.c.l.b16 %v450
      %v1541 = vunpack.c.l.b16 %v451
      %v1542 = vunpack.c.l.b16 %v452
      %v1543 = vunpack.c.l.b16 %v453
      %v1544 = vunpack.c.l.b16 %v454
      %v1545 = vunpack.c.l.b16 %v455
      %v1546 = vunpack.c.l.b16 %v456
      %v1547 = vunpack.c.l.b16 %v457
      %v1548 = vunpack.c.l.b16 %v458
      %v1549 = vunpack.c.l.b16 %v459
      %v1550 = vunpack.c.l.b16 %v460
      %v1551 = vunpack.c.l.b16 %v461
      %v1552 = vunpack.c.l.b16 %v462
      %v1553 = vunpack.c.l.b16 %v463
      %v1554 = vunpack.c.l.b16 %v464
      %v1555 = vunpack.c.l.b16 %v465
      %v1556 = vunpack.c.l.b16 %v466
      %v1557 = vunpack.c.l.b16 %v467
      %v1558 = vunpack.c.l.b16 %v468
      %v1559 = vunpack.c.l.b16 %v469
      %v1560 = vunpack.c.l.b16 %v470
      %v1561 = vunpack.c.l.b16 %v471
      %v1562 = vunpack.c.l.b16 %v472
      %v1563 = vunpack.c.l.b16 %v473
      %v1564 = vunpack.c.l.b16 %v474
      %v1565 = vunpack.c.l.b16 %v475
      %v1566 = vunpack.c.l.b16 %v476
      %v1567 = vpack.c.b16 %v1536, %v1535
      %v1568 = vpack.c.b16 %v1538, %v1537
      %v1569 = vpack.c.b16 %v1540, %v1539
      %v1570 = vpack.c.b16 %v1542, %v1541
      %v1571 = vpack.c.b16 %v1544, %v1543
      %v1572 = vpack.c.b16 %v1546, %v1545
      %v1573 = vpack.c.b16 %v1548, %v1547
      %v1574 = vpack.c.b16 %v1550, %v1549
      %v1575 = vpack.c.b16 %v1552, %v1551
      %v1576 = vpack.c.b16 %v1554, %v1553
      %v1577 = vpack.c.b16 %v1556, %v1555
      %v1578 = vpack.c.b16 %v1558, %v1557
      %v1579 = vpack.c.b16 %v1560, %v1559
      %v1580 = vpack.c.b16 %v1562, %v1561
      %v1581 = vpack.c.b16 %v1564, %v1563
      %v1582 = vpack.c.b16 %v1566, %v1565
      %1583 = vrot.lane.b32.xlu0 %v1567, 24
      %v1584 = vpop.permute.xlu0 %1583
      %1585 = vrot.lane.b32.xlu0 %v1568, 24
      %v1586 = vpop.permute.xlu0 %1585
      %1587 = vrot.lane.b32.xlu0 %v1569, 24
      %v1588 = vpop.permute.xlu0 %1587
      %1589 = vrot.lane.b32.xlu0 %v1570, 24
      %v1590 = vpop.permute.xlu0 %1589
      %1591 = vrot.lane.b32.xlu0 %v1571, 24
      %v1592 = vpop.permute.xlu0 %1591
      %1593 = vrot.lane.b32.xlu0 %v1572, 24
      %v1594 = vpop.permute.xlu0 %1593
      %1595 = vrot.lane.b32.xlu0 %v1573, 24
      %v1596 = vpop.permute.xlu0 %1595
      %1597 = vrot.lane.b32.xlu0 %v1574, 24
      %v1598 = vpop.permute.xlu0 %1597
      %1599 = vrot.lane.b32.xlu0 %v1575, 24
      %v1600 = vpop.permute.xlu0 %1599
      %1601 = vrot.lane.b32.xlu0 %v1576, 24
      %v1602 = vpop.permute.xlu0 %1601
      %1603 = vrot.lane.b32.xlu0 %v1577, 24
      %v1604 = vpop.permute.xlu0 %1603
      %1605 = vrot.lane.b32.xlu0 %v1578, 24
      %v1606 = vpop.permute.xlu0 %1605
      %1607 = vrot.lane.b32.xlu0 %v1579, 24
      %v1608 = vpop.permute.xlu0 %1607
      %1609 = vrot.lane.b32.xlu0 %v1580, 24
      %v1610 = vpop.permute.xlu0 %1609
      %1611 = vrot.lane.b32.xlu0 %v1581, 24
      %v1612 = vpop.permute.xlu0 %1611
      %1613 = vrot.lane.b32.xlu0 %v1582, 24
      %v1614 = vpop.permute.xlu0 %1613
      %v1631 = vunpack.c.l.b16 %v477
      %v1632 = vunpack.c.l.b16 %v478
      %v1633 = vunpack.c.l.b16 %v479
      %v1634 = vunpack.c.l.b16 %v480
      %v1635 = vunpack.c.l.b16 %v481
      %v1636 = vunpack.c.l.b16 %v482
      %v1637 = vunpack.c.l.b16 %v483
      %v1638 = vunpack.c.l.b16 %v484
      %v1639 = vunpack.c.l.b16 %v485
      %v1640 = vunpack.c.l.b16 %v486
      %v1641 = vunpack.c.l.b16 %v487
      %v1642 = vunpack.c.l.b16 %v488
      %v1643 = vunpack.c.l.b16 %v489
      %v1644 = vunpack.c.l.b16 %v490
      %v1645 = vunpack.c.l.b16 %v491
      %v1646 = vunpack.c.l.b16 %v492
      %v1647 = vpack.c.b16 %v1631, %v1631
      %v1648 = vpack.c.b16 %v1632, %v1632
      %v1649 = vpack.c.b16 %v1633, %v1633
      %v1650 = vpack.c.b16 %v1634, %v1634
      %v1651 = vpack.c.b16 %v1635, %v1635
      %v1652 = vpack.c.b16 %v1636, %v1636
      %v1653 = vpack.c.b16 %v1637, %v1637
      %v1654 = vpack.c.b16 %v1638, %v1638
      %v1655 = vpack.c.b16 %v1639, %v1639
      %v1656 = vpack.c.b16 %v1640, %v1640
      %v1657 = vpack.c.b16 %v1641, %v1641
      %v1658 = vpack.c.b16 %v1642, %v1642
      %v1659 = vpack.c.b16 %v1643, %v1643
      %v1660 = vpack.c.b16 %v1644, %v1644
      %v1661 = vpack.c.b16 %v1645, %v1645
      %v1662 = vpack.c.b16 %v1646, %v1646
      %v1664 = vshrl.u32 %v1567, 16
      %v1666 = vshll.u32 %v1567, 16
      %v1668 = vrot.slane %v1666, 1
      %v1669 = vor.u32 %v1664, %v1668
      %v1671 = vshll.u32 %v1647, 16
      %v1673 = vrot.slane %v1671, 1
      %v1674 = vsel %vm637, %v1669, %v1673
      %v1676 = vshrl.u32 %v1568, 16
      %v1678 = vshll.u32 %v1568, 16
      %v1680 = vrot.slane %v1678, 1
      %v1681 = vor.u32 %v1676, %v1680
      %v1683 = vshll.u32 %v1648, 16
      %v1685 = vrot.slane %v1683, 1
      %v1686 = vsel %vm637, %v1681, %v1685
      %v1688 = vshrl.u32 %v1569, 16
      %v1690 = vshll.u32 %v1569, 16
      %v1692 = vrot.slane %v1690, 1
      %v1693 = vor.u32 %v1688, %v1692
      %v1695 = vshll.u32 %v1649, 16
      %v1697 = vrot.slane %v1695, 1
      %v1698 = vsel %vm637, %v1693, %v1697
      %v1700 = vshrl.u32 %v1570, 16
      %v1702 = vshll.u32 %v1570, 16
      %v1704 = vrot.slane %v1702, 1
      %v1705 = vor.u32 %v1700, %v1704
      %v1707 = vshll.u32 %v1650, 16
      %v1709 = vrot.slane %v1707, 1
      %v1710 = vsel %vm637, %v1705, %v1709
      %v1712 = vshrl.u32 %v1571, 16
      %v1714 = vshll.u32 %v1571, 16
      %v1716 = vrot.slane %v1714, 1
      %v1717 = vor.u32 %v1712, %v1716
      %v1719 = vshll.u32 %v1651, 16
      %v1721 = vrot.slane %v1719, 1
      %v1722 = vsel %vm637, %v1717, %v1721
      %v1724 = vshrl.u32 %v1572, 16
      %v1726 = vshll.u32 %v1572, 16
      %v1728 = vrot.slane %v1726, 1
      %v1729 = vor.u32 %v1724, %v1728
      %v1731 = vshll.u32 %v1652, 16
      %v1733 = vrot.slane %v1731, 1
      %v1734 = vsel %vm637, %v1729, %v1733
      %v1736 = vshrl.u32 %v1573, 16
      %v1738 = vshll.u32 %v1573, 16
      %v1740 = vrot.slane %v1738, 1
      %v1741 = vor.u32 %v1736, %v1740
      %v1743 = vshll.u32 %v1653, 16
      %v1745 = vrot.slane %v1743, 1
      %v1746 = vsel %vm637, %v1741, %v1745
      %v1748 = vshrl.u32 %v1574, 16
      %v1750 = vshll.u32 %v1574, 16
      %v1752 = vrot.slane %v1750, 1
      %v1753 = vor.u32 %v1748, %v1752
      %v1755 = vshll.u32 %v1654, 16
      %v1757 = vrot.slane %v1755, 1
      %v1758 = vsel %vm637, %v1753, %v1757
      %v1760 = vshrl.u32 %v1575, 16
      %v1762 = vshll.u32 %v1575, 16
      %v1764 = vrot.slane %v1762, 1
      %v1765 = vor.u32 %v1760, %v1764
      %v1767 = vshll.u32 %v1655, 16
      %v1769 = vrot.slane %v1767, 1
      %v1770 = vsel %vm637, %v1765, %v1769
      %v1772 = vshrl.u32 %v1576, 16
      %v1774 = vshll.u32 %v1576, 16
      %v1776 = vrot.slane %v1774, 1
      %v1777 = vor.u32 %v1772, %v1776
      %v1779 = vshll.u32 %v1656, 16
      %v1781 = vrot.slane %v1779, 1
      %v1782 = vsel %vm637, %v1777, %v1781
      %v1784 = vshrl.u32 %v1577, 16
      %v1786 = vshll.u32 %v1577, 16
      %v1788 = vrot.slane %v1786, 1
      %v1789 = vor.u32 %v1784, %v1788
      %v1791 = vshll.u32 %v1657, 16
      %v1793 = vrot.slane %v1791, 1
      %v1794 = vsel %vm637, %v1789, %v1793
      %v1796 = vshrl.u32 %v1578, 16
      %v1798 = vshll.u32 %v1578, 16
      %v1800 = vrot.slane %v1798, 1
      %v1801 = vor.u32 %v1796, %v1800
      %v1803 = vshll.u32 %v1658, 16
      %v1805 = vrot.slane %v1803, 1
      %v1806 = vsel %vm637, %v1801, %v1805
      %v1808 = vshrl.u32 %v1579, 16
      %v1810 = vshll.u32 %v1579, 16
      %v1812 = vrot.slane %v1810, 1
      %v1813 = vor.u32 %v1808, %v1812
      %v1815 = vshll.u32 %v1659, 16
      %v1817 = vrot.slane %v1815, 1
      %v1818 = vsel %vm637, %v1813, %v1817
      %v1820 = vshrl.u32 %v1580, 16
      %v1822 = vshll.u32 %v1580, 16
      %v1824 = vrot.slane %v1822, 1
      %v1825 = vor.u32 %v1820, %v1824
      %v1827 = vshll.u32 %v1660, 16
      %v1829 = vrot.slane %v1827, 1
      %v1830 = vsel %vm637, %v1825, %v1829
      %v1832 = vshrl.u32 %v1581, 16
      %v1834 = vshll.u32 %v1581, 16
      %v1836 = vrot.slane %v1834, 1
      %v1837 = vor.u32 %v1832, %v1836
      %v1839 = vshll.u32 %v1661, 16
      %v1841 = vrot.slane %v1839, 1
      %v1842 = vsel %vm637, %v1837, %v1841
      %v1844 = vshrl.u32 %v1582, 16
      %v1846 = vshll.u32 %v1582, 16
      %v1848 = vrot.slane %v1846, 1
      %v1849 = vor.u32 %v1844, %v1848
      %v1851 = vshll.u32 %v1662, 16
      %v1853 = vrot.slane %v1851, 1
      %v1854 = vsel %vm637, %v1849, %v1853
      %1855 = vrot.lane.b32.xlu0 %v1674, 28
      %v1856 = vpop.permute.xlu0 %1855
      %1857 = vrot.lane.b32.xlu0 %v1686, 28
      %v1858 = vpop.permute.xlu0 %1857
      %1859 = vrot.lane.b32.xlu0 %v1698, 28
      %v1860 = vpop.permute.xlu0 %1859
      %1861 = vrot.lane.b32.xlu0 %v1710, 28
      %v1862 = vpop.permute.xlu0 %1861
      %1863 = vrot.lane.b32.xlu0 %v1722, 28
      %v1864 = vpop.permute.xlu0 %1863
      %1865 = vrot.lane.b32.xlu0 %v1734, 28
      %v1866 = vpop.permute.xlu0 %1865
      %1867 = vrot.lane.b32.xlu0 %v1746, 28
      %v1868 = vpop.permute.xlu0 %1867
      %1869 = vrot.lane.b32.xlu0 %v1758, 28
      %v1870 = vpop.permute.xlu0 %1869
      %1871 = vrot.lane.b32.xlu0 %v1770, 28
      %v1872 = vpop.permute.xlu0 %1871
      %1873 = vrot.lane.b32.xlu0 %v1782, 28
      %v1874 = vpop.permute.xlu0 %1873
      %1875 = vrot.lane.b32.xlu0 %v1794, 28
      %v1876 = vpop.permute.xlu0 %1875
      %1877 = vrot.lane.b32.xlu0 %v1806, 28
      %v1878 = vpop.permute.xlu0 %1877
      %1879 = vrot.lane.b32.xlu0 %v1818, 28
      %v1880 = vpop.permute.xlu0 %1879
      %1881 = vrot.lane.b32.xlu0 %v1830, 28
      %v1882 = vpop.permute.xlu0 %1881
      %1883 = vrot.lane.b32.xlu0 %v1842, 28
      %v1884 = vpop.permute.xlu0 %1883
      %1885 = vrot.lane.b32.xlu0 %v1854, 28
      %v1886 = vpop.permute.xlu0 %1885
      %v1903 = vunpack.c.l.b16 %v493
      %v1904 = vunpack.c.l.b16 %v494
      %v1905 = vunpack.c.l.b16 %v495
      %v1906 = vunpack.c.l.b16 %v496
      %v1907 = vunpack.c.l.b16 %v497
      %v1908 = vunpack.c.l.b16 %v498
      %v1909 = vunpack.c.l.b16 %v499
      %v1910 = vunpack.c.l.b16 %v500
      %v1911 = vunpack.c.l.b16 %v501
      %v1912 = vunpack.c.l.b16 %v502
      %v1913 = vunpack.c.l.b16 %v503
      %v1914 = vunpack.c.l.b16 %v504
      %v1915 = vunpack.c.l.b16 %v505
      %v1916 = vunpack.c.l.b16 %v506
      %v1917 = vunpack.c.l.b16 %v507
      %v1918 = vunpack.c.l.b16 %v508
      %v1919 = vpack.c.b16 %v1536, %v1903
      %v1920 = vpack.c.b16 %v1538, %v1904
      %v1921 = vpack.c.b16 %v1540, %v1905
      %v1922 = vpack.c.b16 %v1542, %v1906
      %v1923 = vpack.c.b16 %v1544, %v1907
      %v1924 = vpack.c.b16 %v1546, %v1908
      %v1925 = vpack.c.b16 %v1548, %v1909
      %v1926 = vpack.c.b16 %v1550, %v1910
      %v1927 = vpack.c.b16 %v1552, %v1911
      %v1928 = vpack.c.b16 %v1554, %v1912
      %v1929 = vpack.c.b16 %v1556, %v1913
      %v1930 = vpack.c.b16 %v1558, %v1914
      %v1931 = vpack.c.b16 %v1560, %v1915
      %v1932 = vpack.c.b16 %v1562, %v1916
      %v1933 = vpack.c.b16 %v1564, %v1917
      %v1934 = vpack.c.b16 %v1566, %v1918
      %v1935 = vrot.slane %v1919, 1
      %v1936 = vrot.slane %v1647, 1
      %v1937 = vsel %vm910, %v1935, %v1936
      %v1938 = vrot.slane %v1920, 1
      %v1939 = vrot.slane %v1648, 1
      %v1940 = vsel %vm910, %v1938, %v1939
      %v1941 = vrot.slane %v1921, 1
      %v1942 = vrot.slane %v1649, 1
      %v1943 = vsel %vm910, %v1941, %v1942
      %v1944 = vrot.slane %v1922, 1
      %v1945 = vrot.slane %v1650, 1
      %v1946 = vsel %vm910, %v1944, %v1945
      %v1947 = vrot.slane %v1923, 1
      %v1948 = vrot.slane %v1651, 1
      %v1949 = vsel %vm910, %v1947, %v1948
      %v1950 = vrot.slane %v1924, 1
      %v1951 = vrot.slane %v1652, 1
      %v1952 = vsel %vm910, %v1950, %v1951
      %v1953 = vrot.slane %v1925, 1
      %v1954 = vrot.slane %v1653, 1
      %v1955 = vsel %vm910, %v1953, %v1954
      %v1956 = vrot.slane %v1926, 1
      %v1957 = vrot.slane %v1654, 1
      %v1958 = vsel %vm910, %v1956, %v1957
      %v1959 = vrot.slane %v1927, 1
      %v1960 = vrot.slane %v1655, 1
      %v1961 = vsel %vm910, %v1959, %v1960
      %v1962 = vrot.slane %v1928, 1
      %v1963 = vrot.slane %v1656, 1
      %v1964 = vsel %vm910, %v1962, %v1963
      %v1965 = vrot.slane %v1929, 1
      %v1966 = vrot.slane %v1657, 1
      %v1967 = vsel %vm910, %v1965, %v1966
      %v1968 = vrot.slane %v1930, 1
      %v1969 = vrot.slane %v1658, 1
      %v1970 = vsel %vm910, %v1968, %v1969
      %v1971 = vrot.slane %v1931, 1
      %v1972 = vrot.slane %v1659, 1
      %v1973 = vsel %vm910, %v1971, %v1972
      %v1974 = vrot.slane %v1932, 1
      %v1975 = vrot.slane %v1660, 1
      %v1976 = vsel %vm910, %v1974, %v1975
      %v1977 = vrot.slane %v1933, 1
      %v1978 = vrot.slane %v1661, 1
      %v1979 = vsel %vm910, %v1977, %v1978
      %v1980 = vrot.slane %v1934, 1
      %v1981 = vrot.slane %v1662, 1
      %v1982 = vsel %vm910, %v1980, %v1981
      %1983 = vrot.lane.b32.xlu0 %v1937, 32
      %v1984 = vpop.permute.xlu0 %1983
      %1985 = vrot.lane.b32.xlu0 %v1940, 32
      %v1986 = vpop.permute.xlu0 %1985
      %1987 = vrot.lane.b32.xlu0 %v1943, 32
      %v1988 = vpop.permute.xlu0 %1987
      %1989 = vrot.lane.b32.xlu0 %v1946, 32
      %v1990 = vpop.permute.xlu0 %1989
      %1991 = vrot.lane.b32.xlu0 %v1949, 32
      %v1992 = vpop.permute.xlu0 %1991
      %1993 = vrot.lane.b32.xlu0 %v1952, 32
      %v1994 = vpop.permute.xlu0 %1993
      %1995 = vrot.lane.b32.xlu0 %v1955, 32
      %v1996 = vpop.permute.xlu0 %1995
      %1997 = vrot.lane.b32.xlu0 %v1958, 32
      %v1998 = vpop.permute.xlu0 %1997
      %1999 = vrot.lane.b32.xlu0 %v1961, 32
      %v2000 = vpop.permute.xlu0 %1999
      %2001 = vrot.lane.b32.xlu0 %v1964, 32
      %v2002 = vpop.permute.xlu0 %2001
      %2003 = vrot.lane.b32.xlu0 %v1967, 32
      %v2004 = vpop.permute.xlu0 %2003
      %2005 = vrot.lane.b32.xlu0 %v1970, 32
      %v2006 = vpop.permute.xlu0 %2005
      %2007 = vrot.lane.b32.xlu0 %v1973, 32
      %v2008 = vpop.permute.xlu0 %2007
      %2009 = vrot.lane.b32.xlu0 %v1976, 32
      %v2010 = vpop.permute.xlu0 %2009
      %2011 = vrot.lane.b32.xlu0 %v1979, 32
      %v2012 = vpop.permute.xlu0 %2011
      %2013 = vrot.lane.b32.xlu0 %v1982, 32
      %v2014 = vpop.permute.xlu0 %2013
      %vm2015 = vcmask 31744
      %v2017 = vsel %vm2015, %v573, %v831
      %v2019 = vsel %vm2015, %v574, %v833
      %v2021 = vsel %vm2015, %v575, %v835
      %v2023 = vsel %vm2015, %v576, %v837
      %v2025 = vsel %vm2015, %v577, %v839
      %v2027 = vsel %vm2015, %v578, %v841
      %v2029 = vsel %vm2015, %v579, %v843
      %v2031 = vsel %vm2015, %v580, %v845
      %v2033 = vsel %vm2015, %v581, %v847
      %v2035 = vsel %vm2015, %v582, %v849
      %v2037 = vsel %vm2015, %v583, %v851
      %v2039 = vsel %vm2015, %v584, %v853
      %v2041 = vsel %vm2015, %v585, %v855
      %v2043 = vsel %vm2015, %v586, %v857
      %v2045 = vsel %vm2015, %v587, %v859
      %v2047 = vsel %vm2015, %v588, %v861
      %vm2048 = vcmask 64512
      %v2050 = vsel %vm2048, %v2017, %v960
      %v2052 = vsel %vm2048, %v2019, %v962
      %v2054 = vsel %vm2048, %v2021, %v964
      %v2056 = vsel %vm2048, %v2023, %v966
      %v2058 = vsel %vm2048, %v2025, %v968
      %v2060 = vsel %vm2048, %v2027, %v970
      %v2062 = vsel %vm2048, %v2029, %v972
      %v2064 = vsel %vm2048, %v2031, %v974
      %v2066 = vsel %vm2048, %v2033, %v976
      %v2068 = vsel %vm2048, %v2035, %v978
      %v2070 = vsel %vm2048, %v2037, %v980
      %v2072 = vsel %vm2048, %v2039, %v982
      %v2074 = vsel %vm2048, %v2041, %v984
      %v2076 = vsel %vm2048, %v2043, %v986
      %v2078 = vsel %vm2048, %v2045, %v988
      %v2080 = vsel %vm2048, %v2047, %v990
      %vm2081 = vcmask 97280
      %v2083 = vsel %vm2081, %v2050, %v1072
      %v2085 = vsel %vm2081, %v2052, %v1074
      %v2087 = vsel %vm2081, %v2054, %v1076
      %v2089 = vsel %vm2081, %v2056, %v1078
      %v2091 = vsel %vm2081, %v2058, %v1080
      %v2093 = vsel %vm2081, %v2060, %v1082
      %v2095 = vsel %vm2081, %v2062, %v1084
      %v2097 = vsel %vm2081, %v2064, %v1086
      %v2099 = vsel %vm2081, %v2066, %v1088
      %v2101 = vsel %vm2081, %v2068, %v1090
      %v2103 = vsel %vm2081, %v2070, %v1092
      %v2105 = vsel %vm2081, %v2072, %v1094
      %v2107 = vsel %vm2081, %v2074, %v1096
      %v2109 = vsel %vm2081, %v2076, %v1098
      %v2111 = vsel %vm2081, %v2078, %v1100
      %v2113 = vsel %vm2081, %v2080, %v1102
      %vm2114 = vcmask 130048
      %v2116 = vsel %vm2114, %v2083, %v1344
      %v2118 = vsel %vm2114, %v2085, %v1346
      %v2120 = vsel %vm2114, %v2087, %v1348
      %v2122 = vsel %vm2114, %v2089, %v1350
      %v2124 = vsel %vm2114, %v2091, %v1352
      %v2126 = vsel %vm2114, %v2093, %v1354
      %v2128 = vsel %vm2114, %v2095, %v1356
      %v2130 = vsel %vm2114, %v2097, %v1358
      %v2132 = vsel %vm2114, %v2099, %v1360
      %v2134 = vsel %vm2114, %v2101, %v1362
      %v2136 = vsel %vm2114, %v2103, %v1364
      %v2138 = vsel %vm2114, %v2105, %v1366
      %v2140 = vsel %vm2114, %v2107, %v1368
      %v2142 = vsel %vm2114, %v2109, %v1370
      %v2144 = vsel %vm2114, %v2111, %v1372
      %v2146 = vsel %vm2114, %v2113, %v1374
      %vm2147 = vcmask 162816
      %v2149 = vsel %vm2147, %v2116, %v1472
      %v2151 = vsel %vm2147, %v2118, %v1474
      %v2153 = vsel %vm2147, %v2120, %v1476
      %v2155 = vsel %vm2147, %v2122, %v1478
      %v2157 = vsel %vm2147, %v2124, %v1480
      %v2159 = vsel %vm2147, %v2126, %v1482
      %v2161 = vsel %vm2147, %v2128, %v1484
      %v2163 = vsel %vm2147, %v2130, %v1486
      %v2165 = vsel %vm2147, %v2132, %v1488
      %v2167 = vsel %vm2147, %v2134, %v1490
      %v2169 = vsel %vm2147, %v2136, %v1492
      %v2171 = vsel %vm2147, %v2138, %v1494
      %v2173 = vsel %vm2147, %v2140, %v1496
      %v2175 = vsel %vm2147, %v2142, %v1498
      %v2177 = vsel %vm2147, %v2144, %v1500
      %v2179 = vsel %vm2147, %v2146, %v1502
      %vm2180 = vcmask 195584
      %v2182 = vsel %vm2180, %v2149, %v1584
      %v2184 = vsel %vm2180, %v2151, %v1586
      %v2186 = vsel %vm2180, %v2153, %v1588
      %v2188 = vsel %vm2180, %v2155, %v1590
      %v2190 = vsel %vm2180, %v2157, %v1592
      %v2192 = vsel %vm2180, %v2159, %v1594
      %v2194 = vsel %vm2180, %v2161, %v1596
      %v2196 = vsel %vm2180, %v2163, %v1598
      %v2198 = vsel %vm2180, %v2165, %v1600
      %v2200 = vsel %vm2180, %v2167, %v1602
      %v2202 = vsel %vm2180, %v2169, %v1604
      %v2204 = vsel %vm2180, %v2171, %v1606
      %v2206 = vsel %vm2180, %v2173, %v1608
      %v2208 = vsel %vm2180, %v2175, %v1610
      %v2210 = vsel %vm2180, %v2177, %v1612
      %v2212 = vsel %vm2180, %v2179, %v1614
      %vm2213 = vcmask 228352
      %v2215 = vsel %vm2213, %v2182, %v1856
      %v2217 = vsel %vm2213, %v2184, %v1858
      %v2219 = vsel %vm2213, %v2186, %v1860
      %v2221 = vsel %vm2213, %v2188, %v1862
      %v2223 = vsel %vm2213, %v2190, %v1864
      %v2225 = vsel %vm2213, %v2192, %v1866
      %v2227 = vsel %vm2213, %v2194, %v1868
      %v2229 = vsel %vm2213, %v2196, %v1870
      %v2231 = vsel %vm2213, %v2198, %v1872
      %v2233 = vsel %vm2213, %v2200, %v1874
      %v2235 = vsel %vm2213, %v2202, %v1876
      %v2237 = vsel %vm2213, %v2204, %v1878
      %v2239 = vsel %vm2213, %v2206, %v1880
      %v2241 = vsel %vm2213, %v2208, %v1882
      %v2243 = vsel %vm2213, %v2210, %v1884
      %v2245 = vsel %vm2213, %v2212, %v1886
      %vm2246 = vcmask 261120
      %v2248 = vsel %vm2246, %v2215, %v1984
      %v2250 = vsel %vm2246, %v2217, %v1986
      %v2252 = vsel %vm2246, %v2219, %v1988
      %v2254 = vsel %vm2246, %v2221, %v1990
      %v2256 = vsel %vm2246, %v2223, %v1992
      %v2258 = vsel %vm2246, %v2225, %v1994
      %v2260 = vsel %vm2246, %v2227, %v1996
      %v2262 = vsel %vm2246, %v2229, %v1998
      %v2264 = vsel %vm2246, %v2231, %v2000
      %v2266 = vsel %vm2246, %v2233, %v2002
      %v2268 = vsel %vm2246, %v2235, %v2004
      %v2270 = vsel %vm2246, %v2237, %v2006
      %v2272 = vsel %vm2246, %v2239, %v2008
      %v2274 = vsel %vm2246, %v2241, %v2010
      %v2276 = vsel %vm2246, %v2243, %v2012
      %v2278 = vsel %vm2246, %v2245, %v2014
      %v2279 = vld [vmem:[%s1] sm:$0xf]
      %v2280 = vld [vmem:[%s1 + $0x4] sm:$0xf]
      %v2281 = vld [vmem:[%s1 + $0x8] sm:$0xf]
      %v2282 = vld [vmem:[%s1 + $0xc] sm:$0xf]
      %v2283 = vld [vmem:[%s1 + $0x10] sm:$0x3]
      %v2289 = vunpack.c.l.b16 %v2279
      %v2290 = vunpack.c.l.b16 %v2280
      %v2291 = vunpack.c.l.b16 %v2281
      %v2292 = vunpack.c.l.b16 %v2282
      %v2293 = vunpack.c.l.b16 %v2283
      %v2294 = vpack.c.b16 %v2290, %v2289
      %v2295 = vpack.c.b16 %v2292, %v2291
      %v2296 = vpack.c.b16 %v2293, %v2293
      %vm2299 = vcmask 293888
      %v2300 = vsel %vm2299, %v2248, 0
      %v2302 = vsel %vm2299, %v2250, 0
      %v2304 = vsel %vm2299, %v2252, 0
      %v2306 = vsel %vm2299, %v2254, 0
      %v2308 = vsel %vm2299, %v2256, 0
      %v2310 = vsel %vm2299, %v2258, 0
      %v2312 = vsel %vm2299, %v2260, 0
      %v2314 = vsel %vm2299, %v2262, 0
      %v2316 = vsel %vm2299, %v2264, 0
      %v2318 = vsel %vm2299, %v2266, 0
      %v2320 = vsel %vm2299, %v2268, 0
      %v2322 = vsel %vm2299, %v2270, 0
      %v2324 = vsel %vm2299, %v2272, 0
      %v2326 = vsel %vm2299, %v2274, 0
      %v2328 = vsel %vm2299, %v2276, 0
      %v2330 = vsel %vm2299, %v2278, 0
      %vm2332 = vcmask 1041408
      %v2334 = vsel %vm2332, %v2296, 0
      %2336 = vmatpush.bf16.msra.mxu0 0
      %2337 = vmatpush.bf16.msra.mxu0 0
      %2338 = vmatpush.bf16.msra.mxu0 0
      %2339 = vmatpush.bf16.msra.mxu0 0
      %2340 = vmatpush.bf16.msra.mxu0 0
      %2341 = vmatpush.bf16.msra.mxu0 %v2334
      %2342 = vmatpush.bf16.msra.mxu0 %v2295
      %2343 = vmatpush.bf16.msra.mxu0 %v2294
      %2344 = vmatmul.bf16.gmra.mxu0 %v2300
      %v2345 = vpop.f32.mrf.mxu0
      %v2346 = vadd.f32 0.0, %v2345
      %v2347 = vpop.f32.mrf.mxu0
      %v2348 = vadd.f32 0.0, %v2347
      %2349 = vmatmul.bf16.gmra.mxu0 %v2302
      %v2350 = vpop.f32.mrf.mxu0
      %v2351 = vadd.f32 0.0, %v2350
      %v2352 = vpop.f32.mrf.mxu0
      %v2353 = vadd.f32 0.0, %v2352
      %2354 = vmatmul.bf16.gmra.mxu0 %v2304
      %v2355 = vpop.f32.mrf.mxu0
      %v2356 = vadd.f32 0.0, %v2355
      %v2357 = vpop.f32.mrf.mxu0
      %v2358 = vadd.f32 0.0, %v2357
      %2359 = vmatmul.bf16.gmra.mxu0 %v2306
      %v2360 = vpop.f32.mrf.mxu0
      %v2361 = vadd.f32 0.0, %v2360
      %v2362 = vpop.f32.mrf.mxu0
      %v2363 = vadd.f32 0.0, %v2362
      %2364 = vmatmul.bf16.gmra.mxu0 %v2308
      %v2365 = vpop.f32.mrf.mxu0
      %v2366 = vadd.f32 0.0, %v2365
      %v2367 = vpop.f32.mrf.mxu0
      %v2368 = vadd.f32 0.0, %v2367
      %2369 = vmatmul.bf16.gmra.mxu0 %v2310
      %v2370 = vpop.f32.mrf.mxu0
      %v2371 = vadd.f32 0.0, %v2370
      %v2372 = vpop.f32.mrf.mxu0
      %v2373 = vadd.f32 0.0, %v2372
      %2374 = vmatmul.bf16.gmra.mxu0 %v2312
      %v2375 = vpop.f32.mrf.mxu0
      %v2376 = vadd.f32 0.0, %v2375
      %v2377 = vpop.f32.mrf.mxu0
      %v2378 = vadd.f32 0.0, %v2377
      %2379 = vmatmul.bf16.gmra.mxu0 %v2314
      %v2380 = vpop.f32.mrf.mxu0
      %v2381 = vadd.f32 0.0, %v2380
      %v2382 = vpop.f32.mrf.mxu0
      %v2383 = vadd.f32 0.0, %v2382
      %2384 = vmatmul.bf16.gmra.mxu0 %v2316
      %v2385 = vpop.f32.mrf.mxu0
      %v2386 = vadd.f32 0.0, %v2385
      %v2387 = vpop.f32.mrf.mxu0
      %v2388 = vadd.f32 0.0, %v2387
      %2389 = vmatmul.bf16.gmra.mxu0 %v2318
      %v2390 = vpop.f32.mrf.mxu0
      %v2391 = vadd.f32 0.0, %v2390
      %v2392 = vpop.f32.mrf.mxu0
      %v2393 = vadd.f32 0.0, %v2392
      %2394 = vmatmul.bf16.gmra.mxu0 %v2320
      %v2395 = vpop.f32.mrf.mxu0
      %v2396 = vadd.f32 0.0, %v2395
      %v2397 = vpop.f32.mrf.mxu0
      %v2398 = vadd.f32 0.0, %v2397
      %2399 = vmatmul.bf16.gmra.mxu0 %v2322
      %v2400 = vpop.f32.mrf.mxu0
      %v2401 = vadd.f32 0.0, %v2400
      %v2402 = vpop.f32.mrf.mxu0
      %v2403 = vadd.f32 0.0, %v2402
      %2404 = vmatmul.bf16.gmra.mxu0 %v2324
      %v2405 = vpop.f32.mrf.mxu0
      %v2406 = vadd.f32 0.0, %v2405
      %v2407 = vpop.f32.mrf.mxu0
      %v2408 = vadd.f32 0.0, %v2407
      %2409 = vmatmul.bf16.gmra.mxu0 %v2326
      %v2410 = vpop.f32.mrf.mxu0
      %v2411 = vadd.f32 0.0, %v2410
      %v2412 = vpop.f32.mrf.mxu0
      %v2413 = vadd.f32 0.0, %v2412
      %2414 = vmatmul.bf16.gmra.mxu0 %v2328
      %v2415 = vpop.f32.mrf.mxu0
      %v2416 = vadd.f32 0.0, %v2415
      %v2417 = vpop.f32.mrf.mxu0
      %v2418 = vadd.f32 0.0, %v2417
      %2419 = vmatmul.bf16.gmra.mxu0 %v2330
      %v2420 = vpop.f32.mrf.mxu0
      %v2421 = vadd.f32 0.0, %v2420
      %v2422 = vpop.f32.mrf.mxu0
      %v2423 = vadd.f32 0.0, %v2422
      %2424 = vdwg.mxu0
      %v2425 = vld [vmem:[%s2] sm:$0x1]
      %v2427 = vperm.slane %v2425, 0
      %v2429 = vmul.f32 %v2346, %v2427
      %v2430 = vmul.f32 %v2348, %v2427
      %v2431 = vmul.f32 %v2351, %v2427
      %v2432 = vmul.f32 %v2353, %v2427
      %v2433 = vmul.f32 %v2356, %v2427
      %v2434 = vmul.f32 %v2358, %v2427
      %v2435 = vmul.f32 %v2361, %v2427
      %v2436 = vmul.f32 %v2363, %v2427
      %v2437 = vmul.f32 %v2366, %v2427
      %v2438 = vmul.f32 %v2368, %v2427
      %v2439 = vmul.f32 %v2371, %v2427
      %v2440 = vmul.f32 %v2373, %v2427
      %v2441 = vmul.f32 %v2376, %v2427
      %v2442 = vmul.f32 %v2378, %v2427
      %v2443 = vmul.f32 %v2381, %v2427
      %v2444 = vmul.f32 %v2383, %v2427
      %v2445 = vmul.f32 %v2386, %v2427
      %v2446 = vmul.f32 %v2388, %v2427
      %v2447 = vmul.f32 %v2391, %v2427
      %v2448 = vmul.f32 %v2393, %v2427
      %v2449 = vmul.f32 %v2396, %v2427
      %v2450 = vmul.f32 %v2398, %v2427
      %v2451 = vmul.f32 %v2401, %v2427
      %v2452 = vmul.f32 %v2403, %v2427
      %v2453 = vmul.f32 %v2406, %v2427
      %v2454 = vmul.f32 %v2408, %v2427
      %v2455 = vmul.f32 %v2411, %v2427
      %v2456 = vmul.f32 %v2413, %v2427
      %v2457 = vmul.f32 %v2416, %v2427
      %v2458 = vmul.f32 %v2418, %v2427
      %v2459 = vmul.f32 %v2421, %v2427
      %v2460 = vmul.f32 %v2423, %v2427
      %v2461 = vld [vmem:[%s3] sm:$0x1]
      %v2463 = vperm.slane %v2461, 0
      %v2465 = vadd.f32 %v2429, %v2463
      %v2466 = vadd.f32 %v2430, %v2463
      %v2467 = vadd.f32 %v2431, %v2463
      %v2468 = vadd.f32 %v2432, %v2463
      %v2469 = vadd.f32 %v2433, %v2463
      %v2470 = vadd.f32 %v2434, %v2463
      %v2471 = vadd.f32 %v2435, %v2463
      %v2472 = vadd.f32 %v2436, %v2463
      %v2473 = vadd.f32 %v2437, %v2463
      %v2474 = vadd.f32 %v2438, %v2463
      %v2475 = vadd.f32 %v2439, %v2463
      %v2476 = vadd.f32 %v2440, %v2463
      %v2477 = vadd.f32 %v2441, %v2463
      %v2478 = vadd.f32 %v2442, %v2463
      %v2479 = vadd.f32 %v2443, %v2463
      %v2480 = vadd.f32 %v2444, %v2463
      %v2481 = vadd.f32 %v2445, %v2463
      %v2482 = vadd.f32 %v2446, %v2463
      %v2483 = vadd.f32 %v2447, %v2463
      %v2484 = vadd.f32 %v2448, %v2463
      %v2485 = vadd.f32 %v2449, %v2463
      %v2486 = vadd.f32 %v2450, %v2463
      %v2487 = vadd.f32 %v2451, %v2463
      %v2488 = vadd.f32 %v2452, %v2463
      %v2489 = vadd.f32 %v2453, %v2463
      %v2490 = vadd.f32 %v2454, %v2463
      %v2491 = vadd.f32 %v2455, %v2463
      %v2492 = vadd.f32 %v2456, %v2463
      %v2493 = vadd.f32 %v2457, %v2463
      %v2494 = vadd.f32 %v2458, %v2463
      %v2495 = vadd.f32 %v2459, %v2463
      %v2496 = vadd.f32 %v2460, %v2463
      %vm2497 = vcmp.gt.f32.partialorder %v2465, 0.0
      %vm2498 = vcmp.gt.f32.partialorder %v2466, 0.0
      %vm2499 = vcmp.gt.f32.partialorder %v2467, 0.0
      %vm2500 = vcmp.gt.f32.partialorder %v2468, 0.0
      %vm2501 = vcmp.gt.f32.partialorder %v2469, 0.0
      %vm2502 = vcmp.gt.f32.partialorder %v2470, 0.0
      %vm2503 = vcmp.gt.f32.partialorder %v2471, 0.0
      %vm2504 = vcmp.gt.f32.partialorder %v2472, 0.0
      %vm2505 = vcmp.gt.f32.partialorder %v2473, 0.0
      %vm2506 = vcmp.gt.f32.partialorder %v2474, 0.0
      %vm2507 = vcmp.gt.f32.partialorder %v2475, 0.0
      %vm2508 = vcmp.gt.f32.partialorder %v2476, 0.0
      %vm2509 = vcmp.gt.f32.partialorder %v2477, 0.0
      %vm2510 = vcmp.gt.f32.partialorder %v2478, 0.0
      %vm2511 = vcmp.gt.f32.partialorder %v2479, 0.0
      %vm2512 = vcmp.gt.f32.partialorder %v2480, 0.0
      %vm2513 = vcmp.gt.f32.partialorder %v2481, 0.0
      %vm2514 = vcmp.gt.f32.partialorder %v2482, 0.0
      %vm2515 = vcmp.gt.f32.partialorder %v2483, 0.0
      %vm2516 = vcmp.gt.f32.partialorder %v2484, 0.0
      %vm2517 = vcmp.gt.f32.partialorder %v2485, 0.0
      %vm2518 = vcmp.gt.f32.partialorder %v2486, 0.0
      %vm2519 = vcmp.gt.f32.partialorder %v2487, 0.0
      %vm2520 = vcmp.gt.f32.partialorder %v2488, 0.0
      %vm2521 = vcmp.gt.f32.partialorder %v2489, 0.0
      %vm2522 = vcmp.gt.f32.partialorder %v2490, 0.0
      %vm2523 = vcmp.gt.f32.partialorder %v2491, 0.0
      %vm2524 = vcmp.gt.f32.partialorder %v2492, 0.0
      %vm2525 = vcmp.gt.f32.partialorder %v2493, 0.0
      %vm2526 = vcmp.gt.f32.partialorder %v2494, 0.0
      %vm2527 = vcmp.gt.f32.partialorder %v2495, 0.0
      %vm2528 = vcmp.gt.f32.partialorder %v2496, 0.0
      %v2529 = vmul.f32 %v2465, 0.1
      %v2530 = vmul.f32 %v2466, 0.1
      %v2531 = vmul.f32 %v2467, 0.1
      %v2532 = vmul.f32 %v2468, 0.1
      %v2533 = vmul.f32 %v2469, 0.1
      %v2534 = vmul.f32 %v2470, 0.1
      %v2535 = vmul.f32 %v2471, 0.1
      %v2536 = vmul.f32 %v2472, 0.1
      %v2537 = vmul.f32 %v2473, 0.1
      %v2538 = vmul.f32 %v2474, 0.1
      %v2539 = vmul.f32 %v2475, 0.1
      %v2540 = vmul.f32 %v2476, 0.1
      %v2541 = vmul.f32 %v2477, 0.1
      %v2542 = vmul.f32 %v2478, 0.1
      %v2543 = vmul.f32 %v2479, 0.1
      %v2544 = vmul.f32 %v2480, 0.1
      %v2545 = vmul.f32 %v2481, 0.1
      %v2546 = vmul.f32 %v2482, 0.1
      %v2547 = vmul.f32 %v2483, 0.1
      %v2548 = vmul.f32 %v2484, 0.1
      %v2549 = vmul.f32 %v2485, 0.1
      %v2550 = vmul.f32 %v2486, 0.1
      %v2551 = vmul.f32 %v2487, 0.1
      %v2552 = vmul.f32 %v2488, 0.1
      %v2553 = vmul.f32 %v2489, 0.1
      %v2554 = vmul.f32 %v2490, 0.1
      %v2555 = vmul.f32 %v2491, 0.1
      %v2556 = vmul.f32 %v2492, 0.1
      %v2557 = vmul.f32 %v2493, 0.1
      %v2558 = vmul.f32 %v2494, 0.1
      %v2559 = vmul.f32 %v2495, 0.1
      %v2560 = vmul.f32 %v2496, 0.1
      %v2561 = vsel %vm2497, %v2465, %v2529
      %v2562 = vsel %vm2498, %v2466, %v2530
      %v2563 = vsel %vm2499, %v2467, %v2531
      %v2564 = vsel %vm2500, %v2468, %v2532
      %v2565 = vsel %vm2501, %v2469, %v2533
      %v2566 = vsel %vm2502, %v2470, %v2534
      %v2567 = vsel %vm2503, %v2471, %v2535
      %v2568 = vsel %vm2504, %v2472, %v2536
      %v2569 = vsel %vm2505, %v2473, %v2537
      %v2570 = vsel %vm2506, %v2474, %v2538
      %v2571 = vsel %vm2507, %v2475, %v2539
      %v2572 = vsel %vm2508, %v2476, %v2540
      %v2573 = vsel %vm2509, %v2477, %v2541
      %v2574 = vsel %vm2510, %v2478, %v2542
      %v2575 = vsel %vm2511, %v2479, %v2543
      %v2576 = vsel %vm2512, %v2480, %v2544
      %v2577 = vsel %vm2513, %v2481, %v2545
      %v2578 = vsel %vm2514, %v2482, %v2546
      %v2579 = vsel %vm2515, %v2483, %v2547
      %v2580 = vsel %vm2516, %v2484, %v2548
      %v2581 = vsel %vm2517, %v2485, %v2549
      %v2582 = vsel %vm2518, %v2486, %v2550
      %v2583 = vsel %vm2519, %v2487, %v2551
      %v2584 = vsel %vm2520, %v2488, %v2552
      %v2585 = vsel %vm2521, %v2489, %v2553
      %v2586 = vsel %vm2522, %v2490, %v2554
      %v2587 = vsel %vm2523, %v2491, %v2555
      %v2588 = vsel %vm2524, %v2492, %v2556
      %v2589 = vsel %vm2525, %v2493, %v2557
      %v2590 = vsel %vm2526, %v2494, %v2558
      %v2591 = vsel %vm2527, %v2495, %v2559
      %v2592 = vsel %vm2528, %v2496, %v2560
      %v2593 = vpack.c.bf16 %v2562, %v2561
      %v2594 = vpack.c.bf16 %v2564, %v2563
      %v2595 = vpack.c.bf16 %v2566, %v2565
      %v2596 = vpack.c.bf16 %v2568, %v2567
      %v2597 = vpack.c.bf16 %v2570, %v2569
      %v2598 = vpack.c.bf16 %v2572, %v2571
      %v2599 = vpack.c.bf16 %v2574, %v2573
      %v2600 = vpack.c.bf16 %v2576, %v2575
      %v2601 = vpack.c.bf16 %v2578, %v2577
      %v2602 = vpack.c.bf16 %v2580, %v2579
      %v2603 = vpack.c.bf16 %v2582, %v2581
      %v2604 = vpack.c.bf16 %v2584, %v2583
      %v2605 = vpack.c.bf16 %v2586, %v2585
      %v2606 = vpack.c.bf16 %v2588, %v2587
      %v2607 = vpack.c.bf16 %v2590, %v2589
      %v2608 = vpack.c.bf16 %v2592, %v2591
      %v2609 = vld [vmem:[%s4] sm:$0xf]
      %v2611 = vsel %vm2048, %v2593, 0
      %v2614 = vsel %vm2048, %v2594, 0
      %v2617 = vsel %vm2048, %v2595, 0
      %v2620 = vsel %vm2048, %v2596, 0
      %v2623 = vsel %vm2048, %v2597, 0
      %v2626 = vsel %vm2048, %v2598, 0
      %v2629 = vsel %vm2048, %v2599, 0
      %v2632 = vsel %vm2048, %v2600, 0
      %v2635 = vsel %vm2048, %v2601, 0
      %v2638 = vsel %vm2048, %v2602, 0
      %v2641 = vsel %vm2048, %v2603, 0
      %v2644 = vsel %vm2048, %v2604, 0
      %v2647 = vsel %vm2048, %v2605, 0
      %v2650 = vsel %vm2048, %v2606, 0
      %v2653 = vsel %vm2048, %v2607, 0
      %v2656 = vsel %vm2048, %v2608, 0
      %vm2658 = vcmask 1043456
      %v2660 = vsel %vm2658, %v2609, 0
      %2662 = vmatpush.bf16.msra.mxu0 0
      %2663 = vmatpush.bf16.msra.mxu0 0
      %2664 = vmatpush.bf16.msra.mxu0 0
      %2665 = vmatpush.bf16.msra.mxu0 0
      %2666 = vmatpush.bf16.msra.mxu0 0
      %2667 = vmatpush.bf16.msra.mxu0 0
      %2668 = vmatpush.bf16.msra.mxu0 0
      %2669 = vmatpush.bf16.msra.mxu0 %v2660
      %2670 = vmatmul.bf16.gmra.mxu0 %v2611
      %v2671 = vpop.f32.mrf.mxu0
      %v2672 = vadd.f32 0.0, %v2671
      %v2673 = vpop.f32.mrf.mxu0
      %v2674 = vadd.f32 0.0, %v2673
      %2675 = vmatmul.bf16.gmra.mxu0 %v2614
      %v2676 = vpop.f32.mrf.mxu0
      %v2677 = vadd.f32 0.0, %v2676
      %v2678 = vpop.f32.mrf.mxu0
      %v2679 = vadd.f32 0.0, %v2678
      %2680 = vmatmul.bf16.gmra.mxu0 %v2617
      %v2681 = vpop.f32.mrf.mxu0
      %v2682 = vadd.f32 0.0, %v2681
      %v2683 = vpop.f32.mrf.mxu0
      %v2684 = vadd.f32 0.0, %v2683
      %2685 = vmatmul.bf16.gmra.mxu0 %v2620
      %v2686 = vpop.f32.mrf.mxu0
      %v2687 = vadd.f32 0.0, %v2686
      %v2688 = vpop.f32.mrf.mxu0
      %v2689 = vadd.f32 0.0, %v2688
      %2690 = vmatmul.bf16.gmra.mxu0 %v2623
      %v2691 = vpop.f32.mrf.mxu0
      %v2692 = vadd.f32 0.0, %v2691
      %v2693 = vpop.f32.mrf.mxu0
      %v2694 = vadd.f32 0.0, %v2693
      %2695 = vmatmul.bf16.gmra.mxu0 %v2626
      %v2696 = vpop.f32.mrf.mxu0
      %v2697 = vadd.f32 0.0, %v2696
      %v2698 = vpop.f32.mrf.mxu0
      %v2699 = vadd.f32 0.0, %v2698
      %2700 = vmatmul.bf16.gmra.mxu0 %v2629
      %v2701 = vpop.f32.mrf.mxu0
      %v2702 = vadd.f32 0.0, %v2701
      %v2703 = vpop.f32.mrf.mxu0
      %v2704 = vadd.f32 0.0, %v2703
      %2705 = vmatmul.bf16.gmra.mxu0 %v2632
      %v2706 = vpop.f32.mrf.mxu0
      %v2707 = vadd.f32 0.0, %v2706
      %v2708 = vpop.f32.mrf.mxu0
      %v2709 = vadd.f32 0.0, %v2708
      %2710 = vmatmul.bf16.gmra.mxu0 %v2635
      %v2711 = vpop.f32.mrf.mxu0
      %v2712 = vadd.f32 0.0, %v2711
      %v2713 = vpop.f32.mrf.mxu0
      %v2714 = vadd.f32 0.0, %v2713
      %2715 = vmatmul.bf16.gmra.mxu0 %v2638
      %v2716 = vpop.f32.mrf.mxu0
      %v2717 = vadd.f32 0.0, %v2716
      %v2718 = vpop.f32.mrf.mxu0
      %v2719 = vadd.f32 0.0, %v2718
      %2720 = vmatmul.bf16.gmra.mxu0 %v2641
      %v2721 = vpop.f32.mrf.mxu0
      %v2722 = vadd.f32 0.0, %v2721
      %v2723 = vpop.f32.mrf.mxu0
      %v2724 = vadd.f32 0.0, %v2723
      %2725 = vmatmul.bf16.gmra.mxu0 %v2644
      %v2726 = vpop.f32.mrf.mxu0
      %v2727 = vadd.f32 0.0, %v2726
      %v2728 = vpop.f32.mrf.mxu0
      %v2729 = vadd.f32 0.0, %v2728
      %2730 = vmatmul.bf16.gmra.mxu0 %v2647
      %v2731 = vpop.f32.mrf.mxu0
      %v2732 = vadd.f32 0.0, %v2731
      %v2733 = vpop.f32.mrf.mxu0
      %v2734 = vadd.f32 0.0, %v2733
      %2735 = vmatmul.bf16.gmra.mxu0 %v2650
      %v2736 = vpop.f32.mrf.mxu0
      %v2737 = vadd.f32 0.0, %v2736
      %v2738 = vpop.f32.mrf.mxu0
      %v2739 = vadd.f32 0.0, %v2738
      %2740 = vmatmul.bf16.gmra.mxu0 %v2653
      %v2741 = vpop.f32.mrf.mxu0
      %v2742 = vadd.f32 0.0, %v2741
      %v2743 = vpop.f32.mrf.mxu0
      %v2744 = vadd.f32 0.0, %v2743
      %2745 = vmatmul.bf16.gmra.mxu0 %v2656
      %v2746 = vpop.f32.mrf.mxu0
      %v2747 = vadd.f32 0.0, %v2746
      %v2748 = vpop.f32.mrf.mxu0
      %v2749 = vadd.f32 0.0, %v2748
      %2750 = vdwg.mxu0
      %v2751 = vld [vmem:[%s5] sm:$0x1]
      %v2753 = vperm.slane %v2751, 0
      %v2755 = vmul.f32 %v2672, %v2753
      %v2756 = vmul.f32 %v2674, %v2753
      %v2757 = vmul.f32 %v2677, %v2753
      %v2758 = vmul.f32 %v2679, %v2753
      %v2759 = vmul.f32 %v2682, %v2753
      %v2760 = vmul.f32 %v2684, %v2753
      %v2761 = vmul.f32 %v2687, %v2753
      %v2762 = vmul.f32 %v2689, %v2753
      %v2763 = vmul.f32 %v2692, %v2753
      %v2764 = vmul.f32 %v2694, %v2753
      %v2765 = vmul.f32 %v2697, %v2753
      %v2766 = vmul.f32 %v2699, %v2753
      %v2767 = vmul.f32 %v2702, %v2753
      %v2768 = vmul.f32 %v2704, %v2753
      %v2769 = vmul.f32 %v2707, %v2753
      %v2770 = vmul.f32 %v2709, %v2753
      %v2771 = vmul.f32 %v2712, %v2753
      %v2772 = vmul.f32 %v2714, %v2753
      %v2773 = vmul.f32 %v2717, %v2753
      %v2774 = vmul.f32 %v2719, %v2753
      %v2775 = vmul.f32 %v2722, %v2753
      %v2776 = vmul.f32 %v2724, %v2753
      %v2777 = vmul.f32 %v2727, %v2753
      %v2778 = vmul.f32 %v2729, %v2753
      %v2779 = vmul.f32 %v2732, %v2753
      %v2780 = vmul.f32 %v2734, %v2753
      %v2781 = vmul.f32 %v2737, %v2753
      %v2782 = vmul.f32 %v2739, %v2753
      %v2783 = vmul.f32 %v2742, %v2753
      %v2784 = vmul.f32 %v2744, %v2753
      %v2785 = vmul.f32 %v2747, %v2753
      %v2786 = vmul.f32 %v2749, %v2753
      %v2787 = vld [vmem:[%s6] sm:$0x1]
      %v2789 = vperm.slane %v2787, 0
      %v2791 = vadd.f32 %v2755, %v2789
      %v2792 = vadd.f32 %v2756, %v2789
      %v2793 = vadd.f32 %v2757, %v2789
      %v2794 = vadd.f32 %v2758, %v2789
      %v2795 = vadd.f32 %v2759, %v2789
      %v2796 = vadd.f32 %v2760, %v2789
      %v2797 = vadd.f32 %v2761, %v2789
      %v2798 = vadd.f32 %v2762, %v2789
      %v2799 = vadd.f32 %v2763, %v2789
      %v2800 = vadd.f32 %v2764, %v2789
      %v2801 = vadd.f32 %v2765, %v2789
      %v2802 = vadd.f32 %v2766, %v2789
      %v2803 = vadd.f32 %v2767, %v2789
      %v2804 = vadd.f32 %v2768, %v2789
      %v2805 = vadd.f32 %v2769, %v2789
      %v2806 = vadd.f32 %v2770, %v2789
      %v2807 = vadd.f32 %v2771, %v2789
      %v2808 = vadd.f32 %v2772, %v2789
      %v2809 = vadd.f32 %v2773, %v2789
      %v2810 = vadd.f32 %v2774, %v2789
      %v2811 = vadd.f32 %v2775, %v2789
      %v2812 = vadd.f32 %v2776, %v2789
      %v2813 = vadd.f32 %v2777, %v2789
      %v2814 = vadd.f32 %v2778, %v2789
      %v2815 = vadd.f32 %v2779, %v2789
      %v2816 = vadd.f32 %v2780, %v2789
      %v2817 = vadd.f32 %v2781, %v2789
      %v2818 = vadd.f32 %v2782, %v2789
      %v2819 = vadd.f32 %v2783, %v2789
      %v2820 = vadd.f32 %v2784, %v2789
      %v2821 = vadd.f32 %v2785, %v2789
      %v2822 = vadd.f32 %v2786, %v2789
      %vm2823 = vcmp.gt.f32.partialorder %v2791, 0.0
      %vm2824 = vcmp.gt.f32.partialorder %v2792, 0.0
      %vm2825 = vcmp.gt.f32.partialorder %v2793, 0.0
      %vm2826 = vcmp.gt.f32.partialorder %v2794, 0.0
      %vm2827 = vcmp.gt.f32.partialorder %v2795, 0.0
      %vm2828 = vcmp.gt.f32.partialorder %v2796, 0.0
      %vm2829 = vcmp.gt.f32.partialorder %v2797, 0.0
      %vm2830 = vcmp.gt.f32.partialorder %v2798, 0.0
      %vm2831 = vcmp.gt.f32.partialorder %v2799, 0.0
      %vm2832 = vcmp.gt.f32.partialorder %v2800, 0.0
      %vm2833 = vcmp.gt.f32.partialorder %v2801, 0.0
      %vm2834 = vcmp.gt.f32.partialorder %v2802, 0.0
      %vm2835 = vcmp.gt.f32.partialorder %v2803, 0.0
      %vm2836 = vcmp.gt.f32.partialorder %v2804, 0.0
      %vm2837 = vcmp.gt.f32.partialorder %v2805, 0.0
      %vm2838 = vcmp.gt.f32.partialorder %v2806, 0.0
      %vm2839 = vcmp.gt.f32.partialorder %v2807, 0.0
      %vm2840 = vcmp.gt.f32.partialorder %v2808, 0.0
      %vm2841 = vcmp.gt.f32.partialorder %v2809, 0.0
      %vm2842 = vcmp.gt.f32.partialorder %v2810, 0.0
      %vm2843 = vcmp.gt.f32.partialorder %v2811, 0.0
      %vm2844 = vcmp.gt.f32.partialorder %v2812, 0.0
      %vm2845 = vcmp.gt.f32.partialorder %v2813, 0.0
      %vm2846 = vcmp.gt.f32.partialorder %v2814, 0.0
      %vm2847 = vcmp.gt.f32.partialorder %v2815, 0.0
      %vm2848 = vcmp.gt.f32.partialorder %v2816, 0.0
      %vm2849 = vcmp.gt.f32.partialorder %v2817, 0.0
      %vm2850 = vcmp.gt.f32.partialorder %v2818, 0.0
      %vm2851 = vcmp.gt.f32.partialorder %v2819, 0.0
      %vm2852 = vcmp.gt.f32.partialorder %v2820, 0.0
      %vm2853 = vcmp.gt.f32.partialorder %v2821, 0.0
      %vm2854 = vcmp.gt.f32.partialorder %v2822, 0.0
      %v2855 = vmul.f32 %v2791, 0.1
      %v2856 = vmul.f32 %v2792, 0.1
      %v2857 = vmul.f32 %v2793, 0.1
      %v2858 = vmul.f32 %v2794, 0.1
      %v2859 = vmul.f32 %v2795, 0.1
      %v2860 = vmul.f32 %v2796, 0.1
      %v2861 = vmul.f32 %v2797, 0.1
      %v2862 = vmul.f32 %v2798, 0.1
      %v2863 = vmul.f32 %v2799, 0.1
      %v2864 = vmul.f32 %v2800, 0.1
      %v2865 = vmul.f32 %v2801, 0.1
      %v2866 = vmul.f32 %v2802, 0.1
      %v2867 = vmul.f32 %v2803, 0.1
      %v2868 = vmul.f32 %v2804, 0.1
      %v2869 = vmul.f32 %v2805, 0.1
      %v2870 = vmul.f32 %v2806, 0.1
      %v2871 = vmul.f32 %v2807, 0.1
      %v2872 = vmul.f32 %v2808, 0.1
      %v2873 = vmul.f32 %v2809, 0.1
      %v2874 = vmul.f32 %v2810, 0.1
      %v2875 = vmul.f32 %v2811, 0.1
      %v2876 = vmul.f32 %v2812, 0.1
      %v2877 = vmul.f32 %v2813, 0.1
      %v2878 = vmul.f32 %v2814, 0.1
      %v2879 = vmul.f32 %v2815, 0.1
      %v2880 = vmul.f32 %v2816, 0.1
      %v2881 = vmul.f32 %v2817, 0.1
      %v2882 = vmul.f32 %v2818, 0.1
      %v2883 = vmul.f32 %v2819, 0.1
      %v2884 = vmul.f32 %v2820, 0.1
      %v2885 = vmul.f32 %v2821, 0.1
      %v2886 = vmul.f32 %v2822, 0.1
      %v2887 = vsel %vm2823, %v2791, %v2855
      %v2888 = vsel %vm2824, %v2792, %v2856
      %v2889 = vsel %vm2825, %v2793, %v2857
      %v2890 = vsel %vm2826, %v2794, %v2858
      %v2891 = vsel %vm2827, %v2795, %v2859
      %v2892 = vsel %vm2828, %v2796, %v2860
      %v2893 = vsel %vm2829, %v2797, %v2861
      %v2894 = vsel %vm2830, %v2798, %v2862
      %v2895 = vsel %vm2831, %v2799, %v2863
      %v2896 = vsel %vm2832, %v2800, %v2864
      %v2897 = vsel %vm2833, %v2801, %v2865
      %v2898 = vsel %vm2834, %v2802, %v2866
      %v2899 = vsel %vm2835, %v2803, %v2867
      %v2900 = vsel %vm2836, %v2804, %v2868
      %v2901 = vsel %vm2837, %v2805, %v2869
      %v2902 = vsel %vm2838, %v2806, %v2870
      %v2903 = vsel %vm2839, %v2807, %v2871
      %v2904 = vsel %vm2840, %v2808, %v2872
      %v2905 = vsel %vm2841, %v2809, %v2873
      %v2906 = vsel %vm2842, %v2810, %v2874
      %v2907 = vsel %vm2843, %v2811, %v2875
      %v2908 = vsel %vm2844, %v2812, %v2876
      %v2909 = vsel %vm2845, %v2813, %v2877
      %v2910 = vsel %vm2846, %v2814, %v2878
      %v2911 = vsel %vm2847, %v2815, %v2879
      %v2912 = vsel %vm2848, %v2816, %v2880
      %v2913 = vsel %vm2849, %v2817, %v2881
      %v2914 = vsel %vm2850, %v2818, %v2882
      %v2915 = vsel %vm2851, %v2819, %v2883
      %v2916 = vsel %vm2852, %v2820, %v2884
      %v2917 = vsel %vm2853, %v2821, %v2885
      %v2918 = vsel %vm2854, %v2822, %v2886
      %v2919 = vpack.c.bf16 %v2887, %v2887
      %v2920 = vpack.c.bf16 %v2888, %v2888
      %v2921 = vpack.c.bf16 %v2889, %v2889
      %v2922 = vpack.c.bf16 %v2890, %v2890
      %v2923 = vpack.c.bf16 %v2891, %v2891
      %v2924 = vpack.c.bf16 %v2892, %v2892
      %v2925 = vpack.c.bf16 %v2893, %v2893
      %v2926 = vpack.c.bf16 %v2894, %v2894
      %v2927 = vpack.c.bf16 %v2895, %v2895
      %v2928 = vpack.c.bf16 %v2896, %v2896
      %v2929 = vpack.c.bf16 %v2897, %v2897
      %v2930 = vpack.c.bf16 %v2898, %v2898
      %v2931 = vpack.c.bf16 %v2899, %v2899
      %v2932 = vpack.c.bf16 %v2900, %v2900
      %v2933 = vpack.c.bf16 %v2901, %v2901
      %v2934 = vpack.c.bf16 %v2902, %v2902
      %v2935 = vpack.c.bf16 %v2903, %v2903
      %v2936 = vpack.c.bf16 %v2904, %v2904
      %v2937 = vpack.c.bf16 %v2905, %v2905
      %v2938 = vpack.c.bf16 %v2906, %v2906
      %v2939 = vpack.c.bf16 %v2907, %v2907
      %v2940 = vpack.c.bf16 %v2908, %v2908
      %v2941 = vpack.c.bf16 %v2909, %v2909
      %v2942 = vpack.c.bf16 %v2910, %v2910
      %v2943 = vpack.c.bf16 %v2911, %v2911
      %v2944 = vpack.c.bf16 %v2912, %v2912
      %v2945 = vpack.c.bf16 %v2913, %v2913
      %v2946 = vpack.c.bf16 %v2914, %v2914
      %v2947 = vpack.c.bf16 %v2915, %v2915
      %v2948 = vpack.c.bf16 %v2916, %v2916
      %v2949 = vpack.c.bf16 %v2917, %v2917
      %v2950 = vpack.c.bf16 %v2918, %v2918
      %vm2951 = vcmask 27648
      %2952 = vst.msk [vmem:[%s302] sm:$0xf] %vm2951, %v2919
      %2953 = vst.msk [vmem:[%s302 + $0x4] sm:$0xf] %vm2951, %v2920
      %2954 = vst.msk [vmem:[%s302 + $0x8] sm:$0xf] %vm2951, %v2921
      %2955 = vst.msk [vmem:[%s302 + $0xc] sm:$0xf] %vm2951, %v2922
      %2956 = vst.msk [vmem:[%s302 + $0x10] sm:$0xf] %vm2951, %v2923
      %2957 = vst.msk [vmem:[%s302 + $0x14] sm:$0xf] %vm2951, %v2924
      %2958 = vst.msk [vmem:[%s302 + $0x18] sm:$0xf] %vm2951, %v2925
      %2959 = vst.msk [vmem:[%s302 + $0x1c] sm:$0xf] %vm2951, %v2926
      %2960 = vst.msk [vmem:[%s302 + $0x20] sm:$0xf] %vm2951, %v2927
      %2961 = vst.msk [vmem:[%s302 + $0x24] sm:$0xf] %vm2951, %v2928
      %2962 = vst.msk [vmem:[%s302 + $0x28] sm:$0xf] %vm2951, %v2929
      %2963 = vst.msk [vmem:[%s302 + $0x2c] sm:$0xf] %vm2951, %v2930
      %2964 = vst.msk [vmem:[%s302 + $0x30] sm:$0xf] %vm2951, %v2931
      %2965 = vst.msk [vmem:[%s302 + $0x34] sm:$0xf] %vm2951, %v2932
      %2966 = vst.msk [vmem:[%s302 + $0x38] sm:$0xf] %vm2951, %v2933
      %2967 = vst.msk [vmem:[%s302 + $0x3c] sm:$0xf] %vm2951, %v2934
      %2968 = vst.msk [vmem:[%s302 + $0x40] sm:$0xf] %vm2951, %v2935
      %2969 = vst.msk [vmem:[%s302 + $0x44] sm:$0xf] %vm2951, %v2936
      %2970 = vst.msk [vmem:[%s302 + $0x48] sm:$0xf] %vm2951, %v2937
      %2971 = vst.msk [vmem:[%s302 + $0x4c] sm:$0xf] %vm2951, %v2938
      %2972 = vst.msk [vmem:[%s302 + $0x50] sm:$0xf] %vm2951, %v2939
      %2973 = vst.msk [vmem:[%s302 + $0x54] sm:$0xf] %vm2951, %v2940
      %2974 = vst.msk [vmem:[%s302 + $0x58] sm:$0xf] %vm2951, %v2941
      %2975 = vst.msk [vmem:[%s302 + $0x5c] sm:$0xf] %vm2951, %v2942
      %2976 = vst.msk [vmem:[%s302 + $0x60] sm:$0xf] %vm2951, %v2943
      %2977 = vst.msk [vmem:[%s302 + $0x64] sm:$0xf] %vm2951, %v2944
      %2978 = vst.msk [vmem:[%s302 + $0x68] sm:$0xf] %vm2951, %v2945
      %2979 = vst.msk [vmem:[%s302 + $0x6c] sm:$0xf] %vm2951, %v2946
      %2980 = vst.msk [vmem:[%s302 + $0x70] sm:$0xf] %vm2951, %v2947
      %2981 = vst.msk [vmem:[%s302 + $0x74] sm:$0xf] %vm2951, %v2948
      %2982 = vst.msk [vmem:[%s302 + $0x78] sm:$0xf] %vm2951, %v2949
      %2983 = vst.msk [vmem:[%s302 + $0x7c] sm:$0xf] %vm2951, %v2950
      %s2984 = smul.u32 16, %s23
      %p2985 = scmp.lt.s32.totalorder %s22, 1
      %s2986 = scalar_select %p2985, %s22, 1
      %p2987 = scmp.lt.s32.totalorder %s2984, 15
      %s2988 = scalar_select %p2987, %s2984, 15
      %s2989 = smul.addr %s2988, 2
      %s2990 = smul.addr %s2986, 32
      %s2991 = sadd.s32 %s2989, %s2990
      %s2992 = smul.addr %s2991, 4
      %s2993 = scalar_lea.vmem %s7, %s2992
      // Predicated region
      $region49: #{pan_layer_forward.6} parent=47 // pred_check
        %p2994 = pneg %p202
      $region50: #{pan_layer_forward.6} parent=47 // pred_check_branch
        %2996 = sbr.rel (%p2994) target = $region52
      $region51: #{pan_layer_forward.6} parent=47 // pred_region
        %s2997 = smul.u32 16, %s23
      $region52: #{pan_layer_forward.6} parent=47 // pred_fallthru
        _
    $region48: #{pan_layer_forward.6} parent=5 // pred_fallthru
      _
    %p2998 = scmp.le.s32.totalorder 2, %s13
    // Predicated region
    $region53: #{pan_layer_forward.6} parent=5 // pred_check
      %p2999 = pneg %p2998
    $region54: #{pan_layer_forward.6} parent=5 // pred_check_branch
      %3001 = sbr.rel (%p2999) target = $region56
    $region55: #{pan_layer_forward.6} parent=5 // pred_region
      %s3002 = ssub.s32 %s13, 2
      // Predicated region
      $region57: #{pan_layer_forward.6} parent=55 // pred_check
        %p3003 = pneg %p208
      $region58: #{pan_layer_forward.6} parent=55 // pred_check_branch
        %3005 = sbr.rel (%p3003) target = $region60
      $region59: #{pan_layer_forward.6} parent=55 // pred_region
        %s3006 = smul.u32 16, %s25
        %p3007 = scmp.lt.s32.totalorder %s24, 1
        %s3008 = scalar_select %p3007, %s24, 1
        %p3009 = scmp.lt.s32.totalorder %s3006, 15
        %s3010 = scalar_select %p3009, %s3006, 15
        %s3011 = smul.addr %s3010, 2
        %s3012 = smul.addr %s3008, 32
        %s3013 = sadd.s32 %s3011, %s3012
        %s3014 = smul.addr %s3013, 4
        %s3015 = scalar_lea.vmem %s7, %s3014
      $region60: #{pan_layer_forward.6} parent=55 // pred_fallthru
        _
    $region56: #{pan_layer_forward.6} parent=5 // pred_fallthru
      _
  $region6: #{pan_layer_forward.6} parent=0 // loop_footer
    %s17 = sadd.s32 1, %s13
  $region7: #{pan_layer_forward.6} parent=0 // loop_footer_branch
    %12 = sbr.rel target = $region3
  $region8: #{pan_layer_forward.6} parent=0 // loop_exit
    _

</llo_original>
